<compile_context>
chip_gen: v7x
topology: tpu7x:2x2x1
jax: 0.10.0
libtpu: 0.0.40
codegen_flags: <defaults>
</compile_context>

<pallas_src>
import functools

import jax
import jax.numpy as jnp
import numpy as np
from jax.experimental import pallas as pl
from jax.experimental.pallas import tpu as pltpu


# ----------------------------------------------------------------------------
# Pallas kernels: whole-tile matmul (+bias, optional ReLU), single and chained.
# bf16 MXU inputs, f32 accumulate / epilogue.
# ----------------------------------------------------------------------------
def _mm1_kernel(x_ref, w_ref, b_ref, o_ref, *, relu):
    acc = jnp.dot(x_ref[...].astype(jnp.bfloat16), w_ref[...],
                  preferred_element_type=jnp.float32)
    acc = acc + b_ref[...]
    if relu:
        acc = jnp.maximum(acc, 0.0)
    o_ref[...] = acc.astype(o_ref.dtype)


def _mm2_kernel(x_ref, w1_ref, b1_ref, w2_ref, b2_ref, o_ref, *, relu1, relu2):
    h = jnp.dot(x_ref[...].astype(jnp.bfloat16), w1_ref[...],
                preferred_element_type=jnp.float32) + b1_ref[...]
    if relu1:
        h = jnp.maximum(h, 0.0)
    y = jnp.dot(h.astype(jnp.bfloat16), w2_ref[...],
                preferred_element_type=jnp.float32) + b2_ref[...]
    if relu2:
        y = jnp.maximum(y, 0.0)
    o_ref[...] = y.astype(o_ref.dtype)


def matmul_bias(x, w, b, *, relu):
    """x:(M,K) f32, w:(K,N) bf16, b:(1,N) f32 -> (M,N) f32.  Whole-tile, no padding."""
    M, K = x.shape
    K2, N = w.shape
    assert K == K2 and b.shape == (1, N)
    return pl.pallas_call(
        functools.partial(_mm1_kernel, relu=relu),
        out_shape=jax.ShapeDtypeStruct((M, N), jnp.float32),
        grid=(1,),
        in_specs=[
            pl.BlockSpec((M, K), lambda i: (0, 0)),
            pl.BlockSpec((K, N), lambda i: (0, 0)),
            pl.BlockSpec((1, N), lambda i: (0, 0)),
        ],
        out_specs=pl.BlockSpec((M, N), lambda i: (0, 0)),
        compiler_params=pltpu.CompilerParams(
            dimension_semantics=("arbitrary",)),
    )(x, w, b)


def matmul2_bias(x, w1, b1, w2, b2, *, relu1, relu2, vmem_limit_bytes=None):
    """Fused  act2(act1(x@w1+b1) @ w2 + b2); intermediates never leave VMEM."""
    M, K = x.shape
    K2, H = w1.shape
    H2, N = w2.shape
    assert K == K2 and H == H2 and b1.shape == (1, H) and b2.shape == (1, N)
    cp = dict(dimension_semantics=("arbitrary",))
    if vmem_limit_bytes is not None:
        cp["vmem_limit_bytes"] = vmem_limit_bytes
    return pl.pallas_call(
        functools.partial(_mm2_kernel, relu1=relu1, relu2=relu2),
        out_shape=jax.ShapeDtypeStruct((M, N), jnp.float32),
        grid=(1,),
        in_specs=[
            pl.BlockSpec((M, K), lambda i: (0, 0)),
            pl.BlockSpec((K, H), lambda i: (0, 0)),
            pl.BlockSpec((1, H), lambda i: (0, 0)),
            pl.BlockSpec((H, N), lambda i: (0, 0)),
            pl.BlockSpec((1, N), lambda i: (0, 0)),
        ],
        out_specs=pl.BlockSpec((M, N), lambda i: (0, 0)),
        compiler_params=pltpu.CompilerParams(**cp),
    )(x, w1, b1, w2, b2)


# ----------------------------------------------------------------------------
# im2col in NHWC: pad + strided slices + concat along channels.  Patch column
# ordering is (kh, kw, Cin), matching the one-time weight re-layout.
# ----------------------------------------------------------------------------
def im2col_nhwc(x, kh, kw, stride, pad):
    N, H, W, C = x.shape
    xp = jnp.pad(x, ((0, 0), (pad, pad), (pad, pad), (0, 0)))
    Hp, Wp = H + 2 * pad, W + 2 * pad
    OH = (Hp - kh) // stride + 1
    OW = (Wp - kw) // stride + 1
    cols = []
    for i in range(kh):
        for j in range(kw):
            cols.append(xp[:, i:i + stride * OH:stride, j:j + stride * OW:stride, :])
    patches = jnp.concatenate(cols, axis=-1)          # (N, OH, OW, kh*kw*C)
    return patches.reshape(N * OH * OW, kh * kw * C), OH, OW


# ----------------------------------------------------------------------------
# Parameter init (deterministic, PyTorch-style uniform(-1/sqrt(fan_in), ...)),
# stored in PyTorch layouts; prepare_params() re-lays them out ONCE for the kernels.
# ----------------------------------------------------------------------------
def init_params(key, input_channel, num_actions):
    ks = jax.random.split(key, 10)

    def uni(k, shape, fan_in):
        bound = 1.0 / np.sqrt(fan_in)
        return jax.random.uniform(k, shape, jnp.float32, -bound, bound)

    p = {}
    p["w1"] = uni(ks[0], (32, input_channel, 4, 4), input_channel * 16)
    p["b1"] = uni(ks[1], (32,), input_channel * 16)
    p["w2"] = uni(ks[2], (64, 32, 3, 3), 32 * 9)
    p["b2"] = uni(ks[3], (64,), 32 * 9)
    p["w3"] = uni(ks[4], (64, 64, 1, 1), 64)
    p["b3"] = uni(ks[5], (64,), 64)
    p["fc1_w"] = uni(ks[6], (512, 64 * 7 * 11), 64 * 7 * 11)
    p["fc1_b"] = uni(ks[7], (512,), 64 * 7 * 11)
    p["fc2_w"] = uni(ks[8], (num_actions, 512), 512)
    p["fc2_b"] = uni(ks[9], (num_actions,), 512)
    return p


def prepare_params(p):
    """One-time weight re-layout + bf16 cast (never repeated in the forward pass)."""
    def conv_w(w):
        # (Cout, Cin, kh, kw) -> (kh*kw*Cin, Cout), rows ordered (kh, kw, Cin).
        cout, cin, kh, kw = w.shape
        return jnp.transpose(w, (2, 3, 1, 0)).reshape(kh * kw * cin, cout) \
                  .astype(jnp.bfloat16)

    prep = {
        "w1": conv_w(p["w1"]), "b1": p["b1"].reshape(1, -1),
        "w2": conv_w(p["w2"]), "b2": p["b2"].reshape(1, -1),
        "w3": conv_w(p["w3"]), "b3": p["b3"].reshape(1, -1),
    }
    # fc1 weight is (512, 64*7*11) with PyTorch C-major flatten (c, h, w).  Our
    # activations are channels-last, flattened as (h, w, c) -> permute rows once.
    fc1 = p["fc1_w"].reshape(512, 64, 7, 11)           # [out, c, h, w]
    fc1 = jnp.transpose(fc1, (2, 3, 1, 0)).reshape(7 * 11 * 64, 512)
    prep["fc1_w"] = fc1.astype(jnp.bfloat16)
    prep["fc1_b"] = p["fc1_b"].reshape(1, -1)
    prep["fc2_w"] = jnp.transpose(p["fc2_w"]).astype(jnp.bfloat16)   # (512, A)
    prep["fc2_b"] = p["fc2_b"].reshape(1, -1)
    return prep


# ----------------------------------------------------------------------------
# Forward pass (matches CNN.forward), fully jitted: 3 pallas_calls total.
# ----------------------------------------------------------------------------
@jax.jit
def cnn_forward(prep, x):
    # Single NCHW -> NHWC transpose; everything after stays channels-last.
    x = jnp.transpose(x, (0, 2, 3, 1))
    n = x.shape[0]

    # conv1 (k=4, s=4, p=1) + ReLU
    p1, oh1, ow1 = im2col_nhwc(x, 4, 4, 4, 1)
    y1 = matmul_bias(p1, prep["w1"], prep["b1"], relu=True)
    y1 = y1.reshape(n, oh1, ow1, -1)

    # conv2 (k=3, s=3, p=1) + ReLU  fused with  conv3 (1x1, s=1, p=1) + ReLU
    p2, oh2, ow2 = im2col_nhwc(y1, 3, 3, 3, 1)
    y3 = matmul2_bias(p2, prep["w2"], prep["b2"], prep["w3"], prep["b3"],
                      relu1=True, relu2=True)
    y3 = y3.reshape(n, oh2, ow2, -1)

    # conv3's padding=1 ring sees zero input, so its value is relu(b3) per channel.
    ring = jnp.maximum(prep["b3"], 0.0).reshape(-1)
    y3 = jnp.pad(y3 - ring, ((0, 0), (1, 1), (1, 1), (0, 0))) + ring

    # flatten (fc1 weight rows were permuted at prep time to match this ordering)
    flat = y3.reshape(n, -1)

    # fc1 + fc2 fused (no activation between the two Linears, per the module)
    out = matmul2_bias(flat, prep["fc1_w"], prep["fc1_b"],
                       prep["fc2_w"], prep["fc2_b"],
                       relu1=False, relu2=False,
                       vmem_limit_bytes=32 * 1024 * 1024)
    return out


if __name__ == "__main__":
    batch, input_channel, num_actions = 2, 4, 6
    H, W = 52, 100  # yields 7x11 spatial after layer1, matching Linear(64*7*11, 512)

    key = jax.random.PRNGKey(0)
    kx, kp = jax.random.split(key)
    x = jax.random.normal(kx, (batch, input_channel, H, W), dtype=jnp.float32)
    params = init_params(kp, input_channel, num_actions)
    prep = prepare_params(params)          # one-time re-layout / bf16 cast

    out = cnn_forward(prep, x)
    out = jax.block_until_ready(out)
    assert out.shape == (batch, num_actions), out.shape
    assert bool(jnp.all(jnp.isfinite(out)))
    print("KERNEL_OK")
</pallas_src>

<mosaic_0001>
module attributes {stable_mosaic.version = 11 : i64} {
  func.func @_mm1_kernel(%arg0: i32, %arg1: memref<650x64xf32, #tpu.memory_space<vmem>>, %arg2: memref<64x32xbf16, #tpu.memory_space<vmem>>, %arg3: memref<1x32xf32, #tpu.memory_space<vmem>>, %arg4: memref<650x32xf32, #tpu.memory_space<vmem>>) attributes {dimension_semantics = [#tpu.dimension_semantics<arbitrary>], iteration_bounds = array<i64: 1>, scalar_prefetch = 0 : i64, scratch_operands = 0 : i64, tpu.core_type = #tpu.core_type<tc>, window_params = [{pipeline_mode = #tpu.pipeline_mode<synchronous>, transform_indices = @transform_0, window_bounds = array<i64: 650, 64>}, {pipeline_mode = #tpu.pipeline_mode<synchronous>, transform_indices = @transform_1, window_bounds = array<i64: 64, 32>}, {pipeline_mode = #tpu.pipeline_mode<synchronous>, transform_indices = @transform_2, window_bounds = array<i64: 1, 32>}, {pipeline_mode = #tpu.pipeline_mode<synchronous>, transform_indices = @transform_3, window_bounds = array<i64: 650, 32>}]} {
    %c0 = arith.constant 0 : index
    %c0_0 = arith.constant 0 : index
    %0 = vector.load %arg1[%c0, %c0_0] : memref<650x64xf32, #tpu.memory_space<vmem>>, vector<650x64xf32>
    %1 = arith.truncf %0 : vector<650x64xf32> to vector<650x64xbf16>
    %c0_1 = arith.constant 0 : index
    %c0_2 = arith.constant 0 : index
    %2 = vector.load %arg2[%c0_1, %c0_2] : memref<64x32xbf16, #tpu.memory_space<vmem>>, vector<64x32xbf16>
    %cst = arith.constant dense<0.000000e+00> : vector<650x32xf32>
    %3 = tpu.matmul %1, %2, %cst {dimension_numbers = #tpu.dot_dimension_numbers<[1], [0], [0], [1], [0, 0, 1, 1], [], []>} : vector<650x64xbf16>, vector<64x32xbf16>, vector<650x32xf32> -> vector<650x32xf32>
    %c0_3 = arith.constant 0 : index
    %c0_4 = arith.constant 0 : index
    %4 = vector.load %arg3[%c0_3, %c0_4] : memref<1x32xf32, #tpu.memory_space<vmem>>, vector<1x32xf32>
    %5 = vector.broadcast %4 : vector<1x32xf32> to vector<650x32xf32>
    %6 = arith.addf %3, %5 : vector<650x32xf32>
    %cst_5 = arith.constant 0.000000e+00 : f32
    %7 = vector.broadcast %cst_5 : f32 to vector<650x32xf32>
    %8 = arith.maximumf %6, %7 : vector<650x32xf32>
    %c0_6 = arith.constant 0 : index
    %c0_7 = arith.constant 0 : index
    %9 = vector.load %arg4[%c0_6, %c0_7] : memref<650x32xf32, #tpu.memory_space<vmem>>, vector<650x32xf32>
    tpu.vector_store %arg4[%c0_6, %c0_7], %8 {strides = array<i32>} : memref<650x32xf32, #tpu.memory_space<vmem>>, vector<650x32xf32>,
    return
  }
  func.func @transform_0(%arg0: i32) -> (i32, i32) {
    %c0_i32 = arith.constant 0 : i32
    %c0_i32_0 = arith.constant 0 : i32
    %c0_i32_1 = arith.constant 0 : i32
    return %c0_i32, %c0_i32_0 : i32, i32
  }
  func.func @transform_1(%arg0: i32) -> (i32, i32) {
    %c0_i32 = arith.constant 0 : i32
    %c0_i32_0 = arith.constant 0 : i32
    %c0_i32_1 = arith.constant 0 : i32
    return %c0_i32, %c0_i32_0 : i32, i32
  }
  func.func @transform_2(%arg0: i32) -> (i32, i32) {
    %c0_i32 = arith.constant 0 : i32
    %c0_i32_0 = arith.constant 0 : i32
    %c0_i32_1 = arith.constant 0 : i32
    return %c0_i32, %c0_i32_0 : i32, i32
  }
  func.func @transform_3(%arg0: i32) -> (i32, i32) {
    %c0_i32 = arith.constant 0 : i32
    %c0_i32_0 = arith.constant 0 : i32
    %c0_i32_1 = arith.constant 0 : i32
    return %c0_i32, %c0_i32_0 : i32, i32
  }
}

module attributes {stable_mosaic.version = 11 : i64} {
  func.func @_mm2_kernel(%arg0: i32, %arg1: memref<90x288xf32, #tpu.memory_space<vmem>>, %arg2: memref<288x64xbf16, #tpu.memory_space<vmem>>, %arg3: memref<1x64xf32, #tpu.memory_space<vmem>>, %arg4: memref<64x64xbf16, #tpu.memory_space<vmem>>, %arg5: memref<1x64xf32, #tpu.memory_space<vmem>>, %arg6: memref<90x64xf32, #tpu.memory_space<vmem>>) attributes {dimension_semantics = [#tpu.dimension_semantics<arbitrary>], iteration_bounds = array<i64: 1>, scalar_prefetch = 0 : i64, scratch_operands = 0 : i64, tpu.core_type = #tpu.core_type<tc>, window_params = [{pipeline_mode = #tpu.pipeline_mode<synchronous>, transform_indices = @transform_0, window_bounds = array<i64: 90, 288>}, {pipeline_mode = #tpu.pipeline_mode<synchronous>, transform_indices = @transform_1, window_bounds = array<i64: 288, 64>}, {pipeline_mode = #tpu.pipeline_mode<synchronous>, transform_indices = @transform_2, window_bounds = array<i64: 1, 64>}, {pipeline_mode = #tpu.pipeline_mode<synchronous>, transform_indices = @transform_3, window_bounds = array<i64: 64, 64>}, {pipeline_mode = #tpu.pipeline_mode<synchronous>, transform_indices = @transform_4, window_bounds = array<i64: 1, 64>}, {pipeline_mode = #tpu.pipeline_mode<synchronous>, transform_indices = @transform_5, window_bounds = array<i64: 90, 64>}]} {
    %c0 = arith.constant 0 : index
    %c0_0 = arith.constant 0 : index
    %0 = vector.load %arg1[%c0, %c0_0] : memref<90x288xf32, #tpu.memory_space<vmem>>, vector<90x288xf32>
    %1 = arith.truncf %0 : vector<90x288xf32> to vector<90x288xbf16>
    %c0_1 = arith.constant 0 : index
    %c0_2 = arith.constant 0 : index
    %2 = vector.load %arg2[%c0_1, %c0_2] : memref<288x64xbf16, #tpu.memory_space<vmem>>, vector<288x64xbf16>
    %cst = arith.constant dense<0.000000e+00> : vector<90x64xf32>
    %3 = tpu.matmul %1, %2, %cst {dimension_numbers = #tpu.dot_dimension_numbers<[1], [0], [0], [1], [0, 0, 1, 1], [], []>} : vector<90x288xbf16>, vector<288x64xbf16>, vector<90x64xf32> -> vector<90x64xf32>
    %c0_3 = arith.constant 0 : index
    %c0_4 = arith.constant 0 : index
    %4 = vector.load %arg3[%c0_3, %c0_4] : memref<1x64xf32, #tpu.memory_space<vmem>>, vector<1x64xf32>
    %5 = vector.broadcast %4 : vector<1x64xf32> to vector<90x64xf32>
    %6 = arith.addf %3, %5 : vector<90x64xf32>
    %cst_5 = arith.constant 0.000000e+00 : f32
    %7 = vector.broadcast %cst_5 : f32 to vector<90x64xf32>
    %8 = arith.maximumf %6, %7 : vector<90x64xf32>
    %9 = arith.truncf %8 : vector<90x64xf32> to vector<90x64xbf16>
    %c0_6 = arith.constant 0 : index
    %c0_7 = arith.constant 0 : index
    %10 = vector.load %arg4[%c0_6, %c0_7] : memref<64x64xbf16, #tpu.memory_space<vmem>>, vector<64x64xbf16>
    %cst_8 = arith.constant dense<0.000000e+00> : vector<90x64xf32>
    %11 = tpu.matmul %9, %10, %cst_8 {dimension_numbers = #tpu.dot_dimension_numbers<[1], [0], [0], [1], [0, 0, 1, 1], [], []>} : vector<90x64xbf16>, vector<64x64xbf16>, vector<90x64xf32> -> vector<90x64xf32>
    %c0_9 = arith.constant 0 : index
    %c0_10 = arith.constant 0 : index
    %12 = vector.load %arg5[%c0_9, %c0_10] : memref<1x64xf32, #tpu.memory_space<vmem>>, vector<1x64xf32>
    %13 = vector.broadcast %12 : vector<1x64xf32> to vector<90x64xf32>
    %14 = arith.addf %11, %13 : vector<90x64xf32>
    %cst_11 = arith.constant 0.000000e+00 : f32
    %15 = vector.broadcast %cst_11 : f32 to vector<90x64xf32>
    %16 = arith.maximumf %14, %15 : vector<90x64xf32>
    %c0_12 = arith.constant 0 : index
    %c0_13 = arith.constant 0 : index
    %17 = vector.load %arg6[%c0_12, %c0_13] : memref<90x64xf32, #tpu.memory_space<vmem>>, vector<90x64xf32>
    tpu.vector_store %arg6[%c0_12, %c0_13], %16 {strides = array<i32>} : memref<90x64xf32, #tpu.memory_space<vmem>>, vector<90x64xf32>,
    return
  }
  func.func @transform_0(%arg0: i32) -> (i32, i32) {
    %c0_i32 = arith.constant 0 : i32
    %c0_i32_0 = arith.constant 0 : i32
    %c0_i32_1 = arith.constant 0 : i32
    return %c0_i32, %c0_i32_0 : i32, i32
  }
  func.func @transform_1(%arg0: i32) -> (i32, i32) {
    %c0_i32 = arith.constant 0 : i32
    %c0_i32_0 = arith.constant 0 : i32
    %c0_i32_1 = arith.constant 0 : i32
    return %c0_i32, %c0_i32_0 : i32, i32
  }
  func.func @transform_2(%arg0: i32) -> (i32, i32) {
    %c0_i32 = arith.constant 0 : i32
    %c0_i32_0 = arith.constant 0 : i32
    %c0_i32_1 = arith.constant 0 : i32
    return %c0_i32, %c0_i32_0 : i32, i32
  }
  func.func @transform_3(%arg0: i32) -> (i32, i32) {
    %c0_i32 = arith.constant 0 : i32
    %c0_i32_0 = arith.constant 0 : i32
    %c0_i32_1 = arith.constant 0 : i32
    return %c0_i32, %c0_i32_0 : i32, i32
  }
  func.func @transform_4(%arg0: i32) -> (i32, i32) {
    %c0_i32 = arith.constant 0 : i32
    %c0_i32_0 = arith.constant 0 : i32
    %c0_i32_1 = arith.constant 0 : i32
    return %c0_i32, %c0_i32_0 : i32, i32
  }
  func.func @transform_5(%arg0: i32) -> (i32, i32) {
    %c0_i32 = arith.constant 0 : i32
    %c0_i32_0 = arith.constant 0 : i32
    %c0_i32_1 = arith.constant 0 : i32
    return %c0_i32, %c0_i32_0 : i32, i32
  }
}

module attributes {stable_mosaic.version = 11 : i64} {
  func.func @_mm2_kernel(%arg0: i32, %arg1: memref<2x4928xf32, #tpu.memory_space<vmem>>, %arg2: memref<4928x512xbf16, #tpu.memory_space<vmem>>, %arg3: memref<1x512xf32, #tpu.memory_space<vmem>>, %arg4: memref<512x6xbf16, #tpu.memory_space<vmem>>, %arg5: memref<1x6xf32, #tpu.memory_space<vmem>>, %arg6: memref<2x6xf32, #tpu.memory_space<vmem>>) attributes {dimension_semantics = [#tpu.dimension_semantics<arbitrary>], iteration_bounds = array<i64: 1>, scalar_prefetch = 0 : i64, scratch_operands = 0 : i64, tpu.core_type = #tpu.core_type<tc>, window_params = [{pipeline_mode = #tpu.pipeline_mode<synchronous>, transform_indices = @transform_0, window_bounds = array<i64: 2, 4928>}, {pipeline_mode = #tpu.pipeline_mode<synchronous>, transform_indices = @transform_1, window_bounds = array<i64: 4928, 512>}, {pipeline_mode = #tpu.pipeline_mode<synchronous>, transform_indices = @transform_2, window_bounds = array<i64: 1, 512>}, {pipeline_mode = #tpu.pipeline_mode<synchronous>, transform_indices = @transform_3, window_bounds = array<i64: 512, 6>}, {pipeline_mode = #tpu.pipeline_mode<synchronous>, transform_indices = @transform_4, window_bounds = array<i64: 1, 6>}, {pipeline_mode = #tpu.pipeline_mode<synchronous>, transform_indices = @transform_5, window_bounds = array<i64: 2, 6>}]} {
    %c0 = arith.constant 0 : index
    %c0_0 = arith.constant 0 : index
    %0 = vector.load %arg1[%c0, %c0_0] : memref<2x4928xf32, #tpu.memory_space<vmem>>, vector<2x4928xf32>
    %1 = arith.truncf %0 : vector<2x4928xf32> to vector<2x4928xbf16>
    %c0_1 = arith.constant 0 : index
    %c0_2 = arith.constant 0 : index
    %2 = vector.load %arg2[%c0_1, %c0_2] : memref<4928x512xbf16, #tpu.memory_space<vmem>>, vector<4928x512xbf16>
    %cst = arith.constant dense<0.000000e+00> : vector<2x512xf32>
    %3 = tpu.matmul %1, %2, %cst {dimension_numbers = #tpu.dot_dimension_numbers<[1], [0], [0], [1], [0, 0, 1, 1], [], []>} : vector<2x4928xbf16>, vector<4928x512xbf16>, vector<2x512xf32> -> vector<2x512xf32>
    %c0_3 = arith.constant 0 : index
    %c0_4 = arith.constant 0 : index
    %4 = vector.load %arg3[%c0_3, %c0_4] : memref<1x512xf32, #tpu.memory_space<vmem>>, vector<1x512xf32>
    %5 = vector.broadcast %4 : vector<1x512xf32> to vector<2x512xf32>
    %6 = arith.addf %3, %5 : vector<2x512xf32>
    %7 = arith.truncf %6 : vector<2x512xf32> to vector<2x512xbf16>
    %c0_5 = arith.constant 0 : index
    %c0_6 = arith.constant 0 : index
    %8 = vector.load %arg4[%c0_5, %c0_6] : memref<512x6xbf16, #tpu.memory_space<vmem>>, vector<512x6xbf16>
    %cst_7 = arith.constant dense<0.000000e+00> : vector<2x6xf32>
    %9 = tpu.matmul %7, %8, %cst_7 {dimension_numbers = #tpu.dot_dimension_numbers<[1], [0], [0], [1], [0, 0, 1, 1], [], []>} : vector<2x512xbf16>, vector<512x6xbf16>, vector<2x6xf32> -> vector<2x6xf32>
    %c0_8 = arith.constant 0 : index
    %c0_9 = arith.constant 0 : index
    %10 = vector.load %arg5[%c0_8, %c0_9] : memref<1x6xf32, #tpu.memory_space<vmem>>, vector<1x6xf32>
    %11 = vector.broadcast %10 : vector<1x6xf32> to vector<2x6xf32>
    %12 = arith.addf %9, %11 : vector<2x6xf32>
    %c0_10 = arith.constant 0 : index
    %c0_11 = arith.constant 0 : index
    %13 = vector.load %arg6[%c0_10, %c0_11] : memref<2x6xf32, #tpu.memory_space<vmem>>, vector<2x6xf32>
    tpu.vector_store %arg6[%c0_10, %c0_11], %12 {strides = array<i32>} : memref<2x6xf32, #tpu.memory_space<vmem>>, vector<2x6xf32>,
    return
  }
  func.func @transform_0(%arg0: i32) -> (i32, i32) {
    %c0_i32 = arith.constant 0 : i32
    %c0_i32_0 = arith.constant 0 : i32
    %c0_i32_1 = arith.constant 0 : i32
    return %c0_i32, %c0_i32_0 : i32, i32
  }
  func.func @transform_1(%arg0: i32) -> (i32, i32) {
    %c0_i32 = arith.constant 0 : i32
    %c0_i32_0 = arith.constant 0 : i32
    %c0_i32_1 = arith.constant 0 : i32
    return %c0_i32, %c0_i32_0 : i32, i32
  }
  func.func @transform_2(%arg0: i32) -> (i32, i32) {
    %c0_i32 = arith.constant 0 : i32
    %c0_i32_0 = arith.constant 0 : i32
    %c0_i32_1 = arith.constant 0 : i32
    return %c0_i32, %c0_i32_0 : i32, i32
  }
  func.func @transform_3(%arg0: i32) -> (i32, i32) {
    %c0_i32 = arith.constant 0 : i32
    %c0_i32_0 = arith.constant 0 : i32
    %c0_i32_1 = arith.constant 0 : i32
    return %c0_i32, %c0_i32_0 : i32, i32
  }
  func.func @transform_4(%arg0: i32) -> (i32, i32) {
    %c0_i32 = arith.constant 0 : i32
    %c0_i32_0 = arith.constant 0 : i32
    %c0_i32_1 = arith.constant 0 : i32
    return %c0_i32, %c0_i32_0 : i32, i32
  }
  func.func @transform_5(%arg0: i32) -> (i32, i32) {
    %c0_i32 = arith.constant 0 : i32
    %c0_i32_0 = arith.constant 0 : i32
    %c0_i32_1 = arith.constant 0 : i32
    return %c0_i32, %c0_i32_0 : i32, i32
  }
}

</mosaic_0001>

<llo_original>
// kernel: cnn_forward.3
$region0: #{cnn_forward.3}
  #allocation0 [shape = 'u32[]', space=smem, size = 0x4, offset = 0x4, fixed_abs, tag = 'smem constant byte address 0x4 - core index']
  #allocation1 [shape = 'u32[144,128]{1,0:T(1,128)}', space=vmem, size = 0x12000, scoped, tag = 'internal scratch']
  %s0 = inlined_call_operand.vmem [shape: f32[650,64], index: 0, kind: input, shape index: {}]
  %s1 = inlined_call_operand.vmem [shape: bf16[64,32], index: 1, kind: input, shape index: {}]
  %s2 = inlined_call_operand.vmem [shape: f32[1,32], index: 2, kind: input, shape index: {}]
  %s3 = inlined_call_operand.vmem [shape: f32[650,32], index: 3, kind: output, shape index: {}]
  %s4 = sld [smem:[#allocation0]]
  $region22: #{cnn_forward.3} parent=0
    _
  %s6 = ssub.s32 1, %s4
  %s7 = scalar_select 0, %s6, %s4
  // Predicated region
  $region2: #{cnn_forward.3} parent=0 // pred_check
    _
  $region3: #{cnn_forward.3} parent=0 // pred_check_branch
    %9 = sbr.rel (0) target = $region5
  $region4: #{cnn_forward.3} parent=0 // pred_region
    _
  $region5: #{cnn_forward.3} parent=0 // pred_fallthru
    _
  // Predicated region
  $region6: #{cnn_forward.3} parent=0 // pred_check
    _
  $region7: #{cnn_forward.3} parent=0 // pred_check_branch
    %11 = sbr.rel (0) target = $region9
  $region8: #{cnn_forward.3} parent=0 // pred_region
    _
  $region9: #{cnn_forward.3} parent=0 // pred_fallthru
    _
  // Predicated region
  $region10: #{cnn_forward.3} parent=0 // pred_check
    _
  $region11: #{cnn_forward.3} parent=0 // pred_check_branch
    %13 = sbr.rel (0) target = $region13
  $region12: #{cnn_forward.3} parent=0 // pred_region
    _
  $region13: #{cnn_forward.3} parent=0 // pred_fallthru
    _
  %v15 = vld [vmem:[%s0] sm:$0xff]
  %v16 = vld [vmem:[%s0 + $0x8] sm:$0xff]
  %v17 = vld [vmem:[%s0 + $0x10] sm:$0xff]
  %v18 = vld [vmem:[%s0 + $0x18] sm:$0xff]
  %v19 = vld [vmem:[%s0 + $0x20] sm:$0xff]
  %v20 = vld [vmem:[%s0 + $0x28] sm:$0xff]
  %v21 = vld [vmem:[%s0 + $0x30] sm:$0xff]
  %v22 = vld [vmem:[%s0 + $0x38] sm:$0xff]
  %v23 = vld [vmem:[%s0 + $0x40] sm:$0xff]
  %v24 = vld [vmem:[%s0 + $0x48] sm:$0xff]
  %v25 = vld [vmem:[%s0 + $0x50] sm:$0xff]
  %v26 = vld [vmem:[%s0 + $0x58] sm:$0xff]
  %v27 = vld [vmem:[%s0 + $0x60] sm:$0xff]
  %v28 = vld [vmem:[%s0 + $0x68] sm:$0xff]
  %v29 = vld [vmem:[%s0 + $0x70] sm:$0xff]
  %v30 = vld [vmem:[%s0 + $0x78] sm:$0xff]
  %v31 = vld [vmem:[%s0 + $0x80] sm:$0xff]
  %v32 = vld [vmem:[%s0 + $0x88] sm:$0xff]
  %v33 = vld [vmem:[%s0 + $0x90] sm:$0xff]
  %v34 = vld [vmem:[%s0 + $0x98] sm:$0xff]
  %v35 = vld [vmem:[%s0 + $0xa0] sm:$0xff]
  %v36 = vld [vmem:[%s0 + $0xa8] sm:$0xff]
  %v37 = vld [vmem:[%s0 + $0xb0] sm:$0xff]
  %v38 = vld [vmem:[%s0 + $0xb8] sm:$0xff]
  %v39 = vld [vmem:[%s0 + $0xc0] sm:$0xff]
  %v40 = vld [vmem:[%s0 + $0xc8] sm:$0xff]
  %v41 = vld [vmem:[%s0 + $0xd0] sm:$0xff]
  %v42 = vld [vmem:[%s0 + $0xd8] sm:$0xff]
  %v43 = vld [vmem:[%s0 + $0xe0] sm:$0xff]
  %v44 = vld [vmem:[%s0 + $0xe8] sm:$0xff]
  %v45 = vld [vmem:[%s0 + $0xf0] sm:$0xff]
  %v46 = vld [vmem:[%s0 + $0xf8] sm:$0xff]
  %v47 = vld [vmem:[%s0 + $0x100] sm:$0xff]
  %v48 = vld [vmem:[%s0 + $0x108] sm:$0xff]
  %v49 = vld [vmem:[%s0 + $0x110] sm:$0xff]
  %v50 = vld [vmem:[%s0 + $0x118] sm:$0xff]
  %v51 = vld [vmem:[%s0 + $0x120] sm:$0xff]
  %v52 = vld [vmem:[%s0 + $0x128] sm:$0xff]
  %v53 = vld [vmem:[%s0 + $0x130] sm:$0xff]
  %v54 = vld [vmem:[%s0 + $0x138] sm:$0xff]
  %v55 = vld [vmem:[%s0 + $0x140] sm:$0xff]
  %v56 = vld [vmem:[%s0 + $0x148] sm:$0xff]
  %v57 = vld [vmem:[%s0 + $0x150] sm:$0xff]
  %v58 = vld [vmem:[%s0 + $0x158] sm:$0xff]
  %v59 = vld [vmem:[%s0 + $0x160] sm:$0xff]
  %v60 = vld [vmem:[%s0 + $0x168] sm:$0xff]
  %v61 = vld [vmem:[%s0 + $0x170] sm:$0xff]
  %v62 = vld [vmem:[%s0 + $0x178] sm:$0xff]
  %v63 = vld [vmem:[%s0 + $0x180] sm:$0xff]
  %v64 = vld [vmem:[%s0 + $0x188] sm:$0xff]
  %v65 = vld [vmem:[%s0 + $0x190] sm:$0xff]
  %v66 = vld [vmem:[%s0 + $0x198] sm:$0xff]
  %v67 = vld [vmem:[%s0 + $0x1a0] sm:$0xff]
  %v68 = vld [vmem:[%s0 + $0x1a8] sm:$0xff]
  %v69 = vld [vmem:[%s0 + $0x1b0] sm:$0xff]
  %v70 = vld [vmem:[%s0 + $0x1b8] sm:$0xff]
  %v71 = vld [vmem:[%s0 + $0x1c0] sm:$0xff]
  %v72 = vld [vmem:[%s0 + $0x1c8] sm:$0xff]
  %v73 = vld [vmem:[%s0 + $0x1d0] sm:$0xff]
  %v74 = vld [vmem:[%s0 + $0x1d8] sm:$0xff]
  %v75 = vld [vmem:[%s0 + $0x1e0] sm:$0xff]
  %v76 = vld [vmem:[%s0 + $0x1e8] sm:$0xff]
  %v77 = vld [vmem:[%s0 + $0x1f0] sm:$0xff]
  %v78 = vld [vmem:[%s0 + $0x1f8] sm:$0xff]
  %v79 = vld [vmem:[%s0 + $0x200] sm:$0xff]
  %v80 = vld [vmem:[%s0 + $0x208] sm:$0xff]
  %v81 = vld [vmem:[%s0 + $0x210] sm:$0xff]
  %v82 = vld [vmem:[%s0 + $0x218] sm:$0xff]
  %v83 = vld [vmem:[%s0 + $0x220] sm:$0xff]
  %v84 = vld [vmem:[%s0 + $0x228] sm:$0xff]
  %v85 = vld [vmem:[%s0 + $0x230] sm:$0xff]
  %v86 = vld [vmem:[%s0 + $0x238] sm:$0xff]
  %v87 = vld [vmem:[%s0 + $0x240] sm:$0xff]
  %v88 = vld [vmem:[%s0 + $0x248] sm:$0xff]
  %v89 = vld [vmem:[%s0 + $0x250] sm:$0xff]
  %v90 = vld [vmem:[%s0 + $0x258] sm:$0xff]
  %v91 = vld [vmem:[%s0 + $0x260] sm:$0xff]
  %v92 = vld [vmem:[%s0 + $0x268] sm:$0xff]
  %v93 = vld [vmem:[%s0 + $0x270] sm:$0xff]
  %v94 = vld [vmem:[%s0 + $0x278] sm:$0xff]
  %v95 = vld [vmem:[%s0 + $0x280] sm:$0xff]
  %v96 = vld [vmem:[%s0 + $0x288] sm:$0x3]
  %v97 = vpack.c.bf16 %v16, %v15
  %v98 = vpack.c.bf16 %v18, %v17
  %v99 = vpack.c.bf16 %v20, %v19
  %v100 = vpack.c.bf16 %v22, %v21
  %v101 = vpack.c.bf16 %v24, %v23
  %v102 = vpack.c.bf16 %v26, %v25
  %v103 = vpack.c.bf16 %v28, %v27
  %v104 = vpack.c.bf16 %v30, %v29
  %v105 = vpack.c.bf16 %v32, %v31
  %v106 = vpack.c.bf16 %v34, %v33
  %v107 = vpack.c.bf16 %v36, %v35
  %v108 = vpack.c.bf16 %v38, %v37
  %v109 = vpack.c.bf16 %v40, %v39
  %v110 = vpack.c.bf16 %v42, %v41
  %v111 = vpack.c.bf16 %v44, %v43
  %v112 = vpack.c.bf16 %v46, %v45
  %v113 = vpack.c.bf16 %v48, %v47
  %v114 = vpack.c.bf16 %v50, %v49
  %v115 = vpack.c.bf16 %v52, %v51
  %v116 = vpack.c.bf16 %v54, %v53
  %v117 = vpack.c.bf16 %v56, %v55
  %v118 = vpack.c.bf16 %v58, %v57
  %v119 = vpack.c.bf16 %v60, %v59
  %v120 = vpack.c.bf16 %v62, %v61
  %v121 = vpack.c.bf16 %v64, %v63
  %v122 = vpack.c.bf16 %v66, %v65
  %v123 = vpack.c.bf16 %v68, %v67
  %v124 = vpack.c.bf16 %v70, %v69
  %v125 = vpack.c.bf16 %v72, %v71
  %v126 = vpack.c.bf16 %v74, %v73
  %v127 = vpack.c.bf16 %v76, %v75
  %v128 = vpack.c.bf16 %v78, %v77
  %v129 = vpack.c.bf16 %v80, %v79
  %v130 = vpack.c.bf16 %v82, %v81
  %v131 = vpack.c.bf16 %v84, %v83
  %v132 = vpack.c.bf16 %v86, %v85
  %v133 = vpack.c.bf16 %v88, %v87
  %v134 = vpack.c.bf16 %v90, %v89
  %v135 = vpack.c.bf16 %v92, %v91
  %v136 = vpack.c.bf16 %v94, %v93
  %v137 = vpack.c.bf16 %v96, %v95
  %v138 = vld [vmem:[%s1] sm:$0xf]
  %v139 = vld [vmem:[%s1 + $0x4] sm:$0xf]
  %v140 = vld [vmem:[%s1 + $0x8] sm:$0xf]
  %v141 = vld [vmem:[%s1 + $0xc] sm:$0xf]
  %v142 = vld [vmem:[%s1 + $0x10] sm:$0xf]
  %v143 = vld [vmem:[%s1 + $0x14] sm:$0xf]
  %v144 = vld [vmem:[%s1 + $0x18] sm:$0xf]
  %v145 = vld [vmem:[%s1 + $0x1c] sm:$0xf]
  %v146 = vld [vmem:[%s2] sm:$0x1]
  %v148 = vlaneseq
  %v149 = vshrl.u32 %v148, 7
  %v150 = vsub.s32 0, %v149
  %v151 = vrot.slane %v146, %v150
  %v161 = vunpack.c.l.b16 %v138
  %v162 = vunpack.c.l.b16 %v139
  %v163 = vunpack.c.l.b16 %v140
  %v164 = vunpack.c.l.b16 %v141
  %v165 = vunpack.c.l.b16 %v142
  %v166 = vunpack.c.l.b16 %v143
  %v167 = vunpack.c.l.b16 %v144
  %v168 = vunpack.c.l.b16 %v145
  %v169 = vpack.c.b16 %v162, %v161
  %v170 = vpack.c.b16 %v164, %v163
  %v171 = vpack.c.b16 %v166, %v165
  %v172 = vpack.c.b16 %v168, %v167
  %vm177 = vcmask 523264
  %v179 = vsel %vm177, %v97, 0
  %v182 = vsel %vm177, %v98, 0
  %v185 = vsel %vm177, %v99, 0
  %v188 = vsel %vm177, %v100, 0
  %v191 = vsel %vm177, %v101, 0
  %v194 = vsel %vm177, %v102, 0
  %v197 = vsel %vm177, %v103, 0
  %v200 = vsel %vm177, %v104, 0
  %v203 = vsel %vm177, %v105, 0
  %v206 = vsel %vm177, %v106, 0
  %v209 = vsel %vm177, %v107, 0
  %v212 = vsel %vm177, %v108, 0
  %v215 = vsel %vm177, %v109, 0
  %v218 = vsel %vm177, %v110, 0
  %v221 = vsel %vm177, %v111, 0
  %v224 = vsel %vm177, %v112, 0
  %v227 = vsel %vm177, %v113, 0
  %v230 = vsel %vm177, %v114, 0
  %v233 = vsel %vm177, %v115, 0
  %v236 = vsel %vm177, %v116, 0
  %v239 = vsel %vm177, %v117, 0
  %v242 = vsel %vm177, %v118, 0
  %v245 = vsel %vm177, %v119, 0
  %v248 = vsel %vm177, %v120, 0
  %v251 = vsel %vm177, %v121, 0
  %v254 = vsel %vm177, %v122, 0
  %v257 = vsel %vm177, %v123, 0
  %v260 = vsel %vm177, %v124, 0
  %v263 = vsel %vm177, %v125, 0
  %v266 = vsel %vm177, %v126, 0
  %v269 = vsel %vm177, %v127, 0
  %v272 = vsel %vm177, %v128, 0
  %v275 = vsel %vm177, %v129, 0
  %v278 = vsel %vm177, %v130, 0
  %v281 = vsel %vm177, %v131, 0
  %v284 = vsel %vm177, %v132, 0
  %v287 = vsel %vm177, %v133, 0
  %v290 = vsel %vm177, %v134, 0
  %v293 = vsel %vm177, %v135, 0
  %v296 = vsel %vm177, %v136, 0
  %v299 = vsel %vm177, %v137, 0
  %301 = vmatprep.subr.bf16.mxu0 0
  %302 = vmatpush1.bf16.msra.mxu0 %v169
  %303 = vmatprep.subr.bf16.mxu0 0
  %304 = vmatpush1.bf16.msra.mxu0 %v170
  %305 = vmatprep.subr.bf16.mxu0 0
  %306 = vmatpush1.bf16.msra.mxu0 %v171
  %307 = vmatprep.subr.bf16.mxu0 0
  %308 = vmatpush1.bf16.msra.mxu0 %v172
  %309 = vmatprep.subr.bf16.mxu0 0
  %310 = vmatpush1.bf16.msra.mxu0 0
  %311 = vmatprep.subr.bf16.mxu0 0
  %312 = vmatpush1.bf16.msra.mxu0 0
  %313 = vmatprep.subr.bf16.mxu0 0
  %314 = vmatpush1.bf16.msra.mxu0 0
  %315 = vmatprep.subr.bf16.mxu0 0
  %316 = vmatpush1.bf16.msra.mxu0 0
  %317 = vmatprep.subr.bf16.mxu0 0
  %318 = vmatpush1.bf16.msra.mxu0 0
  %319 = vmatprep.subr.bf16.mxu0 0
  %320 = vmatpush1.bf16.msra.mxu0 0
  %321 = vmatprep.subr.bf16.mxu0 0
  %322 = vmatpush1.bf16.msra.mxu0 0
  %323 = vmatprep.subr.bf16.mxu0 0
  %324 = vmatpush1.bf16.msra.mxu0 0
  %325 = vmatprep.subr.bf16.mxu0 0
  %326 = vmatpush1.bf16.msra.mxu0 0
  %327 = vmatprep.subr.bf16.mxu0 0
  %328 = vmatpush1.bf16.msra.mxu0 0
  %329 = vmatprep.subr.bf16.mxu0 0
  %330 = vmatpush1.bf16.msra.mxu0 0
  %331 = vmatprep.subr.bf16.mxu0 0
  %332 = vmatpush1.bf16.msra.mxu0 0
  %333 = vmatprep.mubr.bf16.mxu0 0
  %334 = vmatmul.mubr.bf16.gmra.mrb[0].mxu0 %v179
  %v335 = vpop.f32.mrb[0].mxu0
  %v336 = vadd.f32 %v151, %v335
  %v337 = vpop.f32.mrb[0].mxu0
  %v338 = vpop.f32.mrb[0].mxu0
  %v339 = vadd.f32 %v151, %v338
  %v340 = vpop.f32.mrb[0].mxu0
  %341 = vmatprep.mubr.bf16.mxu0 0
  %342 = vmatmul.mubr.bf16.gmra.mrb[0].mxu0 %v182
  %v343 = vpop.f32.mrb[0].mxu0
  %v344 = vadd.f32 %v151, %v343
  %v345 = vpop.f32.mrb[0].mxu0
  %v346 = vpop.f32.mrb[0].mxu0
  %v347 = vadd.f32 %v151, %v346
  %v348 = vpop.f32.mrb[0].mxu0
  %349 = vmatprep.mubr.bf16.mxu0 0
  %350 = vmatmul.mubr.bf16.gmra.mrb[0].mxu0 %v185
  %v351 = vpop.f32.mrb[0].mxu0
  %v352 = vadd.f32 %v151, %v351
  %v353 = vpop.f32.mrb[0].mxu0
  %v354 = vpop.f32.mrb[0].mxu0
  %v355 = vadd.f32 %v151, %v354
  %v356 = vpop.f32.mrb[0].mxu0
  %357 = vmatprep.mubr.bf16.mxu0 0
  %358 = vmatmul.mubr.bf16.gmra.mrb[0].mxu0 %v188
  %v359 = vpop.f32.mrb[0].mxu0
  %v360 = vadd.f32 %v151, %v359
  %v361 = vpop.f32.mrb[0].mxu0
  %v362 = vpop.f32.mrb[0].mxu0
  %v363 = vadd.f32 %v151, %v362
  %v364 = vpop.f32.mrb[0].mxu0
  %365 = vmatprep.mubr.bf16.mxu0 0
  %366 = vmatmul.mubr.bf16.gmra.mrb[0].mxu0 %v191
  %v367 = vpop.f32.mrb[0].mxu0
  %v368 = vadd.f32 %v151, %v367
  %v369 = vpop.f32.mrb[0].mxu0
  %v370 = vpop.f32.mrb[0].mxu0
  %v371 = vadd.f32 %v151, %v370
  %v372 = vpop.f32.mrb[0].mxu0
  %373 = vmatprep.mubr.bf16.mxu0 0
  %374 = vmatmul.mubr.bf16.gmra.mrb[0].mxu0 %v194
  %v375 = vpop.f32.mrb[0].mxu0
  %v376 = vadd.f32 %v151, %v375
  %v377 = vpop.f32.mrb[0].mxu0
  %v378 = vpop.f32.mrb[0].mxu0
  %v379 = vadd.f32 %v151, %v378
  %v380 = vpop.f32.mrb[0].mxu0
  %381 = vmatprep.mubr.bf16.mxu0 0
  %382 = vmatmul.mubr.bf16.gmra.mrb[0].mxu0 %v197
  %v383 = vpop.f32.mrb[0].mxu0
  %v384 = vadd.f32 %v151, %v383
  %v385 = vpop.f32.mrb[0].mxu0
  %v386 = vpop.f32.mrb[0].mxu0
  %v387 = vadd.f32 %v151, %v386
  %v388 = vpop.f32.mrb[0].mxu0
  %389 = vmatprep.mubr.bf16.mxu0 0
  %390 = vmatmul.mubr.bf16.gmra.mrb[0].mxu0 %v200
  %v391 = vpop.f32.mrb[0].mxu0
  %v392 = vadd.f32 %v151, %v391
  %v393 = vpop.f32.mrb[0].mxu0
  %v394 = vpop.f32.mrb[0].mxu0
  %v395 = vadd.f32 %v151, %v394
  %v396 = vpop.f32.mrb[0].mxu0
  %397 = vmatprep.mubr.bf16.mxu0 0
  %398 = vmatmul.mubr.bf16.gmra.mrb[0].mxu0 %v203
  %v399 = vpop.f32.mrb[0].mxu0
  %v400 = vadd.f32 %v151, %v399
  %v401 = vpop.f32.mrb[0].mxu0
  %v402 = vpop.f32.mrb[0].mxu0
  %v403 = vadd.f32 %v151, %v402
  %v404 = vpop.f32.mrb[0].mxu0
  %405 = vmatprep.mubr.bf16.mxu0 0
  %406 = vmatmul.mubr.bf16.gmra.mrb[0].mxu0 %v206
  %v407 = vpop.f32.mrb[0].mxu0
  %v408 = vadd.f32 %v151, %v407
  %v409 = vpop.f32.mrb[0].mxu0
  %v410 = vpop.f32.mrb[0].mxu0
  %v411 = vadd.f32 %v151, %v410
  %v412 = vpop.f32.mrb[0].mxu0
  %413 = vmatprep.mubr.bf16.mxu0 0
  %414 = vmatmul.mubr.bf16.gmra.mrb[0].mxu0 %v209
  %v415 = vpop.f32.mrb[0].mxu0
  %v416 = vadd.f32 %v151, %v415
  %v417 = vpop.f32.mrb[0].mxu0
  %v418 = vpop.f32.mrb[0].mxu0
  %v419 = vadd.f32 %v151, %v418
  %v420 = vpop.f32.mrb[0].mxu0
  %421 = vmatprep.mubr.bf16.mxu0 0
  %422 = vmatmul.mubr.bf16.gmra.mrb[0].mxu0 %v212
  %v423 = vpop.f32.mrb[0].mxu0
  %v424 = vadd.f32 %v151, %v423
  %v425 = vpop.f32.mrb[0].mxu0
  %v426 = vpop.f32.mrb[0].mxu0
  %v427 = vadd.f32 %v151, %v426
  %v428 = vpop.f32.mrb[0].mxu0
  %429 = vmatprep.mubr.bf16.mxu0 0
  %430 = vmatmul.mubr.bf16.gmra.mrb[0].mxu0 %v215
  %v431 = vpop.f32.mrb[0].mxu0
  %v432 = vadd.f32 %v151, %v431
  %v433 = vpop.f32.mrb[0].mxu0
  %v434 = vpop.f32.mrb[0].mxu0
  %v435 = vadd.f32 %v151, %v434
  %v436 = vpop.f32.mrb[0].mxu0
  %437 = vmatprep.mubr.bf16.mxu0 0
  %438 = vmatmul.mubr.bf16.gmra.mrb[0].mxu0 %v218
  %v439 = vpop.f32.mrb[0].mxu0
  %v440 = vadd.f32 %v151, %v439
  %v441 = vpop.f32.mrb[0].mxu0
  %v442 = vpop.f32.mrb[0].mxu0
  %v443 = vadd.f32 %v151, %v442
  %v444 = vpop.f32.mrb[0].mxu0
  %445 = vmatprep.mubr.bf16.mxu0 0
  %446 = vmatmul.mubr.bf16.gmra.mrb[0].mxu0 %v221
  %v447 = vpop.f32.mrb[0].mxu0
  %v448 = vadd.f32 %v151, %v447
  %v449 = vpop.f32.mrb[0].mxu0
  %v450 = vpop.f32.mrb[0].mxu0
  %v451 = vadd.f32 %v151, %v450
  %v452 = vpop.f32.mrb[0].mxu0
  %453 = vmatprep.mubr.bf16.mxu0 0
  %454 = vmatmul.mubr.bf16.gmra.mrb[0].mxu0 %v224
  %v455 = vpop.f32.mrb[0].mxu0
  %v456 = vadd.f32 %v151, %v455
  %v457 = vpop.f32.mrb[0].mxu0
  %v458 = vpop.f32.mrb[0].mxu0
  %v459 = vadd.f32 %v151, %v458
  %v460 = vpop.f32.mrb[0].mxu0
  %461 = vmatprep.mubr.bf16.mxu0 0
  %462 = vmatmul.mubr.bf16.gmra.mrb[0].mxu0 %v227
  %v463 = vpop.f32.mrb[0].mxu0
  %v464 = vadd.f32 %v151, %v463
  %v465 = vpop.f32.mrb[0].mxu0
  %v466 = vpop.f32.mrb[0].mxu0
  %v467 = vadd.f32 %v151, %v466
  %v468 = vpop.f32.mrb[0].mxu0
  %469 = vmatprep.mubr.bf16.mxu0 0
  %470 = vmatmul.mubr.bf16.gmra.mrb[0].mxu0 %v230
  %v471 = vpop.f32.mrb[0].mxu0
  %v472 = vadd.f32 %v151, %v471
  %v473 = vpop.f32.mrb[0].mxu0
  %v474 = vpop.f32.mrb[0].mxu0
  %v475 = vadd.f32 %v151, %v474
  %v476 = vpop.f32.mrb[0].mxu0
  %477 = vmatprep.mubr.bf16.mxu0 0
  %478 = vmatmul.mubr.bf16.gmra.mrb[0].mxu0 %v233
  %v479 = vpop.f32.mrb[0].mxu0
  %v480 = vadd.f32 %v151, %v479
  %v481 = vpop.f32.mrb[0].mxu0
  %v482 = vpop.f32.mrb[0].mxu0
  %v483 = vadd.f32 %v151, %v482
  %v484 = vpop.f32.mrb[0].mxu0
  %485 = vmatprep.mubr.bf16.mxu0 0
  %486 = vmatmul.mubr.bf16.gmra.mrb[0].mxu0 %v236
  %v487 = vpop.f32.mrb[0].mxu0
  %v488 = vadd.f32 %v151, %v487
  %v489 = vpop.f32.mrb[0].mxu0
  %v490 = vpop.f32.mrb[0].mxu0
  %v491 = vadd.f32 %v151, %v490
  %v492 = vpop.f32.mrb[0].mxu0
  %493 = vmatprep.mubr.bf16.mxu0 0
  %494 = vmatmul.mubr.bf16.gmra.mrb[0].mxu0 %v239
  %v495 = vpop.f32.mrb[0].mxu0
  %v496 = vadd.f32 %v151, %v495
  %v497 = vpop.f32.mrb[0].mxu0
  %v498 = vpop.f32.mrb[0].mxu0
  %v499 = vadd.f32 %v151, %v498
  %v500 = vpop.f32.mrb[0].mxu0
  %501 = vmatprep.mubr.bf16.mxu0 0
  %502 = vmatmul.mubr.bf16.gmra.mrb[0].mxu0 %v242
  %v503 = vpop.f32.mrb[0].mxu0
  %v504 = vadd.f32 %v151, %v503
  %v505 = vpop.f32.mrb[0].mxu0
  %v506 = vpop.f32.mrb[0].mxu0
  %v507 = vadd.f32 %v151, %v506
  %v508 = vpop.f32.mrb[0].mxu0
  %509 = vmatprep.mubr.bf16.mxu0 0
  %510 = vmatmul.mubr.bf16.gmra.mrb[0].mxu0 %v245
  %v511 = vpop.f32.mrb[0].mxu0
  %v512 = vadd.f32 %v151, %v511
  %v513 = vpop.f32.mrb[0].mxu0
  %v514 = vpop.f32.mrb[0].mxu0
  %v515 = vadd.f32 %v151, %v514
  %v516 = vpop.f32.mrb[0].mxu0
  %517 = vmatprep.mubr.bf16.mxu0 0
  %518 = vmatmul.mubr.bf16.gmra.mrb[0].mxu0 %v248
  %v519 = vpop.f32.mrb[0].mxu0
  %v520 = vadd.f32 %v151, %v519
  %v521 = vpop.f32.mrb[0].mxu0
  %v522 = vpop.f32.mrb[0].mxu0
  %v523 = vadd.f32 %v151, %v522
  %v524 = vpop.f32.mrb[0].mxu0
  %525 = vmatprep.mubr.bf16.mxu0 0
  %526 = vmatmul.mubr.bf16.gmra.mrb[0].mxu0 %v251
  %v527 = vpop.f32.mrb[0].mxu0
  %v528 = vadd.f32 %v151, %v527
  %v529 = vpop.f32.mrb[0].mxu0
  %v530 = vpop.f32.mrb[0].mxu0
  %v531 = vadd.f32 %v151, %v530
  %v532 = vpop.f32.mrb[0].mxu0
  %533 = vmatprep.mubr.bf16.mxu0 0
  %534 = vmatmul.mubr.bf16.gmra.mrb[0].mxu0 %v254
  %v535 = vpop.f32.mrb[0].mxu0
  %v536 = vadd.f32 %v151, %v535
  %v537 = vpop.f32.mrb[0].mxu0
  %v538 = vpop.f32.mrb[0].mxu0
  %v539 = vadd.f32 %v151, %v538
  %v540 = vpop.f32.mrb[0].mxu0
  %541 = vmatprep.mubr.bf16.mxu0 0
  %542 = vmatmul.mubr.bf16.gmra.mrb[0].mxu0 %v257
  %v543 = vpop.f32.mrb[0].mxu0
  %v544 = vadd.f32 %v151, %v543
  %v545 = vpop.f32.mrb[0].mxu0
  %v546 = vpop.f32.mrb[0].mxu0
  %v547 = vadd.f32 %v151, %v546
  %v548 = vpop.f32.mrb[0].mxu0
  %549 = vmatprep.mubr.bf16.mxu0 0
  %550 = vmatmul.mubr.bf16.gmra.mrb[0].mxu0 %v260
  %v551 = vpop.f32.mrb[0].mxu0
  %v552 = vadd.f32 %v151, %v551
  %v553 = vpop.f32.mrb[0].mxu0
  %v554 = vpop.f32.mrb[0].mxu0
  %v555 = vadd.f32 %v151, %v554
  %v556 = vpop.f32.mrb[0].mxu0
  %557 = vmatprep.mubr.bf16.mxu0 0
  %558 = vmatmul.mubr.bf16.gmra.mrb[0].mxu0 %v263
  %v559 = vpop.f32.mrb[0].mxu0
  %v560 = vadd.f32 %v151, %v559
  %v561 = vpop.f32.mrb[0].mxu0
  %v562 = vpop.f32.mrb[0].mxu0
  %v563 = vadd.f32 %v151, %v562
  %v564 = vpop.f32.mrb[0].mxu0
  %565 = vmatprep.mubr.bf16.mxu0 0
  %566 = vmatmul.mubr.bf16.gmra.mrb[0].mxu0 %v266
  %v567 = vpop.f32.mrb[0].mxu0
  %v568 = vadd.f32 %v151, %v567
  %v569 = vpop.f32.mrb[0].mxu0
  %v570 = vpop.f32.mrb[0].mxu0
  %v571 = vadd.f32 %v151, %v570
  %v572 = vpop.f32.mrb[0].mxu0
  %573 = vmatprep.mubr.bf16.mxu0 0
  %574 = vmatmul.mubr.bf16.gmra.mrb[0].mxu0 %v269
  %v575 = vpop.f32.mrb[0].mxu0
  %v576 = vadd.f32 %v151, %v575
  %v577 = vpop.f32.mrb[0].mxu0
  %v578 = vpop.f32.mrb[0].mxu0
  %v579 = vadd.f32 %v151, %v578
  %v580 = vpop.f32.mrb[0].mxu0
  %581 = vmatprep.mubr.bf16.mxu0 0
  %582 = vmatmul.mubr.bf16.gmra.mrb[0].mxu0 %v272
  %v583 = vpop.f32.mrb[0].mxu0
  %v584 = vadd.f32 %v151, %v583
  %v585 = vpop.f32.mrb[0].mxu0
  %v586 = vpop.f32.mrb[0].mxu0
  %v587 = vadd.f32 %v151, %v586
  %v588 = vpop.f32.mrb[0].mxu0
  %589 = vmatprep.mubr.bf16.mxu0 0
  %590 = vmatmul.mubr.bf16.gmra.mrb[0].mxu0 %v275
  %v591 = vpop.f32.mrb[0].mxu0
  %v592 = vadd.f32 %v151, %v591
  %v593 = vpop.f32.mrb[0].mxu0
  %v594 = vpop.f32.mrb[0].mxu0
  %v595 = vadd.f32 %v151, %v594
  %v596 = vpop.f32.mrb[0].mxu0
  %597 = vmatprep.mubr.bf16.mxu0 0
  %598 = vmatmul.mubr.bf16.gmra.mrb[0].mxu0 %v278
  %v599 = vpop.f32.mrb[0].mxu0
  %v600 = vadd.f32 %v151, %v599
  %v601 = vpop.f32.mrb[0].mxu0
  %v602 = vpop.f32.mrb[0].mxu0
  %v603 = vadd.f32 %v151, %v602
  %v604 = vpop.f32.mrb[0].mxu0
  %605 = vmatprep.mubr.bf16.mxu0 0
  %606 = vmatmul.mubr.bf16.gmra.mrb[0].mxu0 %v281
  %v607 = vpop.f32.mrb[0].mxu0
  %v608 = vadd.f32 %v151, %v607
  %v609 = vpop.f32.mrb[0].mxu0
  %v610 = vpop.f32.mrb[0].mxu0
  %v611 = vadd.f32 %v151, %v610
  %v612 = vpop.f32.mrb[0].mxu0
  %613 = vmatprep.mubr.bf16.mxu0 0
  %614 = vmatmul.mubr.bf16.gmra.mrb[0].mxu0 %v284
  %v615 = vpop.f32.mrb[0].mxu0
  %v616 = vadd.f32 %v151, %v615
  %v617 = vpop.f32.mrb[0].mxu0
  %v618 = vpop.f32.mrb[0].mxu0
  %v619 = vadd.f32 %v151, %v618
  %v620 = vpop.f32.mrb[0].mxu0
  %621 = vmatprep.mubr.bf16.mxu0 0
  %622 = vmatmul.mubr.bf16.gmra.mrb[0].mxu0 %v287
  %v623 = vpop.f32.mrb[0].mxu0
  %v624 = vadd.f32 %v151, %v623
  %v625 = vpop.f32.mrb[0].mxu0
  %v626 = vpop.f32.mrb[0].mxu0
  %v627 = vadd.f32 %v151, %v626
  %v628 = vpop.f32.mrb[0].mxu0
  %629 = vmatprep.mubr.bf16.mxu0 0
  %630 = vmatmul.mubr.bf16.gmra.mrb[0].mxu0 %v290
  %v631 = vpop.f32.mrb[0].mxu0
  %v632 = vadd.f32 %v151, %v631
  %v633 = vpop.f32.mrb[0].mxu0
  %v634 = vpop.f32.mrb[0].mxu0
  %v635 = vadd.f32 %v151, %v634
  %v636 = vpop.f32.mrb[0].mxu0
  %637 = vmatprep.mubr.bf16.mxu0 0
  %638 = vmatmul.mubr.bf16.gmra.mrb[0].mxu0 %v293
  %v639 = vpop.f32.mrb[0].mxu0
  %v640 = vadd.f32 %v151, %v639
  %v641 = vpop.f32.mrb[0].mxu0
  %v642 = vpop.f32.mrb[0].mxu0
  %v643 = vadd.f32 %v151, %v642
  %v644 = vpop.f32.mrb[0].mxu0
  %645 = vmatprep.mubr.bf16.mxu0 0
  %646 = vmatmul.mubr.bf16.gmra.mrb[0].mxu0 %v296
  %v647 = vpop.f32.mrb[0].mxu0
  %v648 = vadd.f32 %v151, %v647
  %v649 = vpop.f32.mrb[0].mxu0
  %v650 = vpop.f32.mrb[0].mxu0
  %v651 = vadd.f32 %v151, %v650
  %v652 = vpop.f32.mrb[0].mxu0
  %653 = vmatprep.mubr.bf16.mxu0 0
  %654 = vmatmul.mubr.bf16.gmra.mrb[0].mxu0 %v299
  %v655 = vpop.f32.mrb[0].mxu0
  %v656 = vadd.f32 %v151, %v655
  %v657 = vpop.f32.mrb[0].mxu0
  %v658 = vpop.f32.mrb[0].mxu0
  %v659 = vadd.f32 %v151, %v658
  %v660 = vpop.f32.mrb[0].mxu0
  %661 = vdwg.mxu0
  %v662 = vmax.f32 %v336, 0.0
  %v663 = vmax.f32 %v339, 0.0
  %v664 = vmax.f32 %v344, 0.0
  %v665 = vmax.f32 %v347, 0.0
  %v666 = vmax.f32 %v352, 0.0
  %v667 = vmax.f32 %v355, 0.0
  %v668 = vmax.f32 %v360, 0.0
  %v669 = vmax.f32 %v363, 0.0
  %v670 = vmax.f32 %v368, 0.0
  %v671 = vmax.f32 %v371, 0.0
  %v672 = vmax.f32 %v376, 0.0
  %v673 = vmax.f32 %v379, 0.0
  %v674 = vmax.f32 %v384, 0.0
  %v675 = vmax.f32 %v387, 0.0
  %v676 = vmax.f32 %v392, 0.0
  %v677 = vmax.f32 %v395, 0.0
  %v678 = vmax.f32 %v400, 0.0
  %v679 = vmax.f32 %v403, 0.0
  %v680 = vmax.f32 %v408, 0.0
  %v681 = vmax.f32 %v411, 0.0
  %v682 = vmax.f32 %v416, 0.0
  %v683 = vmax.f32 %v419, 0.0
  %v684 = vmax.f32 %v424, 0.0
  %v685 = vmax.f32 %v427, 0.0
  %v686 = vmax.f32 %v432, 0.0
  %v687 = vmax.f32 %v435, 0.0
  %v688 = vmax.f32 %v440, 0.0
  %v689 = vmax.f32 %v443, 0.0
  %v690 = vmax.f32 %v448, 0.0
  %v691 = vmax.f32 %v451, 0.0
  %v692 = vmax.f32 %v456, 0.0
  %v693 = vmax.f32 %v459, 0.0
  %v694 = vmax.f32 %v464, 0.0
  %v695 = vmax.f32 %v467, 0.0
  %v696 = vmax.f32 %v472, 0.0
  %v697 = vmax.f32 %v475, 0.0
  %v698 = vmax.f32 %v480, 0.0
  %v699 = vmax.f32 %v483, 0.0
  %v700 = vmax.f32 %v488, 0.0
  %v701 = vmax.f32 %v491, 0.0
  %v702 = vmax.f32 %v496, 0.0
  %v703 = vmax.f32 %v499, 0.0
  %v704 = vmax.f32 %v504, 0.0
  %v705 = vmax.f32 %v507, 0.0
  %v706 = vmax.f32 %v512, 0.0
  %v707 = vmax.f32 %v515, 0.0
  %v708 = vmax.f32 %v520, 0.0
  %v709 = vmax.f32 %v523, 0.0
  %v710 = vmax.f32 %v528, 0.0
  %v711 = vmax.f32 %v531, 0.0
  %v712 = vmax.f32 %v536, 0.0
  %v713 = vmax.f32 %v539, 0.0
  %v714 = vmax.f32 %v544, 0.0
  %v715 = vmax.f32 %v547, 0.0
  %v716 = vmax.f32 %v552, 0.0
  %v717 = vmax.f32 %v555, 0.0
  %v718 = vmax.f32 %v560, 0.0
  %v719 = vmax.f32 %v563, 0.0
  %v720 = vmax.f32 %v568, 0.0
  %v721 = vmax.f32 %v571, 0.0
  %v722 = vmax.f32 %v576, 0.0
  %v723 = vmax.f32 %v579, 0.0
  %v724 = vmax.f32 %v584, 0.0
  %v725 = vmax.f32 %v587, 0.0
  %v726 = vmax.f32 %v592, 0.0
  %v727 = vmax.f32 %v595, 0.0
  %v728 = vmax.f32 %v600, 0.0
  %v729 = vmax.f32 %v603, 0.0
  %v730 = vmax.f32 %v608, 0.0
  %v731 = vmax.f32 %v611, 0.0
  %v732 = vmax.f32 %v616, 0.0
  %v733 = vmax.f32 %v619, 0.0
  %v734 = vmax.f32 %v624, 0.0
  %v735 = vmax.f32 %v627, 0.0
  %v736 = vmax.f32 %v632, 0.0
  %v737 = vmax.f32 %v635, 0.0
  %v738 = vmax.f32 %v640, 0.0
  %v739 = vmax.f32 %v643, 0.0
  %v740 = vmax.f32 %v648, 0.0
  %v741 = vmax.f32 %v651, 0.0
  %v742 = vmax.f32 %v656, 0.0
  %v743 = vmax.f32 %v659, 0.0
  %vm744 = vcmask 261120
  %745 = vst.msk [vmem:[%s3] sm:$0xff] %vm744, %v662
  %746 = vst.msk [vmem:[%s3 + $0x8] sm:$0xff] %vm744, %v663
  %747 = vst.msk [vmem:[%s3 + $0x10] sm:$0xff] %vm744, %v664
  %748 = vst.msk [vmem:[%s3 + $0x18] sm:$0xff] %vm744, %v665
  %749 = vst.msk [vmem:[%s3 + $0x20] sm:$0xff] %vm744, %v666
  %750 = vst.msk [vmem:[%s3 + $0x28] sm:$0xff] %vm744, %v667
  %751 = vst.msk [vmem:[%s3 + $0x30] sm:$0xff] %vm744, %v668
  %752 = vst.msk [vmem:[%s3 + $0x38] sm:$0xff] %vm744, %v669
  %753 = vst.msk [vmem:[%s3 + $0x40] sm:$0xff] %vm744, %v670
  %754 = vst.msk [vmem:[%s3 + $0x48] sm:$0xff] %vm744, %v671
  %755 = vst.msk [vmem:[%s3 + $0x50] sm:$0xff] %vm744, %v672
  %756 = vst.msk [vmem:[%s3 + $0x58] sm:$0xff] %vm744, %v673
  %757 = vst.msk [vmem:[%s3 + $0x60] sm:$0xff] %vm744, %v674
  %758 = vst.msk [vmem:[%s3 + $0x68] sm:$0xff] %vm744, %v675
  %759 = vst.msk [vmem:[%s3 + $0x70] sm:$0xff] %vm744, %v676
  %760 = vst.msk [vmem:[%s3 + $0x78] sm:$0xff] %vm744, %v677
  %761 = vst.msk [vmem:[%s3 + $0x80] sm:$0xff] %vm744, %v678
  %762 = vst.msk [vmem:[%s3 + $0x88] sm:$0xff] %vm744, %v679
  %763 = vst.msk [vmem:[%s3 + $0x90] sm:$0xff] %vm744, %v680
  %764 = vst.msk [vmem:[%s3 + $0x98] sm:$0xff] %vm744, %v681
  %765 = vst.msk [vmem:[%s3 + $0xa0] sm:$0xff] %vm744, %v682
  %766 = vst.msk [vmem:[%s3 + $0xa8] sm:$0xff] %vm744, %v683
  %767 = vst.msk [vmem:[%s3 + $0xb0] sm:$0xff] %vm744, %v684
  %768 = vst.msk [vmem:[%s3 + $0xb8] sm:$0xff] %vm744, %v685
  %769 = vst.msk [vmem:[%s3 + $0xc0] sm:$0xff] %vm744, %v686
  %770 = vst.msk [vmem:[%s3 + $0xc8] sm:$0xff] %vm744, %v687
  %771 = vst.msk [vmem:[%s3 + $0xd0] sm:$0xff] %vm744, %v688
  %772 = vst.msk [vmem:[%s3 + $0xd8] sm:$0xff] %vm744, %v689
  %773 = vst.msk [vmem:[%s3 + $0xe0] sm:$0xff] %vm744, %v690
  %774 = vst.msk [vmem:[%s3 + $0xe8] sm:$0xff] %vm744, %v691
  %775 = vst.msk [vmem:[%s3 + $0xf0] sm:$0xff] %vm744, %v692
  %776 = vst.msk [vmem:[%s3 + $0xf8] sm:$0xff] %vm744, %v693
  %777 = vst.msk [vmem:[%s3 + $0x100] sm:$0xff] %vm744, %v694
  %778 = vst.msk [vmem:[%s3 + $0x108] sm:$0xff] %vm744, %v695
  %779 = vst.msk [vmem:[%s3 + $0x110] sm:$0xff] %vm744, %v696
  %780 = vst.msk [vmem:[%s3 + $0x118] sm:$0xff] %vm744, %v697
  %781 = vst.msk [vmem:[%s3 + $0x120] sm:$0xff] %vm744, %v698
  %782 = vst.msk [vmem:[%s3 + $0x128] sm:$0xff] %vm744, %v699
  %783 = vst.msk [vmem:[%s3 + $0x130] sm:$0xff] %vm744, %v700
  %784 = vst.msk [vmem:[%s3 + $0x138] sm:$0xff] %vm744, %v701
  %785 = vst.msk [vmem:[%s3 + $0x140] sm:$0xff] %vm744, %v702
  %786 = vst.msk [vmem:[%s3 + $0x148] sm:$0xff] %vm744, %v703
  %787 = vst.msk [vmem:[%s3 + $0x150] sm:$0xff] %vm744, %v704
  %788 = vst.msk [vmem:[%s3 + $0x158] sm:$0xff] %vm744, %v705
  %789 = vst.msk [vmem:[%s3 + $0x160] sm:$0xff] %vm744, %v706
  %790 = vst.msk [vmem:[%s3 + $0x168] sm:$0xff] %vm744, %v707
  %791 = vst.msk [vmem:[%s3 + $0x170] sm:$0xff] %vm744, %v708
  %792 = vst.msk [vmem:[%s3 + $0x178] sm:$0xff] %vm744, %v709
  %793 = vst.msk [vmem:[%s3 + $0x180] sm:$0xff] %vm744, %v710
  %794 = vst.msk [vmem:[%s3 + $0x188] sm:$0xff] %vm744, %v711
  %795 = vst.msk [vmem:[%s3 + $0x190] sm:$0xff] %vm744, %v712
  %796 = vst.msk [vmem:[%s3 + $0x198] sm:$0xff] %vm744, %v713
  %797 = vst.msk [vmem:[%s3 + $0x1a0] sm:$0xff] %vm744, %v714
  %798 = vst.msk [vmem:[%s3 + $0x1a8] sm:$0xff] %vm744, %v715
  %799 = vst.msk [vmem:[%s3 + $0x1b0] sm:$0xff] %vm744, %v716
  %800 = vst.msk [vmem:[%s3 + $0x1b8] sm:$0xff] %vm744, %v717
  %801 = vst.msk [vmem:[%s3 + $0x1c0] sm:$0xff] %vm744, %v718
  %802 = vst.msk [vmem:[%s3 + $0x1c8] sm:$0xff] %vm744, %v719
  %803 = vst.msk [vmem:[%s3 + $0x1d0] sm:$0xff] %vm744, %v720
  %804 = vst.msk [vmem:[%s3 + $0x1d8] sm:$0xff] %vm744, %v721
  %805 = vst.msk [vmem:[%s3 + $0x1e0] sm:$0xff] %vm744, %v722
  %806 = vst.msk [vmem:[%s3 + $0x1e8] sm:$0xff] %vm744, %v723
  %807 = vst.msk [vmem:[%s3 + $0x1f0] sm:$0xff] %vm744, %v724
  %808 = vst.msk [vmem:[%s3 + $0x1f8] sm:$0xff] %vm744, %v725
  %809 = vst.msk [vmem:[%s3 + $0x200] sm:$0xff] %vm744, %v726
  %810 = vst.msk [vmem:[%s3 + $0x208] sm:$0xff] %vm744, %v727
  %811 = vst.msk [vmem:[%s3 + $0x210] sm:$0xff] %vm744, %v728
  %812 = vst.msk [vmem:[%s3 + $0x218] sm:$0xff] %vm744, %v729
  %813 = vst.msk [vmem:[%s3 + $0x220] sm:$0xff] %vm744, %v730
  %814 = vst.msk [vmem:[%s3 + $0x228] sm:$0xff] %vm744, %v731
  %815 = vst.msk [vmem:[%s3 + $0x230] sm:$0xff] %vm744, %v732
  %816 = vst.msk [vmem:[%s3 + $0x238] sm:$0xff] %vm744, %v733
  %817 = vst.msk [vmem:[%s3 + $0x240] sm:$0xff] %vm744, %v734
  %818 = vst.msk [vmem:[%s3 + $0x248] sm:$0xff] %vm744, %v735
  %819 = vst.msk [vmem:[%s3 + $0x250] sm:$0xff] %vm744, %v736
  %820 = vst.msk [vmem:[%s3 + $0x258] sm:$0xff] %vm744, %v737
  %821 = vst.msk [vmem:[%s3 + $0x260] sm:$0xff] %vm744, %v738
  %822 = vst.msk [vmem:[%s3 + $0x268] sm:$0xff] %vm744, %v739
  %823 = vst.msk [vmem:[%s3 + $0x270] sm:$0xff] %vm744, %v740
  %824 = vst.msk [vmem:[%s3 + $0x278] sm:$0xff] %vm744, %v741
  %825 = vst.msk [vmem:[%s3 + $0x280] sm:$0xff] %vm744, %v742
  %vm826 = vcmask 254976
  %827 = vst.msk [vmem:[%s3 + $0x288] sm:$0x3] %vm826, %v743
  // Predicated region
  $region14: #{cnn_forward.3} parent=0 // pred_check
    _
  $region15: #{cnn_forward.3} parent=0 // pred_check_branch
    %829 = sbr.rel (0) target = $region17
  $region16: #{cnn_forward.3} parent=0 // pred_region
    _
  $region17: #{cnn_forward.3} parent=0 // pred_fallthru
    _
  // Predicated region
  $region18: #{cnn_forward.3} parent=0 // pred_check
    _
  $region19: #{cnn_forward.3} parent=0 // pred_check_branch
    %831 = sbr.rel (0) target = $region21
  $region20: #{cnn_forward.3} parent=0 // pred_region
    _
  $region21: #{cnn_forward.3} parent=0 // pred_fallthru
    _

// kernel: cnn_forward.4
$region0: #{cnn_forward.4}
  #allocation0 [shape = 'u32[]', space=smem, size = 0x4, offset = 0x4, fixed_abs, tag = 'smem constant byte address 0x4 - core index']
  #allocation1 [shape = 'u32[144,128]{1,0:T(1,128)}', space=vmem, size = 0x12000, scoped, tag = 'internal scratch']
  %s0 = inlined_call_operand.vmem [shape: f32[90,288], index: 0, kind: input, shape index: {}]
  %s1 = inlined_call_operand.vmem [shape: bf16[288,64], index: 1, kind: input, shape index: {}]
  %s2 = inlined_call_operand.vmem [shape: f32[1,64], index: 2, kind: input, shape index: {}]
  %s3 = inlined_call_operand.vmem [shape: bf16[64,64], index: 3, kind: input, shape index: {}]
  %s4 = inlined_call_operand.vmem [shape: f32[1,64], index: 4, kind: input, shape index: {}]
  %s5 = inlined_call_operand.vmem [shape: f32[90,64], index: 5, kind: output, shape index: {}]
  %s6 = sld [smem:[#allocation0]]
  $region30: #{cnn_forward.4} parent=0
    _
  %s8 = ssub.s32 1, %s6
  %s9 = scalar_select 0, %s8, %s6
  // Predicated region
  $region2: #{cnn_forward.4} parent=0 // pred_check
    _
  $region3: #{cnn_forward.4} parent=0 // pred_check_branch
    %11 = sbr.rel (0) target = $region5
  $region4: #{cnn_forward.4} parent=0 // pred_region
    _
  $region5: #{cnn_forward.4} parent=0 // pred_fallthru
    _
  // Predicated region
  $region6: #{cnn_forward.4} parent=0 // pred_check
    _
  $region7: #{cnn_forward.4} parent=0 // pred_check_branch
    %13 = sbr.rel (0) target = $region9
  $region8: #{cnn_forward.4} parent=0 // pred_region
    _
  $region9: #{cnn_forward.4} parent=0 // pred_fallthru
    _
  // Predicated region
  $region10: #{cnn_forward.4} parent=0 // pred_check
    _
  $region11: #{cnn_forward.4} parent=0 // pred_check_branch
    %15 = sbr.rel (0) target = $region13
  $region12: #{cnn_forward.4} parent=0 // pred_region
    _
  $region13: #{cnn_forward.4} parent=0 // pred_fallthru
    _
  // Predicated region
  $region14: #{cnn_forward.4} parent=0 // pred_check
    _
  $region15: #{cnn_forward.4} parent=0 // pred_check_branch
    %17 = sbr.rel (0) target = $region17
  $region16: #{cnn_forward.4} parent=0 // pred_region
    _
  $region17: #{cnn_forward.4} parent=0 // pred_fallthru
    _
  // Predicated region
  $region18: #{cnn_forward.4} parent=0 // pred_check
    _
  $region19: #{cnn_forward.4} parent=0 // pred_check_branch
    %19 = sbr.rel (0) target = $region21
  $region20: #{cnn_forward.4} parent=0 // pred_region
    _
  $region21: #{cnn_forward.4} parent=0 // pred_fallthru
    _
  %v21 = vld [vmem:[%s0] sm:$0xff]
  %v22 = vld [vmem:[%s0 + $0x8] sm:$0xff]
  %v23 = vld [vmem:[%s0 + $0x10] sm:$0xff]
  %v24 = vld [vmem:[%s0 + $0x18] sm:$0xff]
  %v25 = vld [vmem:[%s0 + $0x20] sm:$0xff]
  %v26 = vld [vmem:[%s0 + $0x28] sm:$0xff]
  %v27 = vld [vmem:[%s0 + $0x30] sm:$0xff]
  %v28 = vld [vmem:[%s0 + $0x38] sm:$0xff]
  %v29 = vld [vmem:[%s0 + $0x40] sm:$0xff]
  %v30 = vld [vmem:[%s0 + $0x48] sm:$0xff]
  %v31 = vld [vmem:[%s0 + $0x50] sm:$0xff]
  %v32 = vld [vmem:[%s0 + $0x58] sm:$0xff]
  %v33 = vld [vmem:[%s0 + $0x60] sm:$0xff]
  %v34 = vld [vmem:[%s0 + $0x68] sm:$0xff]
  %v35 = vld [vmem:[%s0 + $0x70] sm:$0xff]
  %v36 = vld [vmem:[%s0 + $0x78] sm:$0xff]
  %v37 = vld [vmem:[%s0 + $0x80] sm:$0xff]
  %v38 = vld [vmem:[%s0 + $0x88] sm:$0xff]
  %v39 = vld [vmem:[%s0 + $0x90] sm:$0xff]
  %v40 = vld [vmem:[%s0 + $0x98] sm:$0xff]
  %v41 = vld [vmem:[%s0 + $0xa0] sm:$0xff]
  %v42 = vld [vmem:[%s0 + $0xa8] sm:$0xff]
  %v43 = vld [vmem:[%s0 + $0xb0] sm:$0xff]
  %v44 = vld [vmem:[%s0 + $0xb8] sm:$0xff]
  %v45 = vld [vmem:[%s0 + $0xc0] sm:$0xff]
  %v46 = vld [vmem:[%s0 + $0xc8] sm:$0xff]
  %v47 = vld [vmem:[%s0 + $0xd0] sm:$0xff]
  %v48 = vld [vmem:[%s0 + $0xd8] sm:$0xff]
  %v49 = vld [vmem:[%s0 + $0xe0] sm:$0xff]
  %v50 = vld [vmem:[%s0 + $0xe8] sm:$0xff]
  %v51 = vld [vmem:[%s0 + $0xf0] sm:$0xff]
  %v52 = vld [vmem:[%s0 + $0xf8] sm:$0xff]
  %v53 = vld [vmem:[%s0 + $0x100] sm:$0xff]
  %v54 = vld [vmem:[%s0 + $0x108] sm:$0x3]
  %v55 = vld [vmem:[%s0 + $0x110] sm:$0x3]
  %v56 = vld [vmem:[%s0 + $0x118] sm:$0x3]
  %v57 = vpack.c.bf16 %v24, %v21
  %v58 = vpack.c.bf16 %v25, %v22
  %v59 = vpack.c.bf16 %v26, %v23
  %v60 = vpack.c.bf16 %v30, %v27
  %v61 = vpack.c.bf16 %v31, %v28
  %v62 = vpack.c.bf16 %v32, %v29
  %v63 = vpack.c.bf16 %v36, %v33
  %v64 = vpack.c.bf16 %v37, %v34
  %v65 = vpack.c.bf16 %v38, %v35
  %v66 = vpack.c.bf16 %v42, %v39
  %v67 = vpack.c.bf16 %v43, %v40
  %v68 = vpack.c.bf16 %v44, %v41
  %v69 = vpack.c.bf16 %v48, %v45
  %v70 = vpack.c.bf16 %v49, %v46
  %v71 = vpack.c.bf16 %v50, %v47
  %v72 = vpack.c.bf16 %v54, %v51
  %v73 = vpack.c.bf16 %v55, %v52
  %v74 = vpack.c.bf16 %v56, %v53
  %v75 = vld [vmem:[%s1] sm:$0xf]
  %v76 = vld [vmem:[%s1 + $0x4] sm:$0xf]
  %v77 = vld [vmem:[%s1 + $0x8] sm:$0xf]
  %v78 = vld [vmem:[%s1 + $0xc] sm:$0xf]
  %v79 = vld [vmem:[%s1 + $0x10] sm:$0xf]
  %v80 = vld [vmem:[%s1 + $0x14] sm:$0xf]
  %v81 = vld [vmem:[%s1 + $0x18] sm:$0xf]
  %v82 = vld [vmem:[%s1 + $0x1c] sm:$0xf]
  %v83 = vld [vmem:[%s1 + $0x20] sm:$0xf]
  %v84 = vld [vmem:[%s1 + $0x24] sm:$0xf]
  %v85 = vld [vmem:[%s1 + $0x28] sm:$0xf]
  %v86 = vld [vmem:[%s1 + $0x2c] sm:$0xf]
  %v87 = vld [vmem:[%s1 + $0x30] sm:$0xf]
  %v88 = vld [vmem:[%s1 + $0x34] sm:$0xf]
  %v89 = vld [vmem:[%s1 + $0x38] sm:$0xf]
  %v90 = vld [vmem:[%s1 + $0x3c] sm:$0xf]
  %v91 = vld [vmem:[%s1 + $0x40] sm:$0xf]
  %v92 = vld [vmem:[%s1 + $0x44] sm:$0xf]
  %v93 = vld [vmem:[%s1 + $0x48] sm:$0xf]
  %v94 = vld [vmem:[%s1 + $0x4c] sm:$0xf]
  %v95 = vld [vmem:[%s1 + $0x50] sm:$0xf]
  %v96 = vld [vmem:[%s1 + $0x54] sm:$0xf]
  %v97 = vld [vmem:[%s1 + $0x58] sm:$0xf]
  %v98 = vld [vmem:[%s1 + $0x5c] sm:$0xf]
  %v99 = vld [vmem:[%s1 + $0x60] sm:$0xf]
  %v100 = vld [vmem:[%s1 + $0x64] sm:$0xf]
  %v101 = vld [vmem:[%s1 + $0x68] sm:$0xf]
  %v102 = vld [vmem:[%s1 + $0x6c] sm:$0xf]
  %v103 = vld [vmem:[%s1 + $0x70] sm:$0xf]
  %v104 = vld [vmem:[%s1 + $0x74] sm:$0xf]
  %v105 = vld [vmem:[%s1 + $0x78] sm:$0xf]
  %v106 = vld [vmem:[%s1 + $0x7c] sm:$0xf]
  %v107 = vld [vmem:[%s1 + $0x80] sm:$0xf]
  %v108 = vld [vmem:[%s1 + $0x84] sm:$0xf]
  %v109 = vld [vmem:[%s1 + $0x88] sm:$0xf]
  %v110 = vld [vmem:[%s1 + $0x8c] sm:$0xf]
  %v111 = vld [vmem:[%s2] sm:$0x1]
  %v113 = vlaneseq
  %v114 = vshrl.u32 %v113, 7
  %v115 = vsub.s32 0, %v114
  %v116 = vrot.slane %v111, %v115
  %v154 = vunpack.c.l.b16 %v75
  %v155 = vunpack.c.l.b16 %v76
  %v156 = vunpack.c.l.b16 %v77
  %v157 = vunpack.c.l.b16 %v78
  %v158 = vunpack.c.l.b16 %v79
  %v159 = vunpack.c.l.b16 %v80
  %v160 = vunpack.c.l.b16 %v81
  %v161 = vunpack.c.l.b16 %v82
  %v162 = vunpack.c.l.b16 %v83
  %v163 = vunpack.c.l.b16 %v84
  %v164 = vunpack.c.l.b16 %v85
  %v165 = vunpack.c.l.b16 %v86
  %v166 = vunpack.c.l.b16 %v87
  %v167 = vunpack.c.l.b16 %v88
  %v168 = vunpack.c.l.b16 %v89
  %v169 = vunpack.c.l.b16 %v90
  %v170 = vunpack.c.l.b16 %v91
  %v171 = vunpack.c.l.b16 %v92
  %v172 = vunpack.c.l.b16 %v93
  %v173 = vunpack.c.l.b16 %v94
  %v174 = vunpack.c.l.b16 %v95
  %v175 = vunpack.c.l.b16 %v96
  %v176 = vunpack.c.l.b16 %v97
  %v177 = vunpack.c.l.b16 %v98
  %v178 = vunpack.c.l.b16 %v99
  %v179 = vunpack.c.l.b16 %v100
  %v180 = vunpack.c.l.b16 %v101
  %v181 = vunpack.c.l.b16 %v102
  %v182 = vunpack.c.l.b16 %v103
  %v183 = vunpack.c.l.b16 %v104
  %v184 = vunpack.c.l.b16 %v105
  %v185 = vunpack.c.l.b16 %v106
  %v186 = vunpack.c.l.b16 %v107
  %v187 = vunpack.c.l.b16 %v108
  %v188 = vunpack.c.l.b16 %v109
  %v189 = vunpack.c.l.b16 %v110
  %v190 = vpack.c.b16 %v155, %v154
  %v191 = vpack.c.b16 %v157, %v156
  %v192 = vpack.c.b16 %v159, %v158
  %v193 = vpack.c.b16 %v161, %v160
  %v194 = vpack.c.b16 %v163, %v162
  %v195 = vpack.c.b16 %v165, %v164
  %v196 = vpack.c.b16 %v167, %v166
  %v197 = vpack.c.b16 %v169, %v168
  %v198 = vpack.c.b16 %v171, %v170
  %v199 = vpack.c.b16 %v173, %v172
  %v200 = vpack.c.b16 %v175, %v174
  %v201 = vpack.c.b16 %v177, %v176
  %v202 = vpack.c.b16 %v179, %v178
  %v203 = vpack.c.b16 %v181, %v180
  %v204 = vpack.c.b16 %v183, %v182
  %v205 = vpack.c.b16 %v185, %v184
  %v206 = vpack.c.b16 %v187, %v186
  %v207 = vpack.c.b16 %v189, %v188
  %vm226 = vcmask 261120
  %v228 = vsel %vm226, %v59, 0
  %v231 = vsel %vm226, %v62, 0
  %v234 = vsel %vm226, %v65, 0
  %v237 = vsel %vm226, %v68, 0
  %v240 = vsel %vm226, %v71, 0
  %v243 = vsel %vm226, %v74, 0
  %245 = vmatprep.subr.bf16.mxu0 0
  %246 = vmatpush1.bf16.msra.mxu0 %v190
  %247 = vmatprep.subr.bf16.mxu0 0
  %248 = vmatpush1.bf16.msra.mxu0 %v191
  %249 = vmatprep.subr.bf16.mxu0 0
  %250 = vmatpush1.bf16.msra.mxu0 %v192
  %251 = vmatprep.subr.bf16.mxu0 0
  %252 = vmatpush1.bf16.msra.mxu0 %v193
  %253 = vmatprep.subr.bf16.mxu0 0
  %254 = vmatpush1.bf16.msra.mxu0 %v194
  %255 = vmatprep.subr.bf16.mxu0 0
  %256 = vmatpush1.bf16.msra.mxu0 %v195
  %257 = vmatprep.subr.bf16.mxu0 0
  %258 = vmatpush1.bf16.msra.mxu0 %v196
  %259 = vmatprep.subr.bf16.mxu0 0
  %260 = vmatpush1.bf16.msra.mxu0 %v197
  %261 = vmatprep.subr.bf16.mxu0 0
  %262 = vmatpush1.bf16.msra.mxu0 %v198
  %263 = vmatprep.subr.bf16.mxu0 0
  %264 = vmatpush1.bf16.msra.mxu0 %v199
  %265 = vmatprep.subr.bf16.mxu0 0
  %266 = vmatpush1.bf16.msra.mxu0 %v200
  %267 = vmatprep.subr.bf16.mxu0 0
  %268 = vmatpush1.bf16.msra.mxu0 %v201
  %269 = vmatprep.subr.bf16.mxu0 0
  %270 = vmatpush1.bf16.msra.mxu0 %v202
  %271 = vmatprep.subr.bf16.mxu0 0
  %272 = vmatpush1.bf16.msra.mxu0 %v203
  %273 = vmatprep.subr.bf16.mxu0 0
  %274 = vmatpush1.bf16.msra.mxu0 %v204
  %275 = vmatprep.subr.bf16.mxu0 0
  %276 = vmatpush1.bf16.msra.mxu0 %v205
  %277 = vmatprep.mubr.bf16.mxu0 %v58
  %278 = vmatmul.mubr.bf16.gmra.mrb[0].mxu0 %v57
  %v279 = vpop.f32.mrb[0].mxu0
  %v280 = vadd.f32 %v116, %v279
  %v281 = vpop.f32.mrb[0].mxu0
  %v282 = vpop.f32.mrb[0].mxu0
  %v283 = vadd.f32 %v116, %v282
  %v284 = vpop.f32.mrb[0].mxu0
  %285 = vmatprep.mubr.bf16.mxu0 %v61
  %286 = vmatmul.mubr.bf16.gmra.mrb[0].mxu0 %v60
  %v287 = vpop.f32.mrb[0].mxu0
  %v288 = vadd.f32 %v116, %v287
  %v289 = vpop.f32.mrb[0].mxu0
  %v290 = vpop.f32.mrb[0].mxu0
  %v291 = vadd.f32 %v116, %v290
  %v292 = vpop.f32.mrb[0].mxu0
  %293 = vmatprep.mubr.bf16.mxu0 %v64
  %294 = vmatmul.mubr.bf16.gmra.mrb[0].mxu0 %v63
  %v295 = vpop.f32.mrb[0].mxu0
  %v296 = vadd.f32 %v116, %v295
  %v297 = vpop.f32.mrb[0].mxu0
  %v298 = vpop.f32.mrb[0].mxu0
  %v299 = vadd.f32 %v116, %v298
  %v300 = vpop.f32.mrb[0].mxu0
  %301 = vmatprep.mubr.bf16.mxu0 %v67
  %302 = vmatmul.mubr.bf16.gmra.mrb[0].mxu0 %v66
  %v303 = vpop.f32.mrb[0].mxu0
  %v304 = vadd.f32 %v116, %v303
  %v305 = vpop.f32.mrb[0].mxu0
  %v306 = vpop.f32.mrb[0].mxu0
  %v307 = vadd.f32 %v116, %v306
  %v308 = vpop.f32.mrb[0].mxu0
  %309 = vmatprep.mubr.bf16.mxu0 %v70
  %310 = vmatmul.mubr.bf16.gmra.mrb[0].mxu0 %v69
  %v311 = vpop.f32.mrb[0].mxu0
  %v312 = vadd.f32 %v116, %v311
  %v313 = vpop.f32.mrb[0].mxu0
  %v314 = vpop.f32.mrb[0].mxu0
  %v315 = vadd.f32 %v116, %v314
  %v316 = vpop.f32.mrb[0].mxu0
  %317 = vmatprep.mubr.bf16.mxu0 %v73
  %318 = vmatmul.mubr.bf16.gmra.mrb[0].mxu0 %v72
  %v319 = vpop.f32.mrb[0].mxu0
  %v320 = vadd.f32 %v116, %v319
  %v321 = vpop.f32.mrb[0].mxu0
  %v322 = vpop.f32.mrb[0].mxu0
  %v323 = vadd.f32 %v116, %v322
  %v324 = vpop.f32.mrb[0].mxu0
  %325 = vdwg.mxu0
  %326 = vmatprep.subr.bf16.mxu0 0
  %327 = vmatpush1.bf16.msra.mxu0 %v206
  %328 = vmatprep.subr.bf16.mxu0 0
  %329 = vmatpush1.bf16.msra.mxu0 %v207
  %330 = vmatprep.subr.bf16.mxu0 0
  %331 = vmatpush1.bf16.msra.mxu0 0
  %332 = vmatprep.subr.bf16.mxu0 0
  %333 = vmatpush1.bf16.msra.mxu0 0
  %334 = vmatprep.subr.bf16.mxu0 0
  %335 = vmatpush1.bf16.msra.mxu0 0
  %336 = vmatprep.subr.bf16.mxu0 0
  %337 = vmatpush1.bf16.msra.mxu0 0
  %338 = vmatprep.subr.bf16.mxu0 0
  %339 = vmatpush1.bf16.msra.mxu0 0
  %340 = vmatprep.subr.bf16.mxu0 0
  %341 = vmatpush1.bf16.msra.mxu0 0
  %342 = vmatprep.subr.bf16.mxu0 0
  %343 = vmatpush1.bf16.msra.mxu0 0
  %344 = vmatprep.subr.bf16.mxu0 0
  %345 = vmatpush1.bf16.msra.mxu0 0
  %346 = vmatprep.subr.bf16.mxu0 0
  %347 = vmatpush1.bf16.msra.mxu0 0
  %348 = vmatprep.subr.bf16.mxu0 0
  %349 = vmatpush1.bf16.msra.mxu0 0
  %350 = vmatprep.subr.bf16.mxu0 0
  %351 = vmatpush1.bf16.msra.mxu0 0
  %352 = vmatprep.subr.bf16.mxu0 0
  %353 = vmatpush1.bf16.msra.mxu0 0
  %354 = vmatprep.subr.bf16.mxu0 0
  %355 = vmatpush1.bf16.msra.mxu0 0
  %356 = vmatprep.subr.bf16.mxu0 0
  %357 = vmatpush1.bf16.msra.mxu0 0
  %358 = vmatprep.mubr.bf16.mxu0 0
  %359 = vmatmul.mubr.bf16.gmra.mrb[0].mxu0 %v228
  %v360 = vpop.f32.mrb[0].mxu0
  %v361 = vadd.f32 %v280, %v360
  %v362 = vpop.f32.mrb[0].mxu0
  %v363 = vpop.f32.mrb[0].mxu0
  %v364 = vadd.f32 %v283, %v363
  %v365 = vpop.f32.mrb[0].mxu0
  %366 = vmatprep.mubr.bf16.mxu0 0
  %367 = vmatmul.mubr.bf16.gmra.mrb[0].mxu0 %v231
  %v368 = vpop.f32.mrb[0].mxu0
  %v369 = vadd.f32 %v288, %v368
  %v370 = vpop.f32.mrb[0].mxu0
  %v371 = vpop.f32.mrb[0].mxu0
  %v372 = vadd.f32 %v291, %v371
  %v373 = vpop.f32.mrb[0].mxu0
  %374 = vmatprep.mubr.bf16.mxu0 0
  %375 = vmatmul.mubr.bf16.gmra.mrb[0].mxu0 %v234
  %v376 = vpop.f32.mrb[0].mxu0
  %v377 = vadd.f32 %v296, %v376
  %v378 = vpop.f32.mrb[0].mxu0
  %v379 = vpop.f32.mrb[0].mxu0
  %v380 = vadd.f32 %v299, %v379
  %v381 = vpop.f32.mrb[0].mxu0
  %382 = vmatprep.mubr.bf16.mxu0 0
  %383 = vmatmul.mubr.bf16.gmra.mrb[0].mxu0 %v237
  %v384 = vpop.f32.mrb[0].mxu0
  %v385 = vadd.f32 %v304, %v384
  %v386 = vpop.f32.mrb[0].mxu0
  %v387 = vpop.f32.mrb[0].mxu0
  %v388 = vadd.f32 %v307, %v387
  %v389 = vpop.f32.mrb[0].mxu0
  %390 = vmatprep.mubr.bf16.mxu0 0
  %391 = vmatmul.mubr.bf16.gmra.mrb[0].mxu0 %v240
  %v392 = vpop.f32.mrb[0].mxu0
  %v393 = vadd.f32 %v312, %v392
  %v394 = vpop.f32.mrb[0].mxu0
  %v395 = vpop.f32.mrb[0].mxu0
  %v396 = vadd.f32 %v315, %v395
  %v397 = vpop.f32.mrb[0].mxu0
  %398 = vmatprep.mubr.bf16.mxu0 0
  %399 = vmatmul.mubr.bf16.gmra.mrb[0].mxu0 %v243
  %v400 = vpop.f32.mrb[0].mxu0
  %v401 = vadd.f32 %v320, %v400
  %v402 = vpop.f32.mrb[0].mxu0
  %v403 = vpop.f32.mrb[0].mxu0
  %v404 = vadd.f32 %v323, %v403
  %v405 = vpop.f32.mrb[0].mxu0
  %406 = vdwg.mxu0
  %v407 = vmax.f32 %v361, 0.0
  %v408 = vmax.f32 %v364, 0.0
  %v409 = vmax.f32 %v369, 0.0
  %v410 = vmax.f32 %v372, 0.0
  %v411 = vmax.f32 %v377, 0.0
  %v412 = vmax.f32 %v380, 0.0
  %v413 = vmax.f32 %v385, 0.0
  %v414 = vmax.f32 %v388, 0.0
  %v415 = vmax.f32 %v393, 0.0
  %v416 = vmax.f32 %v396, 0.0
  %v417 = vmax.f32 %v401, 0.0
  %v418 = vmax.f32 %v404, 0.0
  %v419 = vpack.c.bf16 %v408, %v407
  %v420 = vpack.c.bf16 %v410, %v409
  %v421 = vpack.c.bf16 %v412, %v411
  %v422 = vpack.c.bf16 %v414, %v413
  %v423 = vpack.c.bf16 %v416, %v415
  %v424 = vpack.c.bf16 %v418, %v417
  %v425 = vld [vmem:[%s3] sm:$0xf]
  %v426 = vld [vmem:[%s3 + $0x4] sm:$0xf]
  %v427 = vld [vmem:[%s3 + $0x8] sm:$0xf]
  %v428 = vld [vmem:[%s3 + $0xc] sm:$0xf]
  %v429 = vld [vmem:[%s3 + $0x10] sm:$0xf]
  %v430 = vld [vmem:[%s3 + $0x14] sm:$0xf]
  %v431 = vld [vmem:[%s3 + $0x18] sm:$0xf]
  %v432 = vld [vmem:[%s3 + $0x1c] sm:$0xf]
  %v433 = vld [vmem:[%s4] sm:$0x1]
  %v435 = vlaneseq
  %v436 = vshrl.u32 %v435, 7
  %v437 = vsub.s32 0, %v436
  %v438 = vrot.slane %v433, %v437
  %v448 = vunpack.c.l.b16 %v425
  %v449 = vunpack.c.l.b16 %v426
  %v450 = vunpack.c.l.b16 %v427
  %v451 = vunpack.c.l.b16 %v428
  %v452 = vunpack.c.l.b16 %v429
  %v453 = vunpack.c.l.b16 %v430
  %v454 = vunpack.c.l.b16 %v431
  %v455 = vunpack.c.l.b16 %v432
  %v456 = vpack.c.b16 %v449, %v448
  %v457 = vpack.c.b16 %v451, %v450
  %v458 = vpack.c.b16 %v453, %v452
  %v459 = vpack.c.b16 %v455, %v454
  %vm464 = vcmask 523264
  %v466 = vsel %vm464, %v419, 0
  %v469 = vsel %vm464, %v420, 0
  %v472 = vsel %vm464, %v421, 0
  %v475 = vsel %vm464, %v422, 0
  %v478 = vsel %vm464, %v423, 0
  %v481 = vsel %vm464, %v424, 0
  %483 = vmatprep.subr.bf16.mxu0 0
  %484 = vmatpush1.bf16.msra.mxu0 %v456
  %485 = vmatprep.subr.bf16.mxu0 0
  %486 = vmatpush1.bf16.msra.mxu0 %v457
  %487 = vmatprep.subr.bf16.mxu0 0
  %488 = vmatpush1.bf16.msra.mxu0 %v458
  %489 = vmatprep.subr.bf16.mxu0 0
  %490 = vmatpush1.bf16.msra.mxu0 %v459
  %491 = vmatprep.subr.bf16.mxu0 0
  %492 = vmatpush1.bf16.msra.mxu0 0
  %493 = vmatprep.subr.bf16.mxu0 0
  %494 = vmatpush1.bf16.msra.mxu0 0
  %495 = vmatprep.subr.bf16.mxu0 0
  %496 = vmatpush1.bf16.msra.mxu0 0
  %497 = vmatprep.subr.bf16.mxu0 0
  %498 = vmatpush1.bf16.msra.mxu0 0
  %499 = vmatprep.subr.bf16.mxu0 0
  %500 = vmatpush1.bf16.msra.mxu0 0
  %501 = vmatprep.subr.bf16.mxu0 0
  %502 = vmatpush1.bf16.msra.mxu0 0
  %503 = vmatprep.subr.bf16.mxu0 0
  %504 = vmatpush1.bf16.msra.mxu0 0
  %505 = vmatprep.subr.bf16.mxu0 0
  %506 = vmatpush1.bf16.msra.mxu0 0
  %507 = vmatprep.subr.bf16.mxu0 0
  %508 = vmatpush1.bf16.msra.mxu0 0
  %509 = vmatprep.subr.bf16.mxu0 0
  %510 = vmatpush1.bf16.msra.mxu0 0
  %511 = vmatprep.subr.bf16.mxu0 0
  %512 = vmatpush1.bf16.msra.mxu0 0
  %513 = vmatprep.subr.bf16.mxu0 0
  %514 = vmatpush1.bf16.msra.mxu0 0
  %515 = vmatprep.mubr.bf16.mxu0 0
  %516 = vmatmul.mubr.bf16.gmra.mrb[0].mxu0 %v466
  %v517 = vpop.f32.mrb[0].mxu0
  %v518 = vadd.f32 %v438, %v517
  %v519 = vpop.f32.mrb[0].mxu0
  %v520 = vpop.f32.mrb[0].mxu0
  %v521 = vadd.f32 %v438, %v520
  %v522 = vpop.f32.mrb[0].mxu0
  %523 = vmatprep.mubr.bf16.mxu0 0
  %524 = vmatmul.mubr.bf16.gmra.mrb[0].mxu0 %v469
  %v525 = vpop.f32.mrb[0].mxu0
  %v526 = vadd.f32 %v438, %v525
  %v527 = vpop.f32.mrb[0].mxu0
  %v528 = vpop.f32.mrb[0].mxu0
  %v529 = vadd.f32 %v438, %v528
  %v530 = vpop.f32.mrb[0].mxu0
  %531 = vmatprep.mubr.bf16.mxu0 0
  %532 = vmatmul.mubr.bf16.gmra.mrb[0].mxu0 %v472
  %v533 = vpop.f32.mrb[0].mxu0
  %v534 = vadd.f32 %v438, %v533
  %v535 = vpop.f32.mrb[0].mxu0
  %v536 = vpop.f32.mrb[0].mxu0
  %v537 = vadd.f32 %v438, %v536
  %v538 = vpop.f32.mrb[0].mxu0
  %539 = vmatprep.mubr.bf16.mxu0 0
  %540 = vmatmul.mubr.bf16.gmra.mrb[0].mxu0 %v475
  %v541 = vpop.f32.mrb[0].mxu0
  %v542 = vadd.f32 %v438, %v541
  %v543 = vpop.f32.mrb[0].mxu0
  %v544 = vpop.f32.mrb[0].mxu0
  %v545 = vadd.f32 %v438, %v544
  %v546 = vpop.f32.mrb[0].mxu0
  %547 = vmatprep.mubr.bf16.mxu0 0
  %548 = vmatmul.mubr.bf16.gmra.mrb[0].mxu0 %v478
  %v549 = vpop.f32.mrb[0].mxu0
  %v550 = vadd.f32 %v438, %v549
  %v551 = vpop.f32.mrb[0].mxu0
  %v552 = vpop.f32.mrb[0].mxu0
  %v553 = vadd.f32 %v438, %v552
  %v554 = vpop.f32.mrb[0].mxu0
  %555 = vmatprep.mubr.bf16.mxu0 0
  %556 = vmatmul.mubr.bf16.gmra.mrb[0].mxu0 %v481
  %v557 = vpop.f32.mrb[0].mxu0
  %v558 = vadd.f32 %v438, %v557
  %v559 = vpop.f32.mrb[0].mxu0
  %v560 = vpop.f32.mrb[0].mxu0
  %v561 = vadd.f32 %v438, %v560
  %v562 = vpop.f32.mrb[0].mxu0
  %563 = vdwg.mxu0
  %v564 = vmax.f32 %v518, 0.0
  %v565 = vmax.f32 %v521, 0.0
  %v566 = vmax.f32 %v526, 0.0
  %v567 = vmax.f32 %v529, 0.0
  %v568 = vmax.f32 %v534, 0.0
  %v569 = vmax.f32 %v537, 0.0
  %v570 = vmax.f32 %v542, 0.0
  %v571 = vmax.f32 %v545, 0.0
  %v572 = vmax.f32 %v550, 0.0
  %v573 = vmax.f32 %v553, 0.0
  %v574 = vmax.f32 %v558, 0.0
  %v575 = vmax.f32 %v561, 0.0
  %576 = vst.msk [vmem:[%s5] sm:$0xff] %vm464, %v564
  %577 = vst.msk [vmem:[%s5 + $0x8] sm:$0xff] %vm464, %v565
  %578 = vst.msk [vmem:[%s5 + $0x10] sm:$0xff] %vm464, %v566
  %579 = vst.msk [vmem:[%s5 + $0x18] sm:$0xff] %vm464, %v567
  %580 = vst.msk [vmem:[%s5 + $0x20] sm:$0xff] %vm464, %v568
  %581 = vst.msk [vmem:[%s5 + $0x28] sm:$0xff] %vm464, %v569
  %582 = vst.msk [vmem:[%s5 + $0x30] sm:$0xff] %vm464, %v570
  %583 = vst.msk [vmem:[%s5 + $0x38] sm:$0xff] %vm464, %v571
  %584 = vst.msk [vmem:[%s5 + $0x40] sm:$0xff] %vm464, %v572
  %585 = vst.msk [vmem:[%s5 + $0x48] sm:$0xff] %vm464, %v573
  %586 = vst.msk [vmem:[%s5 + $0x50] sm:$0xff] %vm464, %v574
  %vm587 = vcmask 517120
  %588 = vst.msk [vmem:[%s5 + $0x58] sm:$0x3] %vm587, %v575
  // Predicated region
  $region22: #{cnn_forward.4} parent=0 // pred_check
    _
  $region23: #{cnn_forward.4} parent=0 // pred_check_branch
    %590 = sbr.rel (0) target = $region25
  $region24: #{cnn_forward.4} parent=0 // pred_region
    _
  $region25: #{cnn_forward.4} parent=0 // pred_fallthru
    _
  // Predicated region
  $region26: #{cnn_forward.4} parent=0 // pred_check
    _
  $region27: #{cnn_forward.4} parent=0 // pred_check_branch
    %592 = sbr.rel (0) target = $region29
  $region28: #{cnn_forward.4} parent=0 // pred_region
    _
  $region29: #{cnn_forward.4} parent=0 // pred_fallthru
    _

// kernel: cnn_forward.5
$region0: #{cnn_forward.5}
  #allocation0 [shape = 'u32[]', space=smem, size = 0x4, offset = 0x4, fixed_abs, tag = 'smem constant byte address 0x4 - core index']
  #allocation1 [shape = 'u32[144,128]{1,0:T(1,128)}', space=vmem, size = 0x12000, scoped, tag = 'internal scratch']
  %s0 = inlined_call_operand.vmem [shape: f32[2,4928], index: 0, kind: input, shape index: {}]
  %s1 = inlined_call_operand.vmem [shape: bf16[4928,512], index: 1, kind: input, shape index: {}]
  %s2 = inlined_call_operand.vmem [shape: f32[1,512], index: 2, kind: input, shape index: {}]
  %s3 = inlined_call_operand.vmem [shape: bf16[512,6], index: 3, kind: input, shape index: {}]
  %s4 = inlined_call_operand.vmem [shape: f32[1,6], index: 4, kind: input, shape index: {}]
  %s5 = inlined_call_operand.hbm [shape: f32[2,6], index: 5, kind: output, shape index: {}]
  %s6 = sld [smem:[#allocation0]]
  $region30: #{cnn_forward.5} parent=0
    _
  %s8 = ssub.s32 1, %s6
  %s9 = scalar_select 0, %s8, %s6
  $region1: #{cnn_forward.5} parent=0
    #allocation2 [shape = 'u8[1024]{0}', space=vmem, size = 0x400, scoped, tag = 'output window, operand 0, single buffered']
    #allocation3 [shape = 's32[1]{0}', space=sflag, size = 0x4, scoped, tag = 'scoped memory for cnn_forward.5']
    %10 = vsyncpa [#allocation3], 0
    // Predicated region
    $region2: #{cnn_forward.5} parent=1 // pred_check
      _
    $region3: #{cnn_forward.5} parent=1 // pred_check_branch
      %12 = sbr.rel (0) target = $region5
    $region4: #{cnn_forward.5} parent=1 // pred_region
      _
    $region5: #{cnn_forward.5} parent=1 // pred_fallthru
      _
    // Predicated region
    $region6: #{cnn_forward.5} parent=1 // pred_check
      _
    $region7: #{cnn_forward.5} parent=1 // pred_check_branch
      %14 = sbr.rel (0) target = $region9
    $region8: #{cnn_forward.5} parent=1 // pred_region
      _
    $region9: #{cnn_forward.5} parent=1 // pred_fallthru
      _
    // Predicated region
    $region10: #{cnn_forward.5} parent=1 // pred_check
      _
    $region11: #{cnn_forward.5} parent=1 // pred_check_branch
      %16 = sbr.rel (0) target = $region13
    $region12: #{cnn_forward.5} parent=1 // pred_region
      _
    $region13: #{cnn_forward.5} parent=1 // pred_fallthru
      _
    // Predicated region
    $region14: #{cnn_forward.5} parent=1 // pred_check
      _
    $region15: #{cnn_forward.5} parent=1 // pred_check_branch
      %18 = sbr.rel (0) target = $region17
    $region16: #{cnn_forward.5} parent=1 // pred_region
      _
    $region17: #{cnn_forward.5} parent=1 // pred_fallthru
      _
    // Predicated region
    $region18: #{cnn_forward.5} parent=1 // pred_check
      _
    $region19: #{cnn_forward.5} parent=1 // pred_check_branch
      %20 = sbr.rel (0) target = $region21
    $region20: #{cnn_forward.5} parent=1 // pred_region
      _
    $region21: #{cnn_forward.5} parent=1 // pred_fallthru
      _
    %v22 = vld [vmem:[%s0] sm:$0xff]
    %v23 = vld [vmem:[%s0 + $0x8] sm:$0xff]
    %v24 = vld [vmem:[%s0 + $0x10] sm:$0xff]
    %v25 = vld [vmem:[%s0 + $0x18] sm:$0xff]
    %v26 = vld [vmem:[%s0 + $0x20] sm:$0xff]
    %v27 = vld [vmem:[%s0 + $0x28] sm:$0xff]
    %v28 = vld [vmem:[%s0 + $0x30] sm:$0xff]
    %v29 = vld [vmem:[%s0 + $0x38] sm:$0xff]
    %v30 = vld [vmem:[%s0 + $0x40] sm:$0xff]
    %v31 = vld [vmem:[%s0 + $0x48] sm:$0x3f]
    %v42 = vcombine.high %v22, %v22
    %v44 = vunpack.c.l.s4 1983009808
    %v45 = vunpack.c.0.s8 %v44
    %v46 = vlaneseq
    %v47 = vshrl.u32 %v46, 7
    %v48 = vsub.s32 %v45, %v47
    %v49 = vrot.slane %v22, %v48
    %v51 = vunpack.c.l.s4 1983009808
    %v52 = vunpack.c.0.s8 %v51
    %v53 = vlaneseq
    %v54 = vshrl.u32 %v53, 7
    %v55 = vsub.s32 %v52, %v54
    %v56 = vrot.slane %v42, %v55
    %v57 = vcombine.high %v49, %v49
    %v58 = vcombine.high %v56, %v56
    %v59 = vcombine.high %v23, %v23
    %v61 = vunpack.c.l.s4 1983009808
    %v62 = vunpack.c.0.s8 %v61
    %v63 = vlaneseq
    %v64 = vshrl.u32 %v63, 7
    %v65 = vsub.s32 %v62, %v64
    %v66 = vrot.slane %v23, %v65
    %v68 = vunpack.c.l.s4 1983009808
    %v69 = vunpack.c.0.s8 %v68
    %v70 = vlaneseq
    %v71 = vshrl.u32 %v70, 7
    %v72 = vsub.s32 %v69, %v71
    %v73 = vrot.slane %v59, %v72
    %v74 = vcombine.high %v66, %v66
    %v75 = vcombine.high %v73, %v73
    %v76 = vcombine.high %v24, %v24
    %v78 = vunpack.c.l.s4 1983009808
    %v79 = vunpack.c.0.s8 %v78
    %v80 = vlaneseq
    %v81 = vshrl.u32 %v80, 7
    %v82 = vsub.s32 %v79, %v81
    %v83 = vrot.slane %v24, %v82
    %v85 = vunpack.c.l.s4 1983009808
    %v86 = vunpack.c.0.s8 %v85
    %v87 = vlaneseq
    %v88 = vshrl.u32 %v87, 7
    %v89 = vsub.s32 %v86, %v88
    %v90 = vrot.slane %v76, %v89
    %v91 = vcombine.high %v83, %v83
    %v92 = vcombine.high %v90, %v90
    %v93 = vcombine.high %v25, %v25
    %v95 = vunpack.c.l.s4 1983009808
    %v96 = vunpack.c.0.s8 %v95
    %v97 = vlaneseq
    %v98 = vshrl.u32 %v97, 7
    %v99 = vsub.s32 %v96, %v98
    %v100 = vrot.slane %v25, %v99
    %v102 = vunpack.c.l.s4 1983009808
    %v103 = vunpack.c.0.s8 %v102
    %v104 = vlaneseq
    %v105 = vshrl.u32 %v104, 7
    %v106 = vsub.s32 %v103, %v105
    %v107 = vrot.slane %v93, %v106
    %v108 = vcombine.high %v100, %v100
    %v109 = vcombine.high %v107, %v107
    %v110 = vcombine.high %v26, %v26
    %v112 = vunpack.c.l.s4 1983009808
    %v113 = vunpack.c.0.s8 %v112
    %v114 = vlaneseq
    %v115 = vshrl.u32 %v114, 7
    %v116 = vsub.s32 %v113, %v115
    %v117 = vrot.slane %v26, %v116
    %v119 = vunpack.c.l.s4 1983009808
    %v120 = vunpack.c.0.s8 %v119
    %v121 = vlaneseq
    %v122 = vshrl.u32 %v121, 7
    %v123 = vsub.s32 %v120, %v122
    %v124 = vrot.slane %v110, %v123
    %v125 = vcombine.high %v117, %v117
    %v126 = vcombine.high %v124, %v124
    %v127 = vcombine.high %v27, %v27
    %v129 = vunpack.c.l.s4 1983009808
    %v130 = vunpack.c.0.s8 %v129
    %v131 = vlaneseq
    %v132 = vshrl.u32 %v131, 7
    %v133 = vsub.s32 %v130, %v132
    %v134 = vrot.slane %v27, %v133
    %v136 = vunpack.c.l.s4 1983009808
    %v137 = vunpack.c.0.s8 %v136
    %v138 = vlaneseq
    %v139 = vshrl.u32 %v138, 7
    %v140 = vsub.s32 %v137, %v139
    %v141 = vrot.slane %v127, %v140
    %v142 = vcombine.high %v134, %v134
    %v143 = vcombine.high %v141, %v141
    %v144 = vcombine.high %v28, %v28
    %v146 = vunpack.c.l.s4 1983009808
    %v147 = vunpack.c.0.s8 %v146
    %v148 = vlaneseq
    %v149 = vshrl.u32 %v148, 7
    %v150 = vsub.s32 %v147, %v149
    %v151 = vrot.slane %v28, %v150
    %v153 = vunpack.c.l.s4 1983009808
    %v154 = vunpack.c.0.s8 %v153
    %v155 = vlaneseq
    %v156 = vshrl.u32 %v155, 7
    %v157 = vsub.s32 %v154, %v156
    %v158 = vrot.slane %v144, %v157
    %v159 = vcombine.high %v151, %v151
    %v160 = vcombine.high %v158, %v158
    %v161 = vcombine.high %v29, %v29
    %v163 = vunpack.c.l.s4 1983009808
    %v164 = vunpack.c.0.s8 %v163
    %v165 = vlaneseq
    %v166 = vshrl.u32 %v165, 7
    %v167 = vsub.s32 %v164, %v166
    %v168 = vrot.slane %v29, %v167
    %v170 = vunpack.c.l.s4 1983009808
    %v171 = vunpack.c.0.s8 %v170
    %v172 = vlaneseq
    %v173 = vshrl.u32 %v172, 7
    %v174 = vsub.s32 %v171, %v173
    %v175 = vrot.slane %v161, %v174
    %v176 = vcombine.high %v168, %v168
    %v177 = vcombine.high %v175, %v175
    %v178 = vcombine.high %v30, %v30
    %v180 = vunpack.c.l.s4 1983009808
    %v181 = vunpack.c.0.s8 %v180
    %v182 = vlaneseq
    %v183 = vshrl.u32 %v182, 7
    %v184 = vsub.s32 %v181, %v183
    %v185 = vrot.slane %v30, %v184
    %v187 = vunpack.c.l.s4 1983009808
    %v188 = vunpack.c.0.s8 %v187
    %v189 = vlaneseq
    %v190 = vshrl.u32 %v189, 7
    %v191 = vsub.s32 %v188, %v190
    %v192 = vrot.slane %v178, %v191
    %v193 = vcombine.high %v185, %v185
    %v194 = vcombine.high %v192, %v192
    %v195 = vcombine.high %v31, %v31
    %v197 = vunpack.c.l.s4 1983009808
    %v198 = vunpack.c.0.s8 %v197
    %v199 = vlaneseq
    %v200 = vshrl.u32 %v199, 7
    %v201 = vsub.s32 %v198, %v200
    %v202 = vrot.slane %v31, %v201
    %v204 = vunpack.c.l.s4 1983009808
    %v205 = vunpack.c.0.s8 %v204
    %v206 = vlaneseq
    %v207 = vshrl.u32 %v206, 7
    %v208 = vsub.s32 %v205, %v207
    %v209 = vrot.slane %v195, %v208
    %v210 = vcombine.high %v202, %v202
    %v250 = vpack.c.bf16 %v49, %v49
    %v251 = vpack.c.bf16 %v57, %v57
    %v252 = vpack.c.bf16 %v56, %v56
    %v253 = vpack.c.bf16 %v58, %v58
    %v254 = vpack.c.bf16 %v66, %v66
    %v255 = vpack.c.bf16 %v74, %v74
    %v256 = vpack.c.bf16 %v73, %v73
    %v257 = vpack.c.bf16 %v75, %v75
    %v258 = vpack.c.bf16 %v83, %v83
    %v259 = vpack.c.bf16 %v91, %v91
    %v260 = vpack.c.bf16 %v90, %v90
    %v261 = vpack.c.bf16 %v92, %v92
    %v262 = vpack.c.bf16 %v100, %v100
    %v263 = vpack.c.bf16 %v108, %v108
    %v264 = vpack.c.bf16 %v107, %v107
    %v265 = vpack.c.bf16 %v109, %v109
    %v266 = vpack.c.bf16 %v117, %v117
    %v267 = vpack.c.bf16 %v125, %v125
    %v268 = vpack.c.bf16 %v124, %v124
    %v269 = vpack.c.bf16 %v126, %v126
    %v270 = vpack.c.bf16 %v134, %v134
    %v271 = vpack.c.bf16 %v142, %v142
    %v272 = vpack.c.bf16 %v141, %v141
    %v273 = vpack.c.bf16 %v143, %v143
    %v274 = vpack.c.bf16 %v151, %v151
    %v275 = vpack.c.bf16 %v159, %v159
    %v276 = vpack.c.bf16 %v158, %v158
    %v277 = vpack.c.bf16 %v160, %v160
    %v278 = vpack.c.bf16 %v168, %v168
    %v279 = vpack.c.bf16 %v176, %v176
    %v280 = vpack.c.bf16 %v175, %v175
    %v281 = vpack.c.bf16 %v177, %v177
    %v282 = vpack.c.bf16 %v185, %v185
    %v283 = vpack.c.bf16 %v193, %v193
    %v284 = vpack.c.bf16 %v192, %v192
    %v285 = vpack.c.bf16 %v194, %v194
    %v286 = vpack.c.bf16 %v202, %v202
    %v287 = vpack.c.bf16 %v210, %v210
    %v288 = vpack.c.bf16 %v209, %v209
    %v289 = vld [vmem:[%s1] sm:$0xff]
    %v290 = vld [vmem:[%s1 + $0x8] sm:$0xff]
    %v291 = vld [vmem:[%s1 + $0x10] sm:$0xff]
    %v292 = vld [vmem:[%s1 + $0x18] sm:$0xff]
    %v293 = vld [vmem:[%s1 + $0x20] sm:$0xff]
    %v294 = vld [vmem:[%s1 + $0x28] sm:$0xff]
    %v295 = vld [vmem:[%s1 + $0x30] sm:$0xff]
    %v296 = vld [vmem:[%s1 + $0x38] sm:$0xff]
    %v297 = vld [vmem:[%s1 + $0x40] sm:$0xff]
    %v298 = vld [vmem:[%s1 + $0x48] sm:$0xff]
    %v299 = vld [vmem:[%s1 + $0x50] sm:$0xff]
    %v300 = vld [vmem:[%s1 + $0x58] sm:$0xff]
    %v301 = vld [vmem:[%s1 + $0x60] sm:$0xff]
    %v302 = vld [vmem:[%s1 + $0x68] sm:$0xff]
    %v303 = vld [vmem:[%s1 + $0x70] sm:$0xff]
    %v304 = vld [vmem:[%s1 + $0x78] sm:$0xff]
    %v305 = vld [vmem:[%s1 + $0x80] sm:$0xff]
    %v306 = vld [vmem:[%s1 + $0x88] sm:$0xff]
    %v307 = vld [vmem:[%s1 + $0x90] sm:$0xff]
    %v308 = vld [vmem:[%s1 + $0x98] sm:$0xff]
    %v309 = vld [vmem:[%s1 + $0xa0] sm:$0xff]
    %v310 = vld [vmem:[%s1 + $0xa8] sm:$0xff]
    %v311 = vld [vmem:[%s1 + $0xb0] sm:$0xff]
    %v312 = vld [vmem:[%s1 + $0xb8] sm:$0xff]
    %v313 = vld [vmem:[%s1 + $0xc0] sm:$0xff]
    %v314 = vld [vmem:[%s1 + $0xc8] sm:$0xff]
    %v315 = vld [vmem:[%s1 + $0xd0] sm:$0xff]
    %v316 = vld [vmem:[%s1 + $0xd8] sm:$0xff]
    %v317 = vld [vmem:[%s1 + $0xe0] sm:$0xff]
    %v318 = vld [vmem:[%s1 + $0xe8] sm:$0xff]
    %v319 = vld [vmem:[%s1 + $0xf0] sm:$0xff]
    %v320 = vld [vmem:[%s1 + $0xf8] sm:$0xff]
    %v321 = vld [vmem:[%s1 + $0x100] sm:$0xff]
    %v322 = vld [vmem:[%s1 + $0x108] sm:$0xff]
    %v323 = vld [vmem:[%s1 + $0x110] sm:$0xff]
    %v324 = vld [vmem:[%s1 + $0x118] sm:$0xff]
    %v325 = vld [vmem:[%s1 + $0x120] sm:$0xff]
    %v326 = vld [vmem:[%s1 + $0x128] sm:$0xff]
    %v327 = vld [vmem:[%s1 + $0x130] sm:$0xff]
    %v328 = vld [vmem:[%s1 + $0x138] sm:$0xff]
    %v329 = vld [vmem:[%s1 + $0x140] sm:$0xff]
    %v330 = vld [vmem:[%s1 + $0x148] sm:$0xff]
    %v331 = vld [vmem:[%s1 + $0x150] sm:$0xff]
    %v332 = vld [vmem:[%s1 + $0x158] sm:$0xff]
    %v333 = vld [vmem:[%s1 + $0x160] sm:$0xff]
    %v334 = vld [vmem:[%s1 + $0x168] sm:$0xff]
    %v335 = vld [vmem:[%s1 + $0x170] sm:$0xff]
    %v336 = vld [vmem:[%s1 + $0x178] sm:$0xff]
    %v337 = vld [vmem:[%s1 + $0x180] sm:$0xff]
    %v338 = vld [vmem:[%s1 + $0x188] sm:$0xff]
    %v339 = vld [vmem:[%s1 + $0x190] sm:$0xff]
    %v340 = vld [vmem:[%s1 + $0x198] sm:$0xff]
    %v341 = vld [vmem:[%s1 + $0x1a0] sm:$0xff]
    %v342 = vld [vmem:[%s1 + $0x1a8] sm:$0xff]
    %v343 = vld [vmem:[%s1 + $0x1b0] sm:$0xff]
    %v344 = vld [vmem:[%s1 + $0x1b8] sm:$0xff]
    %v345 = vld [vmem:[%s1 + $0x1c0] sm:$0xff]
    %v346 = vld [vmem:[%s1 + $0x1c8] sm:$0xff]
    %v347 = vld [vmem:[%s1 + $0x1d0] sm:$0xff]
    %v348 = vld [vmem:[%s1 + $0x1d8] sm:$0xff]
    %v349 = vld [vmem:[%s1 + $0x1e0] sm:$0xff]
    %v350 = vld [vmem:[%s1 + $0x1e8] sm:$0xff]
    %v351 = vld [vmem:[%s1 + $0x1f0] sm:$0xff]
    %v352 = vld [vmem:[%s1 + $0x1f8] sm:$0xff]
    %v353 = vld [vmem:[%s1 + $0x200] sm:$0xff]
    %v354 = vld [vmem:[%s1 + $0x208] sm:$0xff]
    %v355 = vld [vmem:[%s1 + $0x210] sm:$0xff]
    %v356 = vld [vmem:[%s1 + $0x218] sm:$0xff]
    %v357 = vld [vmem:[%s1 + $0x220] sm:$0xff]
    %v358 = vld [vmem:[%s1 + $0x228] sm:$0xff]
    %v359 = vld [vmem:[%s1 + $0x230] sm:$0xff]
    %v360 = vld [vmem:[%s1 + $0x238] sm:$0xff]
    %v361 = vld [vmem:[%s1 + $0x240] sm:$0xff]
    %v362 = vld [vmem:[%s1 + $0x248] sm:$0xff]
    %v363 = vld [vmem:[%s1 + $0x250] sm:$0xff]
    %v364 = vld [vmem:[%s1 + $0x258] sm:$0xff]
    %v365 = vld [vmem:[%s1 + $0x260] sm:$0xff]
    %v366 = vld [vmem:[%s1 + $0x268] sm:$0xff]
    %v367 = vld [vmem:[%s1 + $0x270] sm:$0xff]
    %v368 = vld [vmem:[%s1 + $0x278] sm:$0xff]
    %v369 = vld [vmem:[%s1 + $0x280] sm:$0xff]
    %v370 = vld [vmem:[%s1 + $0x288] sm:$0xff]
    %v371 = vld [vmem:[%s1 + $0x290] sm:$0xff]
    %v372 = vld [vmem:[%s1 + $0x298] sm:$0xff]
    %v373 = vld [vmem:[%s1 + $0x2a0] sm:$0xff]
    %v374 = vld [vmem:[%s1 + $0x2a8] sm:$0xff]
    %v375 = vld [vmem:[%s1 + $0x2b0] sm:$0xff]
    %v376 = vld [vmem:[%s1 + $0x2b8] sm:$0xff]
    %v377 = vld [vmem:[%s1 + $0x2c0] sm:$0xff]
    %v378 = vld [vmem:[%s1 + $0x2c8] sm:$0xff]
    %v379 = vld [vmem:[%s1 + $0x2d0] sm:$0xff]
    %v380 = vld [vmem:[%s1 + $0x2d8] sm:$0xff]
    %v381 = vld [vmem:[%s1 + $0x2e0] sm:$0xff]
    %v382 = vld [vmem:[%s1 + $0x2e8] sm:$0xff]
    %v383 = vld [vmem:[%s1 + $0x2f0] sm:$0xff]
    %v384 = vld [vmem:[%s1 + $0x2f8] sm:$0xff]
    %v385 = vld [vmem:[%s1 + $0x300] sm:$0xff]
    %v386 = vld [vmem:[%s1 + $0x308] sm:$0xff]
    %v387 = vld [vmem:[%s1 + $0x310] sm:$0xff]
    %v388 = vld [vmem:[%s1 + $0x318] sm:$0xff]
    %v389 = vld [vmem:[%s1 + $0x320] sm:$0xff]
    %v390 = vld [vmem:[%s1 + $0x328] sm:$0xff]
    %v391 = vld [vmem:[%s1 + $0x330] sm:$0xff]
    %v392 = vld [vmem:[%s1 + $0x338] sm:$0xff]
    %v393 = vld [vmem:[%s1 + $0x340] sm:$0xff]
    %v394 = vld [vmem:[%s1 + $0x348] sm:$0xff]
    %v395 = vld [vmem:[%s1 + $0x350] sm:$0xff]
    %v396 = vld [vmem:[%s1 + $0x358] sm:$0xff]
    %v397 = vld [vmem:[%s1 + $0x360] sm:$0xff]
    %v398 = vld [vmem:[%s1 + $0x368] sm:$0xff]
    %v399 = vld [vmem:[%s1 + $0x370] sm:$0xff]
    %v400 = vld [vmem:[%s1 + $0x378] sm:$0xff]
    %v401 = vld [vmem:[%s1 + $0x380] sm:$0xff]
    %v402 = vld [vmem:[%s1 + $0x388] sm:$0xff]
    %v403 = vld [vmem:[%s1 + $0x390] sm:$0xff]
    %v404 = vld [vmem:[%s1 + $0x398] sm:$0xff]
    %v405 = vld [vmem:[%s1 + $0x3a0] sm:$0xff]
    %v406 = vld [vmem:[%s1 + $0x3a8] sm:$0xff]
    %v407 = vld [vmem:[%s1 + $0x3b0] sm:$0xff]
    %v408 = vld [vmem:[%s1 + $0x3b8] sm:$0xff]
    %v409 = vld [vmem:[%s1 + $0x3c0] sm:$0xff]
    %v410 = vld [vmem:[%s1 + $0x3c8] sm:$0xff]
    %v411 = vld [vmem:[%s1 + $0x3d0] sm:$0xff]
    %v412 = vld [vmem:[%s1 + $0x3d8] sm:$0xff]
    %v413 = vld [vmem:[%s1 + $0x3e0] sm:$0xff]
    %v414 = vld [vmem:[%s1 + $0x3e8] sm:$0xff]
    %v415 = vld [vmem:[%s1 + $0x3f0] sm:$0xff]
    %v416 = vld [vmem:[%s1 + $0x3f8] sm:$0xff]
    %v417 = vld [vmem:[%s1 + $0x400] sm:$0xff]
    %v418 = vld [vmem:[%s1 + $0x408] sm:$0xff]
    %v419 = vld [vmem:[%s1 + $0x410] sm:$0xff]
    %v420 = vld [vmem:[%s1 + $0x418] sm:$0xff]
    %v421 = vld [vmem:[%s1 + $0x420] sm:$0xff]
    %v422 = vld [vmem:[%s1 + $0x428] sm:$0xff]
    %v423 = vld [vmem:[%s1 + $0x430] sm:$0xff]
    %v424 = vld [vmem:[%s1 + $0x438] sm:$0xff]
    %v425 = vld [vmem:[%s1 + $0x440] sm:$0xff]
    %v426 = vld [vmem:[%s1 + $0x448] sm:$0xff]
    %v427 = vld [vmem:[%s1 + $0x450] sm:$0xff]
    %v428 = vld [vmem:[%s1 + $0x458] sm:$0xff]
    %v429 = vld [vmem:[%s1 + $0x460] sm:$0xff]
    %v430 = vld [vmem:[%s1 + $0x468] sm:$0xff]
    %v431 = vld [vmem:[%s1 + $0x470] sm:$0xff]
    %v432 = vld [vmem:[%s1 + $0x478] sm:$0xff]
    %v433 = vld [vmem:[%s1 + $0x480] sm:$0xff]
    %v434 = vld [vmem:[%s1 + $0x488] sm:$0xff]
    %v435 = vld [vmem:[%s1 + $0x490] sm:$0xff]
    %v436 = vld [vmem:[%s1 + $0x498] sm:$0xff]
    %v437 = vld [vmem:[%s1 + $0x4a0] sm:$0xff]
    %v438 = vld [vmem:[%s1 + $0x4a8] sm:$0xff]
    %v439 = vld [vmem:[%s1 + $0x4b0] sm:$0xff]
    %v440 = vld [vmem:[%s1 + $0x4b8] sm:$0xff]
    %v441 = vld [vmem:[%s1 + $0x4c0] sm:$0xff]
    %v442 = vld [vmem:[%s1 + $0x4c8] sm:$0xff]
    %v443 = vld [vmem:[%s1 + $0x4d0] sm:$0xff]
    %v444 = vld [vmem:[%s1 + $0x4d8] sm:$0xff]
    %v445 = vld [vmem:[%s1 + $0x4e0] sm:$0xff]
    %v446 = vld [vmem:[%s1 + $0x4e8] sm:$0xff]
    %v447 = vld [vmem:[%s1 + $0x4f0] sm:$0xff]
    %v448 = vld [vmem:[%s1 + $0x4f8] sm:$0xff]
    %v449 = vld [vmem:[%s1 + $0x500] sm:$0xff]
    %v450 = vld [vmem:[%s1 + $0x508] sm:$0xff]
    %v451 = vld [vmem:[%s1 + $0x510] sm:$0xff]
    %v452 = vld [vmem:[%s1 + $0x518] sm:$0xff]
    %v453 = vld [vmem:[%s1 + $0x520] sm:$0xff]
    %v454 = vld [vmem:[%s1 + $0x528] sm:$0xff]
    %v455 = vld [vmem:[%s1 + $0x530] sm:$0xff]
    %v456 = vld [vmem:[%s1 + $0x538] sm:$0xff]
    %v457 = vld [vmem:[%s1 + $0x540] sm:$0xff]
    %v458 = vld [vmem:[%s1 + $0x548] sm:$0xff]
    %v459 = vld [vmem:[%s1 + $0x550] sm:$0xff]
    %v460 = vld [vmem:[%s1 + $0x558] sm:$0xff]
    %v461 = vld [vmem:[%s1 + $0x560] sm:$0xff]
    %v462 = vld [vmem:[%s1 + $0x568] sm:$0xff]
    %v463 = vld [vmem:[%s1 + $0x570] sm:$0xff]
    %v464 = vld [vmem:[%s1 + $0x578] sm:$0xff]
    %v465 = vld [vmem:[%s1 + $0x580] sm:$0xff]
    %v466 = vld [vmem:[%s1 + $0x588] sm:$0xff]
    %v467 = vld [vmem:[%s1 + $0x590] sm:$0xff]
    %v468 = vld [vmem:[%s1 + $0x598] sm:$0xff]
    %v469 = vld [vmem:[%s1 + $0x5a0] sm:$0xff]
    %v470 = vld [vmem:[%s1 + $0x5a8] sm:$0xff]
    %v471 = vld [vmem:[%s1 + $0x5b0] sm:$0xff]
    %v472 = vld [vmem:[%s1 + $0x5b8] sm:$0xff]
    %v473 = vld [vmem:[%s1 + $0x5c0] sm:$0xff]
    %v474 = vld [vmem:[%s1 + $0x5c8] sm:$0xff]
    %v475 = vld [vmem:[%s1 + $0x5d0] sm:$0xff]
    %v476 = vld [vmem:[%s1 + $0x5d8] sm:$0xff]
    %v477 = vld [vmem:[%s1 + $0x5e0] sm:$0xff]
    %v478 = vld [vmem:[%s1 + $0x5e8] sm:$0xff]
    %v479 = vld [vmem:[%s1 + $0x5f0] sm:$0xff]
    %v480 = vld [vmem:[%s1 + $0x5f8] sm:$0xff]
    %v481 = vld [vmem:[%s1 + $0x600] sm:$0xff]
    %v482 = vld [vmem:[%s1 + $0x608] sm:$0xff]
    %v483 = vld [vmem:[%s1 + $0x610] sm:$0xff]
    %v484 = vld [vmem:[%s1 + $0x618] sm:$0xff]
    %v485 = vld [vmem:[%s1 + $0x620] sm:$0xff]
    %v486 = vld [vmem:[%s1 + $0x628] sm:$0xff]
    %v487 = vld [vmem:[%s1 + $0x630] sm:$0xff]
    %v488 = vld [vmem:[%s1 + $0x638] sm:$0xff]
    %v489 = vld [vmem:[%s1 + $0x640] sm:$0xff]
    %v490 = vld [vmem:[%s1 + $0x648] sm:$0xff]
    %v491 = vld [vmem:[%s1 + $0x650] sm:$0xff]
    %v492 = vld [vmem:[%s1 + $0x658] sm:$0xff]
    %v493 = vld [vmem:[%s1 + $0x660] sm:$0xff]
    %v494 = vld [vmem:[%s1 + $0x668] sm:$0xff]
    %v495 = vld [vmem:[%s1 + $0x670] sm:$0xff]
    %v496 = vld [vmem:[%s1 + $0x678] sm:$0xff]
    %v497 = vld [vmem:[%s1 + $0x680] sm:$0xff]
    %v498 = vld [vmem:[%s1 + $0x688] sm:$0xff]
    %v499 = vld [vmem:[%s1 + $0x690] sm:$0xff]
    %v500 = vld [vmem:[%s1 + $0x698] sm:$0xff]
    %v501 = vld [vmem:[%s1 + $0x6a0] sm:$0xff]
    %v502 = vld [vmem:[%s1 + $0x6a8] sm:$0xff]
    %v503 = vld [vmem:[%s1 + $0x6b0] sm:$0xff]
    %v504 = vld [vmem:[%s1 + $0x6b8] sm:$0xff]
    %v505 = vld [vmem:[%s1 + $0x6c0] sm:$0xff]
    %v506 = vld [vmem:[%s1 + $0x6c8] sm:$0xff]
    %v507 = vld [vmem:[%s1 + $0x6d0] sm:$0xff]
    %v508 = vld [vmem:[%s1 + $0x6d8] sm:$0xff]
    %v509 = vld [vmem:[%s1 + $0x6e0] sm:$0xff]
    %v510 = vld [vmem:[%s1 + $0x6e8] sm:$0xff]
    %v511 = vld [vmem:[%s1 + $0x6f0] sm:$0xff]
    %v512 = vld [vmem:[%s1 + $0x6f8] sm:$0xff]
    %v513 = vld [vmem:[%s1 + $0x700] sm:$0xff]
    %v514 = vld [vmem:[%s1 + $0x708] sm:$0xff]
    %v515 = vld [vmem:[%s1 + $0x710] sm:$0xff]
    %v516 = vld [vmem:[%s1 + $0x718] sm:$0xff]
    %v517 = vld [vmem:[%s1 + $0x720] sm:$0xff]
    %v518 = vld [vmem:[%s1 + $0x728] sm:$0xff]
    %v519 = vld [vmem:[%s1 + $0x730] sm:$0xff]
    %v520 = vld [vmem:[%s1 + $0x738] sm:$0xff]
    %v521 = vld [vmem:[%s1 + $0x740] sm:$0xff]
    %v522 = vld [vmem:[%s1 + $0x748] sm:$0xff]
    %v523 = vld [vmem:[%s1 + $0x750] sm:$0xff]
    %v524 = vld [vmem:[%s1 + $0x758] sm:$0xff]
    %v525 = vld [vmem:[%s1 + $0x760] sm:$0xff]
    %v526 = vld [vmem:[%s1 + $0x768] sm:$0xff]
    %v527 = vld [vmem:[%s1 + $0x770] sm:$0xff]
    %v528 = vld [vmem:[%s1 + $0x778] sm:$0xff]
    %v529 = vld [vmem:[%s1 + $0x780] sm:$0xff]
    %v530 = vld [vmem:[%s1 + $0x788] sm:$0xff]
    %v531 = vld [vmem:[%s1 + $0x790] sm:$0xff]
    %v532 = vld [vmem:[%s1 + $0x798] sm:$0xff]
    %v533 = vld [vmem:[%s1 + $0x7a0] sm:$0xff]
    %v534 = vld [vmem:[%s1 + $0x7a8] sm:$0xff]
    %v535 = vld [vmem:[%s1 + $0x7b0] sm:$0xff]
    %v536 = vld [vmem:[%s1 + $0x7b8] sm:$0xff]
    %v537 = vld [vmem:[%s1 + $0x7c0] sm:$0xff]
    %v538 = vld [vmem:[%s1 + $0x7c8] sm:$0xff]
    %v539 = vld [vmem:[%s1 + $0x7d0] sm:$0xff]
    %v540 = vld [vmem:[%s1 + $0x7d8] sm:$0xff]
    %v541 = vld [vmem:[%s1 + $0x7e0] sm:$0xff]
    %v542 = vld [vmem:[%s1 + $0x7e8] sm:$0xff]
    %v543 = vld [vmem:[%s1 + $0x7f0] sm:$0xff]
    %v544 = vld [vmem:[%s1 + $0x7f8] sm:$0xff]
    %v545 = vld [vmem:[%s1 + $0x800] sm:$0xff]
    %v546 = vld [vmem:[%s1 + $0x808] sm:$0xff]
    %v547 = vld [vmem:[%s1 + $0x810] sm:$0xff]
    %v548 = vld [vmem:[%s1 + $0x818] sm:$0xff]
    %v549 = vld [vmem:[%s1 + $0x820] sm:$0xff]
    %v550 = vld [vmem:[%s1 + $0x828] sm:$0xff]
    %v551 = vld [vmem:[%s1 + $0x830] sm:$0xff]
    %v552 = vld [vmem:[%s1 + $0x838] sm:$0xff]
    %v553 = vld [vmem:[%s1 + $0x840] sm:$0xff]
    %v554 = vld [vmem:[%s1 + $0x848] sm:$0xff]
    %v555 = vld [vmem:[%s1 + $0x850] sm:$0xff]
    %v556 = vld [vmem:[%s1 + $0x858] sm:$0xff]
    %v557 = vld [vmem:[%s1 + $0x860] sm:$0xff]
    %v558 = vld [vmem:[%s1 + $0x868] sm:$0xff]
    %v559 = vld [vmem:[%s1 + $0x870] sm:$0xff]
    %v560 = vld [vmem:[%s1 + $0x878] sm:$0xff]
    %v561 = vld [vmem:[%s1 + $0x880] sm:$0xff]
    %v562 = vld [vmem:[%s1 + $0x888] sm:$0xff]
    %v563 = vld [vmem:[%s1 + $0x890] sm:$0xff]
    %v564 = vld [vmem:[%s1 + $0x898] sm:$0xff]
    %v565 = vld [vmem:[%s1 + $0x8a0] sm:$0xff]
    %v566 = vld [vmem:[%s1 + $0x8a8] sm:$0xff]
    %v567 = vld [vmem:[%s1 + $0x8b0] sm:$0xff]
    %v568 = vld [vmem:[%s1 + $0x8b8] sm:$0xff]
    %v569 = vld [vmem:[%s1 + $0x8c0] sm:$0xff]
    %v570 = vld [vmem:[%s1 + $0x8c8] sm:$0xff]
    %v571 = vld [vmem:[%s1 + $0x8d0] sm:$0xff]
    %v572 = vld [vmem:[%s1 + $0x8d8] sm:$0xff]
    %v573 = vld [vmem:[%s1 + $0x8e0] sm:$0xff]
    %v574 = vld [vmem:[%s1 + $0x8e8] sm:$0xff]
    %v575 = vld [vmem:[%s1 + $0x8f0] sm:$0xff]
    %v576 = vld [vmem:[%s1 + $0x8f8] sm:$0xff]
    %v577 = vld [vmem:[%s1 + $0x900] sm:$0xff]
    %v578 = vld [vmem:[%s1 + $0x908] sm:$0xff]
    %v579 = vld [vmem:[%s1 + $0x910] sm:$0xff]
    %v580 = vld [vmem:[%s1 + $0x918] sm:$0xff]
    %v581 = vld [vmem:[%s1 + $0x920] sm:$0xff]
    %v582 = vld [vmem:[%s1 + $0x928] sm:$0xff]
    %v583 = vld [vmem:[%s1 + $0x930] sm:$0xff]
    %v584 = vld [vmem:[%s1 + $0x938] sm:$0xff]
    %v585 = vld [vmem:[%s1 + $0x940] sm:$0xff]
    %v586 = vld [vmem:[%s1 + $0x948] sm:$0xff]
    %v587 = vld [vmem:[%s1 + $0x950] sm:$0xff]
    %v588 = vld [vmem:[%s1 + $0x958] sm:$0xff]
    %v589 = vld [vmem:[%s1 + $0x960] sm:$0xff]
    %v590 = vld [vmem:[%s1 + $0x968] sm:$0xff]
    %v591 = vld [vmem:[%s1 + $0x970] sm:$0xff]
    %v592 = vld [vmem:[%s1 + $0x978] sm:$0xff]
    %v593 = vld [vmem:[%s1 + $0x980] sm:$0xff]
    %v594 = vld [vmem:[%s1 + $0x988] sm:$0xff]
    %v595 = vld [vmem:[%s1 + $0x990] sm:$0xff]
    %v596 = vld [vmem:[%s1 + $0x998] sm:$0xff]
    %v597 = vld [vmem:[%s1 + $0x9a0] sm:$0xff]
    %v598 = vld [vmem:[%s1 + $0x9a8] sm:$0xff]
    %v599 = vld [vmem:[%s1 + $0x9b0] sm:$0xff]
    %v600 = vld [vmem:[%s1 + $0x9b8] sm:$0xff]
    %v601 = vld [vmem:[%s1 + $0x9c0] sm:$0xff]
    %v602 = vld [vmem:[%s1 + $0x9c8] sm:$0xff]
    %v603 = vld [vmem:[%s1 + $0x9d0] sm:$0xff]
    %v604 = vld [vmem:[%s1 + $0x9d8] sm:$0xff]
    %v605 = vld [vmem:[%s1 + $0x9e0] sm:$0xff]
    %v606 = vld [vmem:[%s1 + $0x9e8] sm:$0xff]
    %v607 = vld [vmem:[%s1 + $0x9f0] sm:$0xff]
    %v608 = vld [vmem:[%s1 + $0x9f8] sm:$0xff]
    %v609 = vld [vmem:[%s1 + $0xa00] sm:$0xff]
    %v610 = vld [vmem:[%s1 + $0xa08] sm:$0xff]
    %v611 = vld [vmem:[%s1 + $0xa10] sm:$0xff]
    %v612 = vld [vmem:[%s1 + $0xa18] sm:$0xff]
    %v613 = vld [vmem:[%s1 + $0xa20] sm:$0xff]
    %v614 = vld [vmem:[%s1 + $0xa28] sm:$0xff]
    %v615 = vld [vmem:[%s1 + $0xa30] sm:$0xff]
    %v616 = vld [vmem:[%s1 + $0xa38] sm:$0xff]
    %v617 = vld [vmem:[%s1 + $0xa40] sm:$0xff]
    %v618 = vld [vmem:[%s1 + $0xa48] sm:$0xff]
    %v619 = vld [vmem:[%s1 + $0xa50] sm:$0xff]
    %v620 = vld [vmem:[%s1 + $0xa58] sm:$0xff]
    %v621 = vld [vmem:[%s1 + $0xa60] sm:$0xff]
    %v622 = vld [vmem:[%s1 + $0xa68] sm:$0xff]
    %v623 = vld [vmem:[%s1 + $0xa70] sm:$0xff]
    %v624 = vld [vmem:[%s1 + $0xa78] sm:$0xff]
    %v625 = vld [vmem:[%s1 + $0xa80] sm:$0xff]
    %v626 = vld [vmem:[%s1 + $0xa88] sm:$0xff]
    %v627 = vld [vmem:[%s1 + $0xa90] sm:$0xff]
    %v628 = vld [vmem:[%s1 + $0xa98] sm:$0xff]
    %v629 = vld [vmem:[%s1 + $0xaa0] sm:$0xff]
    %v630 = vld [vmem:[%s1 + $0xaa8] sm:$0xff]
    %v631 = vld [vmem:[%s1 + $0xab0] sm:$0xff]
    %v632 = vld [vmem:[%s1 + $0xab8] sm:$0xff]
    %v633 = vld [vmem:[%s1 + $0xac0] sm:$0xff]
    %v634 = vld [vmem:[%s1 + $0xac8] sm:$0xff]
    %v635 = vld [vmem:[%s1 + $0xad0] sm:$0xff]
    %v636 = vld [vmem:[%s1 + $0xad8] sm:$0xff]
    %v637 = vld [vmem:[%s1 + $0xae0] sm:$0xff]
    %v638 = vld [vmem:[%s1 + $0xae8] sm:$0xff]
    %v639 = vld [vmem:[%s1 + $0xaf0] sm:$0xff]
    %v640 = vld [vmem:[%s1 + $0xaf8] sm:$0xff]
    %v641 = vld [vmem:[%s1 + $0xb00] sm:$0xff]
    %v642 = vld [vmem:[%s1 + $0xb08] sm:$0xff]
    %v643 = vld [vmem:[%s1 + $0xb10] sm:$0xff]
    %v644 = vld [vmem:[%s1 + $0xb18] sm:$0xff]
    %v645 = vld [vmem:[%s1 + $0xb20] sm:$0xff]
    %v646 = vld [vmem:[%s1 + $0xb28] sm:$0xff]
    %v647 = vld [vmem:[%s1 + $0xb30] sm:$0xff]
    %v648 = vld [vmem:[%s1 + $0xb38] sm:$0xff]
    %v649 = vld [vmem:[%s1 + $0xb40] sm:$0xff]
    %v650 = vld [vmem:[%s1 + $0xb48] sm:$0xff]
    %v651 = vld [vmem:[%s1 + $0xb50] sm:$0xff]
    %v652 = vld [vmem:[%s1 + $0xb58] sm:$0xff]
    %v653 = vld [vmem:[%s1 + $0xb60] sm:$0xff]
    %v654 = vld [vmem:[%s1 + $0xb68] sm:$0xff]
    %v655 = vld [vmem:[%s1 + $0xb70] sm:$0xff]
    %v656 = vld [vmem:[%s1 + $0xb78] sm:$0xff]
    %v657 = vld [vmem:[%s1 + $0xb80] sm:$0xff]
    %v658 = vld [vmem:[%s1 + $0xb88] sm:$0xff]
    %v659 = vld [vmem:[%s1 + $0xb90] sm:$0xff]
    %v660 = vld [vmem:[%s1 + $0xb98] sm:$0xff]
    %v661 = vld [vmem:[%s1 + $0xba0] sm:$0xff]
    %v662 = vld [vmem:[%s1 + $0xba8] sm:$0xff]
    %v663 = vld [vmem:[%s1 + $0xbb0] sm:$0xff]
    %v664 = vld [vmem:[%s1 + $0xbb8] sm:$0xff]
    %v665 = vld [vmem:[%s1 + $0xbc0] sm:$0xff]
    %v666 = vld [vmem:[%s1 + $0xbc8] sm:$0xff]
    %v667 = vld [vmem:[%s1 + $0xbd0] sm:$0xff]
    %v668 = vld [vmem:[%s1 + $0xbd8] sm:$0xff]
    %v669 = vld [vmem:[%s1 + $0xbe0] sm:$0xff]
    %v670 = vld [vmem:[%s1 + $0xbe8] sm:$0xff]
    %v671 = vld [vmem:[%s1 + $0xbf0] sm:$0xff]
    %v672 = vld [vmem:[%s1 + $0xbf8] sm:$0xff]
    %v673 = vld [vmem:[%s1 + $0xc00] sm:$0xff]
    %v674 = vld [vmem:[%s1 + $0xc08] sm:$0xff]
    %v675 = vld [vmem:[%s1 + $0xc10] sm:$0xff]
    %v676 = vld [vmem:[%s1 + $0xc18] sm:$0xff]
    %v677 = vld [vmem:[%s1 + $0xc20] sm:$0xff]
    %v678 = vld [vmem:[%s1 + $0xc28] sm:$0xff]
    %v679 = vld [vmem:[%s1 + $0xc30] sm:$0xff]
    %v680 = vld [vmem:[%s1 + $0xc38] sm:$0xff]
    %v681 = vld [vmem:[%s1 + $0xc40] sm:$0xff]
    %v682 = vld [vmem:[%s1 + $0xc48] sm:$0xff]
    %v683 = vld [vmem:[%s1 + $0xc50] sm:$0xff]
    %v684 = vld [vmem:[%s1 + $0xc58] sm:$0xff]
    %v685 = vld [vmem:[%s1 + $0xc60] sm:$0xff]
    %v686 = vld [vmem:[%s1 + $0xc68] sm:$0xff]
    %v687 = vld [vmem:[%s1 + $0xc70] sm:$0xff]
    %v688 = vld [vmem:[%s1 + $0xc78] sm:$0xff]
    %v689 = vld [vmem:[%s1 + $0xc80] sm:$0xff]
    %v690 = vld [vmem:[%s1 + $0xc88] sm:$0xff]
    %v691 = vld [vmem:[%s1 + $0xc90] sm:$0xff]
    %v692 = vld [vmem:[%s1 + $0xc98] sm:$0xff]
    %v693 = vld [vmem:[%s1 + $0xca0] sm:$0xff]
    %v694 = vld [vmem:[%s1 + $0xca8] sm:$0xff]
    %v695 = vld [vmem:[%s1 + $0xcb0] sm:$0xff]
    %v696 = vld [vmem:[%s1 + $0xcb8] sm:$0xff]
    %v697 = vld [vmem:[%s1 + $0xcc0] sm:$0xff]
    %v698 = vld [vmem:[%s1 + $0xcc8] sm:$0xff]
    %v699 = vld [vmem:[%s1 + $0xcd0] sm:$0xff]
    %v700 = vld [vmem:[%s1 + $0xcd8] sm:$0xff]
    %v701 = vld [vmem:[%s1 + $0xce0] sm:$0xff]
    %v702 = vld [vmem:[%s1 + $0xce8] sm:$0xff]
    %v703 = vld [vmem:[%s1 + $0xcf0] sm:$0xff]
    %v704 = vld [vmem:[%s1 + $0xcf8] sm:$0xff]
    %v705 = vld [vmem:[%s1 + $0xd00] sm:$0xff]
    %v706 = vld [vmem:[%s1 + $0xd08] sm:$0xff]
    %v707 = vld [vmem:[%s1 + $0xd10] sm:$0xff]
    %v708 = vld [vmem:[%s1 + $0xd18] sm:$0xff]
    %v709 = vld [vmem:[%s1 + $0xd20] sm:$0xff]
    %v710 = vld [vmem:[%s1 + $0xd28] sm:$0xff]
    %v711 = vld [vmem:[%s1 + $0xd30] sm:$0xff]
    %v712 = vld [vmem:[%s1 + $0xd38] sm:$0xff]
    %v713 = vld [vmem:[%s1 + $0xd40] sm:$0xff]
    %v714 = vld [vmem:[%s1 + $0xd48] sm:$0xff]
    %v715 = vld [vmem:[%s1 + $0xd50] sm:$0xff]
    %v716 = vld [vmem:[%s1 + $0xd58] sm:$0xff]
    %v717 = vld [vmem:[%s1 + $0xd60] sm:$0xff]
    %v718 = vld [vmem:[%s1 + $0xd68] sm:$0xff]
    %v719 = vld [vmem:[%s1 + $0xd70] sm:$0xff]
    %v720 = vld [vmem:[%s1 + $0xd78] sm:$0xff]
    %v721 = vld [vmem:[%s1 + $0xd80] sm:$0xff]
    %v722 = vld [vmem:[%s1 + $0xd88] sm:$0xff]
    %v723 = vld [vmem:[%s1 + $0xd90] sm:$0xff]
    %v724 = vld [vmem:[%s1 + $0xd98] sm:$0xff]
    %v725 = vld [vmem:[%s1 + $0xda0] sm:$0xff]
    %v726 = vld [vmem:[%s1 + $0xda8] sm:$0xff]
    %v727 = vld [vmem:[%s1 + $0xdb0] sm:$0xff]
    %v728 = vld [vmem:[%s1 + $0xdb8] sm:$0xff]
    %v729 = vld [vmem:[%s1 + $0xdc0] sm:$0xff]
    %v730 = vld [vmem:[%s1 + $0xdc8] sm:$0xff]
    %v731 = vld [vmem:[%s1 + $0xdd0] sm:$0xff]
    %v732 = vld [vmem:[%s1 + $0xdd8] sm:$0xff]
    %v733 = vld [vmem:[%s1 + $0xde0] sm:$0xff]
    %v734 = vld [vmem:[%s1 + $0xde8] sm:$0xff]
    %v735 = vld [vmem:[%s1 + $0xdf0] sm:$0xff]
    %v736 = vld [vmem:[%s1 + $0xdf8] sm:$0xff]
    %v737 = vld [vmem:[%s1 + $0xe00] sm:$0xff]
    %v738 = vld [vmem:[%s1 + $0xe08] sm:$0xff]
    %v739 = vld [vmem:[%s1 + $0xe10] sm:$0xff]
    %v740 = vld [vmem:[%s1 + $0xe18] sm:$0xff]
    %v741 = vld [vmem:[%s1 + $0xe20] sm:$0xff]
    %v742 = vld [vmem:[%s1 + $0xe28] sm:$0xff]
    %v743 = vld [vmem:[%s1 + $0xe30] sm:$0xff]
    %v744 = vld [vmem:[%s1 + $0xe38] sm:$0xff]
    %v745 = vld [vmem:[%s1 + $0xe40] sm:$0xff]
    %v746 = vld [vmem:[%s1 + $0xe48] sm:$0xff]
    %v747 = vld [vmem:[%s1 + $0xe50] sm:$0xff]
    %v748 = vld [vmem:[%s1 + $0xe58] sm:$0xff]
    %v749 = vld [vmem:[%s1 + $0xe60] sm:$0xff]
    %v750 = vld [vmem:[%s1 + $0xe68] sm:$0xff]
    %v751 = vld [vmem:[%s1 + $0xe70] sm:$0xff]
    %v752 = vld [vmem:[%s1 + $0xe78] sm:$0xff]
    %v753 = vld [vmem:[%s1 + $0xe80] sm:$0xff]
    %v754 = vld [vmem:[%s1 + $0xe88] sm:$0xff]
    %v755 = vld [vmem:[%s1 + $0xe90] sm:$0xff]
    %v756 = vld [vmem:[%s1 + $0xe98] sm:$0xff]
    %v757 = vld [vmem:[%s1 + $0xea0] sm:$0xff]
    %v758 = vld [vmem:[%s1 + $0xea8] sm:$0xff]
    %v759 = vld [vmem:[%s1 + $0xeb0] sm:$0xff]
    %v760 = vld [vmem:[%s1 + $0xeb8] sm:$0xff]
    %v761 = vld [vmem:[%s1 + $0xec0] sm:$0xff]
    %v762 = vld [vmem:[%s1 + $0xec8] sm:$0xff]
    %v763 = vld [vmem:[%s1 + $0xed0] sm:$0xff]
    %v764 = vld [vmem:[%s1 + $0xed8] sm:$0xff]
    %v765 = vld [vmem:[%s1 + $0xee0] sm:$0xff]
    %v766 = vld [vmem:[%s1 + $0xee8] sm:$0xff]
    %v767 = vld [vmem:[%s1 + $0xef0] sm:$0xff]
    %v768 = vld [vmem:[%s1 + $0xef8] sm:$0xff]
    %v769 = vld [vmem:[%s1 + $0xf00] sm:$0xff]
    %v770 = vld [vmem:[%s1 + $0xf08] sm:$0xff]
    %v771 = vld [vmem:[%s1 + $0xf10] sm:$0xff]
    %v772 = vld [vmem:[%s1 + $0xf18] sm:$0xff]
    %v773 = vld [vmem:[%s1 + $0xf20] sm:$0xff]
    %v774 = vld [vmem:[%s1 + $0xf28] sm:$0xff]
    %v775 = vld [vmem:[%s1 + $0xf30] sm:$0xff]
    %v776 = vld [vmem:[%s1 + $0xf38] sm:$0xff]
    %v777 = vld [vmem:[%s1 + $0xf40] sm:$0xff]
    %v778 = vld [vmem:[%s1 + $0xf48] sm:$0xff]
    %v779 = vld [vmem:[%s1 + $0xf50] sm:$0xff]
    %v780 = vld [vmem:[%s1 + $0xf58] sm:$0xff]
    %v781 = vld [vmem:[%s1 + $0xf60] sm:$0xff]
    %v782 = vld [vmem:[%s1 + $0xf68] sm:$0xff]
    %v783 = vld [vmem:[%s1 + $0xf70] sm:$0xff]
    %v784 = vld [vmem:[%s1 + $0xf78] sm:$0xff]
    %v785 = vld [vmem:[%s1 + $0xf80] sm:$0xff]
    %v786 = vld [vmem:[%s1 + $0xf88] sm:$0xff]
    %v787 = vld [vmem:[%s1 + $0xf90] sm:$0xff]
    %v788 = vld [vmem:[%s1 + $0xf98] sm:$0xff]
    %v789 = vld [vmem:[%s1 + $0xfa0] sm:$0xff]
    %v790 = vld [vmem:[%s1 + $0xfa8] sm:$0xff]
    %v791 = vld [vmem:[%s1 + $0xfb0] sm:$0xff]
    %v792 = vld [vmem:[%s1 + $0xfb8] sm:$0xff]
    %v793 = vld [vmem:[%s1 + $0xfc0] sm:$0xff]
    %v794 = vld [vmem:[%s1 + $0xfc8] sm:$0xff]
    %v795 = vld [vmem:[%s1 + $0xfd0] sm:$0xff]
    %v796 = vld [vmem:[%s1 + $0xfd8] sm:$0xff]
    %v797 = vld [vmem:[%s1 + $0xfe0] sm:$0xff]
    %v798 = vld [vmem:[%s1 + $0xfe8] sm:$0xff]
    %v799 = vld [vmem:[%s1 + $0xff0] sm:$0xff]
    %v800 = vld [vmem:[%s1 + $0xff8] sm:$0xff]
    %v801 = vld [vmem:[%s1 + $0x1000] sm:$0xff]
    %v802 = vld [vmem:[%s1 + $0x1008] sm:$0xff]
    %v803 = vld [vmem:[%s1 + $0x1010] sm:$0xff]
    %v804 = vld [vmem:[%s1 + $0x1018] sm:$0xff]
    %v805 = vld [vmem:[%s1 + $0x1020] sm:$0xff]
    %v806 = vld [vmem:[%s1 + $0x1028] sm:$0xff]
    %v807 = vld [vmem:[%s1 + $0x1030] sm:$0xff]
    %v808 = vld [vmem:[%s1 + $0x1038] sm:$0xff]
    %v809 = vld [vmem:[%s1 + $0x1040] sm:$0xff]
    %v810 = vld [vmem:[%s1 + $0x1048] sm:$0xff]
    %v811 = vld [vmem:[%s1 + $0x1050] sm:$0xff]
    %v812 = vld [vmem:[%s1 + $0x1058] sm:$0xff]
    %v813 = vld [vmem:[%s1 + $0x1060] sm:$0xff]
    %v814 = vld [vmem:[%s1 + $0x1068] sm:$0xff]
    %v815 = vld [vmem:[%s1 + $0x1070] sm:$0xff]
    %v816 = vld [vmem:[%s1 + $0x1078] sm:$0xff]
    %v817 = vld [vmem:[%s1 + $0x1080] sm:$0xff]
    %v818 = vld [vmem:[%s1 + $0x1088] sm:$0xff]
    %v819 = vld [vmem:[%s1 + $0x1090] sm:$0xff]
    %v820 = vld [vmem:[%s1 + $0x1098] sm:$0xff]
    %v821 = vld [vmem:[%s1 + $0x10a0] sm:$0xff]
    %v822 = vld [vmem:[%s1 + $0x10a8] sm:$0xff]
    %v823 = vld [vmem:[%s1 + $0x10b0] sm:$0xff]
    %v824 = vld [vmem:[%s1 + $0x10b8] sm:$0xff]
    %v825 = vld [vmem:[%s1 + $0x10c0] sm:$0xff]
    %v826 = vld [vmem:[%s1 + $0x10c8] sm:$0xff]
    %v827 = vld [vmem:[%s1 + $0x10d0] sm:$0xff]
    %v828 = vld [vmem:[%s1 + $0x10d8] sm:$0xff]
    %v829 = vld [vmem:[%s1 + $0x10e0] sm:$0xff]
    %v830 = vld [vmem:[%s1 + $0x10e8] sm:$0xff]
    %v831 = vld [vmem:[%s1 + $0x10f0] sm:$0xff]
    %v832 = vld [vmem:[%s1 + $0x10f8] sm:$0xff]
    %v833 = vld [vmem:[%s1 + $0x1100] sm:$0xff]
    %v834 = vld [vmem:[%s1 + $0x1108] sm:$0xff]
    %v835 = vld [vmem:[%s1 + $0x1110] sm:$0xff]
    %v836 = vld [vmem:[%s1 + $0x1118] sm:$0xff]
    %v837 = vld [vmem:[%s1 + $0x1120] sm:$0xff]
    %v838 = vld [vmem:[%s1 + $0x1128] sm:$0xff]
    %v839 = vld [vmem:[%s1 + $0x1130] sm:$0xff]
    %v840 = vld [vmem:[%s1 + $0x1138] sm:$0xff]
    %v841 = vld [vmem:[%s1 + $0x1140] sm:$0xff]
    %v842 = vld [vmem:[%s1 + $0x1148] sm:$0xff]
    %v843 = vld [vmem:[%s1 + $0x1150] sm:$0xff]
    %v844 = vld [vmem:[%s1 + $0x1158] sm:$0xff]
    %v845 = vld [vmem:[%s1 + $0x1160] sm:$0xff]
    %v846 = vld [vmem:[%s1 + $0x1168] sm:$0xff]
    %v847 = vld [vmem:[%s1 + $0x1170] sm:$0xff]
    %v848 = vld [vmem:[%s1 + $0x1178] sm:$0xff]
    %v849 = vld [vmem:[%s1 + $0x1180] sm:$0xff]
    %v850 = vld [vmem:[%s1 + $0x1188] sm:$0xff]
    %v851 = vld [vmem:[%s1 + $0x1190] sm:$0xff]
    %v852 = vld [vmem:[%s1 + $0x1198] sm:$0xff]
    %v853 = vld [vmem:[%s1 + $0x11a0] sm:$0xff]
    %v854 = vld [vmem:[%s1 + $0x11a8] sm:$0xff]
    %v855 = vld [vmem:[%s1 + $0x11b0] sm:$0xff]
    %v856 = vld [vmem:[%s1 + $0x11b8] sm:$0xff]
    %v857 = vld [vmem:[%s1 + $0x11c0] sm:$0xff]
    %v858 = vld [vmem:[%s1 + $0x11c8] sm:$0xff]
    %v859 = vld [vmem:[%s1 + $0x11d0] sm:$0xff]
    %v860 = vld [vmem:[%s1 + $0x11d8] sm:$0xff]
    %v861 = vld [vmem:[%s1 + $0x11e0] sm:$0xff]
    %v862 = vld [vmem:[%s1 + $0x11e8] sm:$0xff]
    %v863 = vld [vmem:[%s1 + $0x11f0] sm:$0xff]
    %v864 = vld [vmem:[%s1 + $0x11f8] sm:$0xff]
    %v865 = vld [vmem:[%s1 + $0x1200] sm:$0xff]
    %v866 = vld [vmem:[%s1 + $0x1208] sm:$0xff]
    %v867 = vld [vmem:[%s1 + $0x1210] sm:$0xff]
    %v868 = vld [vmem:[%s1 + $0x1218] sm:$0xff]
    %v869 = vld [vmem:[%s1 + $0x1220] sm:$0xff]
    %v870 = vld [vmem:[%s1 + $0x1228] sm:$0xff]
    %v871 = vld [vmem:[%s1 + $0x1230] sm:$0xff]
    %v872 = vld [vmem:[%s1 + $0x1238] sm:$0xff]
    %v873 = vld [vmem:[%s1 + $0x1240] sm:$0xff]
    %v874 = vld [vmem:[%s1 + $0x1248] sm:$0xff]
    %v875 = vld [vmem:[%s1 + $0x1250] sm:$0xff]
    %v876 = vld [vmem:[%s1 + $0x1258] sm:$0xff]
    %v877 = vld [vmem:[%s1 + $0x1260] sm:$0xff]
    %v878 = vld [vmem:[%s1 + $0x1268] sm:$0xff]
    %v879 = vld [vmem:[%s1 + $0x1270] sm:$0xff]
    %v880 = vld [vmem:[%s1 + $0x1278] sm:$0xff]
    %v881 = vld [vmem:[%s1 + $0x1280] sm:$0xff]
    %v882 = vld [vmem:[%s1 + $0x1288] sm:$0xff]
    %v883 = vld [vmem:[%s1 + $0x1290] sm:$0xff]
    %v884 = vld [vmem:[%s1 + $0x1298] sm:$0xff]
    %v885 = vld [vmem:[%s1 + $0x12a0] sm:$0xff]
    %v886 = vld [vmem:[%s1 + $0x12a8] sm:$0xff]
    %v887 = vld [vmem:[%s1 + $0x12b0] sm:$0xff]
    %v888 = vld [vmem:[%s1 + $0x12b8] sm:$0xff]
    %v889 = vld [vmem:[%s1 + $0x12c0] sm:$0xff]
    %v890 = vld [vmem:[%s1 + $0x12c8] sm:$0xff]
    %v891 = vld [vmem:[%s1 + $0x12d0] sm:$0xff]
    %v892 = vld [vmem:[%s1 + $0x12d8] sm:$0xff]
    %v893 = vld [vmem:[%s1 + $0x12e0] sm:$0xff]
    %v894 = vld [vmem:[%s1 + $0x12e8] sm:$0xff]
    %v895 = vld [vmem:[%s1 + $0x12f0] sm:$0xff]
    %v896 = vld [vmem:[%s1 + $0x12f8] sm:$0xff]
    %v897 = vld [vmem:[%s1 + $0x1300] sm:$0xff]
    %v898 = vld [vmem:[%s1 + $0x1308] sm:$0xff]
    %v899 = vld [vmem:[%s1 + $0x1310] sm:$0xff]
    %v900 = vld [vmem:[%s1 + $0x1318] sm:$0xff]
    %v901 = vld [vmem:[%s1 + $0x1320] sm:$0xff]
    %v902 = vld [vmem:[%s1 + $0x1328] sm:$0xff]
    %v903 = vld [vmem:[%s1 + $0x1330] sm:$0xff]
    %v904 = vld [vmem:[%s1 + $0x1338] sm:$0xff]
    %v905 = vld [vmem:[%s1 + $0x1340] sm:$0xff]
    %v906 = vld [vmem:[%s1 + $0x1348] sm:$0xff]
    %v907 = vld [vmem:[%s1 + $0x1350] sm:$0xff]
    %v908 = vld [vmem:[%s1 + $0x1358] sm:$0xff]
    %v909 = vld [vmem:[%s1 + $0x1360] sm:$0xff]
    %v910 = vld [vmem:[%s1 + $0x1368] sm:$0xff]
    %v911 = vld [vmem:[%s1 + $0x1370] sm:$0xff]
    %v912 = vld [vmem:[%s1 + $0x1378] sm:$0xff]
    %v913 = vld [vmem:[%s1 + $0x1380] sm:$0xff]
    %v914 = vld [vmem:[%s1 + $0x1388] sm:$0xff]
    %v915 = vld [vmem:[%s1 + $0x1390] sm:$0xff]
    %v916 = vld [vmem:[%s1 + $0x1398] sm:$0xff]
    %v917 = vld [vmem:[%s1 + $0x13a0] sm:$0xff]
    %v918 = vld [vmem:[%s1 + $0x13a8] sm:$0xff]
    %v919 = vld [vmem:[%s1 + $0x13b0] sm:$0xff]
    %v920 = vld [vmem:[%s1 + $0x13b8] sm:$0xff]
    %v921 = vld [vmem:[%s1 + $0x13c0] sm:$0xff]
    %v922 = vld [vmem:[%s1 + $0x13c8] sm:$0xff]
    %v923 = vld [vmem:[%s1 + $0x13d0] sm:$0xff]
    %v924 = vld [vmem:[%s1 + $0x13d8] sm:$0xff]
    %v925 = vld [vmem:[%s1 + $0x13e0] sm:$0xff]
    %v926 = vld [vmem:[%s1 + $0x13e8] sm:$0xff]
    %v927 = vld [vmem:[%s1 + $0x13f0] sm:$0xff]
    %v928 = vld [vmem:[%s1 + $0x13f8] sm:$0xff]
    %v929 = vld [vmem:[%s1 + $0x1400] sm:$0xff]
    %v930 = vld [vmem:[%s1 + $0x1408] sm:$0xff]
    %v931 = vld [vmem:[%s1 + $0x1410] sm:$0xff]
    %v932 = vld [vmem:[%s1 + $0x1418] sm:$0xff]
    %v933 = vld [vmem:[%s1 + $0x1420] sm:$0xff]
    %v934 = vld [vmem:[%s1 + $0x1428] sm:$0xff]
    %v935 = vld [vmem:[%s1 + $0x1430] sm:$0xff]
    %v936 = vld [vmem:[%s1 + $0x1438] sm:$0xff]
    %v937 = vld [vmem:[%s1 + $0x1440] sm:$0xff]
    %v938 = vld [vmem:[%s1 + $0x1448] sm:$0xff]
    %v939 = vld [vmem:[%s1 + $0x1450] sm:$0xff]
    %v940 = vld [vmem:[%s1 + $0x1458] sm:$0xff]
    %v941 = vld [vmem:[%s1 + $0x1460] sm:$0xff]
    %v942 = vld [vmem:[%s1 + $0x1468] sm:$0xff]
    %v943 = vld [vmem:[%s1 + $0x1470] sm:$0xff]
    %v944 = vld [vmem:[%s1 + $0x1478] sm:$0xff]
    %v945 = vld [vmem:[%s1 + $0x1480] sm:$0xff]
    %v946 = vld [vmem:[%s1 + $0x1488] sm:$0xff]
    %v947 = vld [vmem:[%s1 + $0x1490] sm:$0xff]
    %v948 = vld [vmem:[%s1 + $0x1498] sm:$0xff]
    %v949 = vld [vmem:[%s1 + $0x14a0] sm:$0xff]
    %v950 = vld [vmem:[%s1 + $0x14a8] sm:$0xff]
    %v951 = vld [vmem:[%s1 + $0x14b0] sm:$0xff]
    %v952 = vld [vmem:[%s1 + $0x14b8] sm:$0xff]
    %v953 = vld [vmem:[%s1 + $0x14c0] sm:$0xff]
    %v954 = vld [vmem:[%s1 + $0x14c8] sm:$0xff]
    %v955 = vld [vmem:[%s1 + $0x14d0] sm:$0xff]
    %v956 = vld [vmem:[%s1 + $0x14d8] sm:$0xff]
    %v957 = vld [vmem:[%s1 + $0x14e0] sm:$0xff]
    %v958 = vld [vmem:[%s1 + $0x14e8] sm:$0xff]
    %v959 = vld [vmem:[%s1 + $0x14f0] sm:$0xff]
    %v960 = vld [vmem:[%s1 + $0x14f8] sm:$0xff]
    %v961 = vld [vmem:[%s1 + $0x1500] sm:$0xff]
    %v962 = vld [vmem:[%s1 + $0x1508] sm:$0xff]
    %v963 = vld [vmem:[%s1 + $0x1510] sm:$0xff]
    %v964 = vld [vmem:[%s1 + $0x1518] sm:$0xff]
    %v965 = vld [vmem:[%s1 + $0x1520] sm:$0xff]
    %v966 = vld [vmem:[%s1 + $0x1528] sm:$0xff]
    %v967 = vld [vmem:[%s1 + $0x1530] sm:$0xff]
    %v968 = vld [vmem:[%s1 + $0x1538] sm:$0xff]
    %v969 = vld [vmem:[%s1 + $0x1540] sm:$0xff]
    %v970 = vld [vmem:[%s1 + $0x1548] sm:$0xff]
    %v971 = vld [vmem:[%s1 + $0x1550] sm:$0xff]
    %v972 = vld [vmem:[%s1 + $0x1558] sm:$0xff]
    %v973 = vld [vmem:[%s1 + $0x1560] sm:$0xff]
    %v974 = vld [vmem:[%s1 + $0x1568] sm:$0xff]
    %v975 = vld [vmem:[%s1 + $0x1570] sm:$0xff]
    %v976 = vld [vmem:[%s1 + $0x1578] sm:$0xff]
    %v977 = vld [vmem:[%s1 + $0x1580] sm:$0xff]
    %v978 = vld [vmem:[%s1 + $0x1588] sm:$0xff]
    %v979 = vld [vmem:[%s1 + $0x1590] sm:$0xff]
    %v980 = vld [vmem:[%s1 + $0x1598] sm:$0xff]
    %v981 = vld [vmem:[%s1 + $0x15a0] sm:$0xff]
    %v982 = vld [vmem:[%s1 + $0x15a8] sm:$0xff]
    %v983 = vld [vmem:[%s1 + $0x15b0] sm:$0xff]
    %v984 = vld [vmem:[%s1 + $0x15b8] sm:$0xff]
    %v985 = vld [vmem:[%s1 + $0x15c0] sm:$0xff]
    %v986 = vld [vmem:[%s1 + $0x15c8] sm:$0xff]
    %v987 = vld [vmem:[%s1 + $0x15d0] sm:$0xff]
    %v988 = vld [vmem:[%s1 + $0x15d8] sm:$0xff]
    %v989 = vld [vmem:[%s1 + $0x15e0] sm:$0xff]
    %v990 = vld [vmem:[%s1 + $0x15e8] sm:$0xff]
    %v991 = vld [vmem:[%s1 + $0x15f0] sm:$0xff]
    %v992 = vld [vmem:[%s1 + $0x15f8] sm:$0xff]
    %v993 = vld [vmem:[%s1 + $0x1600] sm:$0xff]
    %v994 = vld [vmem:[%s1 + $0x1608] sm:$0xff]
    %v995 = vld [vmem:[%s1 + $0x1610] sm:$0xff]
    %v996 = vld [vmem:[%s1 + $0x1618] sm:$0xff]
    %v997 = vld [vmem:[%s1 + $0x1620] sm:$0xff]
    %v998 = vld [vmem:[%s1 + $0x1628] sm:$0xff]
    %v999 = vld [vmem:[%s1 + $0x1630] sm:$0xff]
    %v1000 = vld [vmem:[%s1 + $0x1638] sm:$0xff]
    %v1001 = vld [vmem:[%s1 + $0x1640] sm:$0xff]
    %v1002 = vld [vmem:[%s1 + $0x1648] sm:$0xff]
    %v1003 = vld [vmem:[%s1 + $0x1650] sm:$0xff]
    %v1004 = vld [vmem:[%s1 + $0x1658] sm:$0xff]
    %v1005 = vld [vmem:[%s1 + $0x1660] sm:$0xff]
    %v1006 = vld [vmem:[%s1 + $0x1668] sm:$0xff]
    %v1007 = vld [vmem:[%s1 + $0x1670] sm:$0xff]
    %v1008 = vld [vmem:[%s1 + $0x1678] sm:$0xff]
    %v1009 = vld [vmem:[%s1 + $0x1680] sm:$0xff]
    %v1010 = vld [vmem:[%s1 + $0x1688] sm:$0xff]
    %v1011 = vld [vmem:[%s1 + $0x1690] sm:$0xff]
    %v1012 = vld [vmem:[%s1 + $0x1698] sm:$0xff]
    %v1013 = vld [vmem:[%s1 + $0x16a0] sm:$0xff]
    %v1014 = vld [vmem:[%s1 + $0x16a8] sm:$0xff]
    %v1015 = vld [vmem:[%s1 + $0x16b0] sm:$0xff]
    %v1016 = vld [vmem:[%s1 + $0x16b8] sm:$0xff]
    %v1017 = vld [vmem:[%s1 + $0x16c0] sm:$0xff]
    %v1018 = vld [vmem:[%s1 + $0x16c8] sm:$0xff]
    %v1019 = vld [vmem:[%s1 + $0x16d0] sm:$0xff]
    %v1020 = vld [vmem:[%s1 + $0x16d8] sm:$0xff]
    %v1021 = vld [vmem:[%s1 + $0x16e0] sm:$0xff]
    %v1022 = vld [vmem:[%s1 + $0x16e8] sm:$0xff]
    %v1023 = vld [vmem:[%s1 + $0x16f0] sm:$0xff]
    %v1024 = vld [vmem:[%s1 + $0x16f8] sm:$0xff]
    %v1025 = vld [vmem:[%s1 + $0x1700] sm:$0xff]
    %v1026 = vld [vmem:[%s1 + $0x1708] sm:$0xff]
    %v1027 = vld [vmem:[%s1 + $0x1710] sm:$0xff]
    %v1028 = vld [vmem:[%s1 + $0x1718] sm:$0xff]
    %v1029 = vld [vmem:[%s1 + $0x1720] sm:$0xff]
    %v1030 = vld [vmem:[%s1 + $0x1728] sm:$0xff]
    %v1031 = vld [vmem:[%s1 + $0x1730] sm:$0xff]
    %v1032 = vld [vmem:[%s1 + $0x1738] sm:$0xff]
    %v1033 = vld [vmem:[%s1 + $0x1740] sm:$0xff]
    %v1034 = vld [vmem:[%s1 + $0x1748] sm:$0xff]
    %v1035 = vld [vmem:[%s1 + $0x1750] sm:$0xff]
    %v1036 = vld [vmem:[%s1 + $0x1758] sm:$0xff]
    %v1037 = vld [vmem:[%s1 + $0x1760] sm:$0xff]
    %v1038 = vld [vmem:[%s1 + $0x1768] sm:$0xff]
    %v1039 = vld [vmem:[%s1 + $0x1770] sm:$0xff]
    %v1040 = vld [vmem:[%s1 + $0x1778] sm:$0xff]
    %v1041 = vld [vmem:[%s1 + $0x1780] sm:$0xff]
    %v1042 = vld [vmem:[%s1 + $0x1788] sm:$0xff]
    %v1043 = vld [vmem:[%s1 + $0x1790] sm:$0xff]
    %v1044 = vld [vmem:[%s1 + $0x1798] sm:$0xff]
    %v1045 = vld [vmem:[%s1 + $0x17a0] sm:$0xff]
    %v1046 = vld [vmem:[%s1 + $0x17a8] sm:$0xff]
    %v1047 = vld [vmem:[%s1 + $0x17b0] sm:$0xff]
    %v1048 = vld [vmem:[%s1 + $0x17b8] sm:$0xff]
    %v1049 = vld [vmem:[%s1 + $0x17c0] sm:$0xff]
    %v1050 = vld [vmem:[%s1 + $0x17c8] sm:$0xff]
    %v1051 = vld [vmem:[%s1 + $0x17d0] sm:$0xff]
    %v1052 = vld [vmem:[%s1 + $0x17d8] sm:$0xff]
    %v1053 = vld [vmem:[%s1 + $0x17e0] sm:$0xff]
    %v1054 = vld [vmem:[%s1 + $0x17e8] sm:$0xff]
    %v1055 = vld [vmem:[%s1 + $0x17f0] sm:$0xff]
    %v1056 = vld [vmem:[%s1 + $0x17f8] sm:$0xff]
    %v1057 = vld [vmem:[%s1 + $0x1800] sm:$0xff]
    %v1058 = vld [vmem:[%s1 + $0x1808] sm:$0xff]
    %v1059 = vld [vmem:[%s1 + $0x1810] sm:$0xff]
    %v1060 = vld [vmem:[%s1 + $0x1818] sm:$0xff]
    %v1061 = vld [vmem:[%s1 + $0x1820] sm:$0xff]
    %v1062 = vld [vmem:[%s1 + $0x1828] sm:$0xff]
    %v1063 = vld [vmem:[%s1 + $0x1830] sm:$0xff]
    %v1064 = vld [vmem:[%s1 + $0x1838] sm:$0xff]
    %v1065 = vld [vmem:[%s1 + $0x1840] sm:$0xff]
    %v1066 = vld [vmem:[%s1 + $0x1848] sm:$0xff]
    %v1067 = vld [vmem:[%s1 + $0x1850] sm:$0xff]
    %v1068 = vld [vmem:[%s1 + $0x1858] sm:$0xff]
    %v1069 = vld [vmem:[%s1 + $0x1860] sm:$0xff]
    %v1070 = vld [vmem:[%s1 + $0x1868] sm:$0xff]
    %v1071 = vld [vmem:[%s1 + $0x1870] sm:$0xff]
    %v1072 = vld [vmem:[%s1 + $0x1878] sm:$0xff]
    %v1073 = vld [vmem:[%s1 + $0x1880] sm:$0xff]
    %v1074 = vld [vmem:[%s1 + $0x1888] sm:$0xff]
    %v1075 = vld [vmem:[%s1 + $0x1890] sm:$0xff]
    %v1076 = vld [vmem:[%s1 + $0x1898] sm:$0xff]
    %v1077 = vld [vmem:[%s1 + $0x18a0] sm:$0xff]
    %v1078 = vld [vmem:[%s1 + $0x18a8] sm:$0xff]
    %v1079 = vld [vmem:[%s1 + $0x18b0] sm:$0xff]
    %v1080 = vld [vmem:[%s1 + $0x18b8] sm:$0xff]
    %v1081 = vld [vmem:[%s1 + $0x18c0] sm:$0xff]
    %v1082 = vld [vmem:[%s1 + $0x18c8] sm:$0xff]
    %v1083 = vld [vmem:[%s1 + $0x18d0] sm:$0xff]
    %v1084 = vld [vmem:[%s1 + $0x18d8] sm:$0xff]
    %v1085 = vld [vmem:[%s1 + $0x18e0] sm:$0xff]
    %v1086 = vld [vmem:[%s1 + $0x18e8] sm:$0xff]
    %v1087 = vld [vmem:[%s1 + $0x18f0] sm:$0xff]
    %v1088 = vld [vmem:[%s1 + $0x18f8] sm:$0xff]
    %v1089 = vld [vmem:[%s1 + $0x1900] sm:$0xff]
    %v1090 = vld [vmem:[%s1 + $0x1908] sm:$0xff]
    %v1091 = vld [vmem:[%s1 + $0x1910] sm:$0xff]
    %v1092 = vld [vmem:[%s1 + $0x1918] sm:$0xff]
    %v1093 = vld [vmem:[%s1 + $0x1920] sm:$0xff]
    %v1094 = vld [vmem:[%s1 + $0x1928] sm:$0xff]
    %v1095 = vld [vmem:[%s1 + $0x1930] sm:$0xff]
    %v1096 = vld [vmem:[%s1 + $0x1938] sm:$0xff]
    %v1097 = vld [vmem:[%s1 + $0x1940] sm:$0xff]
    %v1098 = vld [vmem:[%s1 + $0x1948] sm:$0xff]
    %v1099 = vld [vmem:[%s1 + $0x1950] sm:$0xff]
    %v1100 = vld [vmem:[%s1 + $0x1958] sm:$0xff]
    %v1101 = vld [vmem:[%s1 + $0x1960] sm:$0xff]
    %v1102 = vld [vmem:[%s1 + $0x1968] sm:$0xff]
    %v1103 = vld [vmem:[%s1 + $0x1970] sm:$0xff]
    %v1104 = vld [vmem:[%s1 + $0x1978] sm:$0xff]
    %v1105 = vld [vmem:[%s1 + $0x1980] sm:$0xff]
    %v1106 = vld [vmem:[%s1 + $0x1988] sm:$0xff]
    %v1107 = vld [vmem:[%s1 + $0x1990] sm:$0xff]
    %v1108 = vld [vmem:[%s1 + $0x1998] sm:$0xff]
    %v1109 = vld [vmem:[%s1 + $0x19a0] sm:$0xff]
    %v1110 = vld [vmem:[%s1 + $0x19a8] sm:$0xff]
    %v1111 = vld [vmem:[%s1 + $0x19b0] sm:$0xff]
    %v1112 = vld [vmem:[%s1 + $0x19b8] sm:$0xff]
    %v1113 = vld [vmem:[%s1 + $0x19c0] sm:$0xff]
    %v1114 = vld [vmem:[%s1 + $0x19c8] sm:$0xff]
    %v1115 = vld [vmem:[%s1 + $0x19d0] sm:$0xff]
    %v1116 = vld [vmem:[%s1 + $0x19d8] sm:$0xff]
    %v1117 = vld [vmem:[%s1 + $0x19e0] sm:$0xff]
    %v1118 = vld [vmem:[%s1 + $0x19e8] sm:$0xff]
    %v1119 = vld [vmem:[%s1 + $0x19f0] sm:$0xff]
    %v1120 = vld [vmem:[%s1 + $0x19f8] sm:$0xff]
    %v1121 = vld [vmem:[%s1 + $0x1a00] sm:$0xff]
    %v1122 = vld [vmem:[%s1 + $0x1a08] sm:$0xff]
    %v1123 = vld [vmem:[%s1 + $0x1a10] sm:$0xff]
    %v1124 = vld [vmem:[%s1 + $0x1a18] sm:$0xff]
    %v1125 = vld [vmem:[%s1 + $0x1a20] sm:$0xff]
    %v1126 = vld [vmem:[%s1 + $0x1a28] sm:$0xff]
    %v1127 = vld [vmem:[%s1 + $0x1a30] sm:$0xff]
    %v1128 = vld [vmem:[%s1 + $0x1a38] sm:$0xff]
    %v1129 = vld [vmem:[%s1 + $0x1a40] sm:$0xff]
    %v1130 = vld [vmem:[%s1 + $0x1a48] sm:$0xff]
    %v1131 = vld [vmem:[%s1 + $0x1a50] sm:$0xff]
    %v1132 = vld [vmem:[%s1 + $0x1a58] sm:$0xff]
    %v1133 = vld [vmem:[%s1 + $0x1a60] sm:$0xff]
    %v1134 = vld [vmem:[%s1 + $0x1a68] sm:$0xff]
    %v1135 = vld [vmem:[%s1 + $0x1a70] sm:$0xff]
    %v1136 = vld [vmem:[%s1 + $0x1a78] sm:$0xff]
    %v1137 = vld [vmem:[%s1 + $0x1a80] sm:$0xff]
    %v1138 = vld [vmem:[%s1 + $0x1a88] sm:$0xff]
    %v1139 = vld [vmem:[%s1 + $0x1a90] sm:$0xff]
    %v1140 = vld [vmem:[%s1 + $0x1a98] sm:$0xff]
    %v1141 = vld [vmem:[%s1 + $0x1aa0] sm:$0xff]
    %v1142 = vld [vmem:[%s1 + $0x1aa8] sm:$0xff]
    %v1143 = vld [vmem:[%s1 + $0x1ab0] sm:$0xff]
    %v1144 = vld [vmem:[%s1 + $0x1ab8] sm:$0xff]
    %v1145 = vld [vmem:[%s1 + $0x1ac0] sm:$0xff]
    %v1146 = vld [vmem:[%s1 + $0x1ac8] sm:$0xff]
    %v1147 = vld [vmem:[%s1 + $0x1ad0] sm:$0xff]
    %v1148 = vld [vmem:[%s1 + $0x1ad8] sm:$0xff]
    %v1149 = vld [vmem:[%s1 + $0x1ae0] sm:$0xff]
    %v1150 = vld [vmem:[%s1 + $0x1ae8] sm:$0xff]
    %v1151 = vld [vmem:[%s1 + $0x1af0] sm:$0xff]
    %v1152 = vld [vmem:[%s1 + $0x1af8] sm:$0xff]
    %v1153 = vld [vmem:[%s1 + $0x1b00] sm:$0xff]
    %v1154 = vld [vmem:[%s1 + $0x1b08] sm:$0xff]
    %v1155 = vld [vmem:[%s1 + $0x1b10] sm:$0xff]
    %v1156 = vld [vmem:[%s1 + $0x1b18] sm:$0xff]
    %v1157 = vld [vmem:[%s1 + $0x1b20] sm:$0xff]
    %v1158 = vld [vmem:[%s1 + $0x1b28] sm:$0xff]
    %v1159 = vld [vmem:[%s1 + $0x1b30] sm:$0xff]
    %v1160 = vld [vmem:[%s1 + $0x1b38] sm:$0xff]
    %v1161 = vld [vmem:[%s1 + $0x1b40] sm:$0xff]
    %v1162 = vld [vmem:[%s1 + $0x1b48] sm:$0xff]
    %v1163 = vld [vmem:[%s1 + $0x1b50] sm:$0xff]
    %v1164 = vld [vmem:[%s1 + $0x1b58] sm:$0xff]
    %v1165 = vld [vmem:[%s1 + $0x1b60] sm:$0xff]
    %v1166 = vld [vmem:[%s1 + $0x1b68] sm:$0xff]
    %v1167 = vld [vmem:[%s1 + $0x1b70] sm:$0xff]
    %v1168 = vld [vmem:[%s1 + $0x1b78] sm:$0xff]
    %v1169 = vld [vmem:[%s1 + $0x1b80] sm:$0xff]
    %v1170 = vld [vmem:[%s1 + $0x1b88] sm:$0xff]
    %v1171 = vld [vmem:[%s1 + $0x1b90] sm:$0xff]
    %v1172 = vld [vmem:[%s1 + $0x1b98] sm:$0xff]
    %v1173 = vld [vmem:[%s1 + $0x1ba0] sm:$0xff]
    %v1174 = vld [vmem:[%s1 + $0x1ba8] sm:$0xff]
    %v1175 = vld [vmem:[%s1 + $0x1bb0] sm:$0xff]
    %v1176 = vld [vmem:[%s1 + $0x1bb8] sm:$0xff]
    %v1177 = vld [vmem:[%s1 + $0x1bc0] sm:$0xff]
    %v1178 = vld [vmem:[%s1 + $0x1bc8] sm:$0xff]
    %v1179 = vld [vmem:[%s1 + $0x1bd0] sm:$0xff]
    %v1180 = vld [vmem:[%s1 + $0x1bd8] sm:$0xff]
    %v1181 = vld [vmem:[%s1 + $0x1be0] sm:$0xff]
    %v1182 = vld [vmem:[%s1 + $0x1be8] sm:$0xff]
    %v1183 = vld [vmem:[%s1 + $0x1bf0] sm:$0xff]
    %v1184 = vld [vmem:[%s1 + $0x1bf8] sm:$0xff]
    %v1185 = vld [vmem:[%s1 + $0x1c00] sm:$0xff]
    %v1186 = vld [vmem:[%s1 + $0x1c08] sm:$0xff]
    %v1187 = vld [vmem:[%s1 + $0x1c10] sm:$0xff]
    %v1188 = vld [vmem:[%s1 + $0x1c18] sm:$0xff]
    %v1189 = vld [vmem:[%s1 + $0x1c20] sm:$0xff]
    %v1190 = vld [vmem:[%s1 + $0x1c28] sm:$0xff]
    %v1191 = vld [vmem:[%s1 + $0x1c30] sm:$0xff]
    %v1192 = vld [vmem:[%s1 + $0x1c38] sm:$0xff]
    %v1193 = vld [vmem:[%s1 + $0x1c40] sm:$0xff]
    %v1194 = vld [vmem:[%s1 + $0x1c48] sm:$0xff]
    %v1195 = vld [vmem:[%s1 + $0x1c50] sm:$0xff]
    %v1196 = vld [vmem:[%s1 + $0x1c58] sm:$0xff]
    %v1197 = vld [vmem:[%s1 + $0x1c60] sm:$0xff]
    %v1198 = vld [vmem:[%s1 + $0x1c68] sm:$0xff]
    %v1199 = vld [vmem:[%s1 + $0x1c70] sm:$0xff]
    %v1200 = vld [vmem:[%s1 + $0x1c78] sm:$0xff]
    %v1201 = vld [vmem:[%s1 + $0x1c80] sm:$0xff]
    %v1202 = vld [vmem:[%s1 + $0x1c88] sm:$0xff]
    %v1203 = vld [vmem:[%s1 + $0x1c90] sm:$0xff]
    %v1204 = vld [vmem:[%s1 + $0x1c98] sm:$0xff]
    %v1205 = vld [vmem:[%s1 + $0x1ca0] sm:$0xff]
    %v1206 = vld [vmem:[%s1 + $0x1ca8] sm:$0xff]
    %v1207 = vld [vmem:[%s1 + $0x1cb0] sm:$0xff]
    %v1208 = vld [vmem:[%s1 + $0x1cb8] sm:$0xff]
    %v1209 = vld [vmem:[%s1 + $0x1cc0] sm:$0xff]
    %v1210 = vld [vmem:[%s1 + $0x1cc8] sm:$0xff]
    %v1211 = vld [vmem:[%s1 + $0x1cd0] sm:$0xff]
    %v1212 = vld [vmem:[%s1 + $0x1cd8] sm:$0xff]
    %v1213 = vld [vmem:[%s1 + $0x1ce0] sm:$0xff]
    %v1214 = vld [vmem:[%s1 + $0x1ce8] sm:$0xff]
    %v1215 = vld [vmem:[%s1 + $0x1cf0] sm:$0xff]
    %v1216 = vld [vmem:[%s1 + $0x1cf8] sm:$0xff]
    %v1217 = vld [vmem:[%s1 + $0x1d00] sm:$0xff]
    %v1218 = vld [vmem:[%s1 + $0x1d08] sm:$0xff]
    %v1219 = vld [vmem:[%s1 + $0x1d10] sm:$0xff]
    %v1220 = vld [vmem:[%s1 + $0x1d18] sm:$0xff]
    %v1221 = vld [vmem:[%s1 + $0x1d20] sm:$0xff]
    %v1222 = vld [vmem:[%s1 + $0x1d28] sm:$0xff]
    %v1223 = vld [vmem:[%s1 + $0x1d30] sm:$0xff]
    %v1224 = vld [vmem:[%s1 + $0x1d38] sm:$0xff]
    %v1225 = vld [vmem:[%s1 + $0x1d40] sm:$0xff]
    %v1226 = vld [vmem:[%s1 + $0x1d48] sm:$0xff]
    %v1227 = vld [vmem:[%s1 + $0x1d50] sm:$0xff]
    %v1228 = vld [vmem:[%s1 + $0x1d58] sm:$0xff]
    %v1229 = vld [vmem:[%s1 + $0x1d60] sm:$0xff]
    %v1230 = vld [vmem:[%s1 + $0x1d68] sm:$0xff]
    %v1231 = vld [vmem:[%s1 + $0x1d70] sm:$0xff]
    %v1232 = vld [vmem:[%s1 + $0x1d78] sm:$0xff]
    %v1233 = vld [vmem:[%s1 + $0x1d80] sm:$0xff]
    %v1234 = vld [vmem:[%s1 + $0x1d88] sm:$0xff]
    %v1235 = vld [vmem:[%s1 + $0x1d90] sm:$0xff]
    %v1236 = vld [vmem:[%s1 + $0x1d98] sm:$0xff]
    %v1237 = vld [vmem:[%s1 + $0x1da0] sm:$0xff]
    %v1238 = vld [vmem:[%s1 + $0x1da8] sm:$0xff]
    %v1239 = vld [vmem:[%s1 + $0x1db0] sm:$0xff]
    %v1240 = vld [vmem:[%s1 + $0x1db8] sm:$0xff]
    %v1241 = vld [vmem:[%s1 + $0x1dc0] sm:$0xff]
    %v1242 = vld [vmem:[%s1 + $0x1dc8] sm:$0xff]
    %v1243 = vld [vmem:[%s1 + $0x1dd0] sm:$0xff]
    %v1244 = vld [vmem:[%s1 + $0x1dd8] sm:$0xff]
    %v1245 = vld [vmem:[%s1 + $0x1de0] sm:$0xff]
    %v1246 = vld [vmem:[%s1 + $0x1de8] sm:$0xff]
    %v1247 = vld [vmem:[%s1 + $0x1df0] sm:$0xff]
    %v1248 = vld [vmem:[%s1 + $0x1df8] sm:$0xff]
    %v1249 = vld [vmem:[%s1 + $0x1e00] sm:$0xff]
    %v1250 = vld [vmem:[%s1 + $0x1e08] sm:$0xff]
    %v1251 = vld [vmem:[%s1 + $0x1e10] sm:$0xff]
    %v1252 = vld [vmem:[%s1 + $0x1e18] sm:$0xff]
    %v1253 = vld [vmem:[%s1 + $0x1e20] sm:$0xff]
    %v1254 = vld [vmem:[%s1 + $0x1e28] sm:$0xff]
    %v1255 = vld [vmem:[%s1 + $0x1e30] sm:$0xff]
    %v1256 = vld [vmem:[%s1 + $0x1e38] sm:$0xff]
    %v1257 = vld [vmem:[%s1 + $0x1e40] sm:$0xff]
    %v1258 = vld [vmem:[%s1 + $0x1e48] sm:$0xff]
    %v1259 = vld [vmem:[%s1 + $0x1e50] sm:$0xff]
    %v1260 = vld [vmem:[%s1 + $0x1e58] sm:$0xff]
    %v1261 = vld [vmem:[%s1 + $0x1e60] sm:$0xff]
    %v1262 = vld [vmem:[%s1 + $0x1e68] sm:$0xff]
    %v1263 = vld [vmem:[%s1 + $0x1e70] sm:$0xff]
    %v1264 = vld [vmem:[%s1 + $0x1e78] sm:$0xff]
    %v1265 = vld [vmem:[%s1 + $0x1e80] sm:$0xff]
    %v1266 = vld [vmem:[%s1 + $0x1e88] sm:$0xff]
    %v1267 = vld [vmem:[%s1 + $0x1e90] sm:$0xff]
    %v1268 = vld [vmem:[%s1 + $0x1e98] sm:$0xff]
    %v1269 = vld [vmem:[%s1 + $0x1ea0] sm:$0xff]
    %v1270 = vld [vmem:[%s1 + $0x1ea8] sm:$0xff]
    %v1271 = vld [vmem:[%s1 + $0x1eb0] sm:$0xff]
    %v1272 = vld [vmem:[%s1 + $0x1eb8] sm:$0xff]
    %v1273 = vld [vmem:[%s1 + $0x1ec0] sm:$0xff]
    %v1274 = vld [vmem:[%s1 + $0x1ec8] sm:$0xff]
    %v1275 = vld [vmem:[%s1 + $0x1ed0] sm:$0xff]
    %v1276 = vld [vmem:[%s1 + $0x1ed8] sm:$0xff]
    %v1277 = vld [vmem:[%s1 + $0x1ee0] sm:$0xff]
    %v1278 = vld [vmem:[%s1 + $0x1ee8] sm:$0xff]
    %v1279 = vld [vmem:[%s1 + $0x1ef0] sm:$0xff]
    %v1280 = vld [vmem:[%s1 + $0x1ef8] sm:$0xff]
    %v1281 = vld [vmem:[%s1 + $0x1f00] sm:$0xff]
    %v1282 = vld [vmem:[%s1 + $0x1f08] sm:$0xff]
    %v1283 = vld [vmem:[%s1 + $0x1f10] sm:$0xff]
    %v1284 = vld [vmem:[%s1 + $0x1f18] sm:$0xff]
    %v1285 = vld [vmem:[%s1 + $0x1f20] sm:$0xff]
    %v1286 = vld [vmem:[%s1 + $0x1f28] sm:$0xff]
    %v1287 = vld [vmem:[%s1 + $0x1f30] sm:$0xff]
    %v1288 = vld [vmem:[%s1 + $0x1f38] sm:$0xff]
    %v1289 = vld [vmem:[%s1 + $0x1f40] sm:$0xff]
    %v1290 = vld [vmem:[%s1 + $0x1f48] sm:$0xff]
    %v1291 = vld [vmem:[%s1 + $0x1f50] sm:$0xff]
    %v1292 = vld [vmem:[%s1 + $0x1f58] sm:$0xff]
    %v1293 = vld [vmem:[%s1 + $0x1f60] sm:$0xff]
    %v1294 = vld [vmem:[%s1 + $0x1f68] sm:$0xff]
    %v1295 = vld [vmem:[%s1 + $0x1f70] sm:$0xff]
    %v1296 = vld [vmem:[%s1 + $0x1f78] sm:$0xff]
    %v1297 = vld [vmem:[%s1 + $0x1f80] sm:$0xff]
    %v1298 = vld [vmem:[%s1 + $0x1f88] sm:$0xff]
    %v1299 = vld [vmem:[%s1 + $0x1f90] sm:$0xff]
    %v1300 = vld [vmem:[%s1 + $0x1f98] sm:$0xff]
    %v1301 = vld [vmem:[%s1 + $0x1fa0] sm:$0xff]
    %v1302 = vld [vmem:[%s1 + $0x1fa8] sm:$0xff]
    %v1303 = vld [vmem:[%s1 + $0x1fb0] sm:$0xff]
    %v1304 = vld [vmem:[%s1 + $0x1fb8] sm:$0xff]
    %v1305 = vld [vmem:[%s1 + $0x1fc0] sm:$0xff]
    %v1306 = vld [vmem:[%s1 + $0x1fc8] sm:$0xff]
    %v1307 = vld [vmem:[%s1 + $0x1fd0] sm:$0xff]
    %v1308 = vld [vmem:[%s1 + $0x1fd8] sm:$0xff]
    %v1309 = vld [vmem:[%s1 + $0x1fe0] sm:$0xff]
    %v1310 = vld [vmem:[%s1 + $0x1fe8] sm:$0xff]
    %v1311 = vld [vmem:[%s1 + $0x1ff0] sm:$0xff]
    %v1312 = vld [vmem:[%s1 + $0x1ff8] sm:$0xff]
    %v1313 = vld [vmem:[%s1 + $0x2000] sm:$0xff]
    %v1314 = vld [vmem:[%s1 + $0x2008] sm:$0xff]
    %v1315 = vld [vmem:[%s1 + $0x2010] sm:$0xff]
    %v1316 = vld [vmem:[%s1 + $0x2018] sm:$0xff]
    %v1317 = vld [vmem:[%s1 + $0x2020] sm:$0xff]
    %v1318 = vld [vmem:[%s1 + $0x2028] sm:$0xff]
    %v1319 = vld [vmem:[%s1 + $0x2030] sm:$0xff]
    %v1320 = vld [vmem:[%s1 + $0x2038] sm:$0xff]
    %v1321 = vld [vmem:[%s1 + $0x2040] sm:$0xff]
    %v1322 = vld [vmem:[%s1 + $0x2048] sm:$0xff]
    %v1323 = vld [vmem:[%s1 + $0x2050] sm:$0xff]
    %v1324 = vld [vmem:[%s1 + $0x2058] sm:$0xff]
    %v1325 = vld [vmem:[%s1 + $0x2060] sm:$0xff]
    %v1326 = vld [vmem:[%s1 + $0x2068] sm:$0xff]
    %v1327 = vld [vmem:[%s1 + $0x2070] sm:$0xff]
    %v1328 = vld [vmem:[%s1 + $0x2078] sm:$0xff]
    %v1329 = vld [vmem:[%s1 + $0x2080] sm:$0xff]
    %v1330 = vld [vmem:[%s1 + $0x2088] sm:$0xff]
    %v1331 = vld [vmem:[%s1 + $0x2090] sm:$0xff]
    %v1332 = vld [vmem:[%s1 + $0x2098] sm:$0xff]
    %v1333 = vld [vmem:[%s1 + $0x20a0] sm:$0xff]
    %v1334 = vld [vmem:[%s1 + $0x20a8] sm:$0xff]
    %v1335 = vld [vmem:[%s1 + $0x20b0] sm:$0xff]
    %v1336 = vld [vmem:[%s1 + $0x20b8] sm:$0xff]
    %v1337 = vld [vmem:[%s1 + $0x20c0] sm:$0xff]
    %v1338 = vld [vmem:[%s1 + $0x20c8] sm:$0xff]
    %v1339 = vld [vmem:[%s1 + $0x20d0] sm:$0xff]
    %v1340 = vld [vmem:[%s1 + $0x20d8] sm:$0xff]
    %v1341 = vld [vmem:[%s1 + $0x20e0] sm:$0xff]
    %v1342 = vld [vmem:[%s1 + $0x20e8] sm:$0xff]
    %v1343 = vld [vmem:[%s1 + $0x20f0] sm:$0xff]
    %v1344 = vld [vmem:[%s1 + $0x20f8] sm:$0xff]
    %v1345 = vld [vmem:[%s1 + $0x2100] sm:$0xff]
    %v1346 = vld [vmem:[%s1 + $0x2108] sm:$0xff]
    %v1347 = vld [vmem:[%s1 + $0x2110] sm:$0xff]
    %v1348 = vld [vmem:[%s1 + $0x2118] sm:$0xff]
    %v1349 = vld [vmem:[%s1 + $0x2120] sm:$0xff]
    %v1350 = vld [vmem:[%s1 + $0x2128] sm:$0xff]
    %v1351 = vld [vmem:[%s1 + $0x2130] sm:$0xff]
    %v1352 = vld [vmem:[%s1 + $0x2138] sm:$0xff]
    %v1353 = vld [vmem:[%s1 + $0x2140] sm:$0xff]
    %v1354 = vld [vmem:[%s1 + $0x2148] sm:$0xff]
    %v1355 = vld [vmem:[%s1 + $0x2150] sm:$0xff]
    %v1356 = vld [vmem:[%s1 + $0x2158] sm:$0xff]
    %v1357 = vld [vmem:[%s1 + $0x2160] sm:$0xff]
    %v1358 = vld [vmem:[%s1 + $0x2168] sm:$0xff]
    %v1359 = vld [vmem:[%s1 + $0x2170] sm:$0xff]
    %v1360 = vld [vmem:[%s1 + $0x2178] sm:$0xff]
    %v1361 = vld [vmem:[%s1 + $0x2180] sm:$0xff]
    %v1362 = vld [vmem:[%s1 + $0x2188] sm:$0xff]
    %v1363 = vld [vmem:[%s1 + $0x2190] sm:$0xff]
    %v1364 = vld [vmem:[%s1 + $0x2198] sm:$0xff]
    %v1365 = vld [vmem:[%s1 + $0x21a0] sm:$0xff]
    %v1366 = vld [vmem:[%s1 + $0x21a8] sm:$0xff]
    %v1367 = vld [vmem:[%s1 + $0x21b0] sm:$0xff]
    %v1368 = vld [vmem:[%s1 + $0x21b8] sm:$0xff]
    %v1369 = vld [vmem:[%s1 + $0x21c0] sm:$0xff]
    %v1370 = vld [vmem:[%s1 + $0x21c8] sm:$0xff]
    %v1371 = vld [vmem:[%s1 + $0x21d0] sm:$0xff]
    %v1372 = vld [vmem:[%s1 + $0x21d8] sm:$0xff]
    %v1373 = vld [vmem:[%s1 + $0x21e0] sm:$0xff]
    %v1374 = vld [vmem:[%s1 + $0x21e8] sm:$0xff]
    %v1375 = vld [vmem:[%s1 + $0x21f0] sm:$0xff]
    %v1376 = vld [vmem:[%s1 + $0x21f8] sm:$0xff]
    %v1377 = vld [vmem:[%s1 + $0x2200] sm:$0xff]
    %v1378 = vld [vmem:[%s1 + $0x2208] sm:$0xff]
    %v1379 = vld [vmem:[%s1 + $0x2210] sm:$0xff]
    %v1380 = vld [vmem:[%s1 + $0x2218] sm:$0xff]
    %v1381 = vld [vmem:[%s1 + $0x2220] sm:$0xff]
    %v1382 = vld [vmem:[%s1 + $0x2228] sm:$0xff]
    %v1383 = vld [vmem:[%s1 + $0x2230] sm:$0xff]
    %v1384 = vld [vmem:[%s1 + $0x2238] sm:$0xff]
    %v1385 = vld [vmem:[%s1 + $0x2240] sm:$0xff]
    %v1386 = vld [vmem:[%s1 + $0x2248] sm:$0xff]
    %v1387 = vld [vmem:[%s1 + $0x2250] sm:$0xff]
    %v1388 = vld [vmem:[%s1 + $0x2258] sm:$0xff]
    %v1389 = vld [vmem:[%s1 + $0x2260] sm:$0xff]
    %v1390 = vld [vmem:[%s1 + $0x2268] sm:$0xff]
    %v1391 = vld [vmem:[%s1 + $0x2270] sm:$0xff]
    %v1392 = vld [vmem:[%s1 + $0x2278] sm:$0xff]
    %v1393 = vld [vmem:[%s1 + $0x2280] sm:$0xff]
    %v1394 = vld [vmem:[%s1 + $0x2288] sm:$0xff]
    %v1395 = vld [vmem:[%s1 + $0x2290] sm:$0xff]
    %v1396 = vld [vmem:[%s1 + $0x2298] sm:$0xff]
    %v1397 = vld [vmem:[%s1 + $0x22a0] sm:$0xff]
    %v1398 = vld [vmem:[%s1 + $0x22a8] sm:$0xff]
    %v1399 = vld [vmem:[%s1 + $0x22b0] sm:$0xff]
    %v1400 = vld [vmem:[%s1 + $0x22b8] sm:$0xff]
    %v1401 = vld [vmem:[%s1 + $0x22c0] sm:$0xff]
    %v1402 = vld [vmem:[%s1 + $0x22c8] sm:$0xff]
    %v1403 = vld [vmem:[%s1 + $0x22d0] sm:$0xff]
    %v1404 = vld [vmem:[%s1 + $0x22d8] sm:$0xff]
    %v1405 = vld [vmem:[%s1 + $0x22e0] sm:$0xff]
    %v1406 = vld [vmem:[%s1 + $0x22e8] sm:$0xff]
    %v1407 = vld [vmem:[%s1 + $0x22f0] sm:$0xff]
    %v1408 = vld [vmem:[%s1 + $0x22f8] sm:$0xff]
    %v1409 = vld [vmem:[%s1 + $0x2300] sm:$0xff]
    %v1410 = vld [vmem:[%s1 + $0x2308] sm:$0xff]
    %v1411 = vld [vmem:[%s1 + $0x2310] sm:$0xff]
    %v1412 = vld [vmem:[%s1 + $0x2318] sm:$0xff]
    %v1413 = vld [vmem:[%s1 + $0x2320] sm:$0xff]
    %v1414 = vld [vmem:[%s1 + $0x2328] sm:$0xff]
    %v1415 = vld [vmem:[%s1 + $0x2330] sm:$0xff]
    %v1416 = vld [vmem:[%s1 + $0x2338] sm:$0xff]
    %v1417 = vld [vmem:[%s1 + $0x2340] sm:$0xff]
    %v1418 = vld [vmem:[%s1 + $0x2348] sm:$0xff]
    %v1419 = vld [vmem:[%s1 + $0x2350] sm:$0xff]
    %v1420 = vld [vmem:[%s1 + $0x2358] sm:$0xff]
    %v1421 = vld [vmem:[%s1 + $0x2360] sm:$0xff]
    %v1422 = vld [vmem:[%s1 + $0x2368] sm:$0xff]
    %v1423 = vld [vmem:[%s1 + $0x2370] sm:$0xff]
    %v1424 = vld [vmem:[%s1 + $0x2378] sm:$0xff]
    %v1425 = vld [vmem:[%s1 + $0x2380] sm:$0xff]
    %v1426 = vld [vmem:[%s1 + $0x2388] sm:$0xff]
    %v1427 = vld [vmem:[%s1 + $0x2390] sm:$0xff]
    %v1428 = vld [vmem:[%s1 + $0x2398] sm:$0xff]
    %v1429 = vld [vmem:[%s1 + $0x23a0] sm:$0xff]
    %v1430 = vld [vmem:[%s1 + $0x23a8] sm:$0xff]
    %v1431 = vld [vmem:[%s1 + $0x23b0] sm:$0xff]
    %v1432 = vld [vmem:[%s1 + $0x23b8] sm:$0xff]
    %v1433 = vld [vmem:[%s1 + $0x23c0] sm:$0xff]
    %v1434 = vld [vmem:[%s1 + $0x23c8] sm:$0xff]
    %v1435 = vld [vmem:[%s1 + $0x23d0] sm:$0xff]
    %v1436 = vld [vmem:[%s1 + $0x23d8] sm:$0xff]
    %v1437 = vld [vmem:[%s1 + $0x23e0] sm:$0xff]
    %v1438 = vld [vmem:[%s1 + $0x23e8] sm:$0xff]
    %v1439 = vld [vmem:[%s1 + $0x23f0] sm:$0xff]
    %v1440 = vld [vmem:[%s1 + $0x23f8] sm:$0xff]
    %v1441 = vld [vmem:[%s1 + $0x2400] sm:$0xff]
    %v1442 = vld [vmem:[%s1 + $0x2408] sm:$0xff]
    %v1443 = vld [vmem:[%s1 + $0x2410] sm:$0xff]
    %v1444 = vld [vmem:[%s1 + $0x2418] sm:$0xff]
    %v1445 = vld [vmem:[%s1 + $0x2420] sm:$0xff]
    %v1446 = vld [vmem:[%s1 + $0x2428] sm:$0xff]
    %v1447 = vld [vmem:[%s1 + $0x2430] sm:$0xff]
    %v1448 = vld [vmem:[%s1 + $0x2438] sm:$0xff]
    %v1449 = vld [vmem:[%s1 + $0x2440] sm:$0xff]
    %v1450 = vld [vmem:[%s1 + $0x2448] sm:$0xff]
    %v1451 = vld [vmem:[%s1 + $0x2450] sm:$0xff]
    %v1452 = vld [vmem:[%s1 + $0x2458] sm:$0xff]
    %v1453 = vld [vmem:[%s1 + $0x2460] sm:$0xff]
    %v1454 = vld [vmem:[%s1 + $0x2468] sm:$0xff]
    %v1455 = vld [vmem:[%s1 + $0x2470] sm:$0xff]
    %v1456 = vld [vmem:[%s1 + $0x2478] sm:$0xff]
    %v1457 = vld [vmem:[%s1 + $0x2480] sm:$0xff]
    %v1458 = vld [vmem:[%s1 + $0x2488] sm:$0xff]
    %v1459 = vld [vmem:[%s1 + $0x2490] sm:$0xff]
    %v1460 = vld [vmem:[%s1 + $0x2498] sm:$0xff]
    %v1461 = vld [vmem:[%s1 + $0x24a0] sm:$0xff]
    %v1462 = vld [vmem:[%s1 + $0x24a8] sm:$0xff]
    %v1463 = vld [vmem:[%s1 + $0x24b0] sm:$0xff]
    %v1464 = vld [vmem:[%s1 + $0x24b8] sm:$0xff]
    %v1465 = vld [vmem:[%s1 + $0x24c0] sm:$0xff]
    %v1466 = vld [vmem:[%s1 + $0x24c8] sm:$0xff]
    %v1467 = vld [vmem:[%s1 + $0x24d0] sm:$0xff]
    %v1468 = vld [vmem:[%s1 + $0x24d8] sm:$0xff]
    %v1469 = vld [vmem:[%s1 + $0x24e0] sm:$0xff]
    %v1470 = vld [vmem:[%s1 + $0x24e8] sm:$0xff]
    %v1471 = vld [vmem:[%s1 + $0x24f0] sm:$0xff]
    %v1472 = vld [vmem:[%s1 + $0x24f8] sm:$0xff]
    %v1473 = vld [vmem:[%s1 + $0x2500] sm:$0xff]
    %v1474 = vld [vmem:[%s1 + $0x2508] sm:$0xff]
    %v1475 = vld [vmem:[%s1 + $0x2510] sm:$0xff]
    %v1476 = vld [vmem:[%s1 + $0x2518] sm:$0xff]
    %v1477 = vld [vmem:[%s1 + $0x2520] sm:$0xff]
    %v1478 = vld [vmem:[%s1 + $0x2528] sm:$0xff]
    %v1479 = vld [vmem:[%s1 + $0x2530] sm:$0xff]
    %v1480 = vld [vmem:[%s1 + $0x2538] sm:$0xff]
    %v1481 = vld [vmem:[%s1 + $0x2540] sm:$0xff]
    %v1482 = vld [vmem:[%s1 + $0x2548] sm:$0xff]
    %v1483 = vld [vmem:[%s1 + $0x2550] sm:$0xff]
    %v1484 = vld [vmem:[%s1 + $0x2558] sm:$0xff]
    %v1485 = vld [vmem:[%s1 + $0x2560] sm:$0xff]
    %v1486 = vld [vmem:[%s1 + $0x2568] sm:$0xff]
    %v1487 = vld [vmem:[%s1 + $0x2570] sm:$0xff]
    %v1488 = vld [vmem:[%s1 + $0x2578] sm:$0xff]
    %v1489 = vld [vmem:[%s1 + $0x2580] sm:$0xff]
    %v1490 = vld [vmem:[%s1 + $0x2588] sm:$0xff]
    %v1491 = vld [vmem:[%s1 + $0x2590] sm:$0xff]
    %v1492 = vld [vmem:[%s1 + $0x2598] sm:$0xff]
    %v1493 = vld [vmem:[%s1 + $0x25a0] sm:$0xff]
    %v1494 = vld [vmem:[%s1 + $0x25a8] sm:$0xff]
    %v1495 = vld [vmem:[%s1 + $0x25b0] sm:$0xff]
    %v1496 = vld [vmem:[%s1 + $0x25b8] sm:$0xff]
    %v1497 = vld [vmem:[%s1 + $0x25c0] sm:$0xff]
    %v1498 = vld [vmem:[%s1 + $0x25c8] sm:$0xff]
    %v1499 = vld [vmem:[%s1 + $0x25d0] sm:$0xff]
    %v1500 = vld [vmem:[%s1 + $0x25d8] sm:$0xff]
    %v1501 = vld [vmem:[%s1 + $0x25e0] sm:$0xff]
    %v1502 = vld [vmem:[%s1 + $0x25e8] sm:$0xff]
    %v1503 = vld [vmem:[%s1 + $0x25f0] sm:$0xff]
    %v1504 = vld [vmem:[%s1 + $0x25f8] sm:$0xff]
    %v1505 = vld [vmem:[%s1 + $0x2600] sm:$0xff]
    %v1506 = vld [vmem:[%s1 + $0x2608] sm:$0xff]
    %v1507 = vld [vmem:[%s1 + $0x2610] sm:$0xff]
    %v1508 = vld [vmem:[%s1 + $0x2618] sm:$0xff]
    %v1509 = vld [vmem:[%s1 + $0x2620] sm:$0xff]
    %v1510 = vld [vmem:[%s1 + $0x2628] sm:$0xff]
    %v1511 = vld [vmem:[%s1 + $0x2630] sm:$0xff]
    %v1512 = vld [vmem:[%s1 + $0x2638] sm:$0xff]
    %v1513 = vld [vmem:[%s1 + $0x2640] sm:$0xff]
    %v1514 = vld [vmem:[%s1 + $0x2648] sm:$0xff]
    %v1515 = vld [vmem:[%s1 + $0x2650] sm:$0xff]
    %v1516 = vld [vmem:[%s1 + $0x2658] sm:$0xff]
    %v1517 = vld [vmem:[%s1 + $0x2660] sm:$0xff]
    %v1518 = vld [vmem:[%s1 + $0x2668] sm:$0xff]
    %v1519 = vld [vmem:[%s1 + $0x2670] sm:$0xff]
    %v1520 = vld [vmem:[%s1 + $0x2678] sm:$0xff]
    %v1521 = vld [vmem:[%s2] sm:$0xf]
    %v1523 = vlaneseq
    %v1524 = vshrl.u32 %v1523, 7
    %v1525 = vsub.s32 0, %v1524
    %v1526 = vrot.slane %v1521, %v1525
    %v1527 = vlaneseq
    %v1528 = vshrl.u32 %v1527, 7
    %v1529 = vsub.s32 1, %v1528
    %v1530 = vrot.slane %v1521, %v1529
    %v1531 = vlaneseq
    %v1532 = vshrl.u32 %v1531, 7
    %v1533 = vsub.s32 2, %v1532
    %v1534 = vrot.slane %v1521, %v1533
    %v1535 = vlaneseq
    %v1536 = vshrl.u32 %v1535, 7
    %v1537 = vsub.s32 3, %v1536
    %v1538 = vrot.slane %v1521, %v1537
    %v2775 = vunpack.c.l.b16 %v289
    %v2776 = vunpack.c.h.b16 %v289
    %v2777 = vunpack.c.l.b16 %v290
    %v2778 = vunpack.c.h.b16 %v290
    %v2779 = vunpack.c.l.b16 %v291
    %v2780 = vunpack.c.h.b16 %v291
    %v2781 = vunpack.c.l.b16 %v292
    %v2782 = vunpack.c.h.b16 %v292
    %v2783 = vunpack.c.l.b16 %v293
    %v2784 = vunpack.c.h.b16 %v293
    %v2785 = vunpack.c.l.b16 %v294
    %v2786 = vunpack.c.h.b16 %v294
    %v2787 = vunpack.c.l.b16 %v295
    %v2788 = vunpack.c.h.b16 %v295
    %v2789 = vunpack.c.l.b16 %v296
    %v2790 = vunpack.c.h.b16 %v296
    %v2791 = vunpack.c.l.b16 %v297
    %v2792 = vunpack.c.h.b16 %v297
    %v2793 = vunpack.c.l.b16 %v298
    %v2794 = vunpack.c.h.b16 %v298
    %v2795 = vunpack.c.l.b16 %v299
    %v2796 = vunpack.c.h.b16 %v299
    %v2797 = vunpack.c.l.b16 %v300
    %v2798 = vunpack.c.h.b16 %v300
    %v2799 = vunpack.c.l.b16 %v301
    %v2800 = vunpack.c.h.b16 %v301
    %v2801 = vunpack.c.l.b16 %v302
    %v2802 = vunpack.c.h.b16 %v302
    %v2803 = vunpack.c.l.b16 %v303
    %v2804 = vunpack.c.h.b16 %v303
    %v2805 = vunpack.c.l.b16 %v304
    %v2806 = vunpack.c.h.b16 %v304
    %v2807 = vunpack.c.l.b16 %v305
    %v2808 = vunpack.c.h.b16 %v305
    %v2809 = vunpack.c.l.b16 %v306
    %v2810 = vunpack.c.h.b16 %v306
    %v2811 = vunpack.c.l.b16 %v307
    %v2812 = vunpack.c.h.b16 %v307
    %v2813 = vunpack.c.l.b16 %v308
    %v2814 = vunpack.c.h.b16 %v308
    %v2815 = vunpack.c.l.b16 %v309
    %v2816 = vunpack.c.h.b16 %v309
    %v2817 = vunpack.c.l.b16 %v310
    %v2818 = vunpack.c.h.b16 %v310
    %v2819 = vunpack.c.l.b16 %v311
    %v2820 = vunpack.c.h.b16 %v311
    %v2821 = vunpack.c.l.b16 %v312
    %v2822 = vunpack.c.h.b16 %v312
    %v2823 = vunpack.c.l.b16 %v313
    %v2824 = vunpack.c.h.b16 %v313
    %v2825 = vunpack.c.l.b16 %v314
    %v2826 = vunpack.c.h.b16 %v314
    %v2827 = vunpack.c.l.b16 %v315
    %v2828 = vunpack.c.h.b16 %v315
    %v2829 = vunpack.c.l.b16 %v316
    %v2830 = vunpack.c.h.b16 %v316
    %v2831 = vunpack.c.l.b16 %v317
    %v2832 = vunpack.c.h.b16 %v317
    %v2833 = vunpack.c.l.b16 %v318
    %v2834 = vunpack.c.h.b16 %v318
    %v2835 = vunpack.c.l.b16 %v319
    %v2836 = vunpack.c.h.b16 %v319
    %v2837 = vunpack.c.l.b16 %v320
    %v2838 = vunpack.c.h.b16 %v320
    %v2839 = vunpack.c.l.b16 %v321
    %v2840 = vunpack.c.h.b16 %v321
    %v2841 = vunpack.c.l.b16 %v322
    %v2842 = vunpack.c.h.b16 %v322
    %v2843 = vunpack.c.l.b16 %v323
    %v2844 = vunpack.c.h.b16 %v323
    %v2845 = vunpack.c.l.b16 %v324
    %v2846 = vunpack.c.h.b16 %v324
    %v2847 = vunpack.c.l.b16 %v325
    %v2848 = vunpack.c.h.b16 %v325
    %v2849 = vunpack.c.l.b16 %v326
    %v2850 = vunpack.c.h.b16 %v326
    %v2851 = vunpack.c.l.b16 %v327
    %v2852 = vunpack.c.h.b16 %v327
    %v2853 = vunpack.c.l.b16 %v328
    %v2854 = vunpack.c.h.b16 %v328
    %v2855 = vunpack.c.l.b16 %v329
    %v2856 = vunpack.c.h.b16 %v329
    %v2857 = vunpack.c.l.b16 %v330
    %v2858 = vunpack.c.h.b16 %v330
    %v2859 = vunpack.c.l.b16 %v331
    %v2860 = vunpack.c.h.b16 %v331
    %v2861 = vunpack.c.l.b16 %v332
    %v2862 = vunpack.c.h.b16 %v332
    %v2863 = vunpack.c.l.b16 %v333
    %v2864 = vunpack.c.h.b16 %v333
    %v2865 = vunpack.c.l.b16 %v334
    %v2866 = vunpack.c.h.b16 %v334
    %v2867 = vunpack.c.l.b16 %v335
    %v2868 = vunpack.c.h.b16 %v335
    %v2869 = vunpack.c.l.b16 %v336
    %v2870 = vunpack.c.h.b16 %v336
    %v2871 = vunpack.c.l.b16 %v337
    %v2872 = vunpack.c.h.b16 %v337
    %v2873 = vunpack.c.l.b16 %v338
    %v2874 = vunpack.c.h.b16 %v338
    %v2875 = vunpack.c.l.b16 %v339
    %v2876 = vunpack.c.h.b16 %v339
    %v2877 = vunpack.c.l.b16 %v340
    %v2878 = vunpack.c.h.b16 %v340
    %v2879 = vunpack.c.l.b16 %v341
    %v2880 = vunpack.c.h.b16 %v341
    %v2881 = vunpack.c.l.b16 %v342
    %v2882 = vunpack.c.h.b16 %v342
    %v2883 = vunpack.c.l.b16 %v343
    %v2884 = vunpack.c.h.b16 %v343
    %v2885 = vunpack.c.l.b16 %v344
    %v2886 = vunpack.c.h.b16 %v344
    %v2887 = vunpack.c.l.b16 %v345
    %v2888 = vunpack.c.h.b16 %v345
    %v2889 = vunpack.c.l.b16 %v346
    %v2890 = vunpack.c.h.b16 %v346
    %v2891 = vunpack.c.l.b16 %v347
    %v2892 = vunpack.c.h.b16 %v347
    %v2893 = vunpack.c.l.b16 %v348
    %v2894 = vunpack.c.h.b16 %v348
    %v2895 = vunpack.c.l.b16 %v349
    %v2896 = vunpack.c.h.b16 %v349
    %v2897 = vunpack.c.l.b16 %v350
    %v2898 = vunpack.c.h.b16 %v350
    %v2899 = vunpack.c.l.b16 %v351
    %v2900 = vunpack.c.h.b16 %v351
    %v2901 = vunpack.c.l.b16 %v352
    %v2902 = vunpack.c.h.b16 %v352
    %v2903 = vunpack.c.l.b16 %v353
    %v2904 = vunpack.c.h.b16 %v353
    %v2905 = vunpack.c.l.b16 %v354
    %v2906 = vunpack.c.h.b16 %v354
    %v2907 = vunpack.c.l.b16 %v355
    %v2908 = vunpack.c.h.b16 %v355
    %v2909 = vunpack.c.l.b16 %v356
    %v2910 = vunpack.c.h.b16 %v356
    %v2911 = vunpack.c.l.b16 %v357
    %v2912 = vunpack.c.h.b16 %v357
    %v2913 = vunpack.c.l.b16 %v358
    %v2914 = vunpack.c.h.b16 %v358
    %v2915 = vunpack.c.l.b16 %v359
    %v2916 = vunpack.c.h.b16 %v359
    %v2917 = vunpack.c.l.b16 %v360
    %v2918 = vunpack.c.h.b16 %v360
    %v2919 = vunpack.c.l.b16 %v361
    %v2920 = vunpack.c.h.b16 %v361
    %v2921 = vunpack.c.l.b16 %v362
    %v2922 = vunpack.c.h.b16 %v362
    %v2923 = vunpack.c.l.b16 %v363
    %v2924 = vunpack.c.h.b16 %v363
    %v2925 = vunpack.c.l.b16 %v364
    %v2926 = vunpack.c.h.b16 %v364
    %v2927 = vunpack.c.l.b16 %v365
    %v2928 = vunpack.c.h.b16 %v365
    %v2929 = vunpack.c.l.b16 %v366
    %v2930 = vunpack.c.h.b16 %v366
    %v2931 = vunpack.c.l.b16 %v367
    %v2932 = vunpack.c.h.b16 %v367
    %v2933 = vunpack.c.l.b16 %v368
    %v2934 = vunpack.c.h.b16 %v368
    %v2935 = vunpack.c.l.b16 %v369
    %v2936 = vunpack.c.h.b16 %v369
    %v2937 = vunpack.c.l.b16 %v370
    %v2938 = vunpack.c.h.b16 %v370
    %v2939 = vunpack.c.l.b16 %v371
    %v2940 = vunpack.c.h.b16 %v371
    %v2941 = vunpack.c.l.b16 %v372
    %v2942 = vunpack.c.h.b16 %v372
    %v2943 = vunpack.c.l.b16 %v373
    %v2944 = vunpack.c.h.b16 %v373
    %v2945 = vunpack.c.l.b16 %v374
    %v2946 = vunpack.c.h.b16 %v374
    %v2947 = vunpack.c.l.b16 %v375
    %v2948 = vunpack.c.h.b16 %v375
    %v2949 = vunpack.c.l.b16 %v376
    %v2950 = vunpack.c.h.b16 %v376
    %v2951 = vunpack.c.l.b16 %v377
    %v2952 = vunpack.c.h.b16 %v377
    %v2953 = vunpack.c.l.b16 %v378
    %v2954 = vunpack.c.h.b16 %v378
    %v2955 = vunpack.c.l.b16 %v379
    %v2956 = vunpack.c.h.b16 %v379
    %v2957 = vunpack.c.l.b16 %v380
    %v2958 = vunpack.c.h.b16 %v380
    %v2959 = vunpack.c.l.b16 %v381
    %v2960 = vunpack.c.h.b16 %v381
    %v2961 = vunpack.c.l.b16 %v382
    %v2962 = vunpack.c.h.b16 %v382
    %v2963 = vunpack.c.l.b16 %v383
    %v2964 = vunpack.c.h.b16 %v383
    %v2965 = vunpack.c.l.b16 %v384
    %v2966 = vunpack.c.h.b16 %v384
    %v2967 = vunpack.c.l.b16 %v385
    %v2968 = vunpack.c.h.b16 %v385
    %v2969 = vunpack.c.l.b16 %v386
    %v2970 = vunpack.c.h.b16 %v386
    %v2971 = vunpack.c.l.b16 %v387
    %v2972 = vunpack.c.h.b16 %v387
    %v2973 = vunpack.c.l.b16 %v388
    %v2974 = vunpack.c.h.b16 %v388
    %v2975 = vunpack.c.l.b16 %v389
    %v2976 = vunpack.c.h.b16 %v389
    %v2977 = vunpack.c.l.b16 %v390
    %v2978 = vunpack.c.h.b16 %v390
    %v2979 = vunpack.c.l.b16 %v391
    %v2980 = vunpack.c.h.b16 %v391
    %v2981 = vunpack.c.l.b16 %v392
    %v2982 = vunpack.c.h.b16 %v392
    %v2983 = vunpack.c.l.b16 %v393
    %v2984 = vunpack.c.h.b16 %v393
    %v2985 = vunpack.c.l.b16 %v394
    %v2986 = vunpack.c.h.b16 %v394
    %v2987 = vunpack.c.l.b16 %v395
    %v2988 = vunpack.c.h.b16 %v395
    %v2989 = vunpack.c.l.b16 %v396
    %v2990 = vunpack.c.h.b16 %v396
    %v2991 = vunpack.c.l.b16 %v397
    %v2992 = vunpack.c.h.b16 %v397
    %v2993 = vunpack.c.l.b16 %v398
    %v2994 = vunpack.c.h.b16 %v398
    %v2995 = vunpack.c.l.b16 %v399
    %v2996 = vunpack.c.h.b16 %v399
    %v2997 = vunpack.c.l.b16 %v400
    %v2998 = vunpack.c.h.b16 %v400
    %v2999 = vunpack.c.l.b16 %v401
    %v3000 = vunpack.c.h.b16 %v401
    %v3001 = vunpack.c.l.b16 %v402
    %v3002 = vunpack.c.h.b16 %v402
    %v3003 = vunpack.c.l.b16 %v403
    %v3004 = vunpack.c.h.b16 %v403
    %v3005 = vunpack.c.l.b16 %v404
    %v3006 = vunpack.c.h.b16 %v404
    %v3007 = vunpack.c.l.b16 %v405
    %v3008 = vunpack.c.h.b16 %v405
    %v3009 = vunpack.c.l.b16 %v406
    %v3010 = vunpack.c.h.b16 %v406
    %v3011 = vunpack.c.l.b16 %v407
    %v3012 = vunpack.c.h.b16 %v407
    %v3013 = vunpack.c.l.b16 %v408
    %v3014 = vunpack.c.h.b16 %v408
    %v3015 = vunpack.c.l.b16 %v409
    %v3016 = vunpack.c.h.b16 %v409
    %v3017 = vunpack.c.l.b16 %v410
    %v3018 = vunpack.c.h.b16 %v410
    %v3019 = vunpack.c.l.b16 %v411
    %v3020 = vunpack.c.h.b16 %v411
    %v3021 = vunpack.c.l.b16 %v412
    %v3022 = vunpack.c.h.b16 %v412
    %v3023 = vunpack.c.l.b16 %v413
    %v3024 = vunpack.c.h.b16 %v413
    %v3025 = vunpack.c.l.b16 %v414
    %v3026 = vunpack.c.h.b16 %v414
    %v3027 = vunpack.c.l.b16 %v415
    %v3028 = vunpack.c.h.b16 %v415
    %v3029 = vunpack.c.l.b16 %v416
    %v3030 = vunpack.c.h.b16 %v416
    %v3031 = vunpack.c.l.b16 %v417
    %v3032 = vunpack.c.h.b16 %v417
    %v3033 = vunpack.c.l.b16 %v418
    %v3034 = vunpack.c.h.b16 %v418
    %v3035 = vunpack.c.l.b16 %v419
    %v3036 = vunpack.c.h.b16 %v419
    %v3037 = vunpack.c.l.b16 %v420
    %v3038 = vunpack.c.h.b16 %v420
    %v3039 = vunpack.c.l.b16 %v421
    %v3040 = vunpack.c.h.b16 %v421
    %v3041 = vunpack.c.l.b16 %v422
    %v3042 = vunpack.c.h.b16 %v422
    %v3043 = vunpack.c.l.b16 %v423
    %v3044 = vunpack.c.h.b16 %v423
    %v3045 = vunpack.c.l.b16 %v424
    %v3046 = vunpack.c.h.b16 %v424
    %v3047 = vunpack.c.l.b16 %v425
    %v3048 = vunpack.c.h.b16 %v425
    %v3049 = vunpack.c.l.b16 %v426
    %v3050 = vunpack.c.h.b16 %v426
    %v3051 = vunpack.c.l.b16 %v427
    %v3052 = vunpack.c.h.b16 %v427
    %v3053 = vunpack.c.l.b16 %v428
    %v3054 = vunpack.c.h.b16 %v428
    %v3055 = vunpack.c.l.b16 %v429
    %v3056 = vunpack.c.h.b16 %v429
    %v3057 = vunpack.c.l.b16 %v430
    %v3058 = vunpack.c.h.b16 %v430
    %v3059 = vunpack.c.l.b16 %v431
    %v3060 = vunpack.c.h.b16 %v431
    %v3061 = vunpack.c.l.b16 %v432
    %v3062 = vunpack.c.h.b16 %v432
    %v3063 = vunpack.c.l.b16 %v433
    %v3064 = vunpack.c.h.b16 %v433
    %v3065 = vunpack.c.l.b16 %v434
    %v3066 = vunpack.c.h.b16 %v434
    %v3067 = vunpack.c.l.b16 %v435
    %v3068 = vunpack.c.h.b16 %v435
    %v3069 = vunpack.c.l.b16 %v436
    %v3070 = vunpack.c.h.b16 %v436
    %v3071 = vunpack.c.l.b16 %v437
    %v3072 = vunpack.c.h.b16 %v437
    %v3073 = vunpack.c.l.b16 %v438
    %v3074 = vunpack.c.h.b16 %v438
    %v3075 = vunpack.c.l.b16 %v439
    %v3076 = vunpack.c.h.b16 %v439
    %v3077 = vunpack.c.l.b16 %v440
    %v3078 = vunpack.c.h.b16 %v440
    %v3079 = vunpack.c.l.b16 %v441
    %v3080 = vunpack.c.h.b16 %v441
    %v3081 = vunpack.c.l.b16 %v442
    %v3082 = vunpack.c.h.b16 %v442
    %v3083 = vunpack.c.l.b16 %v443
    %v3084 = vunpack.c.h.b16 %v443
    %v3085 = vunpack.c.l.b16 %v444
    %v3086 = vunpack.c.h.b16 %v444
    %v3087 = vunpack.c.l.b16 %v445
    %v3088 = vunpack.c.h.b16 %v445
    %v3089 = vunpack.c.l.b16 %v446
    %v3090 = vunpack.c.h.b16 %v446
    %v3091 = vunpack.c.l.b16 %v447
    %v3092 = vunpack.c.h.b16 %v447
    %v3093 = vunpack.c.l.b16 %v448
    %v3094 = vunpack.c.h.b16 %v448
    %v3095 = vunpack.c.l.b16 %v449
    %v3096 = vunpack.c.h.b16 %v449
    %v3097 = vunpack.c.l.b16 %v450
    %v3098 = vunpack.c.h.b16 %v450
    %v3099 = vunpack.c.l.b16 %v451
    %v3100 = vunpack.c.h.b16 %v451
    %v3101 = vunpack.c.l.b16 %v452
    %v3102 = vunpack.c.h.b16 %v452
    %v3103 = vunpack.c.l.b16 %v453
    %v3104 = vunpack.c.h.b16 %v453
    %v3105 = vunpack.c.l.b16 %v454
    %v3106 = vunpack.c.h.b16 %v454
    %v3107 = vunpack.c.l.b16 %v455
    %v3108 = vunpack.c.h.b16 %v455
    %v3109 = vunpack.c.l.b16 %v456
    %v3110 = vunpack.c.h.b16 %v456
    %v3111 = vunpack.c.l.b16 %v457
    %v3112 = vunpack.c.h.b16 %v457
    %v3113 = vunpack.c.l.b16 %v458
    %v3114 = vunpack.c.h.b16 %v458
    %v3115 = vunpack.c.l.b16 %v459
    %v3116 = vunpack.c.h.b16 %v459
    %v3117 = vunpack.c.l.b16 %v460
    %v3118 = vunpack.c.h.b16 %v460
    %v3119 = vunpack.c.l.b16 %v461
    %v3120 = vunpack.c.h.b16 %v461
    %v3121 = vunpack.c.l.b16 %v462
    %v3122 = vunpack.c.h.b16 %v462
    %v3123 = vunpack.c.l.b16 %v463
    %v3124 = vunpack.c.h.b16 %v463
    %v3125 = vunpack.c.l.b16 %v464
    %v3126 = vunpack.c.h.b16 %v464
    %v3127 = vunpack.c.l.b16 %v465
    %v3128 = vunpack.c.h.b16 %v465
    %v3129 = vunpack.c.l.b16 %v466
    %v3130 = vunpack.c.h.b16 %v466
    %v3131 = vunpack.c.l.b16 %v467
    %v3132 = vunpack.c.h.b16 %v467
    %v3133 = vunpack.c.l.b16 %v468
    %v3134 = vunpack.c.h.b16 %v468
    %v3135 = vunpack.c.l.b16 %v469
    %v3136 = vunpack.c.h.b16 %v469
    %v3137 = vunpack.c.l.b16 %v470
    %v3138 = vunpack.c.h.b16 %v470
    %v3139 = vunpack.c.l.b16 %v471
    %v3140 = vunpack.c.h.b16 %v471
    %v3141 = vunpack.c.l.b16 %v472
    %v3142 = vunpack.c.h.b16 %v472
    %v3143 = vunpack.c.l.b16 %v473
    %v3144 = vunpack.c.h.b16 %v473
    %v3145 = vunpack.c.l.b16 %v474
    %v3146 = vunpack.c.h.b16 %v474
    %v3147 = vunpack.c.l.b16 %v475
    %v3148 = vunpack.c.h.b16 %v475
    %v3149 = vunpack.c.l.b16 %v476
    %v3150 = vunpack.c.h.b16 %v476
    %v3151 = vunpack.c.l.b16 %v477
    %v3152 = vunpack.c.h.b16 %v477
    %v3153 = vunpack.c.l.b16 %v478
    %v3154 = vunpack.c.h.b16 %v478
    %v3155 = vunpack.c.l.b16 %v479
    %v3156 = vunpack.c.h.b16 %v479
    %v3157 = vunpack.c.l.b16 %v480
    %v3158 = vunpack.c.h.b16 %v480
    %v3159 = vunpack.c.l.b16 %v481
    %v3160 = vunpack.c.h.b16 %v481
    %v3161 = vunpack.c.l.b16 %v482
    %v3162 = vunpack.c.h.b16 %v482
    %v3163 = vunpack.c.l.b16 %v483
    %v3164 = vunpack.c.h.b16 %v483
    %v3165 = vunpack.c.l.b16 %v484
    %v3166 = vunpack.c.h.b16 %v484
    %v3167 = vunpack.c.l.b16 %v485
    %v3168 = vunpack.c.h.b16 %v485
    %v3169 = vunpack.c.l.b16 %v486
    %v3170 = vunpack.c.h.b16 %v486
    %v3171 = vunpack.c.l.b16 %v487
    %v3172 = vunpack.c.h.b16 %v487
    %v3173 = vunpack.c.l.b16 %v488
    %v3174 = vunpack.c.h.b16 %v488
    %v3175 = vunpack.c.l.b16 %v489
    %v3176 = vunpack.c.h.b16 %v489
    %v3177 = vunpack.c.l.b16 %v490
    %v3178 = vunpack.c.h.b16 %v490
    %v3179 = vunpack.c.l.b16 %v491
    %v3180 = vunpack.c.h.b16 %v491
    %v3181 = vunpack.c.l.b16 %v492
    %v3182 = vunpack.c.h.b16 %v492
    %v3183 = vunpack.c.l.b16 %v493
    %v3184 = vunpack.c.h.b16 %v493
    %v3185 = vunpack.c.l.b16 %v494
    %v3186 = vunpack.c.h.b16 %v494
    %v3187 = vunpack.c.l.b16 %v495
    %v3188 = vunpack.c.h.b16 %v495
    %v3189 = vunpack.c.l.b16 %v496
    %v3190 = vunpack.c.h.b16 %v496
    %v3191 = vunpack.c.l.b16 %v497
    %v3192 = vunpack.c.h.b16 %v497
    %v3193 = vunpack.c.l.b16 %v498
    %v3194 = vunpack.c.h.b16 %v498
    %v3195 = vunpack.c.l.b16 %v499
    %v3196 = vunpack.c.h.b16 %v499
    %v3197 = vunpack.c.l.b16 %v500
    %v3198 = vunpack.c.h.b16 %v500
    %v3199 = vunpack.c.l.b16 %v501
    %v3200 = vunpack.c.h.b16 %v501
    %v3201 = vunpack.c.l.b16 %v502
    %v3202 = vunpack.c.h.b16 %v502
    %v3203 = vunpack.c.l.b16 %v503
    %v3204 = vunpack.c.h.b16 %v503
    %v3205 = vunpack.c.l.b16 %v504
    %v3206 = vunpack.c.h.b16 %v504
    %v3207 = vunpack.c.l.b16 %v505
    %v3208 = vunpack.c.h.b16 %v505
    %v3209 = vunpack.c.l.b16 %v506
    %v3210 = vunpack.c.h.b16 %v506
    %v3211 = vunpack.c.l.b16 %v507
    %v3212 = vunpack.c.h.b16 %v507
    %v3213 = vunpack.c.l.b16 %v508
    %v3214 = vunpack.c.h.b16 %v508
    %v3215 = vunpack.c.l.b16 %v509
    %v3216 = vunpack.c.h.b16 %v509
    %v3217 = vunpack.c.l.b16 %v510
    %v3218 = vunpack.c.h.b16 %v510
    %v3219 = vunpack.c.l.b16 %v511
    %v3220 = vunpack.c.h.b16 %v511
    %v3221 = vunpack.c.l.b16 %v512
    %v3222 = vunpack.c.h.b16 %v512
    %v3223 = vunpack.c.l.b16 %v513
    %v3224 = vunpack.c.h.b16 %v513
    %v3225 = vunpack.c.l.b16 %v514
    %v3226 = vunpack.c.h.b16 %v514
    %v3227 = vunpack.c.l.b16 %v515
    %v3228 = vunpack.c.h.b16 %v515
    %v3229 = vunpack.c.l.b16 %v516
    %v3230 = vunpack.c.h.b16 %v516
    %v3231 = vunpack.c.l.b16 %v517
    %v3232 = vunpack.c.h.b16 %v517
    %v3233 = vunpack.c.l.b16 %v518
    %v3234 = vunpack.c.h.b16 %v518
    %v3235 = vunpack.c.l.b16 %v519
    %v3236 = vunpack.c.h.b16 %v519
    %v3237 = vunpack.c.l.b16 %v520
    %v3238 = vunpack.c.h.b16 %v520
    %v3239 = vunpack.c.l.b16 %v521
    %v3240 = vunpack.c.h.b16 %v521
    %v3241 = vunpack.c.l.b16 %v522
    %v3242 = vunpack.c.h.b16 %v522
    %v3243 = vunpack.c.l.b16 %v523
    %v3244 = vunpack.c.h.b16 %v523
    %v3245 = vunpack.c.l.b16 %v524
    %v3246 = vunpack.c.h.b16 %v524
    %v3247 = vunpack.c.l.b16 %v525
    %v3248 = vunpack.c.h.b16 %v525
    %v3249 = vunpack.c.l.b16 %v526
    %v3250 = vunpack.c.h.b16 %v526
    %v3251 = vunpack.c.l.b16 %v527
    %v3252 = vunpack.c.h.b16 %v527
    %v3253 = vunpack.c.l.b16 %v528
    %v3254 = vunpack.c.h.b16 %v528
    %v3255 = vunpack.c.l.b16 %v529
    %v3256 = vunpack.c.h.b16 %v529
    %v3257 = vunpack.c.l.b16 %v530
    %v3258 = vunpack.c.h.b16 %v530
    %v3259 = vunpack.c.l.b16 %v531
    %v3260 = vunpack.c.h.b16 %v531
    %v3261 = vunpack.c.l.b16 %v532
    %v3262 = vunpack.c.h.b16 %v532
    %v3263 = vunpack.c.l.b16 %v533
    %v3264 = vunpack.c.h.b16 %v533
    %v3265 = vunpack.c.l.b16 %v534
    %v3266 = vunpack.c.h.b16 %v534
    %v3267 = vunpack.c.l.b16 %v535
    %v3268 = vunpack.c.h.b16 %v535
    %v3269 = vunpack.c.l.b16 %v536
    %v3270 = vunpack.c.h.b16 %v536
    %v3271 = vunpack.c.l.b16 %v537
    %v3272 = vunpack.c.h.b16 %v537
    %v3273 = vunpack.c.l.b16 %v538
    %v3274 = vunpack.c.h.b16 %v538
    %v3275 = vunpack.c.l.b16 %v539
    %v3276 = vunpack.c.h.b16 %v539
    %v3277 = vunpack.c.l.b16 %v540
    %v3278 = vunpack.c.h.b16 %v540
    %v3279 = vunpack.c.l.b16 %v541
    %v3280 = vunpack.c.h.b16 %v541
    %v3281 = vunpack.c.l.b16 %v542
    %v3282 = vunpack.c.h.b16 %v542
    %v3283 = vunpack.c.l.b16 %v543
    %v3284 = vunpack.c.h.b16 %v543
    %v3285 = vunpack.c.l.b16 %v544
    %v3286 = vunpack.c.h.b16 %v544
    %v3287 = vunpack.c.l.b16 %v545
    %v3288 = vunpack.c.h.b16 %v545
    %v3289 = vunpack.c.l.b16 %v546
    %v3290 = vunpack.c.h.b16 %v546
    %v3291 = vunpack.c.l.b16 %v547
    %v3292 = vunpack.c.h.b16 %v547
    %v3293 = vunpack.c.l.b16 %v548
    %v3294 = vunpack.c.h.b16 %v548
    %v3295 = vunpack.c.l.b16 %v549
    %v3296 = vunpack.c.h.b16 %v549
    %v3297 = vunpack.c.l.b16 %v550
    %v3298 = vunpack.c.h.b16 %v550
    %v3299 = vunpack.c.l.b16 %v551
    %v3300 = vunpack.c.h.b16 %v551
    %v3301 = vunpack.c.l.b16 %v552
    %v3302 = vunpack.c.h.b16 %v552
    %v3303 = vunpack.c.l.b16 %v553
    %v3304 = vunpack.c.h.b16 %v553
    %v3305 = vunpack.c.l.b16 %v554
    %v3306 = vunpack.c.h.b16 %v554
    %v3307 = vunpack.c.l.b16 %v555
    %v3308 = vunpack.c.h.b16 %v555
    %v3309 = vunpack.c.l.b16 %v556
    %v3310 = vunpack.c.h.b16 %v556
    %v3311 = vunpack.c.l.b16 %v557
    %v3312 = vunpack.c.h.b16 %v557
    %v3313 = vunpack.c.l.b16 %v558
    %v3314 = vunpack.c.h.b16 %v558
    %v3315 = vunpack.c.l.b16 %v559
    %v3316 = vunpack.c.h.b16 %v559
    %v3317 = vunpack.c.l.b16 %v560
    %v3318 = vunpack.c.h.b16 %v560
    %v3319 = vunpack.c.l.b16 %v561
    %v3320 = vunpack.c.h.b16 %v561
    %v3321 = vunpack.c.l.b16 %v562
    %v3322 = vunpack.c.h.b16 %v562
    %v3323 = vunpack.c.l.b16 %v563
    %v3324 = vunpack.c.h.b16 %v563
    %v3325 = vunpack.c.l.b16 %v564
    %v3326 = vunpack.c.h.b16 %v564
    %v3327 = vunpack.c.l.b16 %v565
    %v3328 = vunpack.c.h.b16 %v565
    %v3329 = vunpack.c.l.b16 %v566
    %v3330 = vunpack.c.h.b16 %v566
    %v3331 = vunpack.c.l.b16 %v567
    %v3332 = vunpack.c.h.b16 %v567
    %v3333 = vunpack.c.l.b16 %v568
    %v3334 = vunpack.c.h.b16 %v568
    %v3335 = vunpack.c.l.b16 %v569
    %v3336 = vunpack.c.h.b16 %v569
    %v3337 = vunpack.c.l.b16 %v570
    %v3338 = vunpack.c.h.b16 %v570
    %v3339 = vunpack.c.l.b16 %v571
    %v3340 = vunpack.c.h.b16 %v571
    %v3341 = vunpack.c.l.b16 %v572
    %v3342 = vunpack.c.h.b16 %v572
    %v3343 = vunpack.c.l.b16 %v573
    %v3344 = vunpack.c.h.b16 %v573
    %v3345 = vunpack.c.l.b16 %v574
    %v3346 = vunpack.c.h.b16 %v574
    %v3347 = vunpack.c.l.b16 %v575
    %v3348 = vunpack.c.h.b16 %v575
    %v3349 = vunpack.c.l.b16 %v576
    %v3350 = vunpack.c.h.b16 %v576
    %v3351 = vunpack.c.l.b16 %v577
    %v3352 = vunpack.c.h.b16 %v577
    %v3353 = vunpack.c.l.b16 %v578
    %v3354 = vunpack.c.h.b16 %v578
    %v3355 = vunpack.c.l.b16 %v579
    %v3356 = vunpack.c.h.b16 %v579
    %v3357 = vunpack.c.l.b16 %v580
    %v3358 = vunpack.c.h.b16 %v580
    %v3359 = vunpack.c.l.b16 %v581
    %v3360 = vunpack.c.h.b16 %v581
    %v3361 = vunpack.c.l.b16 %v582
    %v3362 = vunpack.c.h.b16 %v582
    %v3363 = vunpack.c.l.b16 %v583
    %v3364 = vunpack.c.h.b16 %v583
    %v3365 = vunpack.c.l.b16 %v584
    %v3366 = vunpack.c.h.b16 %v584
    %v3367 = vunpack.c.l.b16 %v585
    %v3368 = vunpack.c.h.b16 %v585
    %v3369 = vunpack.c.l.b16 %v586
    %v3370 = vunpack.c.h.b16 %v586
    %v3371 = vunpack.c.l.b16 %v587
    %v3372 = vunpack.c.h.b16 %v587
    %v3373 = vunpack.c.l.b16 %v588
    %v3374 = vunpack.c.h.b16 %v588
    %v3375 = vunpack.c.l.b16 %v589
    %v3376 = vunpack.c.h.b16 %v589
    %v3377 = vunpack.c.l.b16 %v590
    %v3378 = vunpack.c.h.b16 %v590
    %v3379 = vunpack.c.l.b16 %v591
    %v3380 = vunpack.c.h.b16 %v591
    %v3381 = vunpack.c.l.b16 %v592
    %v3382 = vunpack.c.h.b16 %v592
    %v3383 = vunpack.c.l.b16 %v593
    %v3384 = vunpack.c.h.b16 %v593
    %v3385 = vunpack.c.l.b16 %v594
    %v3386 = vunpack.c.h.b16 %v594
    %v3387 = vunpack.c.l.b16 %v595
    %v3388 = vunpack.c.h.b16 %v595
    %v3389 = vunpack.c.l.b16 %v596
    %v3390 = vunpack.c.h.b16 %v596
    %v3391 = vunpack.c.l.b16 %v597
    %v3392 = vunpack.c.h.b16 %v597
    %v3393 = vunpack.c.l.b16 %v598
    %v3394 = vunpack.c.h.b16 %v598
    %v3395 = vunpack.c.l.b16 %v599
    %v3396 = vunpack.c.h.b16 %v599
    %v3397 = vunpack.c.l.b16 %v600
    %v3398 = vunpack.c.h.b16 %v600
    %v3399 = vunpack.c.l.b16 %v601
    %v3400 = vunpack.c.h.b16 %v601
    %v3401 = vunpack.c.l.b16 %v602
    %v3402 = vunpack.c.h.b16 %v602
    %v3403 = vunpack.c.l.b16 %v603
    %v3404 = vunpack.c.h.b16 %v603
    %v3405 = vunpack.c.l.b16 %v604
    %v3406 = vunpack.c.h.b16 %v604
    %v3407 = vunpack.c.l.b16 %v605
    %v3408 = vunpack.c.h.b16 %v605
    %v3409 = vunpack.c.l.b16 %v606
    %v3410 = vunpack.c.h.b16 %v606
    %v3411 = vunpack.c.l.b16 %v607
    %v3412 = vunpack.c.h.b16 %v607
    %v3413 = vunpack.c.l.b16 %v608
    %v3414 = vunpack.c.h.b16 %v608
    %v3415 = vunpack.c.l.b16 %v609
    %v3416 = vunpack.c.h.b16 %v609
    %v3417 = vunpack.c.l.b16 %v610
    %v3418 = vunpack.c.h.b16 %v610
    %v3419 = vunpack.c.l.b16 %v611
    %v3420 = vunpack.c.h.b16 %v611
    %v3421 = vunpack.c.l.b16 %v612
    %v3422 = vunpack.c.h.b16 %v612
    %v3423 = vunpack.c.l.b16 %v613
    %v3424 = vunpack.c.h.b16 %v613
    %v3425 = vunpack.c.l.b16 %v614
    %v3426 = vunpack.c.h.b16 %v614
    %v3427 = vunpack.c.l.b16 %v615
    %v3428 = vunpack.c.h.b16 %v615
    %v3429 = vunpack.c.l.b16 %v616
    %v3430 = vunpack.c.h.b16 %v616
    %v3431 = vunpack.c.l.b16 %v617
    %v3432 = vunpack.c.h.b16 %v617
    %v3433 = vunpack.c.l.b16 %v618
    %v3434 = vunpack.c.h.b16 %v618
    %v3435 = vunpack.c.l.b16 %v619
    %v3436 = vunpack.c.h.b16 %v619
    %v3437 = vunpack.c.l.b16 %v620
    %v3438 = vunpack.c.h.b16 %v620
    %v3439 = vunpack.c.l.b16 %v621
    %v3440 = vunpack.c.h.b16 %v621
    %v3441 = vunpack.c.l.b16 %v622
    %v3442 = vunpack.c.h.b16 %v622
    %v3443 = vunpack.c.l.b16 %v623
    %v3444 = vunpack.c.h.b16 %v623
    %v3445 = vunpack.c.l.b16 %v624
    %v3446 = vunpack.c.h.b16 %v624
    %v3447 = vunpack.c.l.b16 %v625
    %v3448 = vunpack.c.h.b16 %v625
    %v3449 = vunpack.c.l.b16 %v626
    %v3450 = vunpack.c.h.b16 %v626
    %v3451 = vunpack.c.l.b16 %v627
    %v3452 = vunpack.c.h.b16 %v627
    %v3453 = vunpack.c.l.b16 %v628
    %v3454 = vunpack.c.h.b16 %v628
    %v3455 = vunpack.c.l.b16 %v629
    %v3456 = vunpack.c.h.b16 %v629
    %v3457 = vunpack.c.l.b16 %v630
    %v3458 = vunpack.c.h.b16 %v630
    %v3459 = vunpack.c.l.b16 %v631
    %v3460 = vunpack.c.h.b16 %v631
    %v3461 = vunpack.c.l.b16 %v632
    %v3462 = vunpack.c.h.b16 %v632
    %v3463 = vunpack.c.l.b16 %v633
    %v3464 = vunpack.c.h.b16 %v633
    %v3465 = vunpack.c.l.b16 %v634
    %v3466 = vunpack.c.h.b16 %v634
    %v3467 = vunpack.c.l.b16 %v635
    %v3468 = vunpack.c.h.b16 %v635
    %v3469 = vunpack.c.l.b16 %v636
    %v3470 = vunpack.c.h.b16 %v636
    %v3471 = vunpack.c.l.b16 %v637
    %v3472 = vunpack.c.h.b16 %v637
    %v3473 = vunpack.c.l.b16 %v638
    %v3474 = vunpack.c.h.b16 %v638
    %v3475 = vunpack.c.l.b16 %v639
    %v3476 = vunpack.c.h.b16 %v639
    %v3477 = vunpack.c.l.b16 %v640
    %v3478 = vunpack.c.h.b16 %v640
    %v3479 = vunpack.c.l.b16 %v641
    %v3480 = vunpack.c.h.b16 %v641
    %v3481 = vunpack.c.l.b16 %v642
    %v3482 = vunpack.c.h.b16 %v642
    %v3483 = vunpack.c.l.b16 %v643
    %v3484 = vunpack.c.h.b16 %v643
    %v3485 = vunpack.c.l.b16 %v644
    %v3486 = vunpack.c.h.b16 %v644
    %v3487 = vunpack.c.l.b16 %v645
    %v3488 = vunpack.c.h.b16 %v645
    %v3489 = vunpack.c.l.b16 %v646
    %v3490 = vunpack.c.h.b16 %v646
    %v3491 = vunpack.c.l.b16 %v647
    %v3492 = vunpack.c.h.b16 %v647
    %v3493 = vunpack.c.l.b16 %v648
    %v3494 = vunpack.c.h.b16 %v648
    %v3495 = vunpack.c.l.b16 %v649
    %v3496 = vunpack.c.h.b16 %v649
    %v3497 = vunpack.c.l.b16 %v650
    %v3498 = vunpack.c.h.b16 %v650
    %v3499 = vunpack.c.l.b16 %v651
    %v3500 = vunpack.c.h.b16 %v651
    %v3501 = vunpack.c.l.b16 %v652
    %v3502 = vunpack.c.h.b16 %v652
    %v3503 = vunpack.c.l.b16 %v653
    %v3504 = vunpack.c.h.b16 %v653
    %v3505 = vunpack.c.l.b16 %v654
    %v3506 = vunpack.c.h.b16 %v654
    %v3507 = vunpack.c.l.b16 %v655
    %v3508 = vunpack.c.h.b16 %v655
    %v3509 = vunpack.c.l.b16 %v656
    %v3510 = vunpack.c.h.b16 %v656
    %v3511 = vunpack.c.l.b16 %v657
    %v3512 = vunpack.c.h.b16 %v657
    %v3513 = vunpack.c.l.b16 %v658
    %v3514 = vunpack.c.h.b16 %v658
    %v3515 = vunpack.c.l.b16 %v659
    %v3516 = vunpack.c.h.b16 %v659
    %v3517 = vunpack.c.l.b16 %v660
    %v3518 = vunpack.c.h.b16 %v660
    %v3519 = vunpack.c.l.b16 %v661
    %v3520 = vunpack.c.h.b16 %v661
    %v3521 = vunpack.c.l.b16 %v662
    %v3522 = vunpack.c.h.b16 %v662
    %v3523 = vunpack.c.l.b16 %v663
    %v3524 = vunpack.c.h.b16 %v663
    %v3525 = vunpack.c.l.b16 %v664
    %v3526 = vunpack.c.h.b16 %v664
    %v3527 = vunpack.c.l.b16 %v665
    %v3528 = vunpack.c.h.b16 %v665
    %v3529 = vunpack.c.l.b16 %v666
    %v3530 = vunpack.c.h.b16 %v666
    %v3531 = vunpack.c.l.b16 %v667
    %v3532 = vunpack.c.h.b16 %v667
    %v3533 = vunpack.c.l.b16 %v668
    %v3534 = vunpack.c.h.b16 %v668
    %v3535 = vunpack.c.l.b16 %v669
    %v3536 = vunpack.c.h.b16 %v669
    %v3537 = vunpack.c.l.b16 %v670
    %v3538 = vunpack.c.h.b16 %v670
    %v3539 = vunpack.c.l.b16 %v671
    %v3540 = vunpack.c.h.b16 %v671
    %v3541 = vunpack.c.l.b16 %v672
    %v3542 = vunpack.c.h.b16 %v672
    %v3543 = vunpack.c.l.b16 %v673
    %v3544 = vunpack.c.h.b16 %v673
    %v3545 = vunpack.c.l.b16 %v674
    %v3546 = vunpack.c.h.b16 %v674
    %v3547 = vunpack.c.l.b16 %v675
    %v3548 = vunpack.c.h.b16 %v675
    %v3549 = vunpack.c.l.b16 %v676
    %v3550 = vunpack.c.h.b16 %v676
    %v3551 = vunpack.c.l.b16 %v677
    %v3552 = vunpack.c.h.b16 %v677
    %v3553 = vunpack.c.l.b16 %v678
    %v3554 = vunpack.c.h.b16 %v678
    %v3555 = vunpack.c.l.b16 %v679
    %v3556 = vunpack.c.h.b16 %v679
    %v3557 = vunpack.c.l.b16 %v680
    %v3558 = vunpack.c.h.b16 %v680
    %v3559 = vunpack.c.l.b16 %v681
    %v3560 = vunpack.c.h.b16 %v681
    %v3561 = vunpack.c.l.b16 %v682
    %v3562 = vunpack.c.h.b16 %v682
    %v3563 = vunpack.c.l.b16 %v683
    %v3564 = vunpack.c.h.b16 %v683
    %v3565 = vunpack.c.l.b16 %v684
    %v3566 = vunpack.c.h.b16 %v684
    %v3567 = vunpack.c.l.b16 %v685
    %v3568 = vunpack.c.h.b16 %v685
    %v3569 = vunpack.c.l.b16 %v686
    %v3570 = vunpack.c.h.b16 %v686
    %v3571 = vunpack.c.l.b16 %v687
    %v3572 = vunpack.c.h.b16 %v687
    %v3573 = vunpack.c.l.b16 %v688
    %v3574 = vunpack.c.h.b16 %v688
    %v3575 = vunpack.c.l.b16 %v689
    %v3576 = vunpack.c.h.b16 %v689
    %v3577 = vunpack.c.l.b16 %v690
    %v3578 = vunpack.c.h.b16 %v690
    %v3579 = vunpack.c.l.b16 %v691
    %v3580 = vunpack.c.h.b16 %v691
    %v3581 = vunpack.c.l.b16 %v692
    %v3582 = vunpack.c.h.b16 %v692
    %v3583 = vunpack.c.l.b16 %v693
    %v3584 = vunpack.c.h.b16 %v693
    %v3585 = vunpack.c.l.b16 %v694
    %v3586 = vunpack.c.h.b16 %v694
    %v3587 = vunpack.c.l.b16 %v695
    %v3588 = vunpack.c.h.b16 %v695
    %v3589 = vunpack.c.l.b16 %v696
    %v3590 = vunpack.c.h.b16 %v696
    %v3591 = vunpack.c.l.b16 %v697
    %v3592 = vunpack.c.h.b16 %v697
    %v3593 = vunpack.c.l.b16 %v698
    %v3594 = vunpack.c.h.b16 %v698
    %v3595 = vunpack.c.l.b16 %v699
    %v3596 = vunpack.c.h.b16 %v699
    %v3597 = vunpack.c.l.b16 %v700
    %v3598 = vunpack.c.h.b16 %v700
    %v3599 = vunpack.c.l.b16 %v701
    %v3600 = vunpack.c.h.b16 %v701
    %v3601 = vunpack.c.l.b16 %v702
    %v3602 = vunpack.c.h.b16 %v702
    %v3603 = vunpack.c.l.b16 %v703
    %v3604 = vunpack.c.h.b16 %v703
    %v3605 = vunpack.c.l.b16 %v704
    %v3606 = vunpack.c.h.b16 %v704
    %v3607 = vunpack.c.l.b16 %v705
    %v3608 = vunpack.c.h.b16 %v705
    %v3609 = vunpack.c.l.b16 %v706
    %v3610 = vunpack.c.h.b16 %v706
    %v3611 = vunpack.c.l.b16 %v707
    %v3612 = vunpack.c.h.b16 %v707
    %v3613 = vunpack.c.l.b16 %v708
    %v3614 = vunpack.c.h.b16 %v708
    %v3615 = vunpack.c.l.b16 %v709
    %v3616 = vunpack.c.h.b16 %v709
    %v3617 = vunpack.c.l.b16 %v710
    %v3618 = vunpack.c.h.b16 %v710
    %v3619 = vunpack.c.l.b16 %v711
    %v3620 = vunpack.c.h.b16 %v711
    %v3621 = vunpack.c.l.b16 %v712
    %v3622 = vunpack.c.h.b16 %v712
    %v3623 = vunpack.c.l.b16 %v713
    %v3624 = vunpack.c.h.b16 %v713
    %v3625 = vunpack.c.l.b16 %v714
    %v3626 = vunpack.c.h.b16 %v714
    %v3627 = vunpack.c.l.b16 %v715
    %v3628 = vunpack.c.h.b16 %v715
    %v3629 = vunpack.c.l.b16 %v716
    %v3630 = vunpack.c.h.b16 %v716
    %v3631 = vunpack.c.l.b16 %v717
    %v3632 = vunpack.c.h.b16 %v717
    %v3633 = vunpack.c.l.b16 %v718
    %v3634 = vunpack.c.h.b16 %v718
    %v3635 = vunpack.c.l.b16 %v719
    %v3636 = vunpack.c.h.b16 %v719
    %v3637 = vunpack.c.l.b16 %v720
    %v3638 = vunpack.c.h.b16 %v720
    %v3639 = vunpack.c.l.b16 %v721
    %v3640 = vunpack.c.h.b16 %v721
    %v3641 = vunpack.c.l.b16 %v722
    %v3642 = vunpack.c.h.b16 %v722
    %v3643 = vunpack.c.l.b16 %v723
    %v3644 = vunpack.c.h.b16 %v723
    %v3645 = vunpack.c.l.b16 %v724
    %v3646 = vunpack.c.h.b16 %v724
    %v3647 = vunpack.c.l.b16 %v725
    %v3648 = vunpack.c.h.b16 %v725
    %v3649 = vunpack.c.l.b16 %v726
    %v3650 = vunpack.c.h.b16 %v726
    %v3651 = vunpack.c.l.b16 %v727
    %v3652 = vunpack.c.h.b16 %v727
    %v3653 = vunpack.c.l.b16 %v728
    %v3654 = vunpack.c.h.b16 %v728
    %v3655 = vunpack.c.l.b16 %v729
    %v3656 = vunpack.c.h.b16 %v729
    %v3657 = vunpack.c.l.b16 %v730
    %v3658 = vunpack.c.h.b16 %v730
    %v3659 = vunpack.c.l.b16 %v731
    %v3660 = vunpack.c.h.b16 %v731
    %v3661 = vunpack.c.l.b16 %v732
    %v3662 = vunpack.c.h.b16 %v732
    %v3663 = vunpack.c.l.b16 %v733
    %v3664 = vunpack.c.h.b16 %v733
    %v3665 = vunpack.c.l.b16 %v734
    %v3666 = vunpack.c.h.b16 %v734
    %v3667 = vunpack.c.l.b16 %v735
    %v3668 = vunpack.c.h.b16 %v735
    %v3669 = vunpack.c.l.b16 %v736
    %v3670 = vunpack.c.h.b16 %v736
    %v3671 = vunpack.c.l.b16 %v737
    %v3672 = vunpack.c.h.b16 %v737
    %v3673 = vunpack.c.l.b16 %v738
    %v3674 = vunpack.c.h.b16 %v738
    %v3675 = vunpack.c.l.b16 %v739
    %v3676 = vunpack.c.h.b16 %v739
    %v3677 = vunpack.c.l.b16 %v740
    %v3678 = vunpack.c.h.b16 %v740
    %v3679 = vunpack.c.l.b16 %v741
    %v3680 = vunpack.c.h.b16 %v741
    %v3681 = vunpack.c.l.b16 %v742
    %v3682 = vunpack.c.h.b16 %v742
    %v3683 = vunpack.c.l.b16 %v743
    %v3684 = vunpack.c.h.b16 %v743
    %v3685 = vunpack.c.l.b16 %v744
    %v3686 = vunpack.c.h.b16 %v744
    %v3687 = vunpack.c.l.b16 %v745
    %v3688 = vunpack.c.h.b16 %v745
    %v3689 = vunpack.c.l.b16 %v746
    %v3690 = vunpack.c.h.b16 %v746
    %v3691 = vunpack.c.l.b16 %v747
    %v3692 = vunpack.c.h.b16 %v747
    %v3693 = vunpack.c.l.b16 %v748
    %v3694 = vunpack.c.h.b16 %v748
    %v3695 = vunpack.c.l.b16 %v749
    %v3696 = vunpack.c.h.b16 %v749
    %v3697 = vunpack.c.l.b16 %v750
    %v3698 = vunpack.c.h.b16 %v750
    %v3699 = vunpack.c.l.b16 %v751
    %v3700 = vunpack.c.h.b16 %v751
    %v3701 = vunpack.c.l.b16 %v752
    %v3702 = vunpack.c.h.b16 %v752
    %v3703 = vunpack.c.l.b16 %v753
    %v3704 = vunpack.c.h.b16 %v753
    %v3705 = vunpack.c.l.b16 %v754
    %v3706 = vunpack.c.h.b16 %v754
    %v3707 = vunpack.c.l.b16 %v755
    %v3708 = vunpack.c.h.b16 %v755
    %v3709 = vunpack.c.l.b16 %v756
    %v3710 = vunpack.c.h.b16 %v756
    %v3711 = vunpack.c.l.b16 %v757
    %v3712 = vunpack.c.h.b16 %v757
    %v3713 = vunpack.c.l.b16 %v758
    %v3714 = vunpack.c.h.b16 %v758
    %v3715 = vunpack.c.l.b16 %v759
    %v3716 = vunpack.c.h.b16 %v759
    %v3717 = vunpack.c.l.b16 %v760
    %v3718 = vunpack.c.h.b16 %v760
    %v3719 = vunpack.c.l.b16 %v761
    %v3720 = vunpack.c.h.b16 %v761
    %v3721 = vunpack.c.l.b16 %v762
    %v3722 = vunpack.c.h.b16 %v762
    %v3723 = vunpack.c.l.b16 %v763
    %v3724 = vunpack.c.h.b16 %v763
    %v3725 = vunpack.c.l.b16 %v764
    %v3726 = vunpack.c.h.b16 %v764
    %v3727 = vunpack.c.l.b16 %v765
    %v3728 = vunpack.c.h.b16 %v765
    %v3729 = vunpack.c.l.b16 %v766
    %v3730 = vunpack.c.h.b16 %v766
    %v3731 = vunpack.c.l.b16 %v767
    %v3732 = vunpack.c.h.b16 %v767
    %v3733 = vunpack.c.l.b16 %v768
    %v3734 = vunpack.c.h.b16 %v768
    %v3735 = vunpack.c.l.b16 %v769
    %v3736 = vunpack.c.h.b16 %v769
    %v3737 = vunpack.c.l.b16 %v770
    %v3738 = vunpack.c.h.b16 %v770
    %v3739 = vunpack.c.l.b16 %v771
    %v3740 = vunpack.c.h.b16 %v771
    %v3741 = vunpack.c.l.b16 %v772
    %v3742 = vunpack.c.h.b16 %v772
    %v3743 = vunpack.c.l.b16 %v773
    %v3744 = vunpack.c.h.b16 %v773
    %v3745 = vunpack.c.l.b16 %v774
    %v3746 = vunpack.c.h.b16 %v774
    %v3747 = vunpack.c.l.b16 %v775
    %v3748 = vunpack.c.h.b16 %v775
    %v3749 = vunpack.c.l.b16 %v776
    %v3750 = vunpack.c.h.b16 %v776
    %v3751 = vunpack.c.l.b16 %v777
    %v3752 = vunpack.c.h.b16 %v777
    %v3753 = vunpack.c.l.b16 %v778
    %v3754 = vunpack.c.h.b16 %v778
    %v3755 = vunpack.c.l.b16 %v779
    %v3756 = vunpack.c.h.b16 %v779
    %v3757 = vunpack.c.l.b16 %v780
    %v3758 = vunpack.c.h.b16 %v780
    %v3759 = vunpack.c.l.b16 %v781
    %v3760 = vunpack.c.h.b16 %v781
    %v3761 = vunpack.c.l.b16 %v782
    %v3762 = vunpack.c.h.b16 %v782
    %v3763 = vunpack.c.l.b16 %v783
    %v3764 = vunpack.c.h.b16 %v783
    %v3765 = vunpack.c.l.b16 %v784
    %v3766 = vunpack.c.h.b16 %v784
    %v3767 = vunpack.c.l.b16 %v785
    %v3768 = vunpack.c.h.b16 %v785
    %v3769 = vunpack.c.l.b16 %v786
    %v3770 = vunpack.c.h.b16 %v786
    %v3771 = vunpack.c.l.b16 %v787
    %v3772 = vunpack.c.h.b16 %v787
    %v3773 = vunpack.c.l.b16 %v788
    %v3774 = vunpack.c.h.b16 %v788
    %v3775 = vunpack.c.l.b16 %v789
    %v3776 = vunpack.c.h.b16 %v789
    %v3777 = vunpack.c.l.b16 %v790
    %v3778 = vunpack.c.h.b16 %v790
    %v3779 = vunpack.c.l.b16 %v791
    %v3780 = vunpack.c.h.b16 %v791
    %v3781 = vunpack.c.l.b16 %v792
    %v3782 = vunpack.c.h.b16 %v792
    %v3783 = vunpack.c.l.b16 %v793
    %v3784 = vunpack.c.h.b16 %v793
    %v3785 = vunpack.c.l.b16 %v794
    %v3786 = vunpack.c.h.b16 %v794
    %v3787 = vunpack.c.l.b16 %v795
    %v3788 = vunpack.c.h.b16 %v795
    %v3789 = vunpack.c.l.b16 %v796
    %v3790 = vunpack.c.h.b16 %v796
    %v3791 = vunpack.c.l.b16 %v797
    %v3792 = vunpack.c.h.b16 %v797
    %v3793 = vunpack.c.l.b16 %v798
    %v3794 = vunpack.c.h.b16 %v798
    %v3795 = vunpack.c.l.b16 %v799
    %v3796 = vunpack.c.h.b16 %v799
    %v3797 = vunpack.c.l.b16 %v800
    %v3798 = vunpack.c.h.b16 %v800
    %v3799 = vunpack.c.l.b16 %v801
    %v3800 = vunpack.c.h.b16 %v801
    %v3801 = vunpack.c.l.b16 %v802
    %v3802 = vunpack.c.h.b16 %v802
    %v3803 = vunpack.c.l.b16 %v803
    %v3804 = vunpack.c.h.b16 %v803
    %v3805 = vunpack.c.l.b16 %v804
    %v3806 = vunpack.c.h.b16 %v804
    %v3807 = vunpack.c.l.b16 %v805
    %v3808 = vunpack.c.h.b16 %v805
    %v3809 = vunpack.c.l.b16 %v806
    %v3810 = vunpack.c.h.b16 %v806
    %v3811 = vunpack.c.l.b16 %v807
    %v3812 = vunpack.c.h.b16 %v807
    %v3813 = vunpack.c.l.b16 %v808
    %v3814 = vunpack.c.h.b16 %v808
    %v3815 = vunpack.c.l.b16 %v809
    %v3816 = vunpack.c.h.b16 %v809
    %v3817 = vunpack.c.l.b16 %v810
    %v3818 = vunpack.c.h.b16 %v810
    %v3819 = vunpack.c.l.b16 %v811
    %v3820 = vunpack.c.h.b16 %v811
    %v3821 = vunpack.c.l.b16 %v812
    %v3822 = vunpack.c.h.b16 %v812
    %v3823 = vunpack.c.l.b16 %v813
    %v3824 = vunpack.c.h.b16 %v813
    %v3825 = vunpack.c.l.b16 %v814
    %v3826 = vunpack.c.h.b16 %v814
    %v3827 = vunpack.c.l.b16 %v815
    %v3828 = vunpack.c.h.b16 %v815
    %v3829 = vunpack.c.l.b16 %v816
    %v3830 = vunpack.c.h.b16 %v816
    %v3831 = vunpack.c.l.b16 %v817
    %v3832 = vunpack.c.h.b16 %v817
    %v3833 = vunpack.c.l.b16 %v818
    %v3834 = vunpack.c.h.b16 %v818
    %v3835 = vunpack.c.l.b16 %v819
    %v3836 = vunpack.c.h.b16 %v819
    %v3837 = vunpack.c.l.b16 %v820
    %v3838 = vunpack.c.h.b16 %v820
    %v3839 = vunpack.c.l.b16 %v821
    %v3840 = vunpack.c.h.b16 %v821
    %v3841 = vunpack.c.l.b16 %v822
    %v3842 = vunpack.c.h.b16 %v822
    %v3843 = vunpack.c.l.b16 %v823
    %v3844 = vunpack.c.h.b16 %v823
    %v3845 = vunpack.c.l.b16 %v824
    %v3846 = vunpack.c.h.b16 %v824
    %v3847 = vunpack.c.l.b16 %v825
    %v3848 = vunpack.c.h.b16 %v825
    %v3849 = vunpack.c.l.b16 %v826
    %v3850 = vunpack.c.h.b16 %v826
    %v3851 = vunpack.c.l.b16 %v827
    %v3852 = vunpack.c.h.b16 %v827
    %v3853 = vunpack.c.l.b16 %v828
    %v3854 = vunpack.c.h.b16 %v828
    %v3855 = vunpack.c.l.b16 %v829
    %v3856 = vunpack.c.h.b16 %v829
    %v3857 = vunpack.c.l.b16 %v830
    %v3858 = vunpack.c.h.b16 %v830
    %v3859 = vunpack.c.l.b16 %v831
    %v3860 = vunpack.c.h.b16 %v831
    %v3861 = vunpack.c.l.b16 %v832
    %v3862 = vunpack.c.h.b16 %v832
    %v3863 = vunpack.c.l.b16 %v833
    %v3864 = vunpack.c.h.b16 %v833
    %v3865 = vunpack.c.l.b16 %v834
    %v3866 = vunpack.c.h.b16 %v834
    %v3867 = vunpack.c.l.b16 %v835
    %v3868 = vunpack.c.h.b16 %v835
    %v3869 = vunpack.c.l.b16 %v836
    %v3870 = vunpack.c.h.b16 %v836
    %v3871 = vunpack.c.l.b16 %v837
    %v3872 = vunpack.c.h.b16 %v837
    %v3873 = vunpack.c.l.b16 %v838
    %v3874 = vunpack.c.h.b16 %v838
    %v3875 = vunpack.c.l.b16 %v839
    %v3876 = vunpack.c.h.b16 %v839
    %v3877 = vunpack.c.l.b16 %v840
    %v3878 = vunpack.c.h.b16 %v840
    %v3879 = vunpack.c.l.b16 %v841
    %v3880 = vunpack.c.h.b16 %v841
    %v3881 = vunpack.c.l.b16 %v842
    %v3882 = vunpack.c.h.b16 %v842
    %v3883 = vunpack.c.l.b16 %v843
    %v3884 = vunpack.c.h.b16 %v843
    %v3885 = vunpack.c.l.b16 %v844
    %v3886 = vunpack.c.h.b16 %v844
    %v3887 = vunpack.c.l.b16 %v845
    %v3888 = vunpack.c.h.b16 %v845
    %v3889 = vunpack.c.l.b16 %v846
    %v3890 = vunpack.c.h.b16 %v846
    %v3891 = vunpack.c.l.b16 %v847
    %v3892 = vunpack.c.h.b16 %v847
    %v3893 = vunpack.c.l.b16 %v848
    %v3894 = vunpack.c.h.b16 %v848
    %v3895 = vunpack.c.l.b16 %v849
    %v3896 = vunpack.c.h.b16 %v849
    %v3897 = vunpack.c.l.b16 %v850
    %v3898 = vunpack.c.h.b16 %v850
    %v3899 = vunpack.c.l.b16 %v851
    %v3900 = vunpack.c.h.b16 %v851
    %v3901 = vunpack.c.l.b16 %v852
    %v3902 = vunpack.c.h.b16 %v852
    %v3903 = vunpack.c.l.b16 %v853
    %v3904 = vunpack.c.h.b16 %v853
    %v3905 = vunpack.c.l.b16 %v854
    %v3906 = vunpack.c.h.b16 %v854
    %v3907 = vunpack.c.l.b16 %v855
    %v3908 = vunpack.c.h.b16 %v855
    %v3909 = vunpack.c.l.b16 %v856
    %v3910 = vunpack.c.h.b16 %v856
    %v3911 = vunpack.c.l.b16 %v857
    %v3912 = vunpack.c.h.b16 %v857
    %v3913 = vunpack.c.l.b16 %v858
    %v3914 = vunpack.c.h.b16 %v858
    %v3915 = vunpack.c.l.b16 %v859
    %v3916 = vunpack.c.h.b16 %v859
    %v3917 = vunpack.c.l.b16 %v860
    %v3918 = vunpack.c.h.b16 %v860
    %v3919 = vunpack.c.l.b16 %v861
    %v3920 = vunpack.c.h.b16 %v861
    %v3921 = vunpack.c.l.b16 %v862
    %v3922 = vunpack.c.h.b16 %v862
    %v3923 = vunpack.c.l.b16 %v863
    %v3924 = vunpack.c.h.b16 %v863
    %v3925 = vunpack.c.l.b16 %v864
    %v3926 = vunpack.c.h.b16 %v864
    %v3927 = vunpack.c.l.b16 %v865
    %v3928 = vunpack.c.h.b16 %v865
    %v3929 = vunpack.c.l.b16 %v866
    %v3930 = vunpack.c.h.b16 %v866
    %v3931 = vunpack.c.l.b16 %v867
    %v3932 = vunpack.c.h.b16 %v867
    %v3933 = vunpack.c.l.b16 %v868
    %v3934 = vunpack.c.h.b16 %v868
    %v3935 = vunpack.c.l.b16 %v869
    %v3936 = vunpack.c.h.b16 %v869
    %v3937 = vunpack.c.l.b16 %v870
    %v3938 = vunpack.c.h.b16 %v870
    %v3939 = vunpack.c.l.b16 %v871
    %v3940 = vunpack.c.h.b16 %v871
    %v3941 = vunpack.c.l.b16 %v872
    %v3942 = vunpack.c.h.b16 %v872
    %v3943 = vunpack.c.l.b16 %v873
    %v3944 = vunpack.c.h.b16 %v873
    %v3945 = vunpack.c.l.b16 %v874
    %v3946 = vunpack.c.h.b16 %v874
    %v3947 = vunpack.c.l.b16 %v875
    %v3948 = vunpack.c.h.b16 %v875
    %v3949 = vunpack.c.l.b16 %v876
    %v3950 = vunpack.c.h.b16 %v876
    %v3951 = vunpack.c.l.b16 %v877
    %v3952 = vunpack.c.h.b16 %v877
    %v3953 = vunpack.c.l.b16 %v878
    %v3954 = vunpack.c.h.b16 %v878
    %v3955 = vunpack.c.l.b16 %v879
    %v3956 = vunpack.c.h.b16 %v879
    %v3957 = vunpack.c.l.b16 %v880
    %v3958 = vunpack.c.h.b16 %v880
    %v3959 = vunpack.c.l.b16 %v881
    %v3960 = vunpack.c.h.b16 %v881
    %v3961 = vunpack.c.l.b16 %v882
    %v3962 = vunpack.c.h.b16 %v882
    %v3963 = vunpack.c.l.b16 %v883
    %v3964 = vunpack.c.h.b16 %v883
    %v3965 = vunpack.c.l.b16 %v884
    %v3966 = vunpack.c.h.b16 %v884
    %v3967 = vunpack.c.l.b16 %v885
    %v3968 = vunpack.c.h.b16 %v885
    %v3969 = vunpack.c.l.b16 %v886
    %v3970 = vunpack.c.h.b16 %v886
    %v3971 = vunpack.c.l.b16 %v887
    %v3972 = vunpack.c.h.b16 %v887
    %v3973 = vunpack.c.l.b16 %v888
    %v3974 = vunpack.c.h.b16 %v888
    %v3975 = vunpack.c.l.b16 %v889
    %v3976 = vunpack.c.h.b16 %v889
    %v3977 = vunpack.c.l.b16 %v890
    %v3978 = vunpack.c.h.b16 %v890
    %v3979 = vunpack.c.l.b16 %v891
    %v3980 = vunpack.c.h.b16 %v891
    %v3981 = vunpack.c.l.b16 %v892
    %v3982 = vunpack.c.h.b16 %v892
    %v3983 = vunpack.c.l.b16 %v893
    %v3984 = vunpack.c.h.b16 %v893
    %v3985 = vunpack.c.l.b16 %v894
    %v3986 = vunpack.c.h.b16 %v894
    %v3987 = vunpack.c.l.b16 %v895
    %v3988 = vunpack.c.h.b16 %v895
    %v3989 = vunpack.c.l.b16 %v896
    %v3990 = vunpack.c.h.b16 %v896
    %v3991 = vunpack.c.l.b16 %v897
    %v3992 = vunpack.c.h.b16 %v897
    %v3993 = vunpack.c.l.b16 %v898
    %v3994 = vunpack.c.h.b16 %v898
    %v3995 = vunpack.c.l.b16 %v899
    %v3996 = vunpack.c.h.b16 %v899
    %v3997 = vunpack.c.l.b16 %v900
    %v3998 = vunpack.c.h.b16 %v900
    %v3999 = vunpack.c.l.b16 %v901
    %v4000 = vunpack.c.h.b16 %v901
    %v4001 = vunpack.c.l.b16 %v902
    %v4002 = vunpack.c.h.b16 %v902
    %v4003 = vunpack.c.l.b16 %v903
    %v4004 = vunpack.c.h.b16 %v903
    %v4005 = vunpack.c.l.b16 %v904
    %v4006 = vunpack.c.h.b16 %v904
    %v4007 = vunpack.c.l.b16 %v905
    %v4008 = vunpack.c.h.b16 %v905
    %v4009 = vunpack.c.l.b16 %v906
    %v4010 = vunpack.c.h.b16 %v906
    %v4011 = vunpack.c.l.b16 %v907
    %v4012 = vunpack.c.h.b16 %v907
    %v4013 = vunpack.c.l.b16 %v908
    %v4014 = vunpack.c.h.b16 %v908
    %v4015 = vunpack.c.l.b16 %v909
    %v4016 = vunpack.c.h.b16 %v909
    %v4017 = vunpack.c.l.b16 %v910
    %v4018 = vunpack.c.h.b16 %v910
    %v4019 = vunpack.c.l.b16 %v911
    %v4020 = vunpack.c.h.b16 %v911
    %v4021 = vunpack.c.l.b16 %v912
    %v4022 = vunpack.c.h.b16 %v912
    %v4023 = vunpack.c.l.b16 %v913
    %v4024 = vunpack.c.h.b16 %v913
    %v4025 = vunpack.c.l.b16 %v914
    %v4026 = vunpack.c.h.b16 %v914
    %v4027 = vunpack.c.l.b16 %v915
    %v4028 = vunpack.c.h.b16 %v915
    %v4029 = vunpack.c.l.b16 %v916
    %v4030 = vunpack.c.h.b16 %v916
    %v4031 = vunpack.c.l.b16 %v917
    %v4032 = vunpack.c.h.b16 %v917
    %v4033 = vunpack.c.l.b16 %v918
    %v4034 = vunpack.c.h.b16 %v918
    %v4035 = vunpack.c.l.b16 %v919
    %v4036 = vunpack.c.h.b16 %v919
    %v4037 = vunpack.c.l.b16 %v920
    %v4038 = vunpack.c.h.b16 %v920
    %v4039 = vunpack.c.l.b16 %v921
    %v4040 = vunpack.c.h.b16 %v921
    %v4041 = vunpack.c.l.b16 %v922
    %v4042 = vunpack.c.h.b16 %v922
    %v4043 = vunpack.c.l.b16 %v923
    %v4044 = vunpack.c.h.b16 %v923
    %v4045 = vunpack.c.l.b16 %v924
    %v4046 = vunpack.c.h.b16 %v924
    %v4047 = vunpack.c.l.b16 %v925
    %v4048 = vunpack.c.h.b16 %v925
    %v4049 = vunpack.c.l.b16 %v926
    %v4050 = vunpack.c.h.b16 %v926
    %v4051 = vunpack.c.l.b16 %v927
    %v4052 = vunpack.c.h.b16 %v927
    %v4053 = vunpack.c.l.b16 %v928
    %v4054 = vunpack.c.h.b16 %v928
    %v4055 = vunpack.c.l.b16 %v929
    %v4056 = vunpack.c.h.b16 %v929
    %v4057 = vunpack.c.l.b16 %v930
    %v4058 = vunpack.c.h.b16 %v930
    %v4059 = vunpack.c.l.b16 %v931
    %v4060 = vunpack.c.h.b16 %v931
    %v4061 = vunpack.c.l.b16 %v932
    %v4062 = vunpack.c.h.b16 %v932
    %v4063 = vunpack.c.l.b16 %v933
    %v4064 = vunpack.c.h.b16 %v933
    %v4065 = vunpack.c.l.b16 %v934
    %v4066 = vunpack.c.h.b16 %v934
    %v4067 = vunpack.c.l.b16 %v935
    %v4068 = vunpack.c.h.b16 %v935
    %v4069 = vunpack.c.l.b16 %v936
    %v4070 = vunpack.c.h.b16 %v936
    %v4071 = vunpack.c.l.b16 %v937
    %v4072 = vunpack.c.h.b16 %v937
    %v4073 = vunpack.c.l.b16 %v938
    %v4074 = vunpack.c.h.b16 %v938
    %v4075 = vunpack.c.l.b16 %v939
    %v4076 = vunpack.c.h.b16 %v939
    %v4077 = vunpack.c.l.b16 %v940
    %v4078 = vunpack.c.h.b16 %v940
    %v4079 = vunpack.c.l.b16 %v941
    %v4080 = vunpack.c.h.b16 %v941
    %v4081 = vunpack.c.l.b16 %v942
    %v4082 = vunpack.c.h.b16 %v942
    %v4083 = vunpack.c.l.b16 %v943
    %v4084 = vunpack.c.h.b16 %v943
    %v4085 = vunpack.c.l.b16 %v944
    %v4086 = vunpack.c.h.b16 %v944
    %v4087 = vunpack.c.l.b16 %v945
    %v4088 = vunpack.c.h.b16 %v945
    %v4089 = vunpack.c.l.b16 %v946
    %v4090 = vunpack.c.h.b16 %v946
    %v4091 = vunpack.c.l.b16 %v947
    %v4092 = vunpack.c.h.b16 %v947
    %v4093 = vunpack.c.l.b16 %v948
    %v4094 = vunpack.c.h.b16 %v948
    %v4095 = vunpack.c.l.b16 %v949
    %v4096 = vunpack.c.h.b16 %v949
    %v4097 = vunpack.c.l.b16 %v950
    %v4098 = vunpack.c.h.b16 %v950
    %v4099 = vunpack.c.l.b16 %v951
    %v4100 = vunpack.c.h.b16 %v951
    %v4101 = vunpack.c.l.b16 %v952
    %v4102 = vunpack.c.h.b16 %v952
    %v4103 = vunpack.c.l.b16 %v953
    %v4104 = vunpack.c.h.b16 %v953
    %v4105 = vunpack.c.l.b16 %v954
    %v4106 = vunpack.c.h.b16 %v954
    %v4107 = vunpack.c.l.b16 %v955
    %v4108 = vunpack.c.h.b16 %v955
    %v4109 = vunpack.c.l.b16 %v956
    %v4110 = vunpack.c.h.b16 %v956
    %v4111 = vunpack.c.l.b16 %v957
    %v4112 = vunpack.c.h.b16 %v957
    %v4113 = vunpack.c.l.b16 %v958
    %v4114 = vunpack.c.h.b16 %v958
    %v4115 = vunpack.c.l.b16 %v959
    %v4116 = vunpack.c.h.b16 %v959
    %v4117 = vunpack.c.l.b16 %v960
    %v4118 = vunpack.c.h.b16 %v960
    %v4119 = vunpack.c.l.b16 %v961
    %v4120 = vunpack.c.h.b16 %v961
    %v4121 = vunpack.c.l.b16 %v962
    %v4122 = vunpack.c.h.b16 %v962
    %v4123 = vunpack.c.l.b16 %v963
    %v4124 = vunpack.c.h.b16 %v963
    %v4125 = vunpack.c.l.b16 %v964
    %v4126 = vunpack.c.h.b16 %v964
    %v4127 = vunpack.c.l.b16 %v965
    %v4128 = vunpack.c.h.b16 %v965
    %v4129 = vunpack.c.l.b16 %v966
    %v4130 = vunpack.c.h.b16 %v966
    %v4131 = vunpack.c.l.b16 %v967
    %v4132 = vunpack.c.h.b16 %v967
    %v4133 = vunpack.c.l.b16 %v968
    %v4134 = vunpack.c.h.b16 %v968
    %v4135 = vunpack.c.l.b16 %v969
    %v4136 = vunpack.c.h.b16 %v969
    %v4137 = vunpack.c.l.b16 %v970
    %v4138 = vunpack.c.h.b16 %v970
    %v4139 = vunpack.c.l.b16 %v971
    %v4140 = vunpack.c.h.b16 %v971
    %v4141 = vunpack.c.l.b16 %v972
    %v4142 = vunpack.c.h.b16 %v972
    %v4143 = vunpack.c.l.b16 %v973
    %v4144 = vunpack.c.h.b16 %v973
    %v4145 = vunpack.c.l.b16 %v974
    %v4146 = vunpack.c.h.b16 %v974
    %v4147 = vunpack.c.l.b16 %v975
    %v4148 = vunpack.c.h.b16 %v975
    %v4149 = vunpack.c.l.b16 %v976
    %v4150 = vunpack.c.h.b16 %v976
    %v4151 = vunpack.c.l.b16 %v977
    %v4152 = vunpack.c.h.b16 %v977
    %v4153 = vunpack.c.l.b16 %v978
    %v4154 = vunpack.c.h.b16 %v978
    %v4155 = vunpack.c.l.b16 %v979
    %v4156 = vunpack.c.h.b16 %v979
    %v4157 = vunpack.c.l.b16 %v980
    %v4158 = vunpack.c.h.b16 %v980
    %v4159 = vunpack.c.l.b16 %v981
    %v4160 = vunpack.c.h.b16 %v981
    %v4161 = vunpack.c.l.b16 %v982
    %v4162 = vunpack.c.h.b16 %v982
    %v4163 = vunpack.c.l.b16 %v983
    %v4164 = vunpack.c.h.b16 %v983
    %v4165 = vunpack.c.l.b16 %v984
    %v4166 = vunpack.c.h.b16 %v984
    %v4167 = vunpack.c.l.b16 %v985
    %v4168 = vunpack.c.h.b16 %v985
    %v4169 = vunpack.c.l.b16 %v986
    %v4170 = vunpack.c.h.b16 %v986
    %v4171 = vunpack.c.l.b16 %v987
    %v4172 = vunpack.c.h.b16 %v987
    %v4173 = vunpack.c.l.b16 %v988
    %v4174 = vunpack.c.h.b16 %v988
    %v4175 = vunpack.c.l.b16 %v989
    %v4176 = vunpack.c.h.b16 %v989
    %v4177 = vunpack.c.l.b16 %v990
    %v4178 = vunpack.c.h.b16 %v990
    %v4179 = vunpack.c.l.b16 %v991
    %v4180 = vunpack.c.h.b16 %v991
    %v4181 = vunpack.c.l.b16 %v992
    %v4182 = vunpack.c.h.b16 %v992
    %v4183 = vunpack.c.l.b16 %v993
    %v4184 = vunpack.c.h.b16 %v993
    %v4185 = vunpack.c.l.b16 %v994
    %v4186 = vunpack.c.h.b16 %v994
    %v4187 = vunpack.c.l.b16 %v995
    %v4188 = vunpack.c.h.b16 %v995
    %v4189 = vunpack.c.l.b16 %v996
    %v4190 = vunpack.c.h.b16 %v996
    %v4191 = vunpack.c.l.b16 %v997
    %v4192 = vunpack.c.h.b16 %v997
    %v4193 = vunpack.c.l.b16 %v998
    %v4194 = vunpack.c.h.b16 %v998
    %v4195 = vunpack.c.l.b16 %v999
    %v4196 = vunpack.c.h.b16 %v999
    %v4197 = vunpack.c.l.b16 %v1000
    %v4198 = vunpack.c.h.b16 %v1000
    %v4199 = vunpack.c.l.b16 %v1001
    %v4200 = vunpack.c.h.b16 %v1001
    %v4201 = vunpack.c.l.b16 %v1002
    %v4202 = vunpack.c.h.b16 %v1002
    %v4203 = vunpack.c.l.b16 %v1003
    %v4204 = vunpack.c.h.b16 %v1003
    %v4205 = vunpack.c.l.b16 %v1004
    %v4206 = vunpack.c.h.b16 %v1004
    %v4207 = vunpack.c.l.b16 %v1005
    %v4208 = vunpack.c.h.b16 %v1005
    %v4209 = vunpack.c.l.b16 %v1006
    %v4210 = vunpack.c.h.b16 %v1006
    %v4211 = vunpack.c.l.b16 %v1007
    %v4212 = vunpack.c.h.b16 %v1007
    %v4213 = vunpack.c.l.b16 %v1008
    %v4214 = vunpack.c.h.b16 %v1008
    %v4215 = vunpack.c.l.b16 %v1009
    %v4216 = vunpack.c.h.b16 %v1009
    %v4217 = vunpack.c.l.b16 %v1010
    %v4218 = vunpack.c.h.b16 %v1010
    %v4219 = vunpack.c.l.b16 %v1011
    %v4220 = vunpack.c.h.b16 %v1011
    %v4221 = vunpack.c.l.b16 %v1012
    %v4222 = vunpack.c.h.b16 %v1012
    %v4223 = vunpack.c.l.b16 %v1013
    %v4224 = vunpack.c.h.b16 %v1013
    %v4225 = vunpack.c.l.b16 %v1014
    %v4226 = vunpack.c.h.b16 %v1014
    %v4227 = vunpack.c.l.b16 %v1015
    %v4228 = vunpack.c.h.b16 %v1015
    %v4229 = vunpack.c.l.b16 %v1016
    %v4230 = vunpack.c.h.b16 %v1016
    %v4231 = vunpack.c.l.b16 %v1017
    %v4232 = vunpack.c.h.b16 %v1017
    %v4233 = vunpack.c.l.b16 %v1018
    %v4234 = vunpack.c.h.b16 %v1018
    %v4235 = vunpack.c.l.b16 %v1019
    %v4236 = vunpack.c.h.b16 %v1019
    %v4237 = vunpack.c.l.b16 %v1020
    %v4238 = vunpack.c.h.b16 %v1020
    %v4239 = vunpack.c.l.b16 %v1021
    %v4240 = vunpack.c.h.b16 %v1021
    %v4241 = vunpack.c.l.b16 %v1022
    %v4242 = vunpack.c.h.b16 %v1022
    %v4243 = vunpack.c.l.b16 %v1023
    %v4244 = vunpack.c.h.b16 %v1023
    %v4245 = vunpack.c.l.b16 %v1024
    %v4246 = vunpack.c.h.b16 %v1024
    %v4247 = vunpack.c.l.b16 %v1025
    %v4248 = vunpack.c.h.b16 %v1025
    %v4249 = vunpack.c.l.b16 %v1026
    %v4250 = vunpack.c.h.b16 %v1026
    %v4251 = vunpack.c.l.b16 %v1027
    %v4252 = vunpack.c.h.b16 %v1027
    %v4253 = vunpack.c.l.b16 %v1028
    %v4254 = vunpack.c.h.b16 %v1028
    %v4255 = vunpack.c.l.b16 %v1029
    %v4256 = vunpack.c.h.b16 %v1029
    %v4257 = vunpack.c.l.b16 %v1030
    %v4258 = vunpack.c.h.b16 %v1030
    %v4259 = vunpack.c.l.b16 %v1031
    %v4260 = vunpack.c.h.b16 %v1031
    %v4261 = vunpack.c.l.b16 %v1032
    %v4262 = vunpack.c.h.b16 %v1032
    %v4263 = vunpack.c.l.b16 %v1033
    %v4264 = vunpack.c.h.b16 %v1033
    %v4265 = vunpack.c.l.b16 %v1034
    %v4266 = vunpack.c.h.b16 %v1034
    %v4267 = vunpack.c.l.b16 %v1035
    %v4268 = vunpack.c.h.b16 %v1035
    %v4269 = vunpack.c.l.b16 %v1036
    %v4270 = vunpack.c.h.b16 %v1036
    %v4271 = vunpack.c.l.b16 %v1037
    %v4272 = vunpack.c.h.b16 %v1037
    %v4273 = vunpack.c.l.b16 %v1038
    %v4274 = vunpack.c.h.b16 %v1038
    %v4275 = vunpack.c.l.b16 %v1039
    %v4276 = vunpack.c.h.b16 %v1039
    %v4277 = vunpack.c.l.b16 %v1040
    %v4278 = vunpack.c.h.b16 %v1040
    %v4279 = vunpack.c.l.b16 %v1041
    %v4280 = vunpack.c.h.b16 %v1041
    %v4281 = vunpack.c.l.b16 %v1042
    %v4282 = vunpack.c.h.b16 %v1042
    %v4283 = vunpack.c.l.b16 %v1043
    %v4284 = vunpack.c.h.b16 %v1043
    %v4285 = vunpack.c.l.b16 %v1044
    %v4286 = vunpack.c.h.b16 %v1044
    %v4287 = vunpack.c.l.b16 %v1045
    %v4288 = vunpack.c.h.b16 %v1045
    %v4289 = vunpack.c.l.b16 %v1046
    %v4290 = vunpack.c.h.b16 %v1046
    %v4291 = vunpack.c.l.b16 %v1047
    %v4292 = vunpack.c.h.b16 %v1047
    %v4293 = vunpack.c.l.b16 %v1048
    %v4294 = vunpack.c.h.b16 %v1048
    %v4295 = vunpack.c.l.b16 %v1049
    %v4296 = vunpack.c.h.b16 %v1049
    %v4297 = vunpack.c.l.b16 %v1050
    %v4298 = vunpack.c.h.b16 %v1050
    %v4299 = vunpack.c.l.b16 %v1051
    %v4300 = vunpack.c.h.b16 %v1051
    %v4301 = vunpack.c.l.b16 %v1052
    %v4302 = vunpack.c.h.b16 %v1052
    %v4303 = vunpack.c.l.b16 %v1053
    %v4304 = vunpack.c.h.b16 %v1053
    %v4305 = vunpack.c.l.b16 %v1054
    %v4306 = vunpack.c.h.b16 %v1054
    %v4307 = vunpack.c.l.b16 %v1055
    %v4308 = vunpack.c.h.b16 %v1055
    %v4309 = vunpack.c.l.b16 %v1056
    %v4310 = vunpack.c.h.b16 %v1056
    %v4311 = vunpack.c.l.b16 %v1057
    %v4312 = vunpack.c.h.b16 %v1057
    %v4313 = vunpack.c.l.b16 %v1058
    %v4314 = vunpack.c.h.b16 %v1058
    %v4315 = vunpack.c.l.b16 %v1059
    %v4316 = vunpack.c.h.b16 %v1059
    %v4317 = vunpack.c.l.b16 %v1060
    %v4318 = vunpack.c.h.b16 %v1060
    %v4319 = vunpack.c.l.b16 %v1061
    %v4320 = vunpack.c.h.b16 %v1061
    %v4321 = vunpack.c.l.b16 %v1062
    %v4322 = vunpack.c.h.b16 %v1062
    %v4323 = vunpack.c.l.b16 %v1063
    %v4324 = vunpack.c.h.b16 %v1063
    %v4325 = vunpack.c.l.b16 %v1064
    %v4326 = vunpack.c.h.b16 %v1064
    %v4327 = vunpack.c.l.b16 %v1065
    %v4328 = vunpack.c.h.b16 %v1065
    %v4329 = vunpack.c.l.b16 %v1066
    %v4330 = vunpack.c.h.b16 %v1066
    %v4331 = vunpack.c.l.b16 %v1067
    %v4332 = vunpack.c.h.b16 %v1067
    %v4333 = vunpack.c.l.b16 %v1068
    %v4334 = vunpack.c.h.b16 %v1068
    %v4335 = vunpack.c.l.b16 %v1069
    %v4336 = vunpack.c.h.b16 %v1069
    %v4337 = vunpack.c.l.b16 %v1070
    %v4338 = vunpack.c.h.b16 %v1070
    %v4339 = vunpack.c.l.b16 %v1071
    %v4340 = vunpack.c.h.b16 %v1071
    %v4341 = vunpack.c.l.b16 %v1072
    %v4342 = vunpack.c.h.b16 %v1072
    %v4343 = vunpack.c.l.b16 %v1073
    %v4344 = vunpack.c.h.b16 %v1073
    %v4345 = vunpack.c.l.b16 %v1074
    %v4346 = vunpack.c.h.b16 %v1074
    %v4347 = vunpack.c.l.b16 %v1075
    %v4348 = vunpack.c.h.b16 %v1075
    %v4349 = vunpack.c.l.b16 %v1076
    %v4350 = vunpack.c.h.b16 %v1076
    %v4351 = vunpack.c.l.b16 %v1077
    %v4352 = vunpack.c.h.b16 %v1077
    %v4353 = vunpack.c.l.b16 %v1078
    %v4354 = vunpack.c.h.b16 %v1078
    %v4355 = vunpack.c.l.b16 %v1079
    %v4356 = vunpack.c.h.b16 %v1079
    %v4357 = vunpack.c.l.b16 %v1080
    %v4358 = vunpack.c.h.b16 %v1080
    %v4359 = vunpack.c.l.b16 %v1081
    %v4360 = vunpack.c.h.b16 %v1081
    %v4361 = vunpack.c.l.b16 %v1082
    %v4362 = vunpack.c.h.b16 %v1082
    %v4363 = vunpack.c.l.b16 %v1083
    %v4364 = vunpack.c.h.b16 %v1083
    %v4365 = vunpack.c.l.b16 %v1084
    %v4366 = vunpack.c.h.b16 %v1084
    %v4367 = vunpack.c.l.b16 %v1085
    %v4368 = vunpack.c.h.b16 %v1085
    %v4369 = vunpack.c.l.b16 %v1086
    %v4370 = vunpack.c.h.b16 %v1086
    %v4371 = vunpack.c.l.b16 %v1087
    %v4372 = vunpack.c.h.b16 %v1087
    %v4373 = vunpack.c.l.b16 %v1088
    %v4374 = vunpack.c.h.b16 %v1088
    %v4375 = vunpack.c.l.b16 %v1089
    %v4376 = vunpack.c.h.b16 %v1089
    %v4377 = vunpack.c.l.b16 %v1090
    %v4378 = vunpack.c.h.b16 %v1090
    %v4379 = vunpack.c.l.b16 %v1091
    %v4380 = vunpack.c.h.b16 %v1091
    %v4381 = vunpack.c.l.b16 %v1092
    %v4382 = vunpack.c.h.b16 %v1092
    %v4383 = vunpack.c.l.b16 %v1093
    %v4384 = vunpack.c.h.b16 %v1093
    %v4385 = vunpack.c.l.b16 %v1094
    %v4386 = vunpack.c.h.b16 %v1094
    %v4387 = vunpack.c.l.b16 %v1095
    %v4388 = vunpack.c.h.b16 %v1095
    %v4389 = vunpack.c.l.b16 %v1096
    %v4390 = vunpack.c.h.b16 %v1096
    %v4391 = vunpack.c.l.b16 %v1097
    %v4392 = vunpack.c.h.b16 %v1097
    %v4393 = vunpack.c.l.b16 %v1098
    %v4394 = vunpack.c.h.b16 %v1098
    %v4395 = vunpack.c.l.b16 %v1099
    %v4396 = vunpack.c.h.b16 %v1099
    %v4397 = vunpack.c.l.b16 %v1100
    %v4398 = vunpack.c.h.b16 %v1100
    %v4399 = vunpack.c.l.b16 %v1101
    %v4400 = vunpack.c.h.b16 %v1101
    %v4401 = vunpack.c.l.b16 %v1102
    %v4402 = vunpack.c.h.b16 %v1102
    %v4403 = vunpack.c.l.b16 %v1103
    %v4404 = vunpack.c.h.b16 %v1103
    %v4405 = vunpack.c.l.b16 %v1104
    %v4406 = vunpack.c.h.b16 %v1104
    %v4407 = vunpack.c.l.b16 %v1105
    %v4408 = vunpack.c.h.b16 %v1105
    %v4409 = vunpack.c.l.b16 %v1106
    %v4410 = vunpack.c.h.b16 %v1106
    %v4411 = vunpack.c.l.b16 %v1107
    %v4412 = vunpack.c.h.b16 %v1107
    %v4413 = vunpack.c.l.b16 %v1108
    %v4414 = vunpack.c.h.b16 %v1108
    %v4415 = vunpack.c.l.b16 %v1109
    %v4416 = vunpack.c.h.b16 %v1109
    %v4417 = vunpack.c.l.b16 %v1110
    %v4418 = vunpack.c.h.b16 %v1110
    %v4419 = vunpack.c.l.b16 %v1111
    %v4420 = vunpack.c.h.b16 %v1111
    %v4421 = vunpack.c.l.b16 %v1112
    %v4422 = vunpack.c.h.b16 %v1112
    %v4423 = vunpack.c.l.b16 %v1113
    %v4424 = vunpack.c.h.b16 %v1113
    %v4425 = vunpack.c.l.b16 %v1114
    %v4426 = vunpack.c.h.b16 %v1114
    %v4427 = vunpack.c.l.b16 %v1115
    %v4428 = vunpack.c.h.b16 %v1115
    %v4429 = vunpack.c.l.b16 %v1116
    %v4430 = vunpack.c.h.b16 %v1116
    %v4431 = vunpack.c.l.b16 %v1117
    %v4432 = vunpack.c.h.b16 %v1117
    %v4433 = vunpack.c.l.b16 %v1118
    %v4434 = vunpack.c.h.b16 %v1118
    %v4435 = vunpack.c.l.b16 %v1119
    %v4436 = vunpack.c.h.b16 %v1119
    %v4437 = vunpack.c.l.b16 %v1120
    %v4438 = vunpack.c.h.b16 %v1120
    %v4439 = vunpack.c.l.b16 %v1121
    %v4440 = vunpack.c.h.b16 %v1121
    %v4441 = vunpack.c.l.b16 %v1122
    %v4442 = vunpack.c.h.b16 %v1122
    %v4443 = vunpack.c.l.b16 %v1123
    %v4444 = vunpack.c.h.b16 %v1123
    %v4445 = vunpack.c.l.b16 %v1124
    %v4446 = vunpack.c.h.b16 %v1124
    %v4447 = vunpack.c.l.b16 %v1125
    %v4448 = vunpack.c.h.b16 %v1125
    %v4449 = vunpack.c.l.b16 %v1126
    %v4450 = vunpack.c.h.b16 %v1126
    %v4451 = vunpack.c.l.b16 %v1127
    %v4452 = vunpack.c.h.b16 %v1127
    %v4453 = vunpack.c.l.b16 %v1128
    %v4454 = vunpack.c.h.b16 %v1128
    %v4455 = vunpack.c.l.b16 %v1129
    %v4456 = vunpack.c.h.b16 %v1129
    %v4457 = vunpack.c.l.b16 %v1130
    %v4458 = vunpack.c.h.b16 %v1130
    %v4459 = vunpack.c.l.b16 %v1131
    %v4460 = vunpack.c.h.b16 %v1131
    %v4461 = vunpack.c.l.b16 %v1132
    %v4462 = vunpack.c.h.b16 %v1132
    %v4463 = vunpack.c.l.b16 %v1133
    %v4464 = vunpack.c.h.b16 %v1133
    %v4465 = vunpack.c.l.b16 %v1134
    %v4466 = vunpack.c.h.b16 %v1134
    %v4467 = vunpack.c.l.b16 %v1135
    %v4468 = vunpack.c.h.b16 %v1135
    %v4469 = vunpack.c.l.b16 %v1136
    %v4470 = vunpack.c.h.b16 %v1136
    %v4471 = vunpack.c.l.b16 %v1137
    %v4472 = vunpack.c.h.b16 %v1137
    %v4473 = vunpack.c.l.b16 %v1138
    %v4474 = vunpack.c.h.b16 %v1138
    %v4475 = vunpack.c.l.b16 %v1139
    %v4476 = vunpack.c.h.b16 %v1139
    %v4477 = vunpack.c.l.b16 %v1140
    %v4478 = vunpack.c.h.b16 %v1140
    %v4479 = vunpack.c.l.b16 %v1141
    %v4480 = vunpack.c.h.b16 %v1141
    %v4481 = vunpack.c.l.b16 %v1142
    %v4482 = vunpack.c.h.b16 %v1142
    %v4483 = vunpack.c.l.b16 %v1143
    %v4484 = vunpack.c.h.b16 %v1143
    %v4485 = vunpack.c.l.b16 %v1144
    %v4486 = vunpack.c.h.b16 %v1144
    %v4487 = vunpack.c.l.b16 %v1145
    %v4488 = vunpack.c.h.b16 %v1145
    %v4489 = vunpack.c.l.b16 %v1146
    %v4490 = vunpack.c.h.b16 %v1146
    %v4491 = vunpack.c.l.b16 %v1147
    %v4492 = vunpack.c.h.b16 %v1147
    %v4493 = vunpack.c.l.b16 %v1148
    %v4494 = vunpack.c.h.b16 %v1148
    %v4495 = vunpack.c.l.b16 %v1149
    %v4496 = vunpack.c.h.b16 %v1149
    %v4497 = vunpack.c.l.b16 %v1150
    %v4498 = vunpack.c.h.b16 %v1150
    %v4499 = vunpack.c.l.b16 %v1151
    %v4500 = vunpack.c.h.b16 %v1151
    %v4501 = vunpack.c.l.b16 %v1152
    %v4502 = vunpack.c.h.b16 %v1152
    %v4503 = vunpack.c.l.b16 %v1153
    %v4504 = vunpack.c.h.b16 %v1153
    %v4505 = vunpack.c.l.b16 %v1154
    %v4506 = vunpack.c.h.b16 %v1154
    %v4507 = vunpack.c.l.b16 %v1155
    %v4508 = vunpack.c.h.b16 %v1155
    %v4509 = vunpack.c.l.b16 %v1156
    %v4510 = vunpack.c.h.b16 %v1156
    %v4511 = vunpack.c.l.b16 %v1157
    %v4512 = vunpack.c.h.b16 %v1157
    %v4513 = vunpack.c.l.b16 %v1158
    %v4514 = vunpack.c.h.b16 %v1158
    %v4515 = vunpack.c.l.b16 %v1159
    %v4516 = vunpack.c.h.b16 %v1159
    %v4517 = vunpack.c.l.b16 %v1160
    %v4518 = vunpack.c.h.b16 %v1160
    %v4519 = vunpack.c.l.b16 %v1161
    %v4520 = vunpack.c.h.b16 %v1161
    %v4521 = vunpack.c.l.b16 %v1162
    %v4522 = vunpack.c.h.b16 %v1162
    %v4523 = vunpack.c.l.b16 %v1163
    %v4524 = vunpack.c.h.b16 %v1163
    %v4525 = vunpack.c.l.b16 %v1164
    %v4526 = vunpack.c.h.b16 %v1164
    %v4527 = vunpack.c.l.b16 %v1165
    %v4528 = vunpack.c.h.b16 %v1165
    %v4529 = vunpack.c.l.b16 %v1166
    %v4530 = vunpack.c.h.b16 %v1166
    %v4531 = vunpack.c.l.b16 %v1167
    %v4532 = vunpack.c.h.b16 %v1167
    %v4533 = vunpack.c.l.b16 %v1168
    %v4534 = vunpack.c.h.b16 %v1168
    %v4535 = vunpack.c.l.b16 %v1169
    %v4536 = vunpack.c.h.b16 %v1169
    %v4537 = vunpack.c.l.b16 %v1170
    %v4538 = vunpack.c.h.b16 %v1170
    %v4539 = vunpack.c.l.b16 %v1171
    %v4540 = vunpack.c.h.b16 %v1171
    %v4541 = vunpack.c.l.b16 %v1172
    %v4542 = vunpack.c.h.b16 %v1172
    %v4543 = vunpack.c.l.b16 %v1173
    %v4544 = vunpack.c.h.b16 %v1173
    %v4545 = vunpack.c.l.b16 %v1174
    %v4546 = vunpack.c.h.b16 %v1174
    %v4547 = vunpack.c.l.b16 %v1175
    %v4548 = vunpack.c.h.b16 %v1175
    %v4549 = vunpack.c.l.b16 %v1176
    %v4550 = vunpack.c.h.b16 %v1176
    %v4551 = vunpack.c.l.b16 %v1177
    %v4552 = vunpack.c.h.b16 %v1177
    %v4553 = vunpack.c.l.b16 %v1178
    %v4554 = vunpack.c.h.b16 %v1178
    %v4555 = vunpack.c.l.b16 %v1179
    %v4556 = vunpack.c.h.b16 %v1179
    %v4557 = vunpack.c.l.b16 %v1180
    %v4558 = vunpack.c.h.b16 %v1180
    %v4559 = vunpack.c.l.b16 %v1181
    %v4560 = vunpack.c.h.b16 %v1181
    %v4561 = vunpack.c.l.b16 %v1182
    %v4562 = vunpack.c.h.b16 %v1182
    %v4563 = vunpack.c.l.b16 %v1183
    %v4564 = vunpack.c.h.b16 %v1183
    %v4565 = vunpack.c.l.b16 %v1184
    %v4566 = vunpack.c.h.b16 %v1184
    %v4567 = vunpack.c.l.b16 %v1185
    %v4568 = vunpack.c.h.b16 %v1185
    %v4569 = vunpack.c.l.b16 %v1186
    %v4570 = vunpack.c.h.b16 %v1186
    %v4571 = vunpack.c.l.b16 %v1187
    %v4572 = vunpack.c.h.b16 %v1187
    %v4573 = vunpack.c.l.b16 %v1188
    %v4574 = vunpack.c.h.b16 %v1188
    %v4575 = vunpack.c.l.b16 %v1189
    %v4576 = vunpack.c.h.b16 %v1189
    %v4577 = vunpack.c.l.b16 %v1190
    %v4578 = vunpack.c.h.b16 %v1190
    %v4579 = vunpack.c.l.b16 %v1191
    %v4580 = vunpack.c.h.b16 %v1191
    %v4581 = vunpack.c.l.b16 %v1192
    %v4582 = vunpack.c.h.b16 %v1192
    %v4583 = vunpack.c.l.b16 %v1193
    %v4584 = vunpack.c.h.b16 %v1193
    %v4585 = vunpack.c.l.b16 %v1194
    %v4586 = vunpack.c.h.b16 %v1194
    %v4587 = vunpack.c.l.b16 %v1195
    %v4588 = vunpack.c.h.b16 %v1195
    %v4589 = vunpack.c.l.b16 %v1196
    %v4590 = vunpack.c.h.b16 %v1196
    %v4591 = vunpack.c.l.b16 %v1197
    %v4592 = vunpack.c.h.b16 %v1197
    %v4593 = vunpack.c.l.b16 %v1198
    %v4594 = vunpack.c.h.b16 %v1198
    %v4595 = vunpack.c.l.b16 %v1199
    %v4596 = vunpack.c.h.b16 %v1199
    %v4597 = vunpack.c.l.b16 %v1200
    %v4598 = vunpack.c.h.b16 %v1200
    %v4599 = vunpack.c.l.b16 %v1201
    %v4600 = vunpack.c.h.b16 %v1201
    %v4601 = vunpack.c.l.b16 %v1202
    %v4602 = vunpack.c.h.b16 %v1202
    %v4603 = vunpack.c.l.b16 %v1203
    %v4604 = vunpack.c.h.b16 %v1203
    %v4605 = vunpack.c.l.b16 %v1204
    %v4606 = vunpack.c.h.b16 %v1204
    %v4607 = vunpack.c.l.b16 %v1205
    %v4608 = vunpack.c.h.b16 %v1205
    %v4609 = vunpack.c.l.b16 %v1206
    %v4610 = vunpack.c.h.b16 %v1206
    %v4611 = vunpack.c.l.b16 %v1207
    %v4612 = vunpack.c.h.b16 %v1207
    %v4613 = vunpack.c.l.b16 %v1208
    %v4614 = vunpack.c.h.b16 %v1208
    %v4615 = vunpack.c.l.b16 %v1209
    %v4616 = vunpack.c.h.b16 %v1209
    %v4617 = vunpack.c.l.b16 %v1210
    %v4618 = vunpack.c.h.b16 %v1210
    %v4619 = vunpack.c.l.b16 %v1211
    %v4620 = vunpack.c.h.b16 %v1211
    %v4621 = vunpack.c.l.b16 %v1212
    %v4622 = vunpack.c.h.b16 %v1212
    %v4623 = vunpack.c.l.b16 %v1213
    %v4624 = vunpack.c.h.b16 %v1213
    %v4625 = vunpack.c.l.b16 %v1214
    %v4626 = vunpack.c.h.b16 %v1214
    %v4627 = vunpack.c.l.b16 %v1215
    %v4628 = vunpack.c.h.b16 %v1215
    %v4629 = vunpack.c.l.b16 %v1216
    %v4630 = vunpack.c.h.b16 %v1216
    %v4631 = vunpack.c.l.b16 %v1217
    %v4632 = vunpack.c.h.b16 %v1217
    %v4633 = vunpack.c.l.b16 %v1218
    %v4634 = vunpack.c.h.b16 %v1218
    %v4635 = vunpack.c.l.b16 %v1219
    %v4636 = vunpack.c.h.b16 %v1219
    %v4637 = vunpack.c.l.b16 %v1220
    %v4638 = vunpack.c.h.b16 %v1220
    %v4639 = vunpack.c.l.b16 %v1221
    %v4640 = vunpack.c.h.b16 %v1221
    %v4641 = vunpack.c.l.b16 %v1222
    %v4642 = vunpack.c.h.b16 %v1222
    %v4643 = vunpack.c.l.b16 %v1223
    %v4644 = vunpack.c.h.b16 %v1223
    %v4645 = vunpack.c.l.b16 %v1224
    %v4646 = vunpack.c.h.b16 %v1224
    %v4647 = vunpack.c.l.b16 %v1225
    %v4648 = vunpack.c.h.b16 %v1225
    %v4649 = vunpack.c.l.b16 %v1226
    %v4650 = vunpack.c.h.b16 %v1226
    %v4651 = vunpack.c.l.b16 %v1227
    %v4652 = vunpack.c.h.b16 %v1227
    %v4653 = vunpack.c.l.b16 %v1228
    %v4654 = vunpack.c.h.b16 %v1228
    %v4655 = vunpack.c.l.b16 %v1229
    %v4656 = vunpack.c.h.b16 %v1229
    %v4657 = vunpack.c.l.b16 %v1230
    %v4658 = vunpack.c.h.b16 %v1230
    %v4659 = vunpack.c.l.b16 %v1231
    %v4660 = vunpack.c.h.b16 %v1231
    %v4661 = vunpack.c.l.b16 %v1232
    %v4662 = vunpack.c.h.b16 %v1232
    %v4663 = vunpack.c.l.b16 %v1233
    %v4664 = vunpack.c.h.b16 %v1233
    %v4665 = vunpack.c.l.b16 %v1234
    %v4666 = vunpack.c.h.b16 %v1234
    %v4667 = vunpack.c.l.b16 %v1235
    %v4668 = vunpack.c.h.b16 %v1235
    %v4669 = vunpack.c.l.b16 %v1236
    %v4670 = vunpack.c.h.b16 %v1236
    %v4671 = vunpack.c.l.b16 %v1237
    %v4672 = vunpack.c.h.b16 %v1237
    %v4673 = vunpack.c.l.b16 %v1238
    %v4674 = vunpack.c.h.b16 %v1238
    %v4675 = vunpack.c.l.b16 %v1239
    %v4676 = vunpack.c.h.b16 %v1239
    %v4677 = vunpack.c.l.b16 %v1240
    %v4678 = vunpack.c.h.b16 %v1240
    %v4679 = vunpack.c.l.b16 %v1241
    %v4680 = vunpack.c.h.b16 %v1241
    %v4681 = vunpack.c.l.b16 %v1242
    %v4682 = vunpack.c.h.b16 %v1242
    %v4683 = vunpack.c.l.b16 %v1243
    %v4684 = vunpack.c.h.b16 %v1243
    %v4685 = vunpack.c.l.b16 %v1244
    %v4686 = vunpack.c.h.b16 %v1244
    %v4687 = vunpack.c.l.b16 %v1245
    %v4688 = vunpack.c.h.b16 %v1245
    %v4689 = vunpack.c.l.b16 %v1246
    %v4690 = vunpack.c.h.b16 %v1246
    %v4691 = vunpack.c.l.b16 %v1247
    %v4692 = vunpack.c.h.b16 %v1247
    %v4693 = vunpack.c.l.b16 %v1248
    %v4694 = vunpack.c.h.b16 %v1248
    %v4695 = vunpack.c.l.b16 %v1249
    %v4696 = vunpack.c.h.b16 %v1249
    %v4697 = vunpack.c.l.b16 %v1250
    %v4698 = vunpack.c.h.b16 %v1250
    %v4699 = vunpack.c.l.b16 %v1251
    %v4700 = vunpack.c.h.b16 %v1251
    %v4701 = vunpack.c.l.b16 %v1252
    %v4702 = vunpack.c.h.b16 %v1252
    %v4703 = vunpack.c.l.b16 %v1253
    %v4704 = vunpack.c.h.b16 %v1253
    %v4705 = vunpack.c.l.b16 %v1254
    %v4706 = vunpack.c.h.b16 %v1254
    %v4707 = vunpack.c.l.b16 %v1255
    %v4708 = vunpack.c.h.b16 %v1255
    %v4709 = vunpack.c.l.b16 %v1256
    %v4710 = vunpack.c.h.b16 %v1256
    %v4711 = vunpack.c.l.b16 %v1257
    %v4712 = vunpack.c.h.b16 %v1257
    %v4713 = vunpack.c.l.b16 %v1258
    %v4714 = vunpack.c.h.b16 %v1258
    %v4715 = vunpack.c.l.b16 %v1259
    %v4716 = vunpack.c.h.b16 %v1259
    %v4717 = vunpack.c.l.b16 %v1260
    %v4718 = vunpack.c.h.b16 %v1260
    %v4719 = vunpack.c.l.b16 %v1261
    %v4720 = vunpack.c.h.b16 %v1261
    %v4721 = vunpack.c.l.b16 %v1262
    %v4722 = vunpack.c.h.b16 %v1262
    %v4723 = vunpack.c.l.b16 %v1263
    %v4724 = vunpack.c.h.b16 %v1263
    %v4725 = vunpack.c.l.b16 %v1264
    %v4726 = vunpack.c.h.b16 %v1264
    %v4727 = vunpack.c.l.b16 %v1265
    %v4728 = vunpack.c.h.b16 %v1265
    %v4729 = vunpack.c.l.b16 %v1266
    %v4730 = vunpack.c.h.b16 %v1266
    %v4731 = vunpack.c.l.b16 %v1267
    %v4732 = vunpack.c.h.b16 %v1267
    %v4733 = vunpack.c.l.b16 %v1268
    %v4734 = vunpack.c.h.b16 %v1268
    %v4735 = vunpack.c.l.b16 %v1269
    %v4736 = vunpack.c.h.b16 %v1269
    %v4737 = vunpack.c.l.b16 %v1270
    %v4738 = vunpack.c.h.b16 %v1270
    %v4739 = vunpack.c.l.b16 %v1271
    %v4740 = vunpack.c.h.b16 %v1271
    %v4741 = vunpack.c.l.b16 %v1272
    %v4742 = vunpack.c.h.b16 %v1272
    %v4743 = vunpack.c.l.b16 %v1273
    %v4744 = vunpack.c.h.b16 %v1273
    %v4745 = vunpack.c.l.b16 %v1274
    %v4746 = vunpack.c.h.b16 %v1274
    %v4747 = vunpack.c.l.b16 %v1275
    %v4748 = vunpack.c.h.b16 %v1275
    %v4749 = vunpack.c.l.b16 %v1276
    %v4750 = vunpack.c.h.b16 %v1276
    %v4751 = vunpack.c.l.b16 %v1277
    %v4752 = vunpack.c.h.b16 %v1277
    %v4753 = vunpack.c.l.b16 %v1278
    %v4754 = vunpack.c.h.b16 %v1278
    %v4755 = vunpack.c.l.b16 %v1279
    %v4756 = vunpack.c.h.b16 %v1279
    %v4757 = vunpack.c.l.b16 %v1280
    %v4758 = vunpack.c.h.b16 %v1280
    %v4759 = vunpack.c.l.b16 %v1281
    %v4760 = vunpack.c.h.b16 %v1281
    %v4761 = vunpack.c.l.b16 %v1282
    %v4762 = vunpack.c.h.b16 %v1282
    %v4763 = vunpack.c.l.b16 %v1283
    %v4764 = vunpack.c.h.b16 %v1283
    %v4765 = vunpack.c.l.b16 %v1284
    %v4766 = vunpack.c.h.b16 %v1284
    %v4767 = vunpack.c.l.b16 %v1285
    %v4768 = vunpack.c.h.b16 %v1285
    %v4769 = vunpack.c.l.b16 %v1286
    %v4770 = vunpack.c.h.b16 %v1286
    %v4771 = vunpack.c.l.b16 %v1287
    %v4772 = vunpack.c.h.b16 %v1287
    %v4773 = vunpack.c.l.b16 %v1288
    %v4774 = vunpack.c.h.b16 %v1288
    %v4775 = vunpack.c.l.b16 %v1289
    %v4776 = vunpack.c.h.b16 %v1289
    %v4777 = vunpack.c.l.b16 %v1290
    %v4778 = vunpack.c.h.b16 %v1290
    %v4779 = vunpack.c.l.b16 %v1291
    %v4780 = vunpack.c.h.b16 %v1291
    %v4781 = vunpack.c.l.b16 %v1292
    %v4782 = vunpack.c.h.b16 %v1292
    %v4783 = vunpack.c.l.b16 %v1293
    %v4784 = vunpack.c.h.b16 %v1293
    %v4785 = vunpack.c.l.b16 %v1294
    %v4786 = vunpack.c.h.b16 %v1294
    %v4787 = vunpack.c.l.b16 %v1295
    %v4788 = vunpack.c.h.b16 %v1295
    %v4789 = vunpack.c.l.b16 %v1296
    %v4790 = vunpack.c.h.b16 %v1296
    %v4791 = vunpack.c.l.b16 %v1297
    %v4792 = vunpack.c.h.b16 %v1297
    %v4793 = vunpack.c.l.b16 %v1298
    %v4794 = vunpack.c.h.b16 %v1298
    %v4795 = vunpack.c.l.b16 %v1299
    %v4796 = vunpack.c.h.b16 %v1299
    %v4797 = vunpack.c.l.b16 %v1300
    %v4798 = vunpack.c.h.b16 %v1300
    %v4799 = vunpack.c.l.b16 %v1301
    %v4800 = vunpack.c.h.b16 %v1301
    %v4801 = vunpack.c.l.b16 %v1302
    %v4802 = vunpack.c.h.b16 %v1302
    %v4803 = vunpack.c.l.b16 %v1303
    %v4804 = vunpack.c.h.b16 %v1303
    %v4805 = vunpack.c.l.b16 %v1304
    %v4806 = vunpack.c.h.b16 %v1304
    %v4807 = vunpack.c.l.b16 %v1305
    %v4808 = vunpack.c.h.b16 %v1305
    %v4809 = vunpack.c.l.b16 %v1306
    %v4810 = vunpack.c.h.b16 %v1306
    %v4811 = vunpack.c.l.b16 %v1307
    %v4812 = vunpack.c.h.b16 %v1307
    %v4813 = vunpack.c.l.b16 %v1308
    %v4814 = vunpack.c.h.b16 %v1308
    %v4815 = vunpack.c.l.b16 %v1309
    %v4816 = vunpack.c.h.b16 %v1309
    %v4817 = vunpack.c.l.b16 %v1310
    %v4818 = vunpack.c.h.b16 %v1310
    %v4819 = vunpack.c.l.b16 %v1311
    %v4820 = vunpack.c.h.b16 %v1311
    %v4821 = vunpack.c.l.b16 %v1312
    %v4822 = vunpack.c.h.b16 %v1312
    %v4823 = vunpack.c.l.b16 %v1313
    %v4824 = vunpack.c.h.b16 %v1313
    %v4825 = vunpack.c.l.b16 %v1314
    %v4826 = vunpack.c.h.b16 %v1314
    %v4827 = vunpack.c.l.b16 %v1315
    %v4828 = vunpack.c.h.b16 %v1315
    %v4829 = vunpack.c.l.b16 %v1316
    %v4830 = vunpack.c.h.b16 %v1316
    %v4831 = vunpack.c.l.b16 %v1317
    %v4832 = vunpack.c.h.b16 %v1317
    %v4833 = vunpack.c.l.b16 %v1318
    %v4834 = vunpack.c.h.b16 %v1318
    %v4835 = vunpack.c.l.b16 %v1319
    %v4836 = vunpack.c.h.b16 %v1319
    %v4837 = vunpack.c.l.b16 %v1320
    %v4838 = vunpack.c.h.b16 %v1320
    %v4839 = vunpack.c.l.b16 %v1321
    %v4840 = vunpack.c.h.b16 %v1321
    %v4841 = vunpack.c.l.b16 %v1322
    %v4842 = vunpack.c.h.b16 %v1322
    %v4843 = vunpack.c.l.b16 %v1323
    %v4844 = vunpack.c.h.b16 %v1323
    %v4845 = vunpack.c.l.b16 %v1324
    %v4846 = vunpack.c.h.b16 %v1324
    %v4847 = vunpack.c.l.b16 %v1325
    %v4848 = vunpack.c.h.b16 %v1325
    %v4849 = vunpack.c.l.b16 %v1326
    %v4850 = vunpack.c.h.b16 %v1326
    %v4851 = vunpack.c.l.b16 %v1327
    %v4852 = vunpack.c.h.b16 %v1327
    %v4853 = vunpack.c.l.b16 %v1328
    %v4854 = vunpack.c.h.b16 %v1328
    %v4855 = vunpack.c.l.b16 %v1329
    %v4856 = vunpack.c.h.b16 %v1329
    %v4857 = vunpack.c.l.b16 %v1330
    %v4858 = vunpack.c.h.b16 %v1330
    %v4859 = vunpack.c.l.b16 %v1331
    %v4860 = vunpack.c.h.b16 %v1331
    %v4861 = vunpack.c.l.b16 %v1332
    %v4862 = vunpack.c.h.b16 %v1332
    %v4863 = vunpack.c.l.b16 %v1333
    %v4864 = vunpack.c.h.b16 %v1333
    %v4865 = vunpack.c.l.b16 %v1334
    %v4866 = vunpack.c.h.b16 %v1334
    %v4867 = vunpack.c.l.b16 %v1335
    %v4868 = vunpack.c.h.b16 %v1335
    %v4869 = vunpack.c.l.b16 %v1336
    %v4870 = vunpack.c.h.b16 %v1336
    %v4871 = vunpack.c.l.b16 %v1337
    %v4872 = vunpack.c.h.b16 %v1337
    %v4873 = vunpack.c.l.b16 %v1338
    %v4874 = vunpack.c.h.b16 %v1338
    %v4875 = vunpack.c.l.b16 %v1339
    %v4876 = vunpack.c.h.b16 %v1339
    %v4877 = vunpack.c.l.b16 %v1340
    %v4878 = vunpack.c.h.b16 %v1340
    %v4879 = vunpack.c.l.b16 %v1341
    %v4880 = vunpack.c.h.b16 %v1341
    %v4881 = vunpack.c.l.b16 %v1342
    %v4882 = vunpack.c.h.b16 %v1342
    %v4883 = vunpack.c.l.b16 %v1343
    %v4884 = vunpack.c.h.b16 %v1343
    %v4885 = vunpack.c.l.b16 %v1344
    %v4886 = vunpack.c.h.b16 %v1344
    %v4887 = vunpack.c.l.b16 %v1345
    %v4888 = vunpack.c.h.b16 %v1345
    %v4889 = vunpack.c.l.b16 %v1346
    %v4890 = vunpack.c.h.b16 %v1346
    %v4891 = vunpack.c.l.b16 %v1347
    %v4892 = vunpack.c.h.b16 %v1347
    %v4893 = vunpack.c.l.b16 %v1348
    %v4894 = vunpack.c.h.b16 %v1348
    %v4895 = vunpack.c.l.b16 %v1349
    %v4896 = vunpack.c.h.b16 %v1349
    %v4897 = vunpack.c.l.b16 %v1350
    %v4898 = vunpack.c.h.b16 %v1350
    %v4899 = vunpack.c.l.b16 %v1351
    %v4900 = vunpack.c.h.b16 %v1351
    %v4901 = vunpack.c.l.b16 %v1352
    %v4902 = vunpack.c.h.b16 %v1352
    %v4903 = vunpack.c.l.b16 %v1353
    %v4904 = vunpack.c.h.b16 %v1353
    %v4905 = vunpack.c.l.b16 %v1354
    %v4906 = vunpack.c.h.b16 %v1354
    %v4907 = vunpack.c.l.b16 %v1355
    %v4908 = vunpack.c.h.b16 %v1355
    %v4909 = vunpack.c.l.b16 %v1356
    %v4910 = vunpack.c.h.b16 %v1356
    %v4911 = vunpack.c.l.b16 %v1357
    %v4912 = vunpack.c.h.b16 %v1357
    %v4913 = vunpack.c.l.b16 %v1358
    %v4914 = vunpack.c.h.b16 %v1358
    %v4915 = vunpack.c.l.b16 %v1359
    %v4916 = vunpack.c.h.b16 %v1359
    %v4917 = vunpack.c.l.b16 %v1360
    %v4918 = vunpack.c.h.b16 %v1360
    %v4919 = vunpack.c.l.b16 %v1361
    %v4920 = vunpack.c.h.b16 %v1361
    %v4921 = vunpack.c.l.b16 %v1362
    %v4922 = vunpack.c.h.b16 %v1362
    %v4923 = vunpack.c.l.b16 %v1363
    %v4924 = vunpack.c.h.b16 %v1363
    %v4925 = vunpack.c.l.b16 %v1364
    %v4926 = vunpack.c.h.b16 %v1364
    %v4927 = vunpack.c.l.b16 %v1365
    %v4928 = vunpack.c.h.b16 %v1365
    %v4929 = vunpack.c.l.b16 %v1366
    %v4930 = vunpack.c.h.b16 %v1366
    %v4931 = vunpack.c.l.b16 %v1367
    %v4932 = vunpack.c.h.b16 %v1367
    %v4933 = vunpack.c.l.b16 %v1368
    %v4934 = vunpack.c.h.b16 %v1368
    %v4935 = vunpack.c.l.b16 %v1369
    %v4936 = vunpack.c.h.b16 %v1369
    %v4937 = vunpack.c.l.b16 %v1370
    %v4938 = vunpack.c.h.b16 %v1370
    %v4939 = vunpack.c.l.b16 %v1371
    %v4940 = vunpack.c.h.b16 %v1371
    %v4941 = vunpack.c.l.b16 %v1372
    %v4942 = vunpack.c.h.b16 %v1372
    %v4943 = vunpack.c.l.b16 %v1373
    %v4944 = vunpack.c.h.b16 %v1373
    %v4945 = vunpack.c.l.b16 %v1374
    %v4946 = vunpack.c.h.b16 %v1374
    %v4947 = vunpack.c.l.b16 %v1375
    %v4948 = vunpack.c.h.b16 %v1375
    %v4949 = vunpack.c.l.b16 %v1376
    %v4950 = vunpack.c.h.b16 %v1376
    %v4951 = vunpack.c.l.b16 %v1377
    %v4952 = vunpack.c.h.b16 %v1377
    %v4953 = vunpack.c.l.b16 %v1378
    %v4954 = vunpack.c.h.b16 %v1378
    %v4955 = vunpack.c.l.b16 %v1379
    %v4956 = vunpack.c.h.b16 %v1379
    %v4957 = vunpack.c.l.b16 %v1380
    %v4958 = vunpack.c.h.b16 %v1380
    %v4959 = vunpack.c.l.b16 %v1381
    %v4960 = vunpack.c.h.b16 %v1381
    %v4961 = vunpack.c.l.b16 %v1382
    %v4962 = vunpack.c.h.b16 %v1382
    %v4963 = vunpack.c.l.b16 %v1383
    %v4964 = vunpack.c.h.b16 %v1383
    %v4965 = vunpack.c.l.b16 %v1384
    %v4966 = vunpack.c.h.b16 %v1384
    %v4967 = vunpack.c.l.b16 %v1385
    %v4968 = vunpack.c.h.b16 %v1385
    %v4969 = vunpack.c.l.b16 %v1386
    %v4970 = vunpack.c.h.b16 %v1386
    %v4971 = vunpack.c.l.b16 %v1387
    %v4972 = vunpack.c.h.b16 %v1387
    %v4973 = vunpack.c.l.b16 %v1388
    %v4974 = vunpack.c.h.b16 %v1388
    %v4975 = vunpack.c.l.b16 %v1389
    %v4976 = vunpack.c.h.b16 %v1389
    %v4977 = vunpack.c.l.b16 %v1390
    %v4978 = vunpack.c.h.b16 %v1390
    %v4979 = vunpack.c.l.b16 %v1391
    %v4980 = vunpack.c.h.b16 %v1391
    %v4981 = vunpack.c.l.b16 %v1392
    %v4982 = vunpack.c.h.b16 %v1392
    %v4983 = vunpack.c.l.b16 %v1393
    %v4984 = vunpack.c.h.b16 %v1393
    %v4985 = vunpack.c.l.b16 %v1394
    %v4986 = vunpack.c.h.b16 %v1394
    %v4987 = vunpack.c.l.b16 %v1395
    %v4988 = vunpack.c.h.b16 %v1395
    %v4989 = vunpack.c.l.b16 %v1396
    %v4990 = vunpack.c.h.b16 %v1396
    %v4991 = vunpack.c.l.b16 %v1397
    %v4992 = vunpack.c.h.b16 %v1397
    %v4993 = vunpack.c.l.b16 %v1398
    %v4994 = vunpack.c.h.b16 %v1398
    %v4995 = vunpack.c.l.b16 %v1399
    %v4996 = vunpack.c.h.b16 %v1399
    %v4997 = vunpack.c.l.b16 %v1400
    %v4998 = vunpack.c.h.b16 %v1400
    %v4999 = vunpack.c.l.b16 %v1401
    %v5000 = vunpack.c.h.b16 %v1401
    %v5001 = vunpack.c.l.b16 %v1402
    %v5002 = vunpack.c.h.b16 %v1402
    %v5003 = vunpack.c.l.b16 %v1403
    %v5004 = vunpack.c.h.b16 %v1403
    %v5005 = vunpack.c.l.b16 %v1404
    %v5006 = vunpack.c.h.b16 %v1404
    %v5007 = vunpack.c.l.b16 %v1405
    %v5008 = vunpack.c.h.b16 %v1405
    %v5009 = vunpack.c.l.b16 %v1406
    %v5010 = vunpack.c.h.b16 %v1406
    %v5011 = vunpack.c.l.b16 %v1407
    %v5012 = vunpack.c.h.b16 %v1407
    %v5013 = vunpack.c.l.b16 %v1408
    %v5014 = vunpack.c.h.b16 %v1408
    %v5015 = vunpack.c.l.b16 %v1409
    %v5016 = vunpack.c.h.b16 %v1409
    %v5017 = vunpack.c.l.b16 %v1410
    %v5018 = vunpack.c.h.b16 %v1410
    %v5019 = vunpack.c.l.b16 %v1411
    %v5020 = vunpack.c.h.b16 %v1411
    %v5021 = vunpack.c.l.b16 %v1412
    %v5022 = vunpack.c.h.b16 %v1412
    %v5023 = vunpack.c.l.b16 %v1413
    %v5024 = vunpack.c.h.b16 %v1413
    %v5025 = vunpack.c.l.b16 %v1414
    %v5026 = vunpack.c.h.b16 %v1414
    %v5027 = vunpack.c.l.b16 %v1415
    %v5028 = vunpack.c.h.b16 %v1415
    %v5029 = vunpack.c.l.b16 %v1416
    %v5030 = vunpack.c.h.b16 %v1416
    %v5031 = vunpack.c.l.b16 %v1417
    %v5032 = vunpack.c.h.b16 %v1417
    %v5033 = vunpack.c.l.b16 %v1418
    %v5034 = vunpack.c.h.b16 %v1418
    %v5035 = vunpack.c.l.b16 %v1419
    %v5036 = vunpack.c.h.b16 %v1419
    %v5037 = vunpack.c.l.b16 %v1420
    %v5038 = vunpack.c.h.b16 %v1420
    %v5039 = vunpack.c.l.b16 %v1421
    %v5040 = vunpack.c.h.b16 %v1421
    %v5041 = vunpack.c.l.b16 %v1422
    %v5042 = vunpack.c.h.b16 %v1422
    %v5043 = vunpack.c.l.b16 %v1423
    %v5044 = vunpack.c.h.b16 %v1423
    %v5045 = vunpack.c.l.b16 %v1424
    %v5046 = vunpack.c.h.b16 %v1424
    %v5047 = vunpack.c.l.b16 %v1425
    %v5048 = vunpack.c.h.b16 %v1425
    %v5049 = vunpack.c.l.b16 %v1426
    %v5050 = vunpack.c.h.b16 %v1426
    %v5051 = vunpack.c.l.b16 %v1427
    %v5052 = vunpack.c.h.b16 %v1427
    %v5053 = vunpack.c.l.b16 %v1428
    %v5054 = vunpack.c.h.b16 %v1428
    %v5055 = vunpack.c.l.b16 %v1429
    %v5056 = vunpack.c.h.b16 %v1429
    %v5057 = vunpack.c.l.b16 %v1430
    %v5058 = vunpack.c.h.b16 %v1430
    %v5059 = vunpack.c.l.b16 %v1431
    %v5060 = vunpack.c.h.b16 %v1431
    %v5061 = vunpack.c.l.b16 %v1432
    %v5062 = vunpack.c.h.b16 %v1432
    %v5063 = vunpack.c.l.b16 %v1433
    %v5064 = vunpack.c.h.b16 %v1433
    %v5065 = vunpack.c.l.b16 %v1434
    %v5066 = vunpack.c.h.b16 %v1434
    %v5067 = vunpack.c.l.b16 %v1435
    %v5068 = vunpack.c.h.b16 %v1435
    %v5069 = vunpack.c.l.b16 %v1436
    %v5070 = vunpack.c.h.b16 %v1436
    %v5071 = vunpack.c.l.b16 %v1437
    %v5072 = vunpack.c.h.b16 %v1437
    %v5073 = vunpack.c.l.b16 %v1438
    %v5074 = vunpack.c.h.b16 %v1438
    %v5075 = vunpack.c.l.b16 %v1439
    %v5076 = vunpack.c.h.b16 %v1439
    %v5077 = vunpack.c.l.b16 %v1440
    %v5078 = vunpack.c.h.b16 %v1440
    %v5079 = vunpack.c.l.b16 %v1441
    %v5080 = vunpack.c.h.b16 %v1441
    %v5081 = vunpack.c.l.b16 %v1442
    %v5082 = vunpack.c.h.b16 %v1442
    %v5083 = vunpack.c.l.b16 %v1443
    %v5084 = vunpack.c.h.b16 %v1443
    %v5085 = vunpack.c.l.b16 %v1444
    %v5086 = vunpack.c.h.b16 %v1444
    %v5087 = vunpack.c.l.b16 %v1445
    %v5088 = vunpack.c.h.b16 %v1445
    %v5089 = vunpack.c.l.b16 %v1446
    %v5090 = vunpack.c.h.b16 %v1446
    %v5091 = vunpack.c.l.b16 %v1447
    %v5092 = vunpack.c.h.b16 %v1447
    %v5093 = vunpack.c.l.b16 %v1448
    %v5094 = vunpack.c.h.b16 %v1448
    %v5095 = vunpack.c.l.b16 %v1449
    %v5096 = vunpack.c.h.b16 %v1449
    %v5097 = vunpack.c.l.b16 %v1450
    %v5098 = vunpack.c.h.b16 %v1450
    %v5099 = vunpack.c.l.b16 %v1451
    %v5100 = vunpack.c.h.b16 %v1451
    %v5101 = vunpack.c.l.b16 %v1452
    %v5102 = vunpack.c.h.b16 %v1452
    %v5103 = vunpack.c.l.b16 %v1453
    %v5104 = vunpack.c.h.b16 %v1453
    %v5105 = vunpack.c.l.b16 %v1454
    %v5106 = vunpack.c.h.b16 %v1454
    %v5107 = vunpack.c.l.b16 %v1455
    %v5108 = vunpack.c.h.b16 %v1455
    %v5109 = vunpack.c.l.b16 %v1456
    %v5110 = vunpack.c.h.b16 %v1456
    %v5111 = vunpack.c.l.b16 %v1457
    %v5112 = vunpack.c.h.b16 %v1457
    %v5113 = vunpack.c.l.b16 %v1458
    %v5114 = vunpack.c.h.b16 %v1458
    %v5115 = vunpack.c.l.b16 %v1459
    %v5116 = vunpack.c.h.b16 %v1459
    %v5117 = vunpack.c.l.b16 %v1460
    %v5118 = vunpack.c.h.b16 %v1460
    %v5119 = vunpack.c.l.b16 %v1461
    %v5120 = vunpack.c.h.b16 %v1461
    %v5121 = vunpack.c.l.b16 %v1462
    %v5122 = vunpack.c.h.b16 %v1462
    %v5123 = vunpack.c.l.b16 %v1463
    %v5124 = vunpack.c.h.b16 %v1463
    %v5125 = vunpack.c.l.b16 %v1464
    %v5126 = vunpack.c.h.b16 %v1464
    %v5127 = vunpack.c.l.b16 %v1465
    %v5128 = vunpack.c.h.b16 %v1465
    %v5129 = vunpack.c.l.b16 %v1466
    %v5130 = vunpack.c.h.b16 %v1466
    %v5131 = vunpack.c.l.b16 %v1467
    %v5132 = vunpack.c.h.b16 %v1467
    %v5133 = vunpack.c.l.b16 %v1468
    %v5134 = vunpack.c.h.b16 %v1468
    %v5135 = vunpack.c.l.b16 %v1469
    %v5136 = vunpack.c.h.b16 %v1469
    %v5137 = vunpack.c.l.b16 %v1470
    %v5138 = vunpack.c.h.b16 %v1470
    %v5139 = vunpack.c.l.b16 %v1471
    %v5140 = vunpack.c.h.b16 %v1471
    %v5141 = vunpack.c.l.b16 %v1472
    %v5142 = vunpack.c.h.b16 %v1472
    %v5143 = vunpack.c.l.b16 %v1473
    %v5144 = vunpack.c.h.b16 %v1473
    %v5145 = vunpack.c.l.b16 %v1474
    %v5146 = vunpack.c.h.b16 %v1474
    %v5147 = vunpack.c.l.b16 %v1475
    %v5148 = vunpack.c.h.b16 %v1475
    %v5149 = vunpack.c.l.b16 %v1476
    %v5150 = vunpack.c.h.b16 %v1476
    %v5151 = vunpack.c.l.b16 %v1477
    %v5152 = vunpack.c.h.b16 %v1477
    %v5153 = vunpack.c.l.b16 %v1478
    %v5154 = vunpack.c.h.b16 %v1478
    %v5155 = vunpack.c.l.b16 %v1479
    %v5156 = vunpack.c.h.b16 %v1479
    %v5157 = vunpack.c.l.b16 %v1480
    %v5158 = vunpack.c.h.b16 %v1480
    %v5159 = vunpack.c.l.b16 %v1481
    %v5160 = vunpack.c.h.b16 %v1481
    %v5161 = vunpack.c.l.b16 %v1482
    %v5162 = vunpack.c.h.b16 %v1482
    %v5163 = vunpack.c.l.b16 %v1483
    %v5164 = vunpack.c.h.b16 %v1483
    %v5165 = vunpack.c.l.b16 %v1484
    %v5166 = vunpack.c.h.b16 %v1484
    %v5167 = vunpack.c.l.b16 %v1485
    %v5168 = vunpack.c.h.b16 %v1485
    %v5169 = vunpack.c.l.b16 %v1486
    %v5170 = vunpack.c.h.b16 %v1486
    %v5171 = vunpack.c.l.b16 %v1487
    %v5172 = vunpack.c.h.b16 %v1487
    %v5173 = vunpack.c.l.b16 %v1488
    %v5174 = vunpack.c.h.b16 %v1488
    %v5175 = vunpack.c.l.b16 %v1489
    %v5176 = vunpack.c.h.b16 %v1489
    %v5177 = vunpack.c.l.b16 %v1490
    %v5178 = vunpack.c.h.b16 %v1490
    %v5179 = vunpack.c.l.b16 %v1491
    %v5180 = vunpack.c.h.b16 %v1491
    %v5181 = vunpack.c.l.b16 %v1492
    %v5182 = vunpack.c.h.b16 %v1492
    %v5183 = vunpack.c.l.b16 %v1493
    %v5184 = vunpack.c.h.b16 %v1493
    %v5185 = vunpack.c.l.b16 %v1494
    %v5186 = vunpack.c.h.b16 %v1494
    %v5187 = vunpack.c.l.b16 %v1495
    %v5188 = vunpack.c.h.b16 %v1495
    %v5189 = vunpack.c.l.b16 %v1496
    %v5190 = vunpack.c.h.b16 %v1496
    %v5191 = vunpack.c.l.b16 %v1497
    %v5192 = vunpack.c.h.b16 %v1497
    %v5193 = vunpack.c.l.b16 %v1498
    %v5194 = vunpack.c.h.b16 %v1498
    %v5195 = vunpack.c.l.b16 %v1499
    %v5196 = vunpack.c.h.b16 %v1499
    %v5197 = vunpack.c.l.b16 %v1500
    %v5198 = vunpack.c.h.b16 %v1500
    %v5199 = vunpack.c.l.b16 %v1501
    %v5200 = vunpack.c.h.b16 %v1501
    %v5201 = vunpack.c.l.b16 %v1502
    %v5202 = vunpack.c.h.b16 %v1502
    %v5203 = vunpack.c.l.b16 %v1503
    %v5204 = vunpack.c.h.b16 %v1503
    %v5205 = vunpack.c.l.b16 %v1504
    %v5206 = vunpack.c.h.b16 %v1504
    %v5207 = vunpack.c.l.b16 %v1505
    %v5208 = vunpack.c.h.b16 %v1505
    %v5209 = vunpack.c.l.b16 %v1506
    %v5210 = vunpack.c.h.b16 %v1506
    %v5211 = vunpack.c.l.b16 %v1507
    %v5212 = vunpack.c.h.b16 %v1507
    %v5213 = vunpack.c.l.b16 %v1508
    %v5214 = vunpack.c.h.b16 %v1508
    %v5215 = vunpack.c.l.b16 %v1509
    %v5216 = vunpack.c.h.b16 %v1509
    %v5217 = vunpack.c.l.b16 %v1510
    %v5218 = vunpack.c.h.b16 %v1510
    %v5219 = vunpack.c.l.b16 %v1511
    %v5220 = vunpack.c.h.b16 %v1511
    %v5221 = vunpack.c.l.b16 %v1512
    %v5222 = vunpack.c.h.b16 %v1512
    %v5223 = vunpack.c.l.b16 %v1513
    %v5224 = vunpack.c.h.b16 %v1513
    %v5225 = vunpack.c.l.b16 %v1514
    %v5226 = vunpack.c.h.b16 %v1514
    %v5227 = vunpack.c.l.b16 %v1515
    %v5228 = vunpack.c.h.b16 %v1515
    %v5229 = vunpack.c.l.b16 %v1516
    %v5230 = vunpack.c.h.b16 %v1516
    %v5231 = vunpack.c.l.b16 %v1517
    %v5232 = vunpack.c.h.b16 %v1517
    %v5233 = vunpack.c.l.b16 %v1518
    %v5234 = vunpack.c.h.b16 %v1518
    %v5235 = vunpack.c.l.b16 %v1519
    %v5236 = vunpack.c.h.b16 %v1519
    %v5237 = vunpack.c.l.b16 %v1520
    %v5238 = vunpack.c.h.b16 %v1520
    %v5239 = vpack.c.b16 %v2779, %v2775
    %v5240 = vpack.c.b16 %v2780, %v2776
    %v5241 = vpack.c.b16 %v2781, %v2777
    %v5242 = vpack.c.b16 %v2782, %v2778
    %v5243 = vpack.c.b16 %v2787, %v2783
    %v5244 = vpack.c.b16 %v2788, %v2784
    %v5245 = vpack.c.b16 %v2789, %v2785
    %v5246 = vpack.c.b16 %v2790, %v2786
    %v5247 = vpack.c.b16 %v2795, %v2791
    %v5248 = vpack.c.b16 %v2796, %v2792
    %v5249 = vpack.c.b16 %v2797, %v2793
    %v5250 = vpack.c.b16 %v2798, %v2794
    %v5251 = vpack.c.b16 %v2803, %v2799
    %v5252 = vpack.c.b16 %v2804, %v2800
    %v5253 = vpack.c.b16 %v2805, %v2801
    %v5254 = vpack.c.b16 %v2806, %v2802
    %v5255 = vpack.c.b16 %v2811, %v2807
    %v5256 = vpack.c.b16 %v2812, %v2808
    %v5257 = vpack.c.b16 %v2813, %v2809
    %v5258 = vpack.c.b16 %v2814, %v2810
    %v5259 = vpack.c.b16 %v2819, %v2815
    %v5260 = vpack.c.b16 %v2820, %v2816
    %v5261 = vpack.c.b16 %v2821, %v2817
    %v5262 = vpack.c.b16 %v2822, %v2818
    %v5263 = vpack.c.b16 %v2827, %v2823
    %v5264 = vpack.c.b16 %v2828, %v2824
    %v5265 = vpack.c.b16 %v2829, %v2825
    %v5266 = vpack.c.b16 %v2830, %v2826
    %v5267 = vpack.c.b16 %v2835, %v2831
    %v5268 = vpack.c.b16 %v2836, %v2832
    %v5269 = vpack.c.b16 %v2837, %v2833
    %v5270 = vpack.c.b16 %v2838, %v2834
    %v5271 = vpack.c.b16 %v2843, %v2839
    %v5272 = vpack.c.b16 %v2844, %v2840
    %v5273 = vpack.c.b16 %v2845, %v2841
    %v5274 = vpack.c.b16 %v2846, %v2842
    %v5275 = vpack.c.b16 %v2851, %v2847
    %v5276 = vpack.c.b16 %v2852, %v2848
    %v5277 = vpack.c.b16 %v2853, %v2849
    %v5278 = vpack.c.b16 %v2854, %v2850
    %v5279 = vpack.c.b16 %v2859, %v2855
    %v5280 = vpack.c.b16 %v2860, %v2856
    %v5281 = vpack.c.b16 %v2861, %v2857
    %v5282 = vpack.c.b16 %v2862, %v2858
    %v5283 = vpack.c.b16 %v2867, %v2863
    %v5284 = vpack.c.b16 %v2868, %v2864
    %v5285 = vpack.c.b16 %v2869, %v2865
    %v5286 = vpack.c.b16 %v2870, %v2866
    %v5287 = vpack.c.b16 %v2875, %v2871
    %v5288 = vpack.c.b16 %v2876, %v2872
    %v5289 = vpack.c.b16 %v2877, %v2873
    %v5290 = vpack.c.b16 %v2878, %v2874
    %v5291 = vpack.c.b16 %v2883, %v2879
    %v5292 = vpack.c.b16 %v2884, %v2880
    %v5293 = vpack.c.b16 %v2885, %v2881
    %v5294 = vpack.c.b16 %v2886, %v2882
    %v5295 = vpack.c.b16 %v2891, %v2887
    %v5296 = vpack.c.b16 %v2892, %v2888
    %v5297 = vpack.c.b16 %v2893, %v2889
    %v5298 = vpack.c.b16 %v2894, %v2890
    %v5299 = vpack.c.b16 %v2899, %v2895
    %v5300 = vpack.c.b16 %v2900, %v2896
    %v5301 = vpack.c.b16 %v2901, %v2897
    %v5302 = vpack.c.b16 %v2902, %v2898
    %v5303 = vpack.c.b16 %v2907, %v2903
    %v5304 = vpack.c.b16 %v2908, %v2904
    %v5305 = vpack.c.b16 %v2909, %v2905
    %v5306 = vpack.c.b16 %v2910, %v2906
    %v5307 = vpack.c.b16 %v2915, %v2911
    %v5308 = vpack.c.b16 %v2916, %v2912
    %v5309 = vpack.c.b16 %v2917, %v2913
    %v5310 = vpack.c.b16 %v2918, %v2914
    %v5311 = vpack.c.b16 %v2923, %v2919
    %v5312 = vpack.c.b16 %v2924, %v2920
    %v5313 = vpack.c.b16 %v2925, %v2921
    %v5314 = vpack.c.b16 %v2926, %v2922
    %v5315 = vpack.c.b16 %v2931, %v2927
    %v5316 = vpack.c.b16 %v2932, %v2928
    %v5317 = vpack.c.b16 %v2933, %v2929
    %v5318 = vpack.c.b16 %v2934, %v2930
    %v5319 = vpack.c.b16 %v2939, %v2935
    %v5320 = vpack.c.b16 %v2940, %v2936
    %v5321 = vpack.c.b16 %v2941, %v2937
    %v5322 = vpack.c.b16 %v2942, %v2938
    %v5323 = vpack.c.b16 %v2947, %v2943
    %v5324 = vpack.c.b16 %v2948, %v2944
    %v5325 = vpack.c.b16 %v2949, %v2945
    %v5326 = vpack.c.b16 %v2950, %v2946
    %v5327 = vpack.c.b16 %v2955, %v2951
    %v5328 = vpack.c.b16 %v2956, %v2952
    %v5329 = vpack.c.b16 %v2957, %v2953
    %v5330 = vpack.c.b16 %v2958, %v2954
    %v5331 = vpack.c.b16 %v2963, %v2959
    %v5332 = vpack.c.b16 %v2964, %v2960
    %v5333 = vpack.c.b16 %v2965, %v2961
    %v5334 = vpack.c.b16 %v2966, %v2962
    %v5335 = vpack.c.b16 %v2971, %v2967
    %v5336 = vpack.c.b16 %v2972, %v2968
    %v5337 = vpack.c.b16 %v2973, %v2969
    %v5338 = vpack.c.b16 %v2974, %v2970
    %v5339 = vpack.c.b16 %v2979, %v2975
    %v5340 = vpack.c.b16 %v2980, %v2976
    %v5341 = vpack.c.b16 %v2981, %v2977
    %v5342 = vpack.c.b16 %v2982, %v2978
    %v5343 = vpack.c.b16 %v2987, %v2983
    %v5344 = vpack.c.b16 %v2988, %v2984
    %v5345 = vpack.c.b16 %v2989, %v2985
    %v5346 = vpack.c.b16 %v2990, %v2986
    %v5347 = vpack.c.b16 %v2995, %v2991
    %v5348 = vpack.c.b16 %v2996, %v2992
    %v5349 = vpack.c.b16 %v2997, %v2993
    %v5350 = vpack.c.b16 %v2998, %v2994
    %v5351 = vpack.c.b16 %v3003, %v2999
    %v5352 = vpack.c.b16 %v3004, %v3000
    %v5353 = vpack.c.b16 %v3005, %v3001
    %v5354 = vpack.c.b16 %v3006, %v3002
    %v5355 = vpack.c.b16 %v3011, %v3007
    %v5356 = vpack.c.b16 %v3012, %v3008
    %v5357 = vpack.c.b16 %v3013, %v3009
    %v5358 = vpack.c.b16 %v3014, %v3010
    %v5359 = vpack.c.b16 %v3019, %v3015
    %v5360 = vpack.c.b16 %v3020, %v3016
    %v5361 = vpack.c.b16 %v3021, %v3017
    %v5362 = vpack.c.b16 %v3022, %v3018
    %v5363 = vpack.c.b16 %v3027, %v3023
    %v5364 = vpack.c.b16 %v3028, %v3024
    %v5365 = vpack.c.b16 %v3029, %v3025
    %v5366 = vpack.c.b16 %v3030, %v3026
    %v5367 = vpack.c.b16 %v3035, %v3031
    %v5368 = vpack.c.b16 %v3036, %v3032
    %v5369 = vpack.c.b16 %v3037, %v3033
    %v5370 = vpack.c.b16 %v3038, %v3034
    %v5371 = vpack.c.b16 %v3043, %v3039
    %v5372 = vpack.c.b16 %v3044, %v3040
    %v5373 = vpack.c.b16 %v3045, %v3041
    %v5374 = vpack.c.b16 %v3046, %v3042
    %v5375 = vpack.c.b16 %v3051, %v3047
    %v5376 = vpack.c.b16 %v3052, %v3048
    %v5377 = vpack.c.b16 %v3053, %v3049
    %v5378 = vpack.c.b16 %v3054, %v3050
    %v5379 = vpack.c.b16 %v3059, %v3055
    %v5380 = vpack.c.b16 %v3060, %v3056
    %v5381 = vpack.c.b16 %v3061, %v3057
    %v5382 = vpack.c.b16 %v3062, %v3058
    %v5383 = vpack.c.b16 %v3067, %v3063
    %v5384 = vpack.c.b16 %v3068, %v3064
    %v5385 = vpack.c.b16 %v3069, %v3065
    %v5386 = vpack.c.b16 %v3070, %v3066
    %v5387 = vpack.c.b16 %v3075, %v3071
    %v5388 = vpack.c.b16 %v3076, %v3072
    %v5389 = vpack.c.b16 %v3077, %v3073
    %v5390 = vpack.c.b16 %v3078, %v3074
    %v5391 = vpack.c.b16 %v3083, %v3079
    %v5392 = vpack.c.b16 %v3084, %v3080
    %v5393 = vpack.c.b16 %v3085, %v3081
    %v5394 = vpack.c.b16 %v3086, %v3082
    %v5395 = vpack.c.b16 %v3091, %v3087
    %v5396 = vpack.c.b16 %v3092, %v3088
    %v5397 = vpack.c.b16 %v3093, %v3089
    %v5398 = vpack.c.b16 %v3094, %v3090
    %v5399 = vpack.c.b16 %v3099, %v3095
    %v5400 = vpack.c.b16 %v3100, %v3096
    %v5401 = vpack.c.b16 %v3101, %v3097
    %v5402 = vpack.c.b16 %v3102, %v3098
    %v5403 = vpack.c.b16 %v3107, %v3103
    %v5404 = vpack.c.b16 %v3108, %v3104
    %v5405 = vpack.c.b16 %v3109, %v3105
    %v5406 = vpack.c.b16 %v3110, %v3106
    %v5407 = vpack.c.b16 %v3115, %v3111
    %v5408 = vpack.c.b16 %v3116, %v3112
    %v5409 = vpack.c.b16 %v3117, %v3113
    %v5410 = vpack.c.b16 %v3118, %v3114
    %v5411 = vpack.c.b16 %v3123, %v3119
    %v5412 = vpack.c.b16 %v3124, %v3120
    %v5413 = vpack.c.b16 %v3125, %v3121
    %v5414 = vpack.c.b16 %v3126, %v3122
    %v5415 = vpack.c.b16 %v3131, %v3127
    %v5416 = vpack.c.b16 %v3132, %v3128
    %v5417 = vpack.c.b16 %v3133, %v3129
    %v5418 = vpack.c.b16 %v3134, %v3130
    %v5419 = vpack.c.b16 %v3139, %v3135
    %v5420 = vpack.c.b16 %v3140, %v3136
    %v5421 = vpack.c.b16 %v3141, %v3137
    %v5422 = vpack.c.b16 %v3142, %v3138
    %v5423 = vpack.c.b16 %v3147, %v3143
    %v5424 = vpack.c.b16 %v3148, %v3144
    %v5425 = vpack.c.b16 %v3149, %v3145
    %v5426 = vpack.c.b16 %v3150, %v3146
    %v5427 = vpack.c.b16 %v3155, %v3151
    %v5428 = vpack.c.b16 %v3156, %v3152
    %v5429 = vpack.c.b16 %v3157, %v3153
    %v5430 = vpack.c.b16 %v3158, %v3154
    %v5431 = vpack.c.b16 %v3163, %v3159
    %v5432 = vpack.c.b16 %v3164, %v3160
    %v5433 = vpack.c.b16 %v3165, %v3161
    %v5434 = vpack.c.b16 %v3166, %v3162
    %v5435 = vpack.c.b16 %v3171, %v3167
    %v5436 = vpack.c.b16 %v3172, %v3168
    %v5437 = vpack.c.b16 %v3173, %v3169
    %v5438 = vpack.c.b16 %v3174, %v3170
    %v5439 = vpack.c.b16 %v3179, %v3175
    %v5440 = vpack.c.b16 %v3180, %v3176
    %v5441 = vpack.c.b16 %v3181, %v3177
    %v5442 = vpack.c.b16 %v3182, %v3178
    %v5443 = vpack.c.b16 %v3187, %v3183
    %v5444 = vpack.c.b16 %v3188, %v3184
    %v5445 = vpack.c.b16 %v3189, %v3185
    %v5446 = vpack.c.b16 %v3190, %v3186
    %v5447 = vpack.c.b16 %v3195, %v3191
    %v5448 = vpack.c.b16 %v3196, %v3192
    %v5449 = vpack.c.b16 %v3197, %v3193
    %v5450 = vpack.c.b16 %v3198, %v3194
    %v5451 = vpack.c.b16 %v3203, %v3199
    %v5452 = vpack.c.b16 %v3204, %v3200
    %v5453 = vpack.c.b16 %v3205, %v3201
    %v5454 = vpack.c.b16 %v3206, %v3202
    %v5455 = vpack.c.b16 %v3211, %v3207
    %v5456 = vpack.c.b16 %v3212, %v3208
    %v5457 = vpack.c.b16 %v3213, %v3209
    %v5458 = vpack.c.b16 %v3214, %v3210
    %v5459 = vpack.c.b16 %v3219, %v3215
    %v5460 = vpack.c.b16 %v3220, %v3216
    %v5461 = vpack.c.b16 %v3221, %v3217
    %v5462 = vpack.c.b16 %v3222, %v3218
    %v5463 = vpack.c.b16 %v3227, %v3223
    %v5464 = vpack.c.b16 %v3228, %v3224
    %v5465 = vpack.c.b16 %v3229, %v3225
    %v5466 = vpack.c.b16 %v3230, %v3226
    %v5467 = vpack.c.b16 %v3235, %v3231
    %v5468 = vpack.c.b16 %v3236, %v3232
    %v5469 = vpack.c.b16 %v3237, %v3233
    %v5470 = vpack.c.b16 %v3238, %v3234
    %v5471 = vpack.c.b16 %v3243, %v3239
    %v5472 = vpack.c.b16 %v3244, %v3240
    %v5473 = vpack.c.b16 %v3245, %v3241
    %v5474 = vpack.c.b16 %v3246, %v3242
    %v5475 = vpack.c.b16 %v3251, %v3247
    %v5476 = vpack.c.b16 %v3252, %v3248
    %v5477 = vpack.c.b16 %v3253, %v3249
    %v5478 = vpack.c.b16 %v3254, %v3250
    %v5479 = vpack.c.b16 %v3259, %v3255
    %v5480 = vpack.c.b16 %v3260, %v3256
    %v5481 = vpack.c.b16 %v3261, %v3257
    %v5482 = vpack.c.b16 %v3262, %v3258
    %v5483 = vpack.c.b16 %v3267, %v3263
    %v5484 = vpack.c.b16 %v3268, %v3264
    %v5485 = vpack.c.b16 %v3269, %v3265
    %v5486 = vpack.c.b16 %v3270, %v3266
    %v5487 = vpack.c.b16 %v3275, %v3271
    %v5488 = vpack.c.b16 %v3276, %v3272
    %v5489 = vpack.c.b16 %v3277, %v3273
    %v5490 = vpack.c.b16 %v3278, %v3274
    %v5491 = vpack.c.b16 %v3283, %v3279
    %v5492 = vpack.c.b16 %v3284, %v3280
    %v5493 = vpack.c.b16 %v3285, %v3281
    %v5494 = vpack.c.b16 %v3286, %v3282
    %v5495 = vpack.c.b16 %v3291, %v3287
    %v5496 = vpack.c.b16 %v3292, %v3288
    %v5497 = vpack.c.b16 %v3293, %v3289
    %v5498 = vpack.c.b16 %v3294, %v3290
    %v5499 = vpack.c.b16 %v3299, %v3295
    %v5500 = vpack.c.b16 %v3300, %v3296
    %v5501 = vpack.c.b16 %v3301, %v3297
    %v5502 = vpack.c.b16 %v3302, %v3298
    %v5503 = vpack.c.b16 %v3307, %v3303
    %v5504 = vpack.c.b16 %v3308, %v3304
    %v5505 = vpack.c.b16 %v3309, %v3305
    %v5506 = vpack.c.b16 %v3310, %v3306
    %v5507 = vpack.c.b16 %v3315, %v3311
    %v5508 = vpack.c.b16 %v3316, %v3312
    %v5509 = vpack.c.b16 %v3317, %v3313
    %v5510 = vpack.c.b16 %v3318, %v3314
    %v5511 = vpack.c.b16 %v3323, %v3319
    %v5512 = vpack.c.b16 %v3324, %v3320
    %v5513 = vpack.c.b16 %v3325, %v3321
    %v5514 = vpack.c.b16 %v3326, %v3322
    %v5515 = vpack.c.b16 %v3331, %v3327
    %v5516 = vpack.c.b16 %v3332, %v3328
    %v5517 = vpack.c.b16 %v3333, %v3329
    %v5518 = vpack.c.b16 %v3334, %v3330
    %v5519 = vpack.c.b16 %v3339, %v3335
    %v5520 = vpack.c.b16 %v3340, %v3336
    %v5521 = vpack.c.b16 %v3341, %v3337
    %v5522 = vpack.c.b16 %v3342, %v3338
    %v5523 = vpack.c.b16 %v3347, %v3343
    %v5524 = vpack.c.b16 %v3348, %v3344
    %v5525 = vpack.c.b16 %v3349, %v3345
    %v5526 = vpack.c.b16 %v3350, %v3346
    %v5527 = vpack.c.b16 %v3355, %v3351
    %v5528 = vpack.c.b16 %v3356, %v3352
    %v5529 = vpack.c.b16 %v3357, %v3353
    %v5530 = vpack.c.b16 %v3358, %v3354
    %v5531 = vpack.c.b16 %v3363, %v3359
    %v5532 = vpack.c.b16 %v3364, %v3360
    %v5533 = vpack.c.b16 %v3365, %v3361
    %v5534 = vpack.c.b16 %v3366, %v3362
    %v5535 = vpack.c.b16 %v3371, %v3367
    %v5536 = vpack.c.b16 %v3372, %v3368
    %v5537 = vpack.c.b16 %v3373, %v3369
    %v5538 = vpack.c.b16 %v3374, %v3370
    %v5539 = vpack.c.b16 %v3379, %v3375
    %v5540 = vpack.c.b16 %v3380, %v3376
    %v5541 = vpack.c.b16 %v3381, %v3377
    %v5542 = vpack.c.b16 %v3382, %v3378
    %v5543 = vpack.c.b16 %v3387, %v3383
    %v5544 = vpack.c.b16 %v3388, %v3384
    %v5545 = vpack.c.b16 %v3389, %v3385
    %v5546 = vpack.c.b16 %v3390, %v3386
    %v5547 = vpack.c.b16 %v3395, %v3391
    %v5548 = vpack.c.b16 %v3396, %v3392
    %v5549 = vpack.c.b16 %v3397, %v3393
    %v5550 = vpack.c.b16 %v3398, %v3394
    %v5551 = vpack.c.b16 %v3403, %v3399
    %v5552 = vpack.c.b16 %v3404, %v3400
    %v5553 = vpack.c.b16 %v3405, %v3401
    %v5554 = vpack.c.b16 %v3406, %v3402
    %v5555 = vpack.c.b16 %v3411, %v3407
    %v5556 = vpack.c.b16 %v3412, %v3408
    %v5557 = vpack.c.b16 %v3413, %v3409
    %v5558 = vpack.c.b16 %v3414, %v3410
    %v5559 = vpack.c.b16 %v3419, %v3415
    %v5560 = vpack.c.b16 %v3420, %v3416
    %v5561 = vpack.c.b16 %v3421, %v3417
    %v5562 = vpack.c.b16 %v3422, %v3418
    %v5563 = vpack.c.b16 %v3427, %v3423
    %v5564 = vpack.c.b16 %v3428, %v3424
    %v5565 = vpack.c.b16 %v3429, %v3425
    %v5566 = vpack.c.b16 %v3430, %v3426
    %v5567 = vpack.c.b16 %v3435, %v3431
    %v5568 = vpack.c.b16 %v3436, %v3432
    %v5569 = vpack.c.b16 %v3437, %v3433
    %v5570 = vpack.c.b16 %v3438, %v3434
    %v5571 = vpack.c.b16 %v3443, %v3439
    %v5572 = vpack.c.b16 %v3444, %v3440
    %v5573 = vpack.c.b16 %v3445, %v3441
    %v5574 = vpack.c.b16 %v3446, %v3442
    %v5575 = vpack.c.b16 %v3451, %v3447
    %v5576 = vpack.c.b16 %v3452, %v3448
    %v5577 = vpack.c.b16 %v3453, %v3449
    %v5578 = vpack.c.b16 %v3454, %v3450
    %v5579 = vpack.c.b16 %v3459, %v3455
    %v5580 = vpack.c.b16 %v3460, %v3456
    %v5581 = vpack.c.b16 %v3461, %v3457
    %v5582 = vpack.c.b16 %v3462, %v3458
    %v5583 = vpack.c.b16 %v3467, %v3463
    %v5584 = vpack.c.b16 %v3468, %v3464
    %v5585 = vpack.c.b16 %v3469, %v3465
    %v5586 = vpack.c.b16 %v3470, %v3466
    %v5587 = vpack.c.b16 %v3475, %v3471
    %v5588 = vpack.c.b16 %v3476, %v3472
    %v5589 = vpack.c.b16 %v3477, %v3473
    %v5590 = vpack.c.b16 %v3478, %v3474
    %v5591 = vpack.c.b16 %v3483, %v3479
    %v5592 = vpack.c.b16 %v3484, %v3480
    %v5593 = vpack.c.b16 %v3485, %v3481
    %v5594 = vpack.c.b16 %v3486, %v3482
    %v5595 = vpack.c.b16 %v3491, %v3487
    %v5596 = vpack.c.b16 %v3492, %v3488
    %v5597 = vpack.c.b16 %v3493, %v3489
    %v5598 = vpack.c.b16 %v3494, %v3490
    %v5599 = vpack.c.b16 %v3499, %v3495
    %v5600 = vpack.c.b16 %v3500, %v3496
    %v5601 = vpack.c.b16 %v3501, %v3497
    %v5602 = vpack.c.b16 %v3502, %v3498
    %v5603 = vpack.c.b16 %v3507, %v3503
    %v5604 = vpack.c.b16 %v3508, %v3504
    %v5605 = vpack.c.b16 %v3509, %v3505
    %v5606 = vpack.c.b16 %v3510, %v3506
    %v5607 = vpack.c.b16 %v3515, %v3511
    %v5608 = vpack.c.b16 %v3516, %v3512
    %v5609 = vpack.c.b16 %v3517, %v3513
    %v5610 = vpack.c.b16 %v3518, %v3514
    %v5611 = vpack.c.b16 %v3523, %v3519
    %v5612 = vpack.c.b16 %v3524, %v3520
    %v5613 = vpack.c.b16 %v3525, %v3521
    %v5614 = vpack.c.b16 %v3526, %v3522
    %v5615 = vpack.c.b16 %v3531, %v3527
    %v5616 = vpack.c.b16 %v3532, %v3528
    %v5617 = vpack.c.b16 %v3533, %v3529
    %v5618 = vpack.c.b16 %v3534, %v3530
    %v5619 = vpack.c.b16 %v3539, %v3535
    %v5620 = vpack.c.b16 %v3540, %v3536
    %v5621 = vpack.c.b16 %v3541, %v3537
    %v5622 = vpack.c.b16 %v3542, %v3538
    %v5623 = vpack.c.b16 %v3547, %v3543
    %v5624 = vpack.c.b16 %v3548, %v3544
    %v5625 = vpack.c.b16 %v3549, %v3545
    %v5626 = vpack.c.b16 %v3550, %v3546
    %v5627 = vpack.c.b16 %v3555, %v3551
    %v5628 = vpack.c.b16 %v3556, %v3552
    %v5629 = vpack.c.b16 %v3557, %v3553
    %v5630 = vpack.c.b16 %v3558, %v3554
    %v5631 = vpack.c.b16 %v3563, %v3559
    %v5632 = vpack.c.b16 %v3564, %v3560
    %v5633 = vpack.c.b16 %v3565, %v3561
    %v5634 = vpack.c.b16 %v3566, %v3562
    %v5635 = vpack.c.b16 %v3571, %v3567
    %v5636 = vpack.c.b16 %v3572, %v3568
    %v5637 = vpack.c.b16 %v3573, %v3569
    %v5638 = vpack.c.b16 %v3574, %v3570
    %v5639 = vpack.c.b16 %v3579, %v3575
    %v5640 = vpack.c.b16 %v3580, %v3576
    %v5641 = vpack.c.b16 %v3581, %v3577
    %v5642 = vpack.c.b16 %v3582, %v3578
    %v5643 = vpack.c.b16 %v3587, %v3583
    %v5644 = vpack.c.b16 %v3588, %v3584
    %v5645 = vpack.c.b16 %v3589, %v3585
    %v5646 = vpack.c.b16 %v3590, %v3586
    %v5647 = vpack.c.b16 %v3595, %v3591
    %v5648 = vpack.c.b16 %v3596, %v3592
    %v5649 = vpack.c.b16 %v3597, %v3593
    %v5650 = vpack.c.b16 %v3598, %v3594
    %v5651 = vpack.c.b16 %v3603, %v3599
    %v5652 = vpack.c.b16 %v3604, %v3600
    %v5653 = vpack.c.b16 %v3605, %v3601
    %v5654 = vpack.c.b16 %v3606, %v3602
    %v5655 = vpack.c.b16 %v3611, %v3607
    %v5656 = vpack.c.b16 %v3612, %v3608
    %v5657 = vpack.c.b16 %v3613, %v3609
    %v5658 = vpack.c.b16 %v3614, %v3610
    %v5659 = vpack.c.b16 %v3619, %v3615
    %v5660 = vpack.c.b16 %v3620, %v3616
    %v5661 = vpack.c.b16 %v3621, %v3617
    %v5662 = vpack.c.b16 %v3622, %v3618
    %v5663 = vpack.c.b16 %v3627, %v3623
    %v5664 = vpack.c.b16 %v3628, %v3624
    %v5665 = vpack.c.b16 %v3629, %v3625
    %v5666 = vpack.c.b16 %v3630, %v3626
    %v5667 = vpack.c.b16 %v3635, %v3631
    %v5668 = vpack.c.b16 %v3636, %v3632
    %v5669 = vpack.c.b16 %v3637, %v3633
    %v5670 = vpack.c.b16 %v3638, %v3634
    %v5671 = vpack.c.b16 %v3643, %v3639
    %v5672 = vpack.c.b16 %v3644, %v3640
    %v5673 = vpack.c.b16 %v3645, %v3641
    %v5674 = vpack.c.b16 %v3646, %v3642
    %v5675 = vpack.c.b16 %v3651, %v3647
    %v5676 = vpack.c.b16 %v3652, %v3648
    %v5677 = vpack.c.b16 %v3653, %v3649
    %v5678 = vpack.c.b16 %v3654, %v3650
    %v5679 = vpack.c.b16 %v3659, %v3655
    %v5680 = vpack.c.b16 %v3660, %v3656
    %v5681 = vpack.c.b16 %v3661, %v3657
    %v5682 = vpack.c.b16 %v3662, %v3658
    %v5683 = vpack.c.b16 %v3667, %v3663
    %v5684 = vpack.c.b16 %v3668, %v3664
    %v5685 = vpack.c.b16 %v3669, %v3665
    %v5686 = vpack.c.b16 %v3670, %v3666
    %v5687 = vpack.c.b16 %v3675, %v3671
    %v5688 = vpack.c.b16 %v3676, %v3672
    %v5689 = vpack.c.b16 %v3677, %v3673
    %v5690 = vpack.c.b16 %v3678, %v3674
    %v5691 = vpack.c.b16 %v3683, %v3679
    %v5692 = vpack.c.b16 %v3684, %v3680
    %v5693 = vpack.c.b16 %v3685, %v3681
    %v5694 = vpack.c.b16 %v3686, %v3682
    %v5695 = vpack.c.b16 %v3691, %v3687
    %v5696 = vpack.c.b16 %v3692, %v3688
    %v5697 = vpack.c.b16 %v3693, %v3689
    %v5698 = vpack.c.b16 %v3694, %v3690
    %v5699 = vpack.c.b16 %v3699, %v3695
    %v5700 = vpack.c.b16 %v3700, %v3696
    %v5701 = vpack.c.b16 %v3701, %v3697
    %v5702 = vpack.c.b16 %v3702, %v3698
    %v5703 = vpack.c.b16 %v3707, %v3703
    %v5704 = vpack.c.b16 %v3708, %v3704
    %v5705 = vpack.c.b16 %v3709, %v3705
    %v5706 = vpack.c.b16 %v3710, %v3706
    %v5707 = vpack.c.b16 %v3715, %v3711
    %v5708 = vpack.c.b16 %v3716, %v3712
    %v5709 = vpack.c.b16 %v3717, %v3713
    %v5710 = vpack.c.b16 %v3718, %v3714
    %v5711 = vpack.c.b16 %v3723, %v3719
    %v5712 = vpack.c.b16 %v3724, %v3720
    %v5713 = vpack.c.b16 %v3725, %v3721
    %v5714 = vpack.c.b16 %v3726, %v3722
    %v5715 = vpack.c.b16 %v3731, %v3727
    %v5716 = vpack.c.b16 %v3732, %v3728
    %v5717 = vpack.c.b16 %v3733, %v3729
    %v5718 = vpack.c.b16 %v3734, %v3730
    %v5719 = vpack.c.b16 %v3739, %v3735
    %v5720 = vpack.c.b16 %v3740, %v3736
    %v5721 = vpack.c.b16 %v3741, %v3737
    %v5722 = vpack.c.b16 %v3742, %v3738
    %v5723 = vpack.c.b16 %v3747, %v3743
    %v5724 = vpack.c.b16 %v3748, %v3744
    %v5725 = vpack.c.b16 %v3749, %v3745
    %v5726 = vpack.c.b16 %v3750, %v3746
    %v5727 = vpack.c.b16 %v3755, %v3751
    %v5728 = vpack.c.b16 %v3756, %v3752
    %v5729 = vpack.c.b16 %v3757, %v3753
    %v5730 = vpack.c.b16 %v3758, %v3754
    %v5731 = vpack.c.b16 %v3763, %v3759
    %v5732 = vpack.c.b16 %v3764, %v3760
    %v5733 = vpack.c.b16 %v3765, %v3761
    %v5734 = vpack.c.b16 %v3766, %v3762
    %v5735 = vpack.c.b16 %v3771, %v3767
    %v5736 = vpack.c.b16 %v3772, %v3768
    %v5737 = vpack.c.b16 %v3773, %v3769
    %v5738 = vpack.c.b16 %v3774, %v3770
    %v5739 = vpack.c.b16 %v3779, %v3775
    %v5740 = vpack.c.b16 %v3780, %v3776
    %v5741 = vpack.c.b16 %v3781, %v3777
    %v5742 = vpack.c.b16 %v3782, %v3778
    %v5743 = vpack.c.b16 %v3787, %v3783
    %v5744 = vpack.c.b16 %v3788, %v3784
    %v5745 = vpack.c.b16 %v3789, %v3785
    %v5746 = vpack.c.b16 %v3790, %v3786
    %v5747 = vpack.c.b16 %v3795, %v3791
    %v5748 = vpack.c.b16 %v3796, %v3792
    %v5749 = vpack.c.b16 %v3797, %v3793
    %v5750 = vpack.c.b16 %v3798, %v3794
    %v5751 = vpack.c.b16 %v3803, %v3799
    %v5752 = vpack.c.b16 %v3804, %v3800
    %v5753 = vpack.c.b16 %v3805, %v3801
    %v5754 = vpack.c.b16 %v3806, %v3802
    %v5755 = vpack.c.b16 %v3811, %v3807
    %v5756 = vpack.c.b16 %v3812, %v3808
    %v5757 = vpack.c.b16 %v3813, %v3809
    %v5758 = vpack.c.b16 %v3814, %v3810
    %v5759 = vpack.c.b16 %v3819, %v3815
    %v5760 = vpack.c.b16 %v3820, %v3816
    %v5761 = vpack.c.b16 %v3821, %v3817
    %v5762 = vpack.c.b16 %v3822, %v3818
    %v5763 = vpack.c.b16 %v3827, %v3823
    %v5764 = vpack.c.b16 %v3828, %v3824
    %v5765 = vpack.c.b16 %v3829, %v3825
    %v5766 = vpack.c.b16 %v3830, %v3826
    %v5767 = vpack.c.b16 %v3835, %v3831
    %v5768 = vpack.c.b16 %v3836, %v3832
    %v5769 = vpack.c.b16 %v3837, %v3833
    %v5770 = vpack.c.b16 %v3838, %v3834
    %v5771 = vpack.c.b16 %v3843, %v3839
    %v5772 = vpack.c.b16 %v3844, %v3840
    %v5773 = vpack.c.b16 %v3845, %v3841
    %v5774 = vpack.c.b16 %v3846, %v3842
    %v5775 = vpack.c.b16 %v3851, %v3847
    %v5776 = vpack.c.b16 %v3852, %v3848
    %v5777 = vpack.c.b16 %v3853, %v3849
    %v5778 = vpack.c.b16 %v3854, %v3850
    %v5779 = vpack.c.b16 %v3859, %v3855
    %v5780 = vpack.c.b16 %v3860, %v3856
    %v5781 = vpack.c.b16 %v3861, %v3857
    %v5782 = vpack.c.b16 %v3862, %v3858
    %v5783 = vpack.c.b16 %v3867, %v3863
    %v5784 = vpack.c.b16 %v3868, %v3864
    %v5785 = vpack.c.b16 %v3869, %v3865
    %v5786 = vpack.c.b16 %v3870, %v3866
    %v5787 = vpack.c.b16 %v3875, %v3871
    %v5788 = vpack.c.b16 %v3876, %v3872
    %v5789 = vpack.c.b16 %v3877, %v3873
    %v5790 = vpack.c.b16 %v3878, %v3874
    %v5791 = vpack.c.b16 %v3883, %v3879
    %v5792 = vpack.c.b16 %v3884, %v3880
    %v5793 = vpack.c.b16 %v3885, %v3881
    %v5794 = vpack.c.b16 %v3886, %v3882
    %v5795 = vpack.c.b16 %v3891, %v3887
    %v5796 = vpack.c.b16 %v3892, %v3888
    %v5797 = vpack.c.b16 %v3893, %v3889
    %v5798 = vpack.c.b16 %v3894, %v3890
    %v5799 = vpack.c.b16 %v3899, %v3895
    %v5800 = vpack.c.b16 %v3900, %v3896
    %v5801 = vpack.c.b16 %v3901, %v3897
    %v5802 = vpack.c.b16 %v3902, %v3898
    %v5803 = vpack.c.b16 %v3907, %v3903
    %v5804 = vpack.c.b16 %v3908, %v3904
    %v5805 = vpack.c.b16 %v3909, %v3905
    %v5806 = vpack.c.b16 %v3910, %v3906
    %v5807 = vpack.c.b16 %v3915, %v3911
    %v5808 = vpack.c.b16 %v3916, %v3912
    %v5809 = vpack.c.b16 %v3917, %v3913
    %v5810 = vpack.c.b16 %v3918, %v3914
    %v5811 = vpack.c.b16 %v3923, %v3919
    %v5812 = vpack.c.b16 %v3924, %v3920
    %v5813 = vpack.c.b16 %v3925, %v3921
    %v5814 = vpack.c.b16 %v3926, %v3922
    %v5815 = vpack.c.b16 %v3931, %v3927
    %v5816 = vpack.c.b16 %v3932, %v3928
    %v5817 = vpack.c.b16 %v3933, %v3929
    %v5818 = vpack.c.b16 %v3934, %v3930
    %v5819 = vpack.c.b16 %v3939, %v3935
    %v5820 = vpack.c.b16 %v3940, %v3936
    %v5821 = vpack.c.b16 %v3941, %v3937
    %v5822 = vpack.c.b16 %v3942, %v3938
    %v5823 = vpack.c.b16 %v3947, %v3943
    %v5824 = vpack.c.b16 %v3948, %v3944
    %v5825 = vpack.c.b16 %v3949, %v3945
    %v5826 = vpack.c.b16 %v3950, %v3946
    %v5827 = vpack.c.b16 %v3955, %v3951
    %v5828 = vpack.c.b16 %v3956, %v3952
    %v5829 = vpack.c.b16 %v3957, %v3953
    %v5830 = vpack.c.b16 %v3958, %v3954
    %v5831 = vpack.c.b16 %v3963, %v3959
    %v5832 = vpack.c.b16 %v3964, %v3960
    %v5833 = vpack.c.b16 %v3965, %v3961
    %v5834 = vpack.c.b16 %v3966, %v3962
    %v5835 = vpack.c.b16 %v3971, %v3967
    %v5836 = vpack.c.b16 %v3972, %v3968
    %v5837 = vpack.c.b16 %v3973, %v3969
    %v5838 = vpack.c.b16 %v3974, %v3970
    %v5839 = vpack.c.b16 %v3979, %v3975
    %v5840 = vpack.c.b16 %v3980, %v3976
    %v5841 = vpack.c.b16 %v3981, %v3977
    %v5842 = vpack.c.b16 %v3982, %v3978
    %v5843 = vpack.c.b16 %v3987, %v3983
    %v5844 = vpack.c.b16 %v3988, %v3984
    %v5845 = vpack.c.b16 %v3989, %v3985
    %v5846 = vpack.c.b16 %v3990, %v3986
    %v5847 = vpack.c.b16 %v3995, %v3991
    %v5848 = vpack.c.b16 %v3996, %v3992
    %v5849 = vpack.c.b16 %v3997, %v3993
    %v5850 = vpack.c.b16 %v3998, %v3994
    %v5851 = vpack.c.b16 %v4003, %v3999
    %v5852 = vpack.c.b16 %v4004, %v4000
    %v5853 = vpack.c.b16 %v4005, %v4001
    %v5854 = vpack.c.b16 %v4006, %v4002
    %v5855 = vpack.c.b16 %v4011, %v4007
    %v5856 = vpack.c.b16 %v4012, %v4008
    %v5857 = vpack.c.b16 %v4013, %v4009
    %v5858 = vpack.c.b16 %v4014, %v4010
    %v5859 = vpack.c.b16 %v4019, %v4015
    %v5860 = vpack.c.b16 %v4020, %v4016
    %v5861 = vpack.c.b16 %v4021, %v4017
    %v5862 = vpack.c.b16 %v4022, %v4018
    %v5863 = vpack.c.b16 %v4027, %v4023
    %v5864 = vpack.c.b16 %v4028, %v4024
    %v5865 = vpack.c.b16 %v4029, %v4025
    %v5866 = vpack.c.b16 %v4030, %v4026
    %v5867 = vpack.c.b16 %v4035, %v4031
    %v5868 = vpack.c.b16 %v4036, %v4032
    %v5869 = vpack.c.b16 %v4037, %v4033
    %v5870 = vpack.c.b16 %v4038, %v4034
    %v5871 = vpack.c.b16 %v4043, %v4039
    %v5872 = vpack.c.b16 %v4044, %v4040
    %v5873 = vpack.c.b16 %v4045, %v4041
    %v5874 = vpack.c.b16 %v4046, %v4042
    %v5875 = vpack.c.b16 %v4051, %v4047
    %v5876 = vpack.c.b16 %v4052, %v4048
    %v5877 = vpack.c.b16 %v4053, %v4049
    %v5878 = vpack.c.b16 %v4054, %v4050
    %v5879 = vpack.c.b16 %v4059, %v4055
    %v5880 = vpack.c.b16 %v4060, %v4056
    %v5881 = vpack.c.b16 %v4061, %v4057
    %v5882 = vpack.c.b16 %v4062, %v4058
    %v5883 = vpack.c.b16 %v4067, %v4063
    %v5884 = vpack.c.b16 %v4068, %v4064
    %v5885 = vpack.c.b16 %v4069, %v4065
    %v5886 = vpack.c.b16 %v4070, %v4066
    %v5887 = vpack.c.b16 %v4075, %v4071
    %v5888 = vpack.c.b16 %v4076, %v4072
    %v5889 = vpack.c.b16 %v4077, %v4073
    %v5890 = vpack.c.b16 %v4078, %v4074
    %v5891 = vpack.c.b16 %v4083, %v4079
    %v5892 = vpack.c.b16 %v4084, %v4080
    %v5893 = vpack.c.b16 %v4085, %v4081
    %v5894 = vpack.c.b16 %v4086, %v4082
    %v5895 = vpack.c.b16 %v4091, %v4087
    %v5896 = vpack.c.b16 %v4092, %v4088
    %v5897 = vpack.c.b16 %v4093, %v4089
    %v5898 = vpack.c.b16 %v4094, %v4090
    %v5899 = vpack.c.b16 %v4099, %v4095
    %v5900 = vpack.c.b16 %v4100, %v4096
    %v5901 = vpack.c.b16 %v4101, %v4097
    %v5902 = vpack.c.b16 %v4102, %v4098
    %v5903 = vpack.c.b16 %v4107, %v4103
    %v5904 = vpack.c.b16 %v4108, %v4104
    %v5905 = vpack.c.b16 %v4109, %v4105
    %v5906 = vpack.c.b16 %v4110, %v4106
    %v5907 = vpack.c.b16 %v4115, %v4111
    %v5908 = vpack.c.b16 %v4116, %v4112
    %v5909 = vpack.c.b16 %v4117, %v4113
    %v5910 = vpack.c.b16 %v4118, %v4114
    %v5911 = vpack.c.b16 %v4123, %v4119
    %v5912 = vpack.c.b16 %v4124, %v4120
    %v5913 = vpack.c.b16 %v4125, %v4121
    %v5914 = vpack.c.b16 %v4126, %v4122
    %v5915 = vpack.c.b16 %v4131, %v4127
    %v5916 = vpack.c.b16 %v4132, %v4128
    %v5917 = vpack.c.b16 %v4133, %v4129
    %v5918 = vpack.c.b16 %v4134, %v4130
    %v5919 = vpack.c.b16 %v4139, %v4135
    %v5920 = vpack.c.b16 %v4140, %v4136
    %v5921 = vpack.c.b16 %v4141, %v4137
    %v5922 = vpack.c.b16 %v4142, %v4138
    %v5923 = vpack.c.b16 %v4147, %v4143
    %v5924 = vpack.c.b16 %v4148, %v4144
    %v5925 = vpack.c.b16 %v4149, %v4145
    %v5926 = vpack.c.b16 %v4150, %v4146
    %v5927 = vpack.c.b16 %v4155, %v4151
    %v5928 = vpack.c.b16 %v4156, %v4152
    %v5929 = vpack.c.b16 %v4157, %v4153
    %v5930 = vpack.c.b16 %v4158, %v4154
    %v5931 = vpack.c.b16 %v4163, %v4159
    %v5932 = vpack.c.b16 %v4164, %v4160
    %v5933 = vpack.c.b16 %v4165, %v4161
    %v5934 = vpack.c.b16 %v4166, %v4162
    %v5935 = vpack.c.b16 %v4171, %v4167
    %v5936 = vpack.c.b16 %v4172, %v4168
    %v5937 = vpack.c.b16 %v4173, %v4169
    %v5938 = vpack.c.b16 %v4174, %v4170
    %v5939 = vpack.c.b16 %v4179, %v4175
    %v5940 = vpack.c.b16 %v4180, %v4176
    %v5941 = vpack.c.b16 %v4181, %v4177
    %v5942 = vpack.c.b16 %v4182, %v4178
    %v5943 = vpack.c.b16 %v4187, %v4183
    %v5944 = vpack.c.b16 %v4188, %v4184
    %v5945 = vpack.c.b16 %v4189, %v4185
    %v5946 = vpack.c.b16 %v4190, %v4186
    %v5947 = vpack.c.b16 %v4195, %v4191
    %v5948 = vpack.c.b16 %v4196, %v4192
    %v5949 = vpack.c.b16 %v4197, %v4193
    %v5950 = vpack.c.b16 %v4198, %v4194
    %v5951 = vpack.c.b16 %v4203, %v4199
    %v5952 = vpack.c.b16 %v4204, %v4200
    %v5953 = vpack.c.b16 %v4205, %v4201
    %v5954 = vpack.c.b16 %v4206, %v4202
    %v5955 = vpack.c.b16 %v4211, %v4207
    %v5956 = vpack.c.b16 %v4212, %v4208
    %v5957 = vpack.c.b16 %v4213, %v4209
    %v5958 = vpack.c.b16 %v4214, %v4210
    %v5959 = vpack.c.b16 %v4219, %v4215
    %v5960 = vpack.c.b16 %v4220, %v4216
    %v5961 = vpack.c.b16 %v4221, %v4217
    %v5962 = vpack.c.b16 %v4222, %v4218
    %v5963 = vpack.c.b16 %v4227, %v4223
    %v5964 = vpack.c.b16 %v4228, %v4224
    %v5965 = vpack.c.b16 %v4229, %v4225
    %v5966 = vpack.c.b16 %v4230, %v4226
    %v5967 = vpack.c.b16 %v4235, %v4231
    %v5968 = vpack.c.b16 %v4236, %v4232
    %v5969 = vpack.c.b16 %v4237, %v4233
    %v5970 = vpack.c.b16 %v4238, %v4234
    %v5971 = vpack.c.b16 %v4243, %v4239
    %v5972 = vpack.c.b16 %v4244, %v4240
    %v5973 = vpack.c.b16 %v4245, %v4241
    %v5974 = vpack.c.b16 %v4246, %v4242
    %v5975 = vpack.c.b16 %v4251, %v4247
    %v5976 = vpack.c.b16 %v4252, %v4248
    %v5977 = vpack.c.b16 %v4253, %v4249
    %v5978 = vpack.c.b16 %v4254, %v4250
    %v5979 = vpack.c.b16 %v4259, %v4255
    %v5980 = vpack.c.b16 %v4260, %v4256
    %v5981 = vpack.c.b16 %v4261, %v4257
    %v5982 = vpack.c.b16 %v4262, %v4258
    %v5983 = vpack.c.b16 %v4267, %v4263
    %v5984 = vpack.c.b16 %v4268, %v4264
    %v5985 = vpack.c.b16 %v4269, %v4265
    %v5986 = vpack.c.b16 %v4270, %v4266
    %v5987 = vpack.c.b16 %v4275, %v4271
    %v5988 = vpack.c.b16 %v4276, %v4272
    %v5989 = vpack.c.b16 %v4277, %v4273
    %v5990 = vpack.c.b16 %v4278, %v4274
    %v5991 = vpack.c.b16 %v4283, %v4279
    %v5992 = vpack.c.b16 %v4284, %v4280
    %v5993 = vpack.c.b16 %v4285, %v4281
    %v5994 = vpack.c.b16 %v4286, %v4282
    %v5995 = vpack.c.b16 %v4291, %v4287
    %v5996 = vpack.c.b16 %v4292, %v4288
    %v5997 = vpack.c.b16 %v4293, %v4289
    %v5998 = vpack.c.b16 %v4294, %v4290
    %v5999 = vpack.c.b16 %v4299, %v4295
    %v6000 = vpack.c.b16 %v4300, %v4296
    %v6001 = vpack.c.b16 %v4301, %v4297
    %v6002 = vpack.c.b16 %v4302, %v4298
    %v6003 = vpack.c.b16 %v4307, %v4303
    %v6004 = vpack.c.b16 %v4308, %v4304
    %v6005 = vpack.c.b16 %v4309, %v4305
    %v6006 = vpack.c.b16 %v4310, %v4306
    %v6007 = vpack.c.b16 %v4315, %v4311
    %v6008 = vpack.c.b16 %v4316, %v4312
    %v6009 = vpack.c.b16 %v4317, %v4313
    %v6010 = vpack.c.b16 %v4318, %v4314
    %v6011 = vpack.c.b16 %v4323, %v4319
    %v6012 = vpack.c.b16 %v4324, %v4320
    %v6013 = vpack.c.b16 %v4325, %v4321
    %v6014 = vpack.c.b16 %v4326, %v4322
    %v6015 = vpack.c.b16 %v4331, %v4327
    %v6016 = vpack.c.b16 %v4332, %v4328
    %v6017 = vpack.c.b16 %v4333, %v4329
    %v6018 = vpack.c.b16 %v4334, %v4330
    %v6019 = vpack.c.b16 %v4339, %v4335
    %v6020 = vpack.c.b16 %v4340, %v4336
    %v6021 = vpack.c.b16 %v4341, %v4337
    %v6022 = vpack.c.b16 %v4342, %v4338
    %v6023 = vpack.c.b16 %v4347, %v4343
    %v6024 = vpack.c.b16 %v4348, %v4344
    %v6025 = vpack.c.b16 %v4349, %v4345
    %v6026 = vpack.c.b16 %v4350, %v4346
    %v6027 = vpack.c.b16 %v4355, %v4351
    %v6028 = vpack.c.b16 %v4356, %v4352
    %v6029 = vpack.c.b16 %v4357, %v4353
    %v6030 = vpack.c.b16 %v4358, %v4354
    %v6031 = vpack.c.b16 %v4363, %v4359
    %v6032 = vpack.c.b16 %v4364, %v4360
    %v6033 = vpack.c.b16 %v4365, %v4361
    %v6034 = vpack.c.b16 %v4366, %v4362
    %v6035 = vpack.c.b16 %v4371, %v4367
    %v6036 = vpack.c.b16 %v4372, %v4368
    %v6037 = vpack.c.b16 %v4373, %v4369
    %v6038 = vpack.c.b16 %v4374, %v4370
    %v6039 = vpack.c.b16 %v4379, %v4375
    %v6040 = vpack.c.b16 %v4380, %v4376
    %v6041 = vpack.c.b16 %v4381, %v4377
    %v6042 = vpack.c.b16 %v4382, %v4378
    %v6043 = vpack.c.b16 %v4387, %v4383
    %v6044 = vpack.c.b16 %v4388, %v4384
    %v6045 = vpack.c.b16 %v4389, %v4385
    %v6046 = vpack.c.b16 %v4390, %v4386
    %v6047 = vpack.c.b16 %v4395, %v4391
    %v6048 = vpack.c.b16 %v4396, %v4392
    %v6049 = vpack.c.b16 %v4397, %v4393
    %v6050 = vpack.c.b16 %v4398, %v4394
    %v6051 = vpack.c.b16 %v4403, %v4399
    %v6052 = vpack.c.b16 %v4404, %v4400
    %v6053 = vpack.c.b16 %v4405, %v4401
    %v6054 = vpack.c.b16 %v4406, %v4402
    %v6055 = vpack.c.b16 %v4411, %v4407
    %v6056 = vpack.c.b16 %v4412, %v4408
    %v6057 = vpack.c.b16 %v4413, %v4409
    %v6058 = vpack.c.b16 %v4414, %v4410
    %v6059 = vpack.c.b16 %v4419, %v4415
    %v6060 = vpack.c.b16 %v4420, %v4416
    %v6061 = vpack.c.b16 %v4421, %v4417
    %v6062 = vpack.c.b16 %v4422, %v4418
    %v6063 = vpack.c.b16 %v4427, %v4423
    %v6064 = vpack.c.b16 %v4428, %v4424
    %v6065 = vpack.c.b16 %v4429, %v4425
    %v6066 = vpack.c.b16 %v4430, %v4426
    %v6067 = vpack.c.b16 %v4435, %v4431
    %v6068 = vpack.c.b16 %v4436, %v4432
    %v6069 = vpack.c.b16 %v4437, %v4433
    %v6070 = vpack.c.b16 %v4438, %v4434
    %v6071 = vpack.c.b16 %v4443, %v4439
    %v6072 = vpack.c.b16 %v4444, %v4440
    %v6073 = vpack.c.b16 %v4445, %v4441
    %v6074 = vpack.c.b16 %v4446, %v4442
    %v6075 = vpack.c.b16 %v4451, %v4447
    %v6076 = vpack.c.b16 %v4452, %v4448
    %v6077 = vpack.c.b16 %v4453, %v4449
    %v6078 = vpack.c.b16 %v4454, %v4450
    %v6079 = vpack.c.b16 %v4459, %v4455
    %v6080 = vpack.c.b16 %v4460, %v4456
    %v6081 = vpack.c.b16 %v4461, %v4457
    %v6082 = vpack.c.b16 %v4462, %v4458
    %v6083 = vpack.c.b16 %v4467, %v4463
    %v6084 = vpack.c.b16 %v4468, %v4464
    %v6085 = vpack.c.b16 %v4469, %v4465
    %v6086 = vpack.c.b16 %v4470, %v4466
    %v6087 = vpack.c.b16 %v4475, %v4471
    %v6088 = vpack.c.b16 %v4476, %v4472
    %v6089 = vpack.c.b16 %v4477, %v4473
    %v6090 = vpack.c.b16 %v4478, %v4474
    %v6091 = vpack.c.b16 %v4483, %v4479
    %v6092 = vpack.c.b16 %v4484, %v4480
    %v6093 = vpack.c.b16 %v4485, %v4481
    %v6094 = vpack.c.b16 %v4486, %v4482
    %v6095 = vpack.c.b16 %v4491, %v4487
    %v6096 = vpack.c.b16 %v4492, %v4488
    %v6097 = vpack.c.b16 %v4493, %v4489
    %v6098 = vpack.c.b16 %v4494, %v4490
    %v6099 = vpack.c.b16 %v4499, %v4495
    %v6100 = vpack.c.b16 %v4500, %v4496
    %v6101 = vpack.c.b16 %v4501, %v4497
    %v6102 = vpack.c.b16 %v4502, %v4498
    %v6103 = vpack.c.b16 %v4507, %v4503
    %v6104 = vpack.c.b16 %v4508, %v4504
    %v6105 = vpack.c.b16 %v4509, %v4505
    %v6106 = vpack.c.b16 %v4510, %v4506
    %v6107 = vpack.c.b16 %v4515, %v4511
    %v6108 = vpack.c.b16 %v4516, %v4512
    %v6109 = vpack.c.b16 %v4517, %v4513
    %v6110 = vpack.c.b16 %v4518, %v4514
    %v6111 = vpack.c.b16 %v4523, %v4519
    %v6112 = vpack.c.b16 %v4524, %v4520
    %v6113 = vpack.c.b16 %v4525, %v4521
    %v6114 = vpack.c.b16 %v4526, %v4522
    %v6115 = vpack.c.b16 %v4531, %v4527
    %v6116 = vpack.c.b16 %v4532, %v4528
    %v6117 = vpack.c.b16 %v4533, %v4529
    %v6118 = vpack.c.b16 %v4534, %v4530
    %v6119 = vpack.c.b16 %v4539, %v4535
    %v6120 = vpack.c.b16 %v4540, %v4536
    %v6121 = vpack.c.b16 %v4541, %v4537
    %v6122 = vpack.c.b16 %v4542, %v4538
    %v6123 = vpack.c.b16 %v4547, %v4543
    %v6124 = vpack.c.b16 %v4548, %v4544
    %v6125 = vpack.c.b16 %v4549, %v4545
    %v6126 = vpack.c.b16 %v4550, %v4546
    %v6127 = vpack.c.b16 %v4555, %v4551
    %v6128 = vpack.c.b16 %v4556, %v4552
    %v6129 = vpack.c.b16 %v4557, %v4553
    %v6130 = vpack.c.b16 %v4558, %v4554
    %v6131 = vpack.c.b16 %v4563, %v4559
    %v6132 = vpack.c.b16 %v4564, %v4560
    %v6133 = vpack.c.b16 %v4565, %v4561
    %v6134 = vpack.c.b16 %v4566, %v4562
    %v6135 = vpack.c.b16 %v4571, %v4567
    %v6136 = vpack.c.b16 %v4572, %v4568
    %v6137 = vpack.c.b16 %v4573, %v4569
    %v6138 = vpack.c.b16 %v4574, %v4570
    %v6139 = vpack.c.b16 %v4579, %v4575
    %v6140 = vpack.c.b16 %v4580, %v4576
    %v6141 = vpack.c.b16 %v4581, %v4577
    %v6142 = vpack.c.b16 %v4582, %v4578
    %v6143 = vpack.c.b16 %v4587, %v4583
    %v6144 = vpack.c.b16 %v4588, %v4584
    %v6145 = vpack.c.b16 %v4589, %v4585
    %v6146 = vpack.c.b16 %v4590, %v4586
    %v6147 = vpack.c.b16 %v4595, %v4591
    %v6148 = vpack.c.b16 %v4596, %v4592
    %v6149 = vpack.c.b16 %v4597, %v4593
    %v6150 = vpack.c.b16 %v4598, %v4594
    %v6151 = vpack.c.b16 %v4603, %v4599
    %v6152 = vpack.c.b16 %v4604, %v4600
    %v6153 = vpack.c.b16 %v4605, %v4601
    %v6154 = vpack.c.b16 %v4606, %v4602
    %v6155 = vpack.c.b16 %v4611, %v4607
    %v6156 = vpack.c.b16 %v4612, %v4608
    %v6157 = vpack.c.b16 %v4613, %v4609
    %v6158 = vpack.c.b16 %v4614, %v4610
    %v6159 = vpack.c.b16 %v4619, %v4615
    %v6160 = vpack.c.b16 %v4620, %v4616
    %v6161 = vpack.c.b16 %v4621, %v4617
    %v6162 = vpack.c.b16 %v4622, %v4618
    %v6163 = vpack.c.b16 %v4627, %v4623
    %v6164 = vpack.c.b16 %v4628, %v4624
    %v6165 = vpack.c.b16 %v4629, %v4625
    %v6166 = vpack.c.b16 %v4630, %v4626
    %v6167 = vpack.c.b16 %v4635, %v4631
    %v6168 = vpack.c.b16 %v4636, %v4632
    %v6169 = vpack.c.b16 %v4637, %v4633
    %v6170 = vpack.c.b16 %v4638, %v4634
    %v6171 = vpack.c.b16 %v4643, %v4639
    %v6172 = vpack.c.b16 %v4644, %v4640
    %v6173 = vpack.c.b16 %v4645, %v4641
    %v6174 = vpack.c.b16 %v4646, %v4642
    %v6175 = vpack.c.b16 %v4651, %v4647
    %v6176 = vpack.c.b16 %v4652, %v4648
    %v6177 = vpack.c.b16 %v4653, %v4649
    %v6178 = vpack.c.b16 %v4654, %v4650
    %v6179 = vpack.c.b16 %v4659, %v4655
    %v6180 = vpack.c.b16 %v4660, %v4656
    %v6181 = vpack.c.b16 %v4661, %v4657
    %v6182 = vpack.c.b16 %v4662, %v4658
    %v6183 = vpack.c.b16 %v4667, %v4663
    %v6184 = vpack.c.b16 %v4668, %v4664
    %v6185 = vpack.c.b16 %v4669, %v4665
    %v6186 = vpack.c.b16 %v4670, %v4666
    %v6187 = vpack.c.b16 %v4675, %v4671
    %v6188 = vpack.c.b16 %v4676, %v4672
    %v6189 = vpack.c.b16 %v4677, %v4673
    %v6190 = vpack.c.b16 %v4678, %v4674
    %v6191 = vpack.c.b16 %v4683, %v4679
    %v6192 = vpack.c.b16 %v4684, %v4680
    %v6193 = vpack.c.b16 %v4685, %v4681
    %v6194 = vpack.c.b16 %v4686, %v4682
    %v6195 = vpack.c.b16 %v4691, %v4687
    %v6196 = vpack.c.b16 %v4692, %v4688
    %v6197 = vpack.c.b16 %v4693, %v4689
    %v6198 = vpack.c.b16 %v4694, %v4690
    %v6199 = vpack.c.b16 %v4699, %v4695
    %v6200 = vpack.c.b16 %v4700, %v4696
    %v6201 = vpack.c.b16 %v4701, %v4697
    %v6202 = vpack.c.b16 %v4702, %v4698
    %v6203 = vpack.c.b16 %v4707, %v4703
    %v6204 = vpack.c.b16 %v4708, %v4704
    %v6205 = vpack.c.b16 %v4709, %v4705
    %v6206 = vpack.c.b16 %v4710, %v4706
    %v6207 = vpack.c.b16 %v4715, %v4711
    %v6208 = vpack.c.b16 %v4716, %v4712
    %v6209 = vpack.c.b16 %v4717, %v4713
    %v6210 = vpack.c.b16 %v4718, %v4714
    %v6211 = vpack.c.b16 %v4723, %v4719
    %v6212 = vpack.c.b16 %v4724, %v4720
    %v6213 = vpack.c.b16 %v4725, %v4721
    %v6214 = vpack.c.b16 %v4726, %v4722
    %v6215 = vpack.c.b16 %v4731, %v4727
    %v6216 = vpack.c.b16 %v4732, %v4728
    %v6217 = vpack.c.b16 %v4733, %v4729
    %v6218 = vpack.c.b16 %v4734, %v4730
    %v6219 = vpack.c.b16 %v4739, %v4735
    %v6220 = vpack.c.b16 %v4740, %v4736
    %v6221 = vpack.c.b16 %v4741, %v4737
    %v6222 = vpack.c.b16 %v4742, %v4738
    %v6223 = vpack.c.b16 %v4747, %v4743
    %v6224 = vpack.c.b16 %v4748, %v4744
    %v6225 = vpack.c.b16 %v4749, %v4745
    %v6226 = vpack.c.b16 %v4750, %v4746
    %v6227 = vpack.c.b16 %v4755, %v4751
    %v6228 = vpack.c.b16 %v4756, %v4752
    %v6229 = vpack.c.b16 %v4757, %v4753
    %v6230 = vpack.c.b16 %v4758, %v4754
    %v6231 = vpack.c.b16 %v4763, %v4759
    %v6232 = vpack.c.b16 %v4764, %v4760
    %v6233 = vpack.c.b16 %v4765, %v4761
    %v6234 = vpack.c.b16 %v4766, %v4762
    %v6235 = vpack.c.b16 %v4771, %v4767
    %v6236 = vpack.c.b16 %v4772, %v4768
    %v6237 = vpack.c.b16 %v4773, %v4769
    %v6238 = vpack.c.b16 %v4774, %v4770
    %v6239 = vpack.c.b16 %v4779, %v4775
    %v6240 = vpack.c.b16 %v4780, %v4776
    %v6241 = vpack.c.b16 %v4781, %v4777
    %v6242 = vpack.c.b16 %v4782, %v4778
    %v6243 = vpack.c.b16 %v4787, %v4783
    %v6244 = vpack.c.b16 %v4788, %v4784
    %v6245 = vpack.c.b16 %v4789, %v4785
    %v6246 = vpack.c.b16 %v4790, %v4786
    %v6247 = vpack.c.b16 %v4795, %v4791
    %v6248 = vpack.c.b16 %v4796, %v4792
    %v6249 = vpack.c.b16 %v4797, %v4793
    %v6250 = vpack.c.b16 %v4798, %v4794
    %v6251 = vpack.c.b16 %v4803, %v4799
    %v6252 = vpack.c.b16 %v4804, %v4800
    %v6253 = vpack.c.b16 %v4805, %v4801
    %v6254 = vpack.c.b16 %v4806, %v4802
    %v6255 = vpack.c.b16 %v4811, %v4807
    %v6256 = vpack.c.b16 %v4812, %v4808
    %v6257 = vpack.c.b16 %v4813, %v4809
    %v6258 = vpack.c.b16 %v4814, %v4810
    %v6259 = vpack.c.b16 %v4819, %v4815
    %v6260 = vpack.c.b16 %v4820, %v4816
    %v6261 = vpack.c.b16 %v4821, %v4817
    %v6262 = vpack.c.b16 %v4822, %v4818
    %v6263 = vpack.c.b16 %v4827, %v4823
    %v6264 = vpack.c.b16 %v4828, %v4824
    %v6265 = vpack.c.b16 %v4829, %v4825
    %v6266 = vpack.c.b16 %v4830, %v4826
    %v6267 = vpack.c.b16 %v4835, %v4831
    %v6268 = vpack.c.b16 %v4836, %v4832
    %v6269 = vpack.c.b16 %v4837, %v4833
    %v6270 = vpack.c.b16 %v4838, %v4834
    %v6271 = vpack.c.b16 %v4843, %v4839
    %v6272 = vpack.c.b16 %v4844, %v4840
    %v6273 = vpack.c.b16 %v4845, %v4841
    %v6274 = vpack.c.b16 %v4846, %v4842
    %v6275 = vpack.c.b16 %v4851, %v4847
    %v6276 = vpack.c.b16 %v4852, %v4848
    %v6277 = vpack.c.b16 %v4853, %v4849
    %v6278 = vpack.c.b16 %v4854, %v4850
    %v6279 = vpack.c.b16 %v4859, %v4855
    %v6280 = vpack.c.b16 %v4860, %v4856
    %v6281 = vpack.c.b16 %v4861, %v4857
    %v6282 = vpack.c.b16 %v4862, %v4858
    %v6283 = vpack.c.b16 %v4867, %v4863
    %v6284 = vpack.c.b16 %v4868, %v4864
    %v6285 = vpack.c.b16 %v4869, %v4865
    %v6286 = vpack.c.b16 %v4870, %v4866
    %v6287 = vpack.c.b16 %v4875, %v4871
    %v6288 = vpack.c.b16 %v4876, %v4872
    %v6289 = vpack.c.b16 %v4877, %v4873
    %v6290 = vpack.c.b16 %v4878, %v4874
    %v6291 = vpack.c.b16 %v4883, %v4879
    %v6292 = vpack.c.b16 %v4884, %v4880
    %v6293 = vpack.c.b16 %v4885, %v4881
    %v6294 = vpack.c.b16 %v4886, %v4882
    %v6295 = vpack.c.b16 %v4891, %v4887
    %v6296 = vpack.c.b16 %v4892, %v4888
    %v6297 = vpack.c.b16 %v4893, %v4889
    %v6298 = vpack.c.b16 %v4894, %v4890
    %v6299 = vpack.c.b16 %v4899, %v4895
    %v6300 = vpack.c.b16 %v4900, %v4896
    %v6301 = vpack.c.b16 %v4901, %v4897
    %v6302 = vpack.c.b16 %v4902, %v4898
    %v6303 = vpack.c.b16 %v4907, %v4903
    %v6304 = vpack.c.b16 %v4908, %v4904
    %v6305 = vpack.c.b16 %v4909, %v4905
    %v6306 = vpack.c.b16 %v4910, %v4906
    %v6307 = vpack.c.b16 %v4915, %v4911
    %v6308 = vpack.c.b16 %v4916, %v4912
    %v6309 = vpack.c.b16 %v4917, %v4913
    %v6310 = vpack.c.b16 %v4918, %v4914
    %v6311 = vpack.c.b16 %v4923, %v4919
    %v6312 = vpack.c.b16 %v4924, %v4920
    %v6313 = vpack.c.b16 %v4925, %v4921
    %v6314 = vpack.c.b16 %v4926, %v4922
    %v6315 = vpack.c.b16 %v4931, %v4927
    %v6316 = vpack.c.b16 %v4932, %v4928
    %v6317 = vpack.c.b16 %v4933, %v4929
    %v6318 = vpack.c.b16 %v4934, %v4930
    %v6319 = vpack.c.b16 %v4939, %v4935
    %v6320 = vpack.c.b16 %v4940, %v4936
    %v6321 = vpack.c.b16 %v4941, %v4937
    %v6322 = vpack.c.b16 %v4942, %v4938
    %v6323 = vpack.c.b16 %v4947, %v4943
    %v6324 = vpack.c.b16 %v4948, %v4944
    %v6325 = vpack.c.b16 %v4949, %v4945
    %v6326 = vpack.c.b16 %v4950, %v4946
    %v6327 = vpack.c.b16 %v4955, %v4951
    %v6328 = vpack.c.b16 %v4956, %v4952
    %v6329 = vpack.c.b16 %v4957, %v4953
    %v6330 = vpack.c.b16 %v4958, %v4954
    %v6331 = vpack.c.b16 %v4963, %v4959
    %v6332 = vpack.c.b16 %v4964, %v4960
    %v6333 = vpack.c.b16 %v4965, %v4961
    %v6334 = vpack.c.b16 %v4966, %v4962
    %v6335 = vpack.c.b16 %v4971, %v4967
    %v6336 = vpack.c.b16 %v4972, %v4968
    %v6337 = vpack.c.b16 %v4973, %v4969
    %v6338 = vpack.c.b16 %v4974, %v4970
    %v6339 = vpack.c.b16 %v4979, %v4975
    %v6340 = vpack.c.b16 %v4980, %v4976
    %v6341 = vpack.c.b16 %v4981, %v4977
    %v6342 = vpack.c.b16 %v4982, %v4978
    %v6343 = vpack.c.b16 %v4987, %v4983
    %v6344 = vpack.c.b16 %v4988, %v4984
    %v6345 = vpack.c.b16 %v4989, %v4985
    %v6346 = vpack.c.b16 %v4990, %v4986
    %v6347 = vpack.c.b16 %v4995, %v4991
    %v6348 = vpack.c.b16 %v4996, %v4992
    %v6349 = vpack.c.b16 %v4997, %v4993
    %v6350 = vpack.c.b16 %v4998, %v4994
    %v6351 = vpack.c.b16 %v5003, %v4999
    %v6352 = vpack.c.b16 %v5004, %v5000
    %v6353 = vpack.c.b16 %v5005, %v5001
    %v6354 = vpack.c.b16 %v5006, %v5002
    %v6355 = vpack.c.b16 %v5011, %v5007
    %v6356 = vpack.c.b16 %v5012, %v5008
    %v6357 = vpack.c.b16 %v5013, %v5009
    %v6358 = vpack.c.b16 %v5014, %v5010
    %v6359 = vpack.c.b16 %v5019, %v5015
    %v6360 = vpack.c.b16 %v5020, %v5016
    %v6361 = vpack.c.b16 %v5021, %v5017
    %v6362 = vpack.c.b16 %v5022, %v5018
    %v6363 = vpack.c.b16 %v5027, %v5023
    %v6364 = vpack.c.b16 %v5028, %v5024
    %v6365 = vpack.c.b16 %v5029, %v5025
    %v6366 = vpack.c.b16 %v5030, %v5026
    %v6367 = vpack.c.b16 %v5035, %v5031
    %v6368 = vpack.c.b16 %v5036, %v5032
    %v6369 = vpack.c.b16 %v5037, %v5033
    %v6370 = vpack.c.b16 %v5038, %v5034
    %v6371 = vpack.c.b16 %v5043, %v5039
    %v6372 = vpack.c.b16 %v5044, %v5040
    %v6373 = vpack.c.b16 %v5045, %v5041
    %v6374 = vpack.c.b16 %v5046, %v5042
    %v6375 = vpack.c.b16 %v5051, %v5047
    %v6376 = vpack.c.b16 %v5052, %v5048
    %v6377 = vpack.c.b16 %v5053, %v5049
    %v6378 = vpack.c.b16 %v5054, %v5050
    %v6379 = vpack.c.b16 %v5059, %v5055
    %v6380 = vpack.c.b16 %v5060, %v5056
    %v6381 = vpack.c.b16 %v5061, %v5057
    %v6382 = vpack.c.b16 %v5062, %v5058
    %v6383 = vpack.c.b16 %v5067, %v5063
    %v6384 = vpack.c.b16 %v5068, %v5064
    %v6385 = vpack.c.b16 %v5069, %v5065
    %v6386 = vpack.c.b16 %v5070, %v5066
    %v6387 = vpack.c.b16 %v5075, %v5071
    %v6388 = vpack.c.b16 %v5076, %v5072
    %v6389 = vpack.c.b16 %v5077, %v5073
    %v6390 = vpack.c.b16 %v5078, %v5074
    %v6391 = vpack.c.b16 %v5083, %v5079
    %v6392 = vpack.c.b16 %v5084, %v5080
    %v6393 = vpack.c.b16 %v5085, %v5081
    %v6394 = vpack.c.b16 %v5086, %v5082
    %v6395 = vpack.c.b16 %v5091, %v5087
    %v6396 = vpack.c.b16 %v5092, %v5088
    %v6397 = vpack.c.b16 %v5093, %v5089
    %v6398 = vpack.c.b16 %v5094, %v5090
    %v6399 = vpack.c.b16 %v5099, %v5095
    %v6400 = vpack.c.b16 %v5100, %v5096
    %v6401 = vpack.c.b16 %v5101, %v5097
    %v6402 = vpack.c.b16 %v5102, %v5098
    %v6403 = vpack.c.b16 %v5107, %v5103
    %v6404 = vpack.c.b16 %v5108, %v5104
    %v6405 = vpack.c.b16 %v5109, %v5105
    %v6406 = vpack.c.b16 %v5110, %v5106
    %v6407 = vpack.c.b16 %v5115, %v5111
    %v6408 = vpack.c.b16 %v5116, %v5112
    %v6409 = vpack.c.b16 %v5117, %v5113
    %v6410 = vpack.c.b16 %v5118, %v5114
    %v6411 = vpack.c.b16 %v5123, %v5119
    %v6412 = vpack.c.b16 %v5124, %v5120
    %v6413 = vpack.c.b16 %v5125, %v5121
    %v6414 = vpack.c.b16 %v5126, %v5122
    %v6415 = vpack.c.b16 %v5131, %v5127
    %v6416 = vpack.c.b16 %v5132, %v5128
    %v6417 = vpack.c.b16 %v5133, %v5129
    %v6418 = vpack.c.b16 %v5134, %v5130
    %v6419 = vpack.c.b16 %v5139, %v5135
    %v6420 = vpack.c.b16 %v5140, %v5136
    %v6421 = vpack.c.b16 %v5141, %v5137
    %v6422 = vpack.c.b16 %v5142, %v5138
    %v6423 = vpack.c.b16 %v5147, %v5143
    %v6424 = vpack.c.b16 %v5148, %v5144
    %v6425 = vpack.c.b16 %v5149, %v5145
    %v6426 = vpack.c.b16 %v5150, %v5146
    %v6427 = vpack.c.b16 %v5155, %v5151
    %v6428 = vpack.c.b16 %v5156, %v5152
    %v6429 = vpack.c.b16 %v5157, %v5153
    %v6430 = vpack.c.b16 %v5158, %v5154
    %v6431 = vpack.c.b16 %v5163, %v5159
    %v6432 = vpack.c.b16 %v5164, %v5160
    %v6433 = vpack.c.b16 %v5165, %v5161
    %v6434 = vpack.c.b16 %v5166, %v5162
    %v6435 = vpack.c.b16 %v5171, %v5167
    %v6436 = vpack.c.b16 %v5172, %v5168
    %v6437 = vpack.c.b16 %v5173, %v5169
    %v6438 = vpack.c.b16 %v5174, %v5170
    %v6439 = vpack.c.b16 %v5179, %v5175
    %v6440 = vpack.c.b16 %v5180, %v5176
    %v6441 = vpack.c.b16 %v5181, %v5177
    %v6442 = vpack.c.b16 %v5182, %v5178
    %v6443 = vpack.c.b16 %v5187, %v5183
    %v6444 = vpack.c.b16 %v5188, %v5184
    %v6445 = vpack.c.b16 %v5189, %v5185
    %v6446 = vpack.c.b16 %v5190, %v5186
    %v6447 = vpack.c.b16 %v5195, %v5191
    %v6448 = vpack.c.b16 %v5196, %v5192
    %v6449 = vpack.c.b16 %v5197, %v5193
    %v6450 = vpack.c.b16 %v5198, %v5194
    %v6451 = vpack.c.b16 %v5203, %v5199
    %v6452 = vpack.c.b16 %v5204, %v5200
    %v6453 = vpack.c.b16 %v5205, %v5201
    %v6454 = vpack.c.b16 %v5206, %v5202
    %v6455 = vpack.c.b16 %v5211, %v5207
    %v6456 = vpack.c.b16 %v5212, %v5208
    %v6457 = vpack.c.b16 %v5213, %v5209
    %v6458 = vpack.c.b16 %v5214, %v5210
    %v6459 = vpack.c.b16 %v5219, %v5215
    %v6460 = vpack.c.b16 %v5220, %v5216
    %v6461 = vpack.c.b16 %v5221, %v5217
    %v6462 = vpack.c.b16 %v5222, %v5218
    %v6463 = vpack.c.b16 %v5227, %v5223
    %v6464 = vpack.c.b16 %v5228, %v5224
    %v6465 = vpack.c.b16 %v5229, %v5225
    %v6466 = vpack.c.b16 %v5230, %v5226
    %v6467 = vpack.c.b16 %v5235, %v5231
    %v6468 = vpack.c.b16 %v5236, %v5232
    %v6469 = vpack.c.b16 %v5237, %v5233
    %v6470 = vpack.c.b16 %v5238, %v5234
    %vm7703 = vcmask 523264
    %v7705 = vsel %vm7703, %v288, 0
    %7707 = vmatprep.subr.bf16.mxu0 %v5240
    %7708 = vmatpush1.bf16.msra.mxu0 %v5239
    %7709 = vmatprep.subr.bf16.mxu0 %v5244
    %7710 = vmatpush1.bf16.msra.mxu0 %v5243
    %7711 = vmatprep.subr.bf16.mxu0 %v5248
    %7712 = vmatpush1.bf16.msra.mxu0 %v5247
    %7713 = vmatprep.subr.bf16.mxu0 %v5252
    %7714 = vmatpush1.bf16.msra.mxu0 %v5251
    %7715 = vmatprep.subr.bf16.mxu0 %v5256
    %7716 = vmatpush1.bf16.msra.mxu0 %v5255
    %7717 = vmatprep.subr.bf16.mxu0 %v5260
    %7718 = vmatpush1.bf16.msra.mxu0 %v5259
    %7719 = vmatprep.subr.bf16.mxu0 %v5264
    %7720 = vmatpush1.bf16.msra.mxu0 %v5263
    %7721 = vmatprep.subr.bf16.mxu0 %v5268
    %7722 = vmatpush1.bf16.msra.mxu0 %v5267
    %7723 = vmatprep.subr.bf16.mxu0 %v5272
    %7724 = vmatpush1.bf16.msra.mxu0 %v5271
    %7725 = vmatprep.subr.bf16.mxu0 %v5276
    %7726 = vmatpush1.bf16.msra.mxu0 %v5275
    %7727 = vmatprep.subr.bf16.mxu0 %v5280
    %7728 = vmatpush1.bf16.msra.mxu0 %v5279
    %7729 = vmatprep.subr.bf16.mxu0 %v5284
    %7730 = vmatpush1.bf16.msra.mxu0 %v5283
    %7731 = vmatprep.subr.bf16.mxu0 %v5288
    %7732 = vmatpush1.bf16.msra.mxu0 %v5287
    %7733 = vmatprep.subr.bf16.mxu0 %v5292
    %7734 = vmatpush1.bf16.msra.mxu0 %v5291
    %7735 = vmatprep.subr.bf16.mxu0 %v5296
    %7736 = vmatpush1.bf16.msra.mxu0 %v5295
    %7737 = vmatprep.subr.bf16.mxu0 %v5300
    %7738 = vmatpush1.bf16.msra.mxu0 %v5299
    %7739 = vmatprep.mubr.bf16.mxu0 %v251
    %7740 = vmatmul.mubr.bf16.gmra.mrb[0].mxu0 %v250
    %v7741 = vpop.f32.mrb[0].mxu0
    %v7742 = vadd.f32 %v1526, %v7741
    %v7743 = vpop.f32.mrb[0].mxu0
    %v7744 = vadd.f32 %v1530, %v7743
    %v7745 = vpop.f32.mrb[0].mxu0
    %v7746 = vpop.f32.mrb[0].mxu0
    %7747 = vdwg.mxu0
    %7748 = vmatprep.subr.bf16.mxu0 %v5304
    %7749 = vmatpush1.bf16.msra.mxu0 %v5303
    %7750 = vmatprep.subr.bf16.mxu0 %v5308
    %7751 = vmatpush1.bf16.msra.mxu0 %v5307
    %7752 = vmatprep.subr.bf16.mxu0 %v5312
    %7753 = vmatpush1.bf16.msra.mxu0 %v5311
    %7754 = vmatprep.subr.bf16.mxu0 %v5316
    %7755 = vmatpush1.bf16.msra.mxu0 %v5315
    %7756 = vmatprep.subr.bf16.mxu0 %v5320
    %7757 = vmatpush1.bf16.msra.mxu0 %v5319
    %7758 = vmatprep.subr.bf16.mxu0 %v5324
    %7759 = vmatpush1.bf16.msra.mxu0 %v5323
    %7760 = vmatprep.subr.bf16.mxu0 %v5328
    %7761 = vmatpush1.bf16.msra.mxu0 %v5327
    %7762 = vmatprep.subr.bf16.mxu0 %v5332
    %7763 = vmatpush1.bf16.msra.mxu0 %v5331
    %7764 = vmatprep.subr.bf16.mxu0 %v5336
    %7765 = vmatpush1.bf16.msra.mxu0 %v5335
    %7766 = vmatprep.subr.bf16.mxu0 %v5340
    %7767 = vmatpush1.bf16.msra.mxu0 %v5339
    %7768 = vmatprep.subr.bf16.mxu0 %v5344
    %7769 = vmatpush1.bf16.msra.mxu0 %v5343
    %7770 = vmatprep.subr.bf16.mxu0 %v5348
    %7771 = vmatpush1.bf16.msra.mxu0 %v5347
    %7772 = vmatprep.subr.bf16.mxu0 %v5352
    %7773 = vmatpush1.bf16.msra.mxu0 %v5351
    %7774 = vmatprep.subr.bf16.mxu0 %v5356
    %7775 = vmatpush1.bf16.msra.mxu0 %v5355
    %7776 = vmatprep.subr.bf16.mxu0 %v5360
    %7777 = vmatpush1.bf16.msra.mxu0 %v5359
    %7778 = vmatprep.subr.bf16.mxu0 %v5364
    %7779 = vmatpush1.bf16.msra.mxu0 %v5363
    %7780 = vmatprep.mubr.bf16.mxu0 %v253
    %7781 = vmatmul.mubr.bf16.gmra.mrb[0].mxu0 %v252
    %v7782 = vpop.f32.mrb[0].mxu0
    %v7783 = vadd.f32 %v7742, %v7782
    %v7784 = vpop.f32.mrb[0].mxu0
    %v7785 = vadd.f32 %v7744, %v7784
    %v7786 = vpop.f32.mrb[0].mxu0
    %v7787 = vpop.f32.mrb[0].mxu0
    %7788 = vdwg.mxu0
    %7789 = vmatprep.subr.bf16.mxu0 %v5368
    %7790 = vmatpush1.bf16.msra.mxu0 %v5367
    %7791 = vmatprep.subr.bf16.mxu0 %v5372
    %7792 = vmatpush1.bf16.msra.mxu0 %v5371
    %7793 = vmatprep.subr.bf16.mxu0 %v5376
    %7794 = vmatpush1.bf16.msra.mxu0 %v5375
    %7795 = vmatprep.subr.bf16.mxu0 %v5380
    %7796 = vmatpush1.bf16.msra.mxu0 %v5379
    %7797 = vmatprep.subr.bf16.mxu0 %v5384
    %7798 = vmatpush1.bf16.msra.mxu0 %v5383
    %7799 = vmatprep.subr.bf16.mxu0 %v5388
    %7800 = vmatpush1.bf16.msra.mxu0 %v5387
    %7801 = vmatprep.subr.bf16.mxu0 %v5392
    %7802 = vmatpush1.bf16.msra.mxu0 %v5391
    %7803 = vmatprep.subr.bf16.mxu0 %v5396
    %7804 = vmatpush1.bf16.msra.mxu0 %v5395
    %7805 = vmatprep.subr.bf16.mxu0 %v5400
    %7806 = vmatpush1.bf16.msra.mxu0 %v5399
    %7807 = vmatprep.subr.bf16.mxu0 %v5404
    %7808 = vmatpush1.bf16.msra.mxu0 %v5403
    %7809 = vmatprep.subr.bf16.mxu0 %v5408
    %7810 = vmatpush1.bf16.msra.mxu0 %v5407
    %7811 = vmatprep.subr.bf16.mxu0 %v5412
    %7812 = vmatpush1.bf16.msra.mxu0 %v5411
    %7813 = vmatprep.subr.bf16.mxu0 %v5416
    %7814 = vmatpush1.bf16.msra.mxu0 %v5415
    %7815 = vmatprep.subr.bf16.mxu0 %v5420
    %7816 = vmatpush1.bf16.msra.mxu0 %v5419
    %7817 = vmatprep.subr.bf16.mxu0 %v5424
    %7818 = vmatpush1.bf16.msra.mxu0 %v5423
    %7819 = vmatprep.subr.bf16.mxu0 %v5428
    %7820 = vmatpush1.bf16.msra.mxu0 %v5427
    %7821 = vmatprep.mubr.bf16.mxu0 %v255
    %7822 = vmatmul.mubr.bf16.gmra.mrb[0].mxu0 %v254
    %v7823 = vpop.f32.mrb[0].mxu0
    %v7824 = vadd.f32 %v7783, %v7823
    %v7825 = vpop.f32.mrb[0].mxu0
    %v7826 = vadd.f32 %v7785, %v7825
    %v7827 = vpop.f32.mrb[0].mxu0
    %v7828 = vpop.f32.mrb[0].mxu0
    %7829 = vdwg.mxu0
    %7830 = vmatprep.subr.bf16.mxu0 %v5432
    %7831 = vmatpush1.bf16.msra.mxu0 %v5431
    %7832 = vmatprep.subr.bf16.mxu0 %v5436
    %7833 = vmatpush1.bf16.msra.mxu0 %v5435
    %7834 = vmatprep.subr.bf16.mxu0 %v5440
    %7835 = vmatpush1.bf16.msra.mxu0 %v5439
    %7836 = vmatprep.subr.bf16.mxu0 %v5444
    %7837 = vmatpush1.bf16.msra.mxu0 %v5443
    %7838 = vmatprep.subr.bf16.mxu0 %v5448
    %7839 = vmatpush1.bf16.msra.mxu0 %v5447
    %7840 = vmatprep.subr.bf16.mxu0 %v5452
    %7841 = vmatpush1.bf16.msra.mxu0 %v5451
    %7842 = vmatprep.subr.bf16.mxu0 %v5456
    %7843 = vmatpush1.bf16.msra.mxu0 %v5455
    %7844 = vmatprep.subr.bf16.mxu0 %v5460
    %7845 = vmatpush1.bf16.msra.mxu0 %v5459
    %7846 = vmatprep.subr.bf16.mxu0 %v5464
    %7847 = vmatpush1.bf16.msra.mxu0 %v5463
    %7848 = vmatprep.subr.bf16.mxu0 %v5468
    %7849 = vmatpush1.bf16.msra.mxu0 %v5467
    %7850 = vmatprep.subr.bf16.mxu0 %v5472
    %7851 = vmatpush1.bf16.msra.mxu0 %v5471
    %7852 = vmatprep.subr.bf16.mxu0 %v5476
    %7853 = vmatpush1.bf16.msra.mxu0 %v5475
    %7854 = vmatprep.subr.bf16.mxu0 %v5480
    %7855 = vmatpush1.bf16.msra.mxu0 %v5479
    %7856 = vmatprep.subr.bf16.mxu0 %v5484
    %7857 = vmatpush1.bf16.msra.mxu0 %v5483
    %7858 = vmatprep.subr.bf16.mxu0 %v5488
    %7859 = vmatpush1.bf16.msra.mxu0 %v5487
    %7860 = vmatprep.subr.bf16.mxu0 %v5492
    %7861 = vmatpush1.bf16.msra.mxu0 %v5491
    %7862 = vmatprep.mubr.bf16.mxu0 %v257
    %7863 = vmatmul.mubr.bf16.gmra.mrb[0].mxu0 %v256
    %v7864 = vpop.f32.mrb[0].mxu0
    %v7865 = vadd.f32 %v7824, %v7864
    %v7866 = vpop.f32.mrb[0].mxu0
    %v7867 = vadd.f32 %v7826, %v7866
    %v7868 = vpop.f32.mrb[0].mxu0
    %v7869 = vpop.f32.mrb[0].mxu0
    %7870 = vdwg.mxu0
    %7871 = vmatprep.subr.bf16.mxu0 %v5496
    %7872 = vmatpush1.bf16.msra.mxu0 %v5495
    %7873 = vmatprep.subr.bf16.mxu0 %v5500
    %7874 = vmatpush1.bf16.msra.mxu0 %v5499
    %7875 = vmatprep.subr.bf16.mxu0 %v5504
    %7876 = vmatpush1.bf16.msra.mxu0 %v5503
    %7877 = vmatprep.subr.bf16.mxu0 %v5508
    %7878 = vmatpush1.bf16.msra.mxu0 %v5507
    %7879 = vmatprep.subr.bf16.mxu0 %v5512
    %7880 = vmatpush1.bf16.msra.mxu0 %v5511
    %7881 = vmatprep.subr.bf16.mxu0 %v5516
    %7882 = vmatpush1.bf16.msra.mxu0 %v5515
    %7883 = vmatprep.subr.bf16.mxu0 %v5520
    %7884 = vmatpush1.bf16.msra.mxu0 %v5519
    %7885 = vmatprep.subr.bf16.mxu0 %v5524
    %7886 = vmatpush1.bf16.msra.mxu0 %v5523
    %7887 = vmatprep.subr.bf16.mxu0 %v5528
    %7888 = vmatpush1.bf16.msra.mxu0 %v5527
    %7889 = vmatprep.subr.bf16.mxu0 %v5532
    %7890 = vmatpush1.bf16.msra.mxu0 %v5531
    %7891 = vmatprep.subr.bf16.mxu0 %v5536
    %7892 = vmatpush1.bf16.msra.mxu0 %v5535
    %7893 = vmatprep.subr.bf16.mxu0 %v5540
    %7894 = vmatpush1.bf16.msra.mxu0 %v5539
    %7895 = vmatprep.subr.bf16.mxu0 %v5544
    %7896 = vmatpush1.bf16.msra.mxu0 %v5543
    %7897 = vmatprep.subr.bf16.mxu0 %v5548
    %7898 = vmatpush1.bf16.msra.mxu0 %v5547
    %7899 = vmatprep.subr.bf16.mxu0 %v5552
    %7900 = vmatpush1.bf16.msra.mxu0 %v5551
    %7901 = vmatprep.subr.bf16.mxu0 %v5556
    %7902 = vmatpush1.bf16.msra.mxu0 %v5555
    %7903 = vmatprep.mubr.bf16.mxu0 %v259
    %7904 = vmatmul.mubr.bf16.gmra.mrb[0].mxu0 %v258
    %v7905 = vpop.f32.mrb[0].mxu0
    %v7906 = vadd.f32 %v7865, %v7905
    %v7907 = vpop.f32.mrb[0].mxu0
    %v7908 = vadd.f32 %v7867, %v7907
    %v7909 = vpop.f32.mrb[0].mxu0
    %v7910 = vpop.f32.mrb[0].mxu0
    %7911 = vdwg.mxu0
    %7912 = vmatprep.subr.bf16.mxu0 %v5560
    %7913 = vmatpush1.bf16.msra.mxu0 %v5559
    %7914 = vmatprep.subr.bf16.mxu0 %v5564
    %7915 = vmatpush1.bf16.msra.mxu0 %v5563
    %7916 = vmatprep.subr.bf16.mxu0 %v5568
    %7917 = vmatpush1.bf16.msra.mxu0 %v5567
    %7918 = vmatprep.subr.bf16.mxu0 %v5572
    %7919 = vmatpush1.bf16.msra.mxu0 %v5571
    %7920 = vmatprep.subr.bf16.mxu0 %v5576
    %7921 = vmatpush1.bf16.msra.mxu0 %v5575
    %7922 = vmatprep.subr.bf16.mxu0 %v5580
    %7923 = vmatpush1.bf16.msra.mxu0 %v5579
    %7924 = vmatprep.subr.bf16.mxu0 %v5584
    %7925 = vmatpush1.bf16.msra.mxu0 %v5583
    %7926 = vmatprep.subr.bf16.mxu0 %v5588
    %7927 = vmatpush1.bf16.msra.mxu0 %v5587
    %7928 = vmatprep.subr.bf16.mxu0 %v5592
    %7929 = vmatpush1.bf16.msra.mxu0 %v5591
    %7930 = vmatprep.subr.bf16.mxu0 %v5596
    %7931 = vmatpush1.bf16.msra.mxu0 %v5595
    %7932 = vmatprep.subr.bf16.mxu0 %v5600
    %7933 = vmatpush1.bf16.msra.mxu0 %v5599
    %7934 = vmatprep.subr.bf16.mxu0 %v5604
    %7935 = vmatpush1.bf16.msra.mxu0 %v5603
    %7936 = vmatprep.subr.bf16.mxu0 %v5608
    %7937 = vmatpush1.bf16.msra.mxu0 %v5607
    %7938 = vmatprep.subr.bf16.mxu0 %v5612
    %7939 = vmatpush1.bf16.msra.mxu0 %v5611
    %7940 = vmatprep.subr.bf16.mxu0 %v5616
    %7941 = vmatpush1.bf16.msra.mxu0 %v5615
    %7942 = vmatprep.subr.bf16.mxu0 %v5620
    %7943 = vmatpush1.bf16.msra.mxu0 %v5619
    %7944 = vmatprep.mubr.bf16.mxu0 %v261
    %7945 = vmatmul.mubr.bf16.gmra.mrb[0].mxu0 %v260
    %v7946 = vpop.f32.mrb[0].mxu0
    %v7947 = vadd.f32 %v7906, %v7946
    %v7948 = vpop.f32.mrb[0].mxu0
    %v7949 = vadd.f32 %v7908, %v7948
    %v7950 = vpop.f32.mrb[0].mxu0
    %v7951 = vpop.f32.mrb[0].mxu0
    %7952 = vdwg.mxu0
    %7953 = vmatprep.subr.bf16.mxu0 %v5624
    %7954 = vmatpush1.bf16.msra.mxu0 %v5623
    %7955 = vmatprep.subr.bf16.mxu0 %v5628
    %7956 = vmatpush1.bf16.msra.mxu0 %v5627
    %7957 = vmatprep.subr.bf16.mxu0 %v5632
    %7958 = vmatpush1.bf16.msra.mxu0 %v5631
    %7959 = vmatprep.subr.bf16.mxu0 %v5636
    %7960 = vmatpush1.bf16.msra.mxu0 %v5635
    %7961 = vmatprep.subr.bf16.mxu0 %v5640
    %7962 = vmatpush1.bf16.msra.mxu0 %v5639
    %7963 = vmatprep.subr.bf16.mxu0 %v5644
    %7964 = vmatpush1.bf16.msra.mxu0 %v5643
    %7965 = vmatprep.subr.bf16.mxu0 %v5648
    %7966 = vmatpush1.bf16.msra.mxu0 %v5647
    %7967 = vmatprep.subr.bf16.mxu0 %v5652
    %7968 = vmatpush1.bf16.msra.mxu0 %v5651
    %7969 = vmatprep.subr.bf16.mxu0 %v5656
    %7970 = vmatpush1.bf16.msra.mxu0 %v5655
    %7971 = vmatprep.subr.bf16.mxu0 %v5660
    %7972 = vmatpush1.bf16.msra.mxu0 %v5659
    %7973 = vmatprep.subr.bf16.mxu0 %v5664
    %7974 = vmatpush1.bf16.msra.mxu0 %v5663
    %7975 = vmatprep.subr.bf16.mxu0 %v5668
    %7976 = vmatpush1.bf16.msra.mxu0 %v5667
    %7977 = vmatprep.subr.bf16.mxu0 %v5672
    %7978 = vmatpush1.bf16.msra.mxu0 %v5671
    %7979 = vmatprep.subr.bf16.mxu0 %v5676
    %7980 = vmatpush1.bf16.msra.mxu0 %v5675
    %7981 = vmatprep.subr.bf16.mxu0 %v5680
    %7982 = vmatpush1.bf16.msra.mxu0 %v5679
    %7983 = vmatprep.subr.bf16.mxu0 %v5684
    %7984 = vmatpush1.bf16.msra.mxu0 %v5683
    %7985 = vmatprep.mubr.bf16.mxu0 %v263
    %7986 = vmatmul.mubr.bf16.gmra.mrb[0].mxu0 %v262
    %v7987 = vpop.f32.mrb[0].mxu0
    %v7988 = vadd.f32 %v7947, %v7987
    %v7989 = vpop.f32.mrb[0].mxu0
    %v7990 = vadd.f32 %v7949, %v7989
    %v7991 = vpop.f32.mrb[0].mxu0
    %v7992 = vpop.f32.mrb[0].mxu0
    %7993 = vdwg.mxu0
    %7994 = vmatprep.subr.bf16.mxu0 %v5688
    %7995 = vmatpush1.bf16.msra.mxu0 %v5687
    %7996 = vmatprep.subr.bf16.mxu0 %v5692
    %7997 = vmatpush1.bf16.msra.mxu0 %v5691
    %7998 = vmatprep.subr.bf16.mxu0 %v5696
    %7999 = vmatpush1.bf16.msra.mxu0 %v5695
    %8000 = vmatprep.subr.bf16.mxu0 %v5700
    %8001 = vmatpush1.bf16.msra.mxu0 %v5699
    %8002 = vmatprep.subr.bf16.mxu0 %v5704
    %8003 = vmatpush1.bf16.msra.mxu0 %v5703
    %8004 = vmatprep.subr.bf16.mxu0 %v5708
    %8005 = vmatpush1.bf16.msra.mxu0 %v5707
    %8006 = vmatprep.subr.bf16.mxu0 %v5712
    %8007 = vmatpush1.bf16.msra.mxu0 %v5711
    %8008 = vmatprep.subr.bf16.mxu0 %v5716
    %8009 = vmatpush1.bf16.msra.mxu0 %v5715
    %8010 = vmatprep.subr.bf16.mxu0 %v5720
    %8011 = vmatpush1.bf16.msra.mxu0 %v5719
    %8012 = vmatprep.subr.bf16.mxu0 %v5724
    %8013 = vmatpush1.bf16.msra.mxu0 %v5723
    %8014 = vmatprep.subr.bf16.mxu0 %v5728
    %8015 = vmatpush1.bf16.msra.mxu0 %v5727
    %8016 = vmatprep.subr.bf16.mxu0 %v5732
    %8017 = vmatpush1.bf16.msra.mxu0 %v5731
    %8018 = vmatprep.subr.bf16.mxu0 %v5736
    %8019 = vmatpush1.bf16.msra.mxu0 %v5735
    %8020 = vmatprep.subr.bf16.mxu0 %v5740
    %8021 = vmatpush1.bf16.msra.mxu0 %v5739
    %8022 = vmatprep.subr.bf16.mxu0 %v5744
    %8023 = vmatpush1.bf16.msra.mxu0 %v5743
    %8024 = vmatprep.subr.bf16.mxu0 %v5748
    %8025 = vmatpush1.bf16.msra.mxu0 %v5747
    %8026 = vmatprep.mubr.bf16.mxu0 %v265
    %8027 = vmatmul.mubr.bf16.gmra.mrb[0].mxu0 %v264
    %v8028 = vpop.f32.mrb[0].mxu0
    %v8029 = vadd.f32 %v7988, %v8028
    %v8030 = vpop.f32.mrb[0].mxu0
    %v8031 = vadd.f32 %v7990, %v8030
    %v8032 = vpop.f32.mrb[0].mxu0
    %v8033 = vpop.f32.mrb[0].mxu0
    %8034 = vdwg.mxu0
    %8035 = vmatprep.subr.bf16.mxu0 %v5752
    %8036 = vmatpush1.bf16.msra.mxu0 %v5751
    %8037 = vmatprep.subr.bf16.mxu0 %v5756
    %8038 = vmatpush1.bf16.msra.mxu0 %v5755
    %8039 = vmatprep.subr.bf16.mxu0 %v5760
    %8040 = vmatpush1.bf16.msra.mxu0 %v5759
    %8041 = vmatprep.subr.bf16.mxu0 %v5764
    %8042 = vmatpush1.bf16.msra.mxu0 %v5763
    %8043 = vmatprep.subr.bf16.mxu0 %v5768
    %8044 = vmatpush1.bf16.msra.mxu0 %v5767
    %8045 = vmatprep.subr.bf16.mxu0 %v5772
    %8046 = vmatpush1.bf16.msra.mxu0 %v5771
    %8047 = vmatprep.subr.bf16.mxu0 %v5776
    %8048 = vmatpush1.bf16.msra.mxu0 %v5775
    %8049 = vmatprep.subr.bf16.mxu0 %v5780
    %8050 = vmatpush1.bf16.msra.mxu0 %v5779
    %8051 = vmatprep.subr.bf16.mxu0 %v5784
    %8052 = vmatpush1.bf16.msra.mxu0 %v5783
    %8053 = vmatprep.subr.bf16.mxu0 %v5788
    %8054 = vmatpush1.bf16.msra.mxu0 %v5787
    %8055 = vmatprep.subr.bf16.mxu0 %v5792
    %8056 = vmatpush1.bf16.msra.mxu0 %v5791
    %8057 = vmatprep.subr.bf16.mxu0 %v5796
    %8058 = vmatpush1.bf16.msra.mxu0 %v5795
    %8059 = vmatprep.subr.bf16.mxu0 %v5800
    %8060 = vmatpush1.bf16.msra.mxu0 %v5799
    %8061 = vmatprep.subr.bf16.mxu0 %v5804
    %8062 = vmatpush1.bf16.msra.mxu0 %v5803
    %8063 = vmatprep.subr.bf16.mxu0 %v5808
    %8064 = vmatpush1.bf16.msra.mxu0 %v5807
    %8065 = vmatprep.subr.bf16.mxu0 %v5812
    %8066 = vmatpush1.bf16.msra.mxu0 %v5811
    %8067 = vmatprep.mubr.bf16.mxu0 %v267
    %8068 = vmatmul.mubr.bf16.gmra.mrb[0].mxu0 %v266
    %v8069 = vpop.f32.mrb[0].mxu0
    %v8070 = vadd.f32 %v8029, %v8069
    %v8071 = vpop.f32.mrb[0].mxu0
    %v8072 = vadd.f32 %v8031, %v8071
    %v8073 = vpop.f32.mrb[0].mxu0
    %v8074 = vpop.f32.mrb[0].mxu0
    %8075 = vdwg.mxu0
    %8076 = vmatprep.subr.bf16.mxu0 %v5816
    %8077 = vmatpush1.bf16.msra.mxu0 %v5815
    %8078 = vmatprep.subr.bf16.mxu0 %v5820
    %8079 = vmatpush1.bf16.msra.mxu0 %v5819
    %8080 = vmatprep.subr.bf16.mxu0 %v5824
    %8081 = vmatpush1.bf16.msra.mxu0 %v5823
    %8082 = vmatprep.subr.bf16.mxu0 %v5828
    %8083 = vmatpush1.bf16.msra.mxu0 %v5827
    %8084 = vmatprep.subr.bf16.mxu0 %v5832
    %8085 = vmatpush1.bf16.msra.mxu0 %v5831
    %8086 = vmatprep.subr.bf16.mxu0 %v5836
    %8087 = vmatpush1.bf16.msra.mxu0 %v5835
    %8088 = vmatprep.subr.bf16.mxu0 %v5840
    %8089 = vmatpush1.bf16.msra.mxu0 %v5839
    %8090 = vmatprep.subr.bf16.mxu0 %v5844
    %8091 = vmatpush1.bf16.msra.mxu0 %v5843
    %8092 = vmatprep.subr.bf16.mxu0 %v5848
    %8093 = vmatpush1.bf16.msra.mxu0 %v5847
    %8094 = vmatprep.subr.bf16.mxu0 %v5852
    %8095 = vmatpush1.bf16.msra.mxu0 %v5851
    %8096 = vmatprep.subr.bf16.mxu0 %v5856
    %8097 = vmatpush1.bf16.msra.mxu0 %v5855
    %8098 = vmatprep.subr.bf16.mxu0 %v5860
    %8099 = vmatpush1.bf16.msra.mxu0 %v5859
    %8100 = vmatprep.subr.bf16.mxu0 %v5864
    %8101 = vmatpush1.bf16.msra.mxu0 %v5863
    %8102 = vmatprep.subr.bf16.mxu0 %v5868
    %8103 = vmatpush1.bf16.msra.mxu0 %v5867
    %8104 = vmatprep.subr.bf16.mxu0 %v5872
    %8105 = vmatpush1.bf16.msra.mxu0 %v5871
    %8106 = vmatprep.subr.bf16.mxu0 %v5876
    %8107 = vmatpush1.bf16.msra.mxu0 %v5875
    %8108 = vmatprep.mubr.bf16.mxu0 %v269
    %8109 = vmatmul.mubr.bf16.gmra.mrb[0].mxu0 %v268
    %v8110 = vpop.f32.mrb[0].mxu0
    %v8111 = vadd.f32 %v8070, %v8110
    %v8112 = vpop.f32.mrb[0].mxu0
    %v8113 = vadd.f32 %v8072, %v8112
    %v8114 = vpop.f32.mrb[0].mxu0
    %v8115 = vpop.f32.mrb[0].mxu0
    %8116 = vdwg.mxu0
    %8117 = vmatprep.subr.bf16.mxu0 %v5880
    %8118 = vmatpush1.bf16.msra.mxu0 %v5879
    %8119 = vmatprep.subr.bf16.mxu0 %v5884
    %8120 = vmatpush1.bf16.msra.mxu0 %v5883
    %8121 = vmatprep.subr.bf16.mxu0 %v5888
    %8122 = vmatpush1.bf16.msra.mxu0 %v5887
    %8123 = vmatprep.subr.bf16.mxu0 %v5892
    %8124 = vmatpush1.bf16.msra.mxu0 %v5891
    %8125 = vmatprep.subr.bf16.mxu0 %v5896
    %8126 = vmatpush1.bf16.msra.mxu0 %v5895
    %8127 = vmatprep.subr.bf16.mxu0 %v5900
    %8128 = vmatpush1.bf16.msra.mxu0 %v5899
    %8129 = vmatprep.subr.bf16.mxu0 %v5904
    %8130 = vmatpush1.bf16.msra.mxu0 %v5903
    %8131 = vmatprep.subr.bf16.mxu0 %v5908
    %8132 = vmatpush1.bf16.msra.mxu0 %v5907
    %8133 = vmatprep.subr.bf16.mxu0 %v5912
    %8134 = vmatpush1.bf16.msra.mxu0 %v5911
    %8135 = vmatprep.subr.bf16.mxu0 %v5916
    %8136 = vmatpush1.bf16.msra.mxu0 %v5915
    %8137 = vmatprep.subr.bf16.mxu0 %v5920
    %8138 = vmatpush1.bf16.msra.mxu0 %v5919
    %8139 = vmatprep.subr.bf16.mxu0 %v5924
    %8140 = vmatpush1.bf16.msra.mxu0 %v5923
    %8141 = vmatprep.subr.bf16.mxu0 %v5928
    %8142 = vmatpush1.bf16.msra.mxu0 %v5927
    %8143 = vmatprep.subr.bf16.mxu0 %v5932
    %8144 = vmatpush1.bf16.msra.mxu0 %v5931
    %8145 = vmatprep.subr.bf16.mxu0 %v5936
    %8146 = vmatpush1.bf16.msra.mxu0 %v5935
    %8147 = vmatprep.subr.bf16.mxu0 %v5940
    %8148 = vmatpush1.bf16.msra.mxu0 %v5939
    %8149 = vmatprep.mubr.bf16.mxu0 %v271
    %8150 = vmatmul.mubr.bf16.gmra.mrb[0].mxu0 %v270
    %v8151 = vpop.f32.mrb[0].mxu0
    %v8152 = vadd.f32 %v8111, %v8151
    %v8153 = vpop.f32.mrb[0].mxu0
    %v8154 = vadd.f32 %v8113, %v8153
    %v8155 = vpop.f32.mrb[0].mxu0
    %v8156 = vpop.f32.mrb[0].mxu0
    %8157 = vdwg.mxu0
    %8158 = vmatprep.subr.bf16.mxu0 %v5944
    %8159 = vmatpush1.bf16.msra.mxu0 %v5943
    %8160 = vmatprep.subr.bf16.mxu0 %v5948
    %8161 = vmatpush1.bf16.msra.mxu0 %v5947
    %8162 = vmatprep.subr.bf16.mxu0 %v5952
    %8163 = vmatpush1.bf16.msra.mxu0 %v5951
    %8164 = vmatprep.subr.bf16.mxu0 %v5956
    %8165 = vmatpush1.bf16.msra.mxu0 %v5955
    %8166 = vmatprep.subr.bf16.mxu0 %v5960
    %8167 = vmatpush1.bf16.msra.mxu0 %v5959
    %8168 = vmatprep.subr.bf16.mxu0 %v5964
    %8169 = vmatpush1.bf16.msra.mxu0 %v5963
    %8170 = vmatprep.subr.bf16.mxu0 %v5968
    %8171 = vmatpush1.bf16.msra.mxu0 %v5967
    %8172 = vmatprep.subr.bf16.mxu0 %v5972
    %8173 = vmatpush1.bf16.msra.mxu0 %v5971
    %8174 = vmatprep.subr.bf16.mxu0 %v5976
    %8175 = vmatpush1.bf16.msra.mxu0 %v5975
    %8176 = vmatprep.subr.bf16.mxu0 %v5980
    %8177 = vmatpush1.bf16.msra.mxu0 %v5979
    %8178 = vmatprep.subr.bf16.mxu0 %v5984
    %8179 = vmatpush1.bf16.msra.mxu0 %v5983
    %8180 = vmatprep.subr.bf16.mxu0 %v5988
    %8181 = vmatpush1.bf16.msra.mxu0 %v5987
    %8182 = vmatprep.subr.bf16.mxu0 %v5992
    %8183 = vmatpush1.bf16.msra.mxu0 %v5991
    %8184 = vmatprep.subr.bf16.mxu0 %v5996
    %8185 = vmatpush1.bf16.msra.mxu0 %v5995
    %8186 = vmatprep.subr.bf16.mxu0 %v6000
    %8187 = vmatpush1.bf16.msra.mxu0 %v5999
    %8188 = vmatprep.subr.bf16.mxu0 %v6004
    %8189 = vmatpush1.bf16.msra.mxu0 %v6003
    %8190 = vmatprep.mubr.bf16.mxu0 %v273
    %8191 = vmatmul.mubr.bf16.gmra.mrb[0].mxu0 %v272
    %v8192 = vpop.f32.mrb[0].mxu0
    %v8193 = vadd.f32 %v8152, %v8192
    %v8194 = vpop.f32.mrb[0].mxu0
    %v8195 = vadd.f32 %v8154, %v8194
    %v8196 = vpop.f32.mrb[0].mxu0
    %v8197 = vpop.f32.mrb[0].mxu0
    %8198 = vdwg.mxu0
    %8199 = vmatprep.subr.bf16.mxu0 %v6008
    %8200 = vmatpush1.bf16.msra.mxu0 %v6007
    %8201 = vmatprep.subr.bf16.mxu0 %v6012
    %8202 = vmatpush1.bf16.msra.mxu0 %v6011
    %8203 = vmatprep.subr.bf16.mxu0 %v6016
    %8204 = vmatpush1.bf16.msra.mxu0 %v6015
    %8205 = vmatprep.subr.bf16.mxu0 %v6020
    %8206 = vmatpush1.bf16.msra.mxu0 %v6019
    %8207 = vmatprep.subr.bf16.mxu0 %v6024
    %8208 = vmatpush1.bf16.msra.mxu0 %v6023
    %8209 = vmatprep.subr.bf16.mxu0 %v6028
    %8210 = vmatpush1.bf16.msra.mxu0 %v6027
    %8211 = vmatprep.subr.bf16.mxu0 %v6032
    %8212 = vmatpush1.bf16.msra.mxu0 %v6031
    %8213 = vmatprep.subr.bf16.mxu0 %v6036
    %8214 = vmatpush1.bf16.msra.mxu0 %v6035
    %8215 = vmatprep.subr.bf16.mxu0 %v6040
    %8216 = vmatpush1.bf16.msra.mxu0 %v6039
    %8217 = vmatprep.subr.bf16.mxu0 %v6044
    %8218 = vmatpush1.bf16.msra.mxu0 %v6043
    %8219 = vmatprep.subr.bf16.mxu0 %v6048
    %8220 = vmatpush1.bf16.msra.mxu0 %v6047
    %8221 = vmatprep.subr.bf16.mxu0 %v6052
    %8222 = vmatpush1.bf16.msra.mxu0 %v6051
    %8223 = vmatprep.subr.bf16.mxu0 %v6056
    %8224 = vmatpush1.bf16.msra.mxu0 %v6055
    %8225 = vmatprep.subr.bf16.mxu0 %v6060
    %8226 = vmatpush1.bf16.msra.mxu0 %v6059
    %8227 = vmatprep.subr.bf16.mxu0 %v6064
    %8228 = vmatpush1.bf16.msra.mxu0 %v6063
    %8229 = vmatprep.subr.bf16.mxu0 %v6068
    %8230 = vmatpush1.bf16.msra.mxu0 %v6067
    %8231 = vmatprep.mubr.bf16.mxu0 %v275
    %8232 = vmatmul.mubr.bf16.gmra.mrb[0].mxu0 %v274
    %v8233 = vpop.f32.mrb[0].mxu0
    %v8234 = vadd.f32 %v8193, %v8233
    %v8235 = vpop.f32.mrb[0].mxu0
    %v8236 = vadd.f32 %v8195, %v8235
    %v8237 = vpop.f32.mrb[0].mxu0
    %v8238 = vpop.f32.mrb[0].mxu0
    %8239 = vdwg.mxu0
    %8240 = vmatprep.subr.bf16.mxu0 %v6072
    %8241 = vmatpush1.bf16.msra.mxu0 %v6071
    %8242 = vmatprep.subr.bf16.mxu0 %v6076
    %8243 = vmatpush1.bf16.msra.mxu0 %v6075
    %8244 = vmatprep.subr.bf16.mxu0 %v6080
    %8245 = vmatpush1.bf16.msra.mxu0 %v6079
    %8246 = vmatprep.subr.bf16.mxu0 %v6084
    %8247 = vmatpush1.bf16.msra.mxu0 %v6083
    %8248 = vmatprep.subr.bf16.mxu0 %v6088
    %8249 = vmatpush1.bf16.msra.mxu0 %v6087
    %8250 = vmatprep.subr.bf16.mxu0 %v6092
    %8251 = vmatpush1.bf16.msra.mxu0 %v6091
    %8252 = vmatprep.subr.bf16.mxu0 %v6096
    %8253 = vmatpush1.bf16.msra.mxu0 %v6095
    %8254 = vmatprep.subr.bf16.mxu0 %v6100
    %8255 = vmatpush1.bf16.msra.mxu0 %v6099
    %8256 = vmatprep.subr.bf16.mxu0 %v6104
    %8257 = vmatpush1.bf16.msra.mxu0 %v6103
    %8258 = vmatprep.subr.bf16.mxu0 %v6108
    %8259 = vmatpush1.bf16.msra.mxu0 %v6107
    %8260 = vmatprep.subr.bf16.mxu0 %v6112
    %8261 = vmatpush1.bf16.msra.mxu0 %v6111
    %8262 = vmatprep.subr.bf16.mxu0 %v6116
    %8263 = vmatpush1.bf16.msra.mxu0 %v6115
    %8264 = vmatprep.subr.bf16.mxu0 %v6120
    %8265 = vmatpush1.bf16.msra.mxu0 %v6119
    %8266 = vmatprep.subr.bf16.mxu0 %v6124
    %8267 = vmatpush1.bf16.msra.mxu0 %v6123
    %8268 = vmatprep.subr.bf16.mxu0 %v6128
    %8269 = vmatpush1.bf16.msra.mxu0 %v6127
    %8270 = vmatprep.subr.bf16.mxu0 %v6132
    %8271 = vmatpush1.bf16.msra.mxu0 %v6131
    %8272 = vmatprep.mubr.bf16.mxu0 %v277
    %8273 = vmatmul.mubr.bf16.gmra.mrb[0].mxu0 %v276
    %v8274 = vpop.f32.mrb[0].mxu0
    %v8275 = vadd.f32 %v8234, %v8274
    %v8276 = vpop.f32.mrb[0].mxu0
    %v8277 = vadd.f32 %v8236, %v8276
    %v8278 = vpop.f32.mrb[0].mxu0
    %v8279 = vpop.f32.mrb[0].mxu0
    %8280 = vdwg.mxu0
    %8281 = vmatprep.subr.bf16.mxu0 %v6136
    %8282 = vmatpush1.bf16.msra.mxu0 %v6135
    %8283 = vmatprep.subr.bf16.mxu0 %v6140
    %8284 = vmatpush1.bf16.msra.mxu0 %v6139
    %8285 = vmatprep.subr.bf16.mxu0 %v6144
    %8286 = vmatpush1.bf16.msra.mxu0 %v6143
    %8287 = vmatprep.subr.bf16.mxu0 %v6148
    %8288 = vmatpush1.bf16.msra.mxu0 %v6147
    %8289 = vmatprep.subr.bf16.mxu0 %v6152
    %8290 = vmatpush1.bf16.msra.mxu0 %v6151
    %8291 = vmatprep.subr.bf16.mxu0 %v6156
    %8292 = vmatpush1.bf16.msra.mxu0 %v6155
    %8293 = vmatprep.subr.bf16.mxu0 %v6160
    %8294 = vmatpush1.bf16.msra.mxu0 %v6159
    %8295 = vmatprep.subr.bf16.mxu0 %v6164
    %8296 = vmatpush1.bf16.msra.mxu0 %v6163
    %8297 = vmatprep.subr.bf16.mxu0 %v6168
    %8298 = vmatpush1.bf16.msra.mxu0 %v6167
    %8299 = vmatprep.subr.bf16.mxu0 %v6172
    %8300 = vmatpush1.bf16.msra.mxu0 %v6171
    %8301 = vmatprep.subr.bf16.mxu0 %v6176
    %8302 = vmatpush1.bf16.msra.mxu0 %v6175
    %8303 = vmatprep.subr.bf16.mxu0 %v6180
    %8304 = vmatpush1.bf16.msra.mxu0 %v6179
    %8305 = vmatprep.subr.bf16.mxu0 %v6184
    %8306 = vmatpush1.bf16.msra.mxu0 %v6183
    %8307 = vmatprep.subr.bf16.mxu0 %v6188
    %8308 = vmatpush1.bf16.msra.mxu0 %v6187
    %8309 = vmatprep.subr.bf16.mxu0 %v6192
    %8310 = vmatpush1.bf16.msra.mxu0 %v6191
    %8311 = vmatprep.subr.bf16.mxu0 %v6196
    %8312 = vmatpush1.bf16.msra.mxu0 %v6195
    %8313 = vmatprep.mubr.bf16.mxu0 %v279
    %8314 = vmatmul.mubr.bf16.gmra.mrb[0].mxu0 %v278
    %v8315 = vpop.f32.mrb[0].mxu0
    %v8316 = vadd.f32 %v8275, %v8315
    %v8317 = vpop.f32.mrb[0].mxu0
    %v8318 = vadd.f32 %v8277, %v8317
    %v8319 = vpop.f32.mrb[0].mxu0
    %v8320 = vpop.f32.mrb[0].mxu0
    %8321 = vdwg.mxu0
    %8322 = vmatprep.subr.bf16.mxu0 %v6200
    %8323 = vmatpush1.bf16.msra.mxu0 %v6199
    %8324 = vmatprep.subr.bf16.mxu0 %v6204
    %8325 = vmatpush1.bf16.msra.mxu0 %v6203
    %8326 = vmatprep.subr.bf16.mxu0 %v6208
    %8327 = vmatpush1.bf16.msra.mxu0 %v6207
    %8328 = vmatprep.subr.bf16.mxu0 %v6212
    %8329 = vmatpush1.bf16.msra.mxu0 %v6211
    %8330 = vmatprep.subr.bf16.mxu0 %v6216
    %8331 = vmatpush1.bf16.msra.mxu0 %v6215
    %8332 = vmatprep.subr.bf16.mxu0 %v6220
    %8333 = vmatpush1.bf16.msra.mxu0 %v6219
    %8334 = vmatprep.subr.bf16.mxu0 %v6224
    %8335 = vmatpush1.bf16.msra.mxu0 %v6223
    %8336 = vmatprep.subr.bf16.mxu0 %v6228
    %8337 = vmatpush1.bf16.msra.mxu0 %v6227
    %8338 = vmatprep.subr.bf16.mxu0 %v6232
    %8339 = vmatpush1.bf16.msra.mxu0 %v6231
    %8340 = vmatprep.subr.bf16.mxu0 %v6236
    %8341 = vmatpush1.bf16.msra.mxu0 %v6235
    %8342 = vmatprep.subr.bf16.mxu0 %v6240
    %8343 = vmatpush1.bf16.msra.mxu0 %v6239
    %8344 = vmatprep.subr.bf16.mxu0 %v6244
    %8345 = vmatpush1.bf16.msra.mxu0 %v6243
    %8346 = vmatprep.subr.bf16.mxu0 %v6248
    %8347 = vmatpush1.bf16.msra.mxu0 %v6247
    %8348 = vmatprep.subr.bf16.mxu0 %v6252
    %8349 = vmatpush1.bf16.msra.mxu0 %v6251
    %8350 = vmatprep.subr.bf16.mxu0 %v6256
    %8351 = vmatpush1.bf16.msra.mxu0 %v6255
    %8352 = vmatprep.subr.bf16.mxu0 %v6260
    %8353 = vmatpush1.bf16.msra.mxu0 %v6259
    %8354 = vmatprep.mubr.bf16.mxu0 %v281
    %8355 = vmatmul.mubr.bf16.gmra.mrb[0].mxu0 %v280
    %v8356 = vpop.f32.mrb[0].mxu0
    %v8357 = vadd.f32 %v8316, %v8356
    %v8358 = vpop.f32.mrb[0].mxu0
    %v8359 = vadd.f32 %v8318, %v8358
    %v8360 = vpop.f32.mrb[0].mxu0
    %v8361 = vpop.f32.mrb[0].mxu0
    %8362 = vdwg.mxu0
    %8363 = vmatprep.subr.bf16.mxu0 %v6264
    %8364 = vmatpush1.bf16.msra.mxu0 %v6263
    %8365 = vmatprep.subr.bf16.mxu0 %v6268
    %8366 = vmatpush1.bf16.msra.mxu0 %v6267
    %8367 = vmatprep.subr.bf16.mxu0 %v6272
    %8368 = vmatpush1.bf16.msra.mxu0 %v6271
    %8369 = vmatprep.subr.bf16.mxu0 %v6276
    %8370 = vmatpush1.bf16.msra.mxu0 %v6275
    %8371 = vmatprep.subr.bf16.mxu0 %v6280
    %8372 = vmatpush1.bf16.msra.mxu0 %v6279
    %8373 = vmatprep.subr.bf16.mxu0 %v6284
    %8374 = vmatpush1.bf16.msra.mxu0 %v6283
    %8375 = vmatprep.subr.bf16.mxu0 %v6288
    %8376 = vmatpush1.bf16.msra.mxu0 %v6287
    %8377 = vmatprep.subr.bf16.mxu0 %v6292
    %8378 = vmatpush1.bf16.msra.mxu0 %v6291
    %8379 = vmatprep.subr.bf16.mxu0 %v6296
    %8380 = vmatpush1.bf16.msra.mxu0 %v6295
    %8381 = vmatprep.subr.bf16.mxu0 %v6300
    %8382 = vmatpush1.bf16.msra.mxu0 %v6299
    %8383 = vmatprep.subr.bf16.mxu0 %v6304
    %8384 = vmatpush1.bf16.msra.mxu0 %v6303
    %8385 = vmatprep.subr.bf16.mxu0 %v6308
    %8386 = vmatpush1.bf16.msra.mxu0 %v6307
    %8387 = vmatprep.subr.bf16.mxu0 %v6312
    %8388 = vmatpush1.bf16.msra.mxu0 %v6311
    %8389 = vmatprep.subr.bf16.mxu0 %v6316
    %8390 = vmatpush1.bf16.msra.mxu0 %v6315
    %8391 = vmatprep.subr.bf16.mxu0 %v6320
    %8392 = vmatpush1.bf16.msra.mxu0 %v6319
    %8393 = vmatprep.subr.bf16.mxu0 %v6324
    %8394 = vmatpush1.bf16.msra.mxu0 %v6323
    %8395 = vmatprep.mubr.bf16.mxu0 %v283
    %8396 = vmatmul.mubr.bf16.gmra.mrb[0].mxu0 %v282
    %v8397 = vpop.f32.mrb[0].mxu0
    %v8398 = vadd.f32 %v8357, %v8397
    %v8399 = vpop.f32.mrb[0].mxu0
    %v8400 = vadd.f32 %v8359, %v8399
    %v8401 = vpop.f32.mrb[0].mxu0
    %v8402 = vpop.f32.mrb[0].mxu0
    %8403 = vdwg.mxu0
    %8404 = vmatprep.subr.bf16.mxu0 %v6328
    %8405 = vmatpush1.bf16.msra.mxu0 %v6327
    %8406 = vmatprep.subr.bf16.mxu0 %v6332
    %8407 = vmatpush1.bf16.msra.mxu0 %v6331
    %8408 = vmatprep.subr.bf16.mxu0 %v6336
    %8409 = vmatpush1.bf16.msra.mxu0 %v6335
    %8410 = vmatprep.subr.bf16.mxu0 %v6340
    %8411 = vmatpush1.bf16.msra.mxu0 %v6339
    %8412 = vmatprep.subr.bf16.mxu0 %v6344
    %8413 = vmatpush1.bf16.msra.mxu0 %v6343
    %8414 = vmatprep.subr.bf16.mxu0 %v6348
    %8415 = vmatpush1.bf16.msra.mxu0 %v6347
    %8416 = vmatprep.subr.bf16.mxu0 %v6352
    %8417 = vmatpush1.bf16.msra.mxu0 %v6351
    %8418 = vmatprep.subr.bf16.mxu0 %v6356
    %8419 = vmatpush1.bf16.msra.mxu0 %v6355
    %8420 = vmatprep.subr.bf16.mxu0 %v6360
    %8421 = vmatpush1.bf16.msra.mxu0 %v6359
    %8422 = vmatprep.subr.bf16.mxu0 %v6364
    %8423 = vmatpush1.bf16.msra.mxu0 %v6363
    %8424 = vmatprep.subr.bf16.mxu0 %v6368
    %8425 = vmatpush1.bf16.msra.mxu0 %v6367
    %8426 = vmatprep.subr.bf16.mxu0 %v6372
    %8427 = vmatpush1.bf16.msra.mxu0 %v6371
    %8428 = vmatprep.subr.bf16.mxu0 %v6376
    %8429 = vmatpush1.bf16.msra.mxu0 %v6375
    %8430 = vmatprep.subr.bf16.mxu0 %v6380
    %8431 = vmatpush1.bf16.msra.mxu0 %v6379
    %8432 = vmatprep.subr.bf16.mxu0 %v6384
    %8433 = vmatpush1.bf16.msra.mxu0 %v6383
    %8434 = vmatprep.subr.bf16.mxu0 %v6388
    %8435 = vmatpush1.bf16.msra.mxu0 %v6387
    %8436 = vmatprep.mubr.bf16.mxu0 %v285
    %8437 = vmatmul.mubr.bf16.gmra.mrb[0].mxu0 %v284
    %v8438 = vpop.f32.mrb[0].mxu0
    %v8439 = vadd.f32 %v8398, %v8438
    %v8440 = vpop.f32.mrb[0].mxu0
    %v8441 = vadd.f32 %v8400, %v8440
    %v8442 = vpop.f32.mrb[0].mxu0
    %v8443 = vpop.f32.mrb[0].mxu0
    %8444 = vdwg.mxu0
    %8445 = vmatprep.subr.bf16.mxu0 %v6392
    %8446 = vmatpush1.bf16.msra.mxu0 %v6391
    %8447 = vmatprep.subr.bf16.mxu0 %v6396
    %8448 = vmatpush1.bf16.msra.mxu0 %v6395
    %8449 = vmatprep.subr.bf16.mxu0 %v6400
    %8450 = vmatpush1.bf16.msra.mxu0 %v6399
    %8451 = vmatprep.subr.bf16.mxu0 %v6404
    %8452 = vmatpush1.bf16.msra.mxu0 %v6403
    %8453 = vmatprep.subr.bf16.mxu0 %v6408
    %8454 = vmatpush1.bf16.msra.mxu0 %v6407
    %8455 = vmatprep.subr.bf16.mxu0 %v6412
    %8456 = vmatpush1.bf16.msra.mxu0 %v6411
    %8457 = vmatprep.subr.bf16.mxu0 %v6416
    %8458 = vmatpush1.bf16.msra.mxu0 %v6415
    %8459 = vmatprep.subr.bf16.mxu0 %v6420
    %8460 = vmatpush1.bf16.msra.mxu0 %v6419
    %8461 = vmatprep.subr.bf16.mxu0 %v6424
    %8462 = vmatpush1.bf16.msra.mxu0 %v6423
    %8463 = vmatprep.subr.bf16.mxu0 %v6428
    %8464 = vmatpush1.bf16.msra.mxu0 %v6427
    %8465 = vmatprep.subr.bf16.mxu0 %v6432
    %8466 = vmatpush1.bf16.msra.mxu0 %v6431
    %8467 = vmatprep.subr.bf16.mxu0 %v6436
    %8468 = vmatpush1.bf16.msra.mxu0 %v6435
    %8469 = vmatprep.subr.bf16.mxu0 %v6440
    %8470 = vmatpush1.bf16.msra.mxu0 %v6439
    %8471 = vmatprep.subr.bf16.mxu0 %v6444
    %8472 = vmatpush1.bf16.msra.mxu0 %v6443
    %8473 = vmatprep.subr.bf16.mxu0 %v6448
    %8474 = vmatpush1.bf16.msra.mxu0 %v6447
    %8475 = vmatprep.subr.bf16.mxu0 %v6452
    %8476 = vmatpush1.bf16.msra.mxu0 %v6451
    %8477 = vmatprep.mubr.bf16.mxu0 %v287
    %8478 = vmatmul.mubr.bf16.gmra.mrb[0].mxu0 %v286
    %v8479 = vpop.f32.mrb[0].mxu0
    %v8480 = vadd.f32 %v8439, %v8479
    %v8481 = vpop.f32.mrb[0].mxu0
    %v8482 = vadd.f32 %v8441, %v8481
    %v8483 = vpop.f32.mrb[0].mxu0
    %v8484 = vpop.f32.mrb[0].mxu0
    %8485 = vdwg.mxu0
    %8486 = vmatprep.subr.bf16.mxu0 %v6456
    %8487 = vmatpush1.bf16.msra.mxu0 %v6455
    %8488 = vmatprep.subr.bf16.mxu0 %v6460
    %8489 = vmatpush1.bf16.msra.mxu0 %v6459
    %8490 = vmatprep.subr.bf16.mxu0 %v6464
    %8491 = vmatpush1.bf16.msra.mxu0 %v6463
    %8492 = vmatprep.subr.bf16.mxu0 %v6468
    %8493 = vmatpush1.bf16.msra.mxu0 %v6467
    %8494 = vmatprep.subr.bf16.mxu0 0
    %8495 = vmatpush1.bf16.msra.mxu0 0
    %8496 = vmatprep.subr.bf16.mxu0 0
    %8497 = vmatpush1.bf16.msra.mxu0 0
    %8498 = vmatprep.subr.bf16.mxu0 0
    %8499 = vmatpush1.bf16.msra.mxu0 0
    %8500 = vmatprep.subr.bf16.mxu0 0
    %8501 = vmatpush1.bf16.msra.mxu0 0
    %8502 = vmatprep.subr.bf16.mxu0 0
    %8503 = vmatpush1.bf16.msra.mxu0 0
    %8504 = vmatprep.subr.bf16.mxu0 0
    %8505 = vmatpush1.bf16.msra.mxu0 0
    %8506 = vmatprep.subr.bf16.mxu0 0
    %8507 = vmatpush1.bf16.msra.mxu0 0
    %8508 = vmatprep.subr.bf16.mxu0 0
    %8509 = vmatpush1.bf16.msra.mxu0 0
    %8510 = vmatprep.subr.bf16.mxu0 0
    %8511 = vmatpush1.bf16.msra.mxu0 0
    %8512 = vmatprep.subr.bf16.mxu0 0
    %8513 = vmatpush1.bf16.msra.mxu0 0
    %8514 = vmatprep.subr.bf16.mxu0 0
    %8515 = vmatpush1.bf16.msra.mxu0 0
    %8516 = vmatprep.subr.bf16.mxu0 0
    %8517 = vmatpush1.bf16.msra.mxu0 0
    %8518 = vmatprep.mubr.bf16.mxu0 0
    %8519 = vmatmul.mubr.bf16.gmra.mrb[0].mxu0 %v7705
    %v8520 = vpop.f32.mrb[0].mxu0
    %v8521 = vadd.f32 %v8480, %v8520
    %v8522 = vpop.f32.mrb[0].mxu0
    %v8523 = vadd.f32 %v8482, %v8522
    %v8524 = vpop.f32.mrb[0].mxu0
    %v8525 = vpop.f32.mrb[0].mxu0
    %8526 = vdwg.mxu0
    %8527 = vmatprep.subr.bf16.mxu0 %v5242
    %8528 = vmatpush1.bf16.msra.mxu0 %v5241
    %8529 = vmatprep.subr.bf16.mxu0 %v5246
    %8530 = vmatpush1.bf16.msra.mxu0 %v5245
    %8531 = vmatprep.subr.bf16.mxu0 %v5250
    %8532 = vmatpush1.bf16.msra.mxu0 %v5249
    %8533 = vmatprep.subr.bf16.mxu0 %v5254
    %8534 = vmatpush1.bf16.msra.mxu0 %v5253
    %8535 = vmatprep.subr.bf16.mxu0 %v5258
    %8536 = vmatpush1.bf16.msra.mxu0 %v5257
    %8537 = vmatprep.subr.bf16.mxu0 %v5262
    %8538 = vmatpush1.bf16.msra.mxu0 %v5261
    %8539 = vmatprep.subr.bf16.mxu0 %v5266
    %8540 = vmatpush1.bf16.msra.mxu0 %v5265
    %8541 = vmatprep.subr.bf16.mxu0 %v5270
    %8542 = vmatpush1.bf16.msra.mxu0 %v5269
    %8543 = vmatprep.subr.bf16.mxu0 %v5274
    %8544 = vmatpush1.bf16.msra.mxu0 %v5273
    %8545 = vmatprep.subr.bf16.mxu0 %v5278
    %8546 = vmatpush1.bf16.msra.mxu0 %v5277
    %8547 = vmatprep.subr.bf16.mxu0 %v5282
    %8548 = vmatpush1.bf16.msra.mxu0 %v5281
    %8549 = vmatprep.subr.bf16.mxu0 %v5286
    %8550 = vmatpush1.bf16.msra.mxu0 %v5285
    %8551 = vmatprep.subr.bf16.mxu0 %v5290
    %8552 = vmatpush1.bf16.msra.mxu0 %v5289
    %8553 = vmatprep.subr.bf16.mxu0 %v5294
    %8554 = vmatpush1.bf16.msra.mxu0 %v5293
    %8555 = vmatprep.subr.bf16.mxu0 %v5298
    %8556 = vmatpush1.bf16.msra.mxu0 %v5297
    %8557 = vmatprep.subr.bf16.mxu0 %v5302
    %8558 = vmatpush1.bf16.msra.mxu0 %v5301
    %8559 = vmatprep.mubr.bf16.mxu0 %v251
    %8560 = vmatmul.mubr.bf16.gmra.mrb[0].mxu0 %v250
    %v8561 = vpop.f32.mrb[0].mxu0
    %v8562 = vadd.f32 %v1534, %v8561
    %v8563 = vpop.f32.mrb[0].mxu0
    %v8564 = vadd.f32 %v1538, %v8563
    %v8565 = vpop.f32.mrb[0].mxu0
    %v8566 = vpop.f32.mrb[0].mxu0
    %8567 = vdwg.mxu0
    %8568 = vmatprep.subr.bf16.mxu0 %v5306
    %8569 = vmatpush1.bf16.msra.mxu0 %v5305
    %8570 = vmatprep.subr.bf16.mxu0 %v5310
    %8571 = vmatpush1.bf16.msra.mxu0 %v5309
    %8572 = vmatprep.subr.bf16.mxu0 %v5314
    %8573 = vmatpush1.bf16.msra.mxu0 %v5313
    %8574 = vmatprep.subr.bf16.mxu0 %v5318
    %8575 = vmatpush1.bf16.msra.mxu0 %v5317
    %8576 = vmatprep.subr.bf16.mxu0 %v5322
    %8577 = vmatpush1.bf16.msra.mxu0 %v5321
    %8578 = vmatprep.subr.bf16.mxu0 %v5326
    %8579 = vmatpush1.bf16.msra.mxu0 %v5325
    %8580 = vmatprep.subr.bf16.mxu0 %v5330
    %8581 = vmatpush1.bf16.msra.mxu0 %v5329
    %8582 = vmatprep.subr.bf16.mxu0 %v5334
    %8583 = vmatpush1.bf16.msra.mxu0 %v5333
    %8584 = vmatprep.subr.bf16.mxu0 %v5338
    %8585 = vmatpush1.bf16.msra.mxu0 %v5337
    %8586 = vmatprep.subr.bf16.mxu0 %v5342
    %8587 = vmatpush1.bf16.msra.mxu0 %v5341
    %8588 = vmatprep.subr.bf16.mxu0 %v5346
    %8589 = vmatpush1.bf16.msra.mxu0 %v5345
    %8590 = vmatprep.subr.bf16.mxu0 %v5350
    %8591 = vmatpush1.bf16.msra.mxu0 %v5349
    %8592 = vmatprep.subr.bf16.mxu0 %v5354
    %8593 = vmatpush1.bf16.msra.mxu0 %v5353
    %8594 = vmatprep.subr.bf16.mxu0 %v5358
    %8595 = vmatpush1.bf16.msra.mxu0 %v5357
    %8596 = vmatprep.subr.bf16.mxu0 %v5362
    %8597 = vmatpush1.bf16.msra.mxu0 %v5361
    %8598 = vmatprep.subr.bf16.mxu0 %v5366
    %8599 = vmatpush1.bf16.msra.mxu0 %v5365
    %8600 = vmatprep.mubr.bf16.mxu0 %v253
    %8601 = vmatmul.mubr.bf16.gmra.mrb[0].mxu0 %v252
    %v8602 = vpop.f32.mrb[0].mxu0
    %v8603 = vadd.f32 %v8562, %v8602
    %v8604 = vpop.f32.mrb[0].mxu0
    %v8605 = vadd.f32 %v8564, %v8604
    %v8606 = vpop.f32.mrb[0].mxu0
    %v8607 = vpop.f32.mrb[0].mxu0
    %8608 = vdwg.mxu0
    %8609 = vmatprep.subr.bf16.mxu0 %v5370
    %8610 = vmatpush1.bf16.msra.mxu0 %v5369
    %8611 = vmatprep.subr.bf16.mxu0 %v5374
    %8612 = vmatpush1.bf16.msra.mxu0 %v5373
    %8613 = vmatprep.subr.bf16.mxu0 %v5378
    %8614 = vmatpush1.bf16.msra.mxu0 %v5377
    %8615 = vmatprep.subr.bf16.mxu0 %v5382
    %8616 = vmatpush1.bf16.msra.mxu0 %v5381
    %8617 = vmatprep.subr.bf16.mxu0 %v5386
    %8618 = vmatpush1.bf16.msra.mxu0 %v5385
    %8619 = vmatprep.subr.bf16.mxu0 %v5390
    %8620 = vmatpush1.bf16.msra.mxu0 %v5389
    %8621 = vmatprep.subr.bf16.mxu0 %v5394
    %8622 = vmatpush1.bf16.msra.mxu0 %v5393
    %8623 = vmatprep.subr.bf16.mxu0 %v5398
    %8624 = vmatpush1.bf16.msra.mxu0 %v5397
    %8625 = vmatprep.subr.bf16.mxu0 %v5402
    %8626 = vmatpush1.bf16.msra.mxu0 %v5401
    %8627 = vmatprep.subr.bf16.mxu0 %v5406
    %8628 = vmatpush1.bf16.msra.mxu0 %v5405
    %8629 = vmatprep.subr.bf16.mxu0 %v5410
    %8630 = vmatpush1.bf16.msra.mxu0 %v5409
    %8631 = vmatprep.subr.bf16.mxu0 %v5414
    %8632 = vmatpush1.bf16.msra.mxu0 %v5413
    %8633 = vmatprep.subr.bf16.mxu0 %v5418
    %8634 = vmatpush1.bf16.msra.mxu0 %v5417
    %8635 = vmatprep.subr.bf16.mxu0 %v5422
    %8636 = vmatpush1.bf16.msra.mxu0 %v5421
    %8637 = vmatprep.subr.bf16.mxu0 %v5426
    %8638 = vmatpush1.bf16.msra.mxu0 %v5425
    %8639 = vmatprep.subr.bf16.mxu0 %v5430
    %8640 = vmatpush1.bf16.msra.mxu0 %v5429
    %8641 = vmatprep.mubr.bf16.mxu0 %v255
    %8642 = vmatmul.mubr.bf16.gmra.mrb[0].mxu0 %v254
    %v8643 = vpop.f32.mrb[0].mxu0
    %v8644 = vadd.f32 %v8603, %v8643
    %v8645 = vpop.f32.mrb[0].mxu0
    %v8646 = vadd.f32 %v8605, %v8645
    %v8647 = vpop.f32.mrb[0].mxu0
    %v8648 = vpop.f32.mrb[0].mxu0
    %8649 = vdwg.mxu0
    %8650 = vmatprep.subr.bf16.mxu0 %v5434
    %8651 = vmatpush1.bf16.msra.mxu0 %v5433
    %8652 = vmatprep.subr.bf16.mxu0 %v5438
    %8653 = vmatpush1.bf16.msra.mxu0 %v5437
    %8654 = vmatprep.subr.bf16.mxu0 %v5442
    %8655 = vmatpush1.bf16.msra.mxu0 %v5441
    %8656 = vmatprep.subr.bf16.mxu0 %v5446
    %8657 = vmatpush1.bf16.msra.mxu0 %v5445
    %8658 = vmatprep.subr.bf16.mxu0 %v5450
    %8659 = vmatpush1.bf16.msra.mxu0 %v5449
    %8660 = vmatprep.subr.bf16.mxu0 %v5454
    %8661 = vmatpush1.bf16.msra.mxu0 %v5453
    %8662 = vmatprep.subr.bf16.mxu0 %v5458
    %8663 = vmatpush1.bf16.msra.mxu0 %v5457
    %8664 = vmatprep.subr.bf16.mxu0 %v5462
    %8665 = vmatpush1.bf16.msra.mxu0 %v5461
    %8666 = vmatprep.subr.bf16.mxu0 %v5466
    %8667 = vmatpush1.bf16.msra.mxu0 %v5465
    %8668 = vmatprep.subr.bf16.mxu0 %v5470
    %8669 = vmatpush1.bf16.msra.mxu0 %v5469
    %8670 = vmatprep.subr.bf16.mxu0 %v5474
    %8671 = vmatpush1.bf16.msra.mxu0 %v5473
    %8672 = vmatprep.subr.bf16.mxu0 %v5478
    %8673 = vmatpush1.bf16.msra.mxu0 %v5477
    %8674 = vmatprep.subr.bf16.mxu0 %v5482
    %8675 = vmatpush1.bf16.msra.mxu0 %v5481
    %8676 = vmatprep.subr.bf16.mxu0 %v5486
    %8677 = vmatpush1.bf16.msra.mxu0 %v5485
    %8678 = vmatprep.subr.bf16.mxu0 %v5490
    %8679 = vmatpush1.bf16.msra.mxu0 %v5489
    %8680 = vmatprep.subr.bf16.mxu0 %v5494
    %8681 = vmatpush1.bf16.msra.mxu0 %v5493
    %8682 = vmatprep.mubr.bf16.mxu0 %v257
    %8683 = vmatmul.mubr.bf16.gmra.mrb[0].mxu0 %v256
    %v8684 = vpop.f32.mrb[0].mxu0
    %v8685 = vadd.f32 %v8644, %v8684
    %v8686 = vpop.f32.mrb[0].mxu0
    %v8687 = vadd.f32 %v8646, %v8686
    %v8688 = vpop.f32.mrb[0].mxu0
    %v8689 = vpop.f32.mrb[0].mxu0
    %8690 = vdwg.mxu0
    %8691 = vmatprep.subr.bf16.mxu0 %v5498
    %8692 = vmatpush1.bf16.msra.mxu0 %v5497
    %8693 = vmatprep.subr.bf16.mxu0 %v5502
    %8694 = vmatpush1.bf16.msra.mxu0 %v5501
    %8695 = vmatprep.subr.bf16.mxu0 %v5506
    %8696 = vmatpush1.bf16.msra.mxu0 %v5505
    %8697 = vmatprep.subr.bf16.mxu0 %v5510
    %8698 = vmatpush1.bf16.msra.mxu0 %v5509
    %8699 = vmatprep.subr.bf16.mxu0 %v5514
    %8700 = vmatpush1.bf16.msra.mxu0 %v5513
    %8701 = vmatprep.subr.bf16.mxu0 %v5518
    %8702 = vmatpush1.bf16.msra.mxu0 %v5517
    %8703 = vmatprep.subr.bf16.mxu0 %v5522
    %8704 = vmatpush1.bf16.msra.mxu0 %v5521
    %8705 = vmatprep.subr.bf16.mxu0 %v5526
    %8706 = vmatpush1.bf16.msra.mxu0 %v5525
    %8707 = vmatprep.subr.bf16.mxu0 %v5530
    %8708 = vmatpush1.bf16.msra.mxu0 %v5529
    %8709 = vmatprep.subr.bf16.mxu0 %v5534
    %8710 = vmatpush1.bf16.msra.mxu0 %v5533
    %8711 = vmatprep.subr.bf16.mxu0 %v5538
    %8712 = vmatpush1.bf16.msra.mxu0 %v5537
    %8713 = vmatprep.subr.bf16.mxu0 %v5542
    %8714 = vmatpush1.bf16.msra.mxu0 %v5541
    %8715 = vmatprep.subr.bf16.mxu0 %v5546
    %8716 = vmatpush1.bf16.msra.mxu0 %v5545
    %8717 = vmatprep.subr.bf16.mxu0 %v5550
    %8718 = vmatpush1.bf16.msra.mxu0 %v5549
    %8719 = vmatprep.subr.bf16.mxu0 %v5554
    %8720 = vmatpush1.bf16.msra.mxu0 %v5553
    %8721 = vmatprep.subr.bf16.mxu0 %v5558
    %8722 = vmatpush1.bf16.msra.mxu0 %v5557
    %8723 = vmatprep.mubr.bf16.mxu0 %v259
    %8724 = vmatmul.mubr.bf16.gmra.mrb[0].mxu0 %v258
    %v8725 = vpop.f32.mrb[0].mxu0
    %v8726 = vadd.f32 %v8685, %v8725
    %v8727 = vpop.f32.mrb[0].mxu0
    %v8728 = vadd.f32 %v8687, %v8727
    %v8729 = vpop.f32.mrb[0].mxu0
    %v8730 = vpop.f32.mrb[0].mxu0
    %8731 = vdwg.mxu0
    %8732 = vmatprep.subr.bf16.mxu0 %v5562
    %8733 = vmatpush1.bf16.msra.mxu0 %v5561
    %8734 = vmatprep.subr.bf16.mxu0 %v5566
    %8735 = vmatpush1.bf16.msra.mxu0 %v5565
    %8736 = vmatprep.subr.bf16.mxu0 %v5570
    %8737 = vmatpush1.bf16.msra.mxu0 %v5569
    %8738 = vmatprep.subr.bf16.mxu0 %v5574
    %8739 = vmatpush1.bf16.msra.mxu0 %v5573
    %8740 = vmatprep.subr.bf16.mxu0 %v5578
    %8741 = vmatpush1.bf16.msra.mxu0 %v5577
    %8742 = vmatprep.subr.bf16.mxu0 %v5582
    %8743 = vmatpush1.bf16.msra.mxu0 %v5581
    %8744 = vmatprep.subr.bf16.mxu0 %v5586
    %8745 = vmatpush1.bf16.msra.mxu0 %v5585
    %8746 = vmatprep.subr.bf16.mxu0 %v5590
    %8747 = vmatpush1.bf16.msra.mxu0 %v5589
    %8748 = vmatprep.subr.bf16.mxu0 %v5594
    %8749 = vmatpush1.bf16.msra.mxu0 %v5593
    %8750 = vmatprep.subr.bf16.mxu0 %v5598
    %8751 = vmatpush1.bf16.msra.mxu0 %v5597
    %8752 = vmatprep.subr.bf16.mxu0 %v5602
    %8753 = vmatpush1.bf16.msra.mxu0 %v5601
    %8754 = vmatprep.subr.bf16.mxu0 %v5606
    %8755 = vmatpush1.bf16.msra.mxu0 %v5605
    %8756 = vmatprep.subr.bf16.mxu0 %v5610
    %8757 = vmatpush1.bf16.msra.mxu0 %v5609
    %8758 = vmatprep.subr.bf16.mxu0 %v5614
    %8759 = vmatpush1.bf16.msra.mxu0 %v5613
    %8760 = vmatprep.subr.bf16.mxu0 %v5618
    %8761 = vmatpush1.bf16.msra.mxu0 %v5617
    %8762 = vmatprep.subr.bf16.mxu0 %v5622
    %8763 = vmatpush1.bf16.msra.mxu0 %v5621
    %8764 = vmatprep.mubr.bf16.mxu0 %v261
    %8765 = vmatmul.mubr.bf16.gmra.mrb[0].mxu0 %v260
    %v8766 = vpop.f32.mrb[0].mxu0
    %v8767 = vadd.f32 %v8726, %v8766
    %v8768 = vpop.f32.mrb[0].mxu0
    %v8769 = vadd.f32 %v8728, %v8768
    %v8770 = vpop.f32.mrb[0].mxu0
    %v8771 = vpop.f32.mrb[0].mxu0
    %8772 = vdwg.mxu0
    %8773 = vmatprep.subr.bf16.mxu0 %v5626
    %8774 = vmatpush1.bf16.msra.mxu0 %v5625
    %8775 = vmatprep.subr.bf16.mxu0 %v5630
    %8776 = vmatpush1.bf16.msra.mxu0 %v5629
    %8777 = vmatprep.subr.bf16.mxu0 %v5634
    %8778 = vmatpush1.bf16.msra.mxu0 %v5633
    %8779 = vmatprep.subr.bf16.mxu0 %v5638
    %8780 = vmatpush1.bf16.msra.mxu0 %v5637
    %8781 = vmatprep.subr.bf16.mxu0 %v5642
    %8782 = vmatpush1.bf16.msra.mxu0 %v5641
    %8783 = vmatprep.subr.bf16.mxu0 %v5646
    %8784 = vmatpush1.bf16.msra.mxu0 %v5645
    %8785 = vmatprep.subr.bf16.mxu0 %v5650
    %8786 = vmatpush1.bf16.msra.mxu0 %v5649
    %8787 = vmatprep.subr.bf16.mxu0 %v5654
    %8788 = vmatpush1.bf16.msra.mxu0 %v5653
    %8789 = vmatprep.subr.bf16.mxu0 %v5658
    %8790 = vmatpush1.bf16.msra.mxu0 %v5657
    %8791 = vmatprep.subr.bf16.mxu0 %v5662
    %8792 = vmatpush1.bf16.msra.mxu0 %v5661
    %8793 = vmatprep.subr.bf16.mxu0 %v5666
    %8794 = vmatpush1.bf16.msra.mxu0 %v5665
    %8795 = vmatprep.subr.bf16.mxu0 %v5670
    %8796 = vmatpush1.bf16.msra.mxu0 %v5669
    %8797 = vmatprep.subr.bf16.mxu0 %v5674
    %8798 = vmatpush1.bf16.msra.mxu0 %v5673
    %8799 = vmatprep.subr.bf16.mxu0 %v5678
    %8800 = vmatpush1.bf16.msra.mxu0 %v5677
    %8801 = vmatprep.subr.bf16.mxu0 %v5682
    %8802 = vmatpush1.bf16.msra.mxu0 %v5681
    %8803 = vmatprep.subr.bf16.mxu0 %v5686
    %8804 = vmatpush1.bf16.msra.mxu0 %v5685
    %8805 = vmatprep.mubr.bf16.mxu0 %v263
    %8806 = vmatmul.mubr.bf16.gmra.mrb[0].mxu0 %v262
    %v8807 = vpop.f32.mrb[0].mxu0
    %v8808 = vadd.f32 %v8767, %v8807
    %v8809 = vpop.f32.mrb[0].mxu0
    %v8810 = vadd.f32 %v8769, %v8809
    %v8811 = vpop.f32.mrb[0].mxu0
    %v8812 = vpop.f32.mrb[0].mxu0
    %8813 = vdwg.mxu0
    %8814 = vmatprep.subr.bf16.mxu0 %v5690
    %8815 = vmatpush1.bf16.msra.mxu0 %v5689
    %8816 = vmatprep.subr.bf16.mxu0 %v5694
    %8817 = vmatpush1.bf16.msra.mxu0 %v5693
    %8818 = vmatprep.subr.bf16.mxu0 %v5698
    %8819 = vmatpush1.bf16.msra.mxu0 %v5697
    %8820 = vmatprep.subr.bf16.mxu0 %v5702
    %8821 = vmatpush1.bf16.msra.mxu0 %v5701
    %8822 = vmatprep.subr.bf16.mxu0 %v5706
    %8823 = vmatpush1.bf16.msra.mxu0 %v5705
    %8824 = vmatprep.subr.bf16.mxu0 %v5710
    %8825 = vmatpush1.bf16.msra.mxu0 %v5709
    %8826 = vmatprep.subr.bf16.mxu0 %v5714
    %8827 = vmatpush1.bf16.msra.mxu0 %v5713
    %8828 = vmatprep.subr.bf16.mxu0 %v5718
    %8829 = vmatpush1.bf16.msra.mxu0 %v5717
    %8830 = vmatprep.subr.bf16.mxu0 %v5722
    %8831 = vmatpush1.bf16.msra.mxu0 %v5721
    %8832 = vmatprep.subr.bf16.mxu0 %v5726
    %8833 = vmatpush1.bf16.msra.mxu0 %v5725
    %8834 = vmatprep.subr.bf16.mxu0 %v5730
    %8835 = vmatpush1.bf16.msra.mxu0 %v5729
    %8836 = vmatprep.subr.bf16.mxu0 %v5734
    %8837 = vmatpush1.bf16.msra.mxu0 %v5733
    %8838 = vmatprep.subr.bf16.mxu0 %v5738
    %8839 = vmatpush1.bf16.msra.mxu0 %v5737
    %8840 = vmatprep.subr.bf16.mxu0 %v5742
    %8841 = vmatpush1.bf16.msra.mxu0 %v5741
    %8842 = vmatprep.subr.bf16.mxu0 %v5746
    %8843 = vmatpush1.bf16.msra.mxu0 %v5745
    %8844 = vmatprep.subr.bf16.mxu0 %v5750
    %8845 = vmatpush1.bf16.msra.mxu0 %v5749
    %8846 = vmatprep.mubr.bf16.mxu0 %v265
    %8847 = vmatmul.mubr.bf16.gmra.mrb[0].mxu0 %v264
    %v8848 = vpop.f32.mrb[0].mxu0
    %v8849 = vadd.f32 %v8808, %v8848
    %v8850 = vpop.f32.mrb[0].mxu0
    %v8851 = vadd.f32 %v8810, %v8850
    %v8852 = vpop.f32.mrb[0].mxu0
    %v8853 = vpop.f32.mrb[0].mxu0
    %8854 = vdwg.mxu0
    %8855 = vmatprep.subr.bf16.mxu0 %v5754
    %8856 = vmatpush1.bf16.msra.mxu0 %v5753
    %8857 = vmatprep.subr.bf16.mxu0 %v5758
    %8858 = vmatpush1.bf16.msra.mxu0 %v5757
    %8859 = vmatprep.subr.bf16.mxu0 %v5762
    %8860 = vmatpush1.bf16.msra.mxu0 %v5761
    %8861 = vmatprep.subr.bf16.mxu0 %v5766
    %8862 = vmatpush1.bf16.msra.mxu0 %v5765
    %8863 = vmatprep.subr.bf16.mxu0 %v5770
    %8864 = vmatpush1.bf16.msra.mxu0 %v5769
    %8865 = vmatprep.subr.bf16.mxu0 %v5774
    %8866 = vmatpush1.bf16.msra.mxu0 %v5773
    %8867 = vmatprep.subr.bf16.mxu0 %v5778
    %8868 = vmatpush1.bf16.msra.mxu0 %v5777
    %8869 = vmatprep.subr.bf16.mxu0 %v5782
    %8870 = vmatpush1.bf16.msra.mxu0 %v5781
    %8871 = vmatprep.subr.bf16.mxu0 %v5786
    %8872 = vmatpush1.bf16.msra.mxu0 %v5785
    %8873 = vmatprep.subr.bf16.mxu0 %v5790
    %8874 = vmatpush1.bf16.msra.mxu0 %v5789
    %8875 = vmatprep.subr.bf16.mxu0 %v5794
    %8876 = vmatpush1.bf16.msra.mxu0 %v5793
    %8877 = vmatprep.subr.bf16.mxu0 %v5798
    %8878 = vmatpush1.bf16.msra.mxu0 %v5797
    %8879 = vmatprep.subr.bf16.mxu0 %v5802
    %8880 = vmatpush1.bf16.msra.mxu0 %v5801
    %8881 = vmatprep.subr.bf16.mxu0 %v5806
    %8882 = vmatpush1.bf16.msra.mxu0 %v5805
    %8883 = vmatprep.subr.bf16.mxu0 %v5810
    %8884 = vmatpush1.bf16.msra.mxu0 %v5809
    %8885 = vmatprep.subr.bf16.mxu0 %v5814
    %8886 = vmatpush1.bf16.msra.mxu0 %v5813
    %8887 = vmatprep.mubr.bf16.mxu0 %v267
    %8888 = vmatmul.mubr.bf16.gmra.mrb[0].mxu0 %v266
    %v8889 = vpop.f32.mrb[0].mxu0
    %v8890 = vadd.f32 %v8849, %v8889
    %v8891 = vpop.f32.mrb[0].mxu0
    %v8892 = vadd.f32 %v8851, %v8891
    %v8893 = vpop.f32.mrb[0].mxu0
    %v8894 = vpop.f32.mrb[0].mxu0
    %8895 = vdwg.mxu0
    %8896 = vmatprep.subr.bf16.mxu0 %v5818
    %8897 = vmatpush1.bf16.msra.mxu0 %v5817
    %8898 = vmatprep.subr.bf16.mxu0 %v5822
    %8899 = vmatpush1.bf16.msra.mxu0 %v5821
    %8900 = vmatprep.subr.bf16.mxu0 %v5826
    %8901 = vmatpush1.bf16.msra.mxu0 %v5825
    %8902 = vmatprep.subr.bf16.mxu0 %v5830
    %8903 = vmatpush1.bf16.msra.mxu0 %v5829
    %8904 = vmatprep.subr.bf16.mxu0 %v5834
    %8905 = vmatpush1.bf16.msra.mxu0 %v5833
    %8906 = vmatprep.subr.bf16.mxu0 %v5838
    %8907 = vmatpush1.bf16.msra.mxu0 %v5837
    %8908 = vmatprep.subr.bf16.mxu0 %v5842
    %8909 = vmatpush1.bf16.msra.mxu0 %v5841
    %8910 = vmatprep.subr.bf16.mxu0 %v5846
    %8911 = vmatpush1.bf16.msra.mxu0 %v5845
    %8912 = vmatprep.subr.bf16.mxu0 %v5850
    %8913 = vmatpush1.bf16.msra.mxu0 %v5849
    %8914 = vmatprep.subr.bf16.mxu0 %v5854
    %8915 = vmatpush1.bf16.msra.mxu0 %v5853
    %8916 = vmatprep.subr.bf16.mxu0 %v5858
    %8917 = vmatpush1.bf16.msra.mxu0 %v5857
    %8918 = vmatprep.subr.bf16.mxu0 %v5862
    %8919 = vmatpush1.bf16.msra.mxu0 %v5861
    %8920 = vmatprep.subr.bf16.mxu0 %v5866
    %8921 = vmatpush1.bf16.msra.mxu0 %v5865
    %8922 = vmatprep.subr.bf16.mxu0 %v5870
    %8923 = vmatpush1.bf16.msra.mxu0 %v5869
    %8924 = vmatprep.subr.bf16.mxu0 %v5874
    %8925 = vmatpush1.bf16.msra.mxu0 %v5873
    %8926 = vmatprep.subr.bf16.mxu0 %v5878
    %8927 = vmatpush1.bf16.msra.mxu0 %v5877
    %8928 = vmatprep.mubr.bf16.mxu0 %v269
    %8929 = vmatmul.mubr.bf16.gmra.mrb[0].mxu0 %v268
    %v8930 = vpop.f32.mrb[0].mxu0
    %v8931 = vadd.f32 %v8890, %v8930
    %v8932 = vpop.f32.mrb[0].mxu0
    %v8933 = vadd.f32 %v8892, %v8932
    %v8934 = vpop.f32.mrb[0].mxu0
    %v8935 = vpop.f32.mrb[0].mxu0
    %8936 = vdwg.mxu0
    %8937 = vmatprep.subr.bf16.mxu0 %v5882
    %8938 = vmatpush1.bf16.msra.mxu0 %v5881
    %8939 = vmatprep.subr.bf16.mxu0 %v5886
    %8940 = vmatpush1.bf16.msra.mxu0 %v5885
    %8941 = vmatprep.subr.bf16.mxu0 %v5890
    %8942 = vmatpush1.bf16.msra.mxu0 %v5889
    %8943 = vmatprep.subr.bf16.mxu0 %v5894
    %8944 = vmatpush1.bf16.msra.mxu0 %v5893
    %8945 = vmatprep.subr.bf16.mxu0 %v5898
    %8946 = vmatpush1.bf16.msra.mxu0 %v5897
    %8947 = vmatprep.subr.bf16.mxu0 %v5902
    %8948 = vmatpush1.bf16.msra.mxu0 %v5901
    %8949 = vmatprep.subr.bf16.mxu0 %v5906
    %8950 = vmatpush1.bf16.msra.mxu0 %v5905
    %8951 = vmatprep.subr.bf16.mxu0 %v5910
    %8952 = vmatpush1.bf16.msra.mxu0 %v5909
    %8953 = vmatprep.subr.bf16.mxu0 %v5914
    %8954 = vmatpush1.bf16.msra.mxu0 %v5913
    %8955 = vmatprep.subr.bf16.mxu0 %v5918
    %8956 = vmatpush1.bf16.msra.mxu0 %v5917
    %8957 = vmatprep.subr.bf16.mxu0 %v5922
    %8958 = vmatpush1.bf16.msra.mxu0 %v5921
    %8959 = vmatprep.subr.bf16.mxu0 %v5926
    %8960 = vmatpush1.bf16.msra.mxu0 %v5925
    %8961 = vmatprep.subr.bf16.mxu0 %v5930
    %8962 = vmatpush1.bf16.msra.mxu0 %v5929
    %8963 = vmatprep.subr.bf16.mxu0 %v5934
    %8964 = vmatpush1.bf16.msra.mxu0 %v5933
    %8965 = vmatprep.subr.bf16.mxu0 %v5938
    %8966 = vmatpush1.bf16.msra.mxu0 %v5937
    %8967 = vmatprep.subr.bf16.mxu0 %v5942
    %8968 = vmatpush1.bf16.msra.mxu0 %v5941
    %8969 = vmatprep.mubr.bf16.mxu0 %v271
    %8970 = vmatmul.mubr.bf16.gmra.mrb[0].mxu0 %v270
    %v8971 = vpop.f32.mrb[0].mxu0
    %v8972 = vadd.f32 %v8931, %v8971
    %v8973 = vpop.f32.mrb[0].mxu0
    %v8974 = vadd.f32 %v8933, %v8973
    %v8975 = vpop.f32.mrb[0].mxu0
    %v8976 = vpop.f32.mrb[0].mxu0
    %8977 = vdwg.mxu0
    %8978 = vmatprep.subr.bf16.mxu0 %v5946
    %8979 = vmatpush1.bf16.msra.mxu0 %v5945
    %8980 = vmatprep.subr.bf16.mxu0 %v5950
    %8981 = vmatpush1.bf16.msra.mxu0 %v5949
    %8982 = vmatprep.subr.bf16.mxu0 %v5954
    %8983 = vmatpush1.bf16.msra.mxu0 %v5953
    %8984 = vmatprep.subr.bf16.mxu0 %v5958
    %8985 = vmatpush1.bf16.msra.mxu0 %v5957
    %8986 = vmatprep.subr.bf16.mxu0 %v5962
    %8987 = vmatpush1.bf16.msra.mxu0 %v5961
    %8988 = vmatprep.subr.bf16.mxu0 %v5966
    %8989 = vmatpush1.bf16.msra.mxu0 %v5965
    %8990 = vmatprep.subr.bf16.mxu0 %v5970
    %8991 = vmatpush1.bf16.msra.mxu0 %v5969
    %8992 = vmatprep.subr.bf16.mxu0 %v5974
    %8993 = vmatpush1.bf16.msra.mxu0 %v5973
    %8994 = vmatprep.subr.bf16.mxu0 %v5978
    %8995 = vmatpush1.bf16.msra.mxu0 %v5977
    %8996 = vmatprep.subr.bf16.mxu0 %v5982
    %8997 = vmatpush1.bf16.msra.mxu0 %v5981
    %8998 = vmatprep.subr.bf16.mxu0 %v5986
    %8999 = vmatpush1.bf16.msra.mxu0 %v5985
    %9000 = vmatprep.subr.bf16.mxu0 %v5990
    %9001 = vmatpush1.bf16.msra.mxu0 %v5989
    %9002 = vmatprep.subr.bf16.mxu0 %v5994
    %9003 = vmatpush1.bf16.msra.mxu0 %v5993
    %9004 = vmatprep.subr.bf16.mxu0 %v5998
    %9005 = vmatpush1.bf16.msra.mxu0 %v5997
    %9006 = vmatprep.subr.bf16.mxu0 %v6002
    %9007 = vmatpush1.bf16.msra.mxu0 %v6001
    %9008 = vmatprep.subr.bf16.mxu0 %v6006
    %9009 = vmatpush1.bf16.msra.mxu0 %v6005
    %9010 = vmatprep.mubr.bf16.mxu0 %v273
    %9011 = vmatmul.mubr.bf16.gmra.mrb[0].mxu0 %v272
    %v9012 = vpop.f32.mrb[0].mxu0
    %v9013 = vadd.f32 %v8972, %v9012
    %v9014 = vpop.f32.mrb[0].mxu0
    %v9015 = vadd.f32 %v8974, %v9014
    %v9016 = vpop.f32.mrb[0].mxu0
    %v9017 = vpop.f32.mrb[0].mxu0
    %9018 = vdwg.mxu0
    %9019 = vmatprep.subr.bf16.mxu0 %v6010
    %9020 = vmatpush1.bf16.msra.mxu0 %v6009
    %9021 = vmatprep.subr.bf16.mxu0 %v6014
    %9022 = vmatpush1.bf16.msra.mxu0 %v6013
    %9023 = vmatprep.subr.bf16.mxu0 %v6018
    %9024 = vmatpush1.bf16.msra.mxu0 %v6017
    %9025 = vmatprep.subr.bf16.mxu0 %v6022
    %9026 = vmatpush1.bf16.msra.mxu0 %v6021
    %9027 = vmatprep.subr.bf16.mxu0 %v6026
    %9028 = vmatpush1.bf16.msra.mxu0 %v6025
    %9029 = vmatprep.subr.bf16.mxu0 %v6030
    %9030 = vmatpush1.bf16.msra.mxu0 %v6029
    %9031 = vmatprep.subr.bf16.mxu0 %v6034
    %9032 = vmatpush1.bf16.msra.mxu0 %v6033
    %9033 = vmatprep.subr.bf16.mxu0 %v6038
    %9034 = vmatpush1.bf16.msra.mxu0 %v6037
    %9035 = vmatprep.subr.bf16.mxu0 %v6042
    %9036 = vmatpush1.bf16.msra.mxu0 %v6041
    %9037 = vmatprep.subr.bf16.mxu0 %v6046
    %9038 = vmatpush1.bf16.msra.mxu0 %v6045
    %9039 = vmatprep.subr.bf16.mxu0 %v6050
    %9040 = vmatpush1.bf16.msra.mxu0 %v6049
    %9041 = vmatprep.subr.bf16.mxu0 %v6054
    %9042 = vmatpush1.bf16.msra.mxu0 %v6053
    %9043 = vmatprep.subr.bf16.mxu0 %v6058
    %9044 = vmatpush1.bf16.msra.mxu0 %v6057
    %9045 = vmatprep.subr.bf16.mxu0 %v6062
    %9046 = vmatpush1.bf16.msra.mxu0 %v6061
    %9047 = vmatprep.subr.bf16.mxu0 %v6066
    %9048 = vmatpush1.bf16.msra.mxu0 %v6065
    %9049 = vmatprep.subr.bf16.mxu0 %v6070
    %9050 = vmatpush1.bf16.msra.mxu0 %v6069
    %9051 = vmatprep.mubr.bf16.mxu0 %v275
    %9052 = vmatmul.mubr.bf16.gmra.mrb[0].mxu0 %v274
    %v9053 = vpop.f32.mrb[0].mxu0
    %v9054 = vadd.f32 %v9013, %v9053
    %v9055 = vpop.f32.mrb[0].mxu0
    %v9056 = vadd.f32 %v9015, %v9055
    %v9057 = vpop.f32.mrb[0].mxu0
    %v9058 = vpop.f32.mrb[0].mxu0
    %9059 = vdwg.mxu0
    %9060 = vmatprep.subr.bf16.mxu0 %v6074
    %9061 = vmatpush1.bf16.msra.mxu0 %v6073
    %9062 = vmatprep.subr.bf16.mxu0 %v6078
    %9063 = vmatpush1.bf16.msra.mxu0 %v6077
    %9064 = vmatprep.subr.bf16.mxu0 %v6082
    %9065 = vmatpush1.bf16.msra.mxu0 %v6081
    %9066 = vmatprep.subr.bf16.mxu0 %v6086
    %9067 = vmatpush1.bf16.msra.mxu0 %v6085
    %9068 = vmatprep.subr.bf16.mxu0 %v6090
    %9069 = vmatpush1.bf16.msra.mxu0 %v6089
    %9070 = vmatprep.subr.bf16.mxu0 %v6094
    %9071 = vmatpush1.bf16.msra.mxu0 %v6093
    %9072 = vmatprep.subr.bf16.mxu0 %v6098
    %9073 = vmatpush1.bf16.msra.mxu0 %v6097
    %9074 = vmatprep.subr.bf16.mxu0 %v6102
    %9075 = vmatpush1.bf16.msra.mxu0 %v6101
    %9076 = vmatprep.subr.bf16.mxu0 %v6106
    %9077 = vmatpush1.bf16.msra.mxu0 %v6105
    %9078 = vmatprep.subr.bf16.mxu0 %v6110
    %9079 = vmatpush1.bf16.msra.mxu0 %v6109
    %9080 = vmatprep.subr.bf16.mxu0 %v6114
    %9081 = vmatpush1.bf16.msra.mxu0 %v6113
    %9082 = vmatprep.subr.bf16.mxu0 %v6118
    %9083 = vmatpush1.bf16.msra.mxu0 %v6117
    %9084 = vmatprep.subr.bf16.mxu0 %v6122
    %9085 = vmatpush1.bf16.msra.mxu0 %v6121
    %9086 = vmatprep.subr.bf16.mxu0 %v6126
    %9087 = vmatpush1.bf16.msra.mxu0 %v6125
    %9088 = vmatprep.subr.bf16.mxu0 %v6130
    %9089 = vmatpush1.bf16.msra.mxu0 %v6129
    %9090 = vmatprep.subr.bf16.mxu0 %v6134
    %9091 = vmatpush1.bf16.msra.mxu0 %v6133
    %9092 = vmatprep.mubr.bf16.mxu0 %v277
    %9093 = vmatmul.mubr.bf16.gmra.mrb[0].mxu0 %v276
    %v9094 = vpop.f32.mrb[0].mxu0
    %v9095 = vadd.f32 %v9054, %v9094
    %v9096 = vpop.f32.mrb[0].mxu0
    %v9097 = vadd.f32 %v9056, %v9096
    %v9098 = vpop.f32.mrb[0].mxu0
    %v9099 = vpop.f32.mrb[0].mxu0
    %9100 = vdwg.mxu0
    %9101 = vmatprep.subr.bf16.mxu0 %v6138
    %9102 = vmatpush1.bf16.msra.mxu0 %v6137
    %9103 = vmatprep.subr.bf16.mxu0 %v6142
    %9104 = vmatpush1.bf16.msra.mxu0 %v6141
    %9105 = vmatprep.subr.bf16.mxu0 %v6146
    %9106 = vmatpush1.bf16.msra.mxu0 %v6145
    %9107 = vmatprep.subr.bf16.mxu0 %v6150
    %9108 = vmatpush1.bf16.msra.mxu0 %v6149
    %9109 = vmatprep.subr.bf16.mxu0 %v6154
    %9110 = vmatpush1.bf16.msra.mxu0 %v6153
    %9111 = vmatprep.subr.bf16.mxu0 %v6158
    %9112 = vmatpush1.bf16.msra.mxu0 %v6157
    %9113 = vmatprep.subr.bf16.mxu0 %v6162
    %9114 = vmatpush1.bf16.msra.mxu0 %v6161
    %9115 = vmatprep.subr.bf16.mxu0 %v6166
    %9116 = vmatpush1.bf16.msra.mxu0 %v6165
    %9117 = vmatprep.subr.bf16.mxu0 %v6170
    %9118 = vmatpush1.bf16.msra.mxu0 %v6169
    %9119 = vmatprep.subr.bf16.mxu0 %v6174
    %9120 = vmatpush1.bf16.msra.mxu0 %v6173
    %9121 = vmatprep.subr.bf16.mxu0 %v6178
    %9122 = vmatpush1.bf16.msra.mxu0 %v6177
    %9123 = vmatprep.subr.bf16.mxu0 %v6182
    %9124 = vmatpush1.bf16.msra.mxu0 %v6181
    %9125 = vmatprep.subr.bf16.mxu0 %v6186
    %9126 = vmatpush1.bf16.msra.mxu0 %v6185
    %9127 = vmatprep.subr.bf16.mxu0 %v6190
    %9128 = vmatpush1.bf16.msra.mxu0 %v6189
    %9129 = vmatprep.subr.bf16.mxu0 %v6194
    %9130 = vmatpush1.bf16.msra.mxu0 %v6193
    %9131 = vmatprep.subr.bf16.mxu0 %v6198
    %9132 = vmatpush1.bf16.msra.mxu0 %v6197
    %9133 = vmatprep.mubr.bf16.mxu0 %v279
    %9134 = vmatmul.mubr.bf16.gmra.mrb[0].mxu0 %v278
    %v9135 = vpop.f32.mrb[0].mxu0
    %v9136 = vadd.f32 %v9095, %v9135
    %v9137 = vpop.f32.mrb[0].mxu0
    %v9138 = vadd.f32 %v9097, %v9137
    %v9139 = vpop.f32.mrb[0].mxu0
    %v9140 = vpop.f32.mrb[0].mxu0
    %9141 = vdwg.mxu0
    %9142 = vmatprep.subr.bf16.mxu0 %v6202
    %9143 = vmatpush1.bf16.msra.mxu0 %v6201
    %9144 = vmatprep.subr.bf16.mxu0 %v6206
    %9145 = vmatpush1.bf16.msra.mxu0 %v6205
    %9146 = vmatprep.subr.bf16.mxu0 %v6210
    %9147 = vmatpush1.bf16.msra.mxu0 %v6209
    %9148 = vmatprep.subr.bf16.mxu0 %v6214
    %9149 = vmatpush1.bf16.msra.mxu0 %v6213
    %9150 = vmatprep.subr.bf16.mxu0 %v6218
    %9151 = vmatpush1.bf16.msra.mxu0 %v6217
    %9152 = vmatprep.subr.bf16.mxu0 %v6222
    %9153 = vmatpush1.bf16.msra.mxu0 %v6221
    %9154 = vmatprep.subr.bf16.mxu0 %v6226
    %9155 = vmatpush1.bf16.msra.mxu0 %v6225
    %9156 = vmatprep.subr.bf16.mxu0 %v6230
    %9157 = vmatpush1.bf16.msra.mxu0 %v6229
    %9158 = vmatprep.subr.bf16.mxu0 %v6234
    %9159 = vmatpush1.bf16.msra.mxu0 %v6233
    %9160 = vmatprep.subr.bf16.mxu0 %v6238
    %9161 = vmatpush1.bf16.msra.mxu0 %v6237
    %9162 = vmatprep.subr.bf16.mxu0 %v6242
    %9163 = vmatpush1.bf16.msra.mxu0 %v6241
    %9164 = vmatprep.subr.bf16.mxu0 %v6246
    %9165 = vmatpush1.bf16.msra.mxu0 %v6245
    %9166 = vmatprep.subr.bf16.mxu0 %v6250
    %9167 = vmatpush1.bf16.msra.mxu0 %v6249
    %9168 = vmatprep.subr.bf16.mxu0 %v6254
    %9169 = vmatpush1.bf16.msra.mxu0 %v6253
    %9170 = vmatprep.subr.bf16.mxu0 %v6258
    %9171 = vmatpush1.bf16.msra.mxu0 %v6257
    %9172 = vmatprep.subr.bf16.mxu0 %v6262
    %9173 = vmatpush1.bf16.msra.mxu0 %v6261
    %9174 = vmatprep.mubr.bf16.mxu0 %v281
    %9175 = vmatmul.mubr.bf16.gmra.mrb[0].mxu0 %v280
    %v9176 = vpop.f32.mrb[0].mxu0
    %v9177 = vadd.f32 %v9136, %v9176
    %v9178 = vpop.f32.mrb[0].mxu0
    %v9179 = vadd.f32 %v9138, %v9178
    %v9180 = vpop.f32.mrb[0].mxu0
    %v9181 = vpop.f32.mrb[0].mxu0
    %9182 = vdwg.mxu0
    %9183 = vmatprep.subr.bf16.mxu0 %v6266
    %9184 = vmatpush1.bf16.msra.mxu0 %v6265
    %9185 = vmatprep.subr.bf16.mxu0 %v6270
    %9186 = vmatpush1.bf16.msra.mxu0 %v6269
    %9187 = vmatprep.subr.bf16.mxu0 %v6274
    %9188 = vmatpush1.bf16.msra.mxu0 %v6273
    %9189 = vmatprep.subr.bf16.mxu0 %v6278
    %9190 = vmatpush1.bf16.msra.mxu0 %v6277
    %9191 = vmatprep.subr.bf16.mxu0 %v6282
    %9192 = vmatpush1.bf16.msra.mxu0 %v6281
    %9193 = vmatprep.subr.bf16.mxu0 %v6286
    %9194 = vmatpush1.bf16.msra.mxu0 %v6285
    %9195 = vmatprep.subr.bf16.mxu0 %v6290
    %9196 = vmatpush1.bf16.msra.mxu0 %v6289
    %9197 = vmatprep.subr.bf16.mxu0 %v6294
    %9198 = vmatpush1.bf16.msra.mxu0 %v6293
    %9199 = vmatprep.subr.bf16.mxu0 %v6298
    %9200 = vmatpush1.bf16.msra.mxu0 %v6297
    %9201 = vmatprep.subr.bf16.mxu0 %v6302
    %9202 = vmatpush1.bf16.msra.mxu0 %v6301
    %9203 = vmatprep.subr.bf16.mxu0 %v6306
    %9204 = vmatpush1.bf16.msra.mxu0 %v6305
    %9205 = vmatprep.subr.bf16.mxu0 %v6310
    %9206 = vmatpush1.bf16.msra.mxu0 %v6309
    %9207 = vmatprep.subr.bf16.mxu0 %v6314
    %9208 = vmatpush1.bf16.msra.mxu0 %v6313
    %9209 = vmatprep.subr.bf16.mxu0 %v6318
    %9210 = vmatpush1.bf16.msra.mxu0 %v6317
    %9211 = vmatprep.subr.bf16.mxu0 %v6322
    %9212 = vmatpush1.bf16.msra.mxu0 %v6321
    %9213 = vmatprep.subr.bf16.mxu0 %v6326
    %9214 = vmatpush1.bf16.msra.mxu0 %v6325
    %9215 = vmatprep.mubr.bf16.mxu0 %v283
    %9216 = vmatmul.mubr.bf16.gmra.mrb[0].mxu0 %v282
    %v9217 = vpop.f32.mrb[0].mxu0
    %v9218 = vadd.f32 %v9177, %v9217
    %v9219 = vpop.f32.mrb[0].mxu0
    %v9220 = vadd.f32 %v9179, %v9219
    %v9221 = vpop.f32.mrb[0].mxu0
    %v9222 = vpop.f32.mrb[0].mxu0
    %9223 = vdwg.mxu0
    %9224 = vmatprep.subr.bf16.mxu0 %v6330
    %9225 = vmatpush1.bf16.msra.mxu0 %v6329
    %9226 = vmatprep.subr.bf16.mxu0 %v6334
    %9227 = vmatpush1.bf16.msra.mxu0 %v6333
    %9228 = vmatprep.subr.bf16.mxu0 %v6338
    %9229 = vmatpush1.bf16.msra.mxu0 %v6337
    %9230 = vmatprep.subr.bf16.mxu0 %v6342
    %9231 = vmatpush1.bf16.msra.mxu0 %v6341
    %9232 = vmatprep.subr.bf16.mxu0 %v6346
    %9233 = vmatpush1.bf16.msra.mxu0 %v6345
    %9234 = vmatprep.subr.bf16.mxu0 %v6350
    %9235 = vmatpush1.bf16.msra.mxu0 %v6349
    %9236 = vmatprep.subr.bf16.mxu0 %v6354
    %9237 = vmatpush1.bf16.msra.mxu0 %v6353
    %9238 = vmatprep.subr.bf16.mxu0 %v6358
    %9239 = vmatpush1.bf16.msra.mxu0 %v6357
    %9240 = vmatprep.subr.bf16.mxu0 %v6362
    %9241 = vmatpush1.bf16.msra.mxu0 %v6361
    %9242 = vmatprep.subr.bf16.mxu0 %v6366
    %9243 = vmatpush1.bf16.msra.mxu0 %v6365
    %9244 = vmatprep.subr.bf16.mxu0 %v6370
    %9245 = vmatpush1.bf16.msra.mxu0 %v6369
    %9246 = vmatprep.subr.bf16.mxu0 %v6374
    %9247 = vmatpush1.bf16.msra.mxu0 %v6373
    %9248 = vmatprep.subr.bf16.mxu0 %v6378
    %9249 = vmatpush1.bf16.msra.mxu0 %v6377
    %9250 = vmatprep.subr.bf16.mxu0 %v6382
    %9251 = vmatpush1.bf16.msra.mxu0 %v6381
    %9252 = vmatprep.subr.bf16.mxu0 %v6386
    %9253 = vmatpush1.bf16.msra.mxu0 %v6385
    %9254 = vmatprep.subr.bf16.mxu0 %v6390
    %9255 = vmatpush1.bf16.msra.mxu0 %v6389
    %9256 = vmatprep.mubr.bf16.mxu0 %v285
    %9257 = vmatmul.mubr.bf16.gmra.mrb[0].mxu0 %v284
    %v9258 = vpop.f32.mrb[0].mxu0
    %v9259 = vadd.f32 %v9218, %v9258
    %v9260 = vpop.f32.mrb[0].mxu0
    %v9261 = vadd.f32 %v9220, %v9260
    %v9262 = vpop.f32.mrb[0].mxu0
    %v9263 = vpop.f32.mrb[0].mxu0
    %9264 = vdwg.mxu0
    %9265 = vmatprep.subr.bf16.mxu0 %v6394
    %9266 = vmatpush1.bf16.msra.mxu0 %v6393
    %9267 = vmatprep.subr.bf16.mxu0 %v6398
    %9268 = vmatpush1.bf16.msra.mxu0 %v6397
    %9269 = vmatprep.subr.bf16.mxu0 %v6402
    %9270 = vmatpush1.bf16.msra.mxu0 %v6401
    %9271 = vmatprep.subr.bf16.mxu0 %v6406
    %9272 = vmatpush1.bf16.msra.mxu0 %v6405
    %9273 = vmatprep.subr.bf16.mxu0 %v6410
    %9274 = vmatpush1.bf16.msra.mxu0 %v6409
    %9275 = vmatprep.subr.bf16.mxu0 %v6414
    %9276 = vmatpush1.bf16.msra.mxu0 %v6413
    %9277 = vmatprep.subr.bf16.mxu0 %v6418
    %9278 = vmatpush1.bf16.msra.mxu0 %v6417
    %9279 = vmatprep.subr.bf16.mxu0 %v6422
    %9280 = vmatpush1.bf16.msra.mxu0 %v6421
    %9281 = vmatprep.subr.bf16.mxu0 %v6426
    %9282 = vmatpush1.bf16.msra.mxu0 %v6425
    %9283 = vmatprep.subr.bf16.mxu0 %v6430
    %9284 = vmatpush1.bf16.msra.mxu0 %v6429
    %9285 = vmatprep.subr.bf16.mxu0 %v6434
    %9286 = vmatpush1.bf16.msra.mxu0 %v6433
    %9287 = vmatprep.subr.bf16.mxu0 %v6438
    %9288 = vmatpush1.bf16.msra.mxu0 %v6437
    %9289 = vmatprep.subr.bf16.mxu0 %v6442
    %9290 = vmatpush1.bf16.msra.mxu0 %v6441
    %9291 = vmatprep.subr.bf16.mxu0 %v6446
    %9292 = vmatpush1.bf16.msra.mxu0 %v6445
    %9293 = vmatprep.subr.bf16.mxu0 %v6450
    %9294 = vmatpush1.bf16.msra.mxu0 %v6449
    %9295 = vmatprep.subr.bf16.mxu0 %v6454
    %9296 = vmatpush1.bf16.msra.mxu0 %v6453
    %9297 = vmatprep.mubr.bf16.mxu0 %v287
    %9298 = vmatmul.mubr.bf16.gmra.mrb[0].mxu0 %v286
    %v9299 = vpop.f32.mrb[0].mxu0
    %v9300 = vadd.f32 %v9259, %v9299
    %v9301 = vpop.f32.mrb[0].mxu0
    %v9302 = vadd.f32 %v9261, %v9301
    %v9303 = vpop.f32.mrb[0].mxu0
    %v9304 = vpop.f32.mrb[0].mxu0
    %9305 = vdwg.mxu0
    %9306 = vmatprep.subr.bf16.mxu0 %v6458
    %9307 = vmatpush1.bf16.msra.mxu0 %v6457
    %9308 = vmatprep.subr.bf16.mxu0 %v6462
    %9309 = vmatpush1.bf16.msra.mxu0 %v6461
    %9310 = vmatprep.subr.bf16.mxu0 %v6466
    %9311 = vmatpush1.bf16.msra.mxu0 %v6465
    %9312 = vmatprep.subr.bf16.mxu0 %v6470
    %9313 = vmatpush1.bf16.msra.mxu0 %v6469
    %9314 = vmatprep.subr.bf16.mxu0 0
    %9315 = vmatpush1.bf16.msra.mxu0 0
    %9316 = vmatprep.subr.bf16.mxu0 0
    %9317 = vmatpush1.bf16.msra.mxu0 0
    %9318 = vmatprep.subr.bf16.mxu0 0
    %9319 = vmatpush1.bf16.msra.mxu0 0
    %9320 = vmatprep.subr.bf16.mxu0 0
    %9321 = vmatpush1.bf16.msra.mxu0 0
    %9322 = vmatprep.subr.bf16.mxu0 0
    %9323 = vmatpush1.bf16.msra.mxu0 0
    %9324 = vmatprep.subr.bf16.mxu0 0
    %9325 = vmatpush1.bf16.msra.mxu0 0
    %9326 = vmatprep.subr.bf16.mxu0 0
    %9327 = vmatpush1.bf16.msra.mxu0 0
    %9328 = vmatprep.subr.bf16.mxu0 0
    %9329 = vmatpush1.bf16.msra.mxu0 0
    %9330 = vmatprep.subr.bf16.mxu0 0
    %9331 = vmatpush1.bf16.msra.mxu0 0
    %9332 = vmatprep.subr.bf16.mxu0 0
    %9333 = vmatpush1.bf16.msra.mxu0 0
    %9334 = vmatprep.subr.bf16.mxu0 0
    %9335 = vmatpush1.bf16.msra.mxu0 0
    %9336 = vmatprep.subr.bf16.mxu0 0
    %9337 = vmatpush1.bf16.msra.mxu0 0
    %9338 = vmatprep.mubr.bf16.mxu0 0
    %9339 = vmatmul.mubr.bf16.gmra.mrb[0].mxu0 %v7705
    %v9340 = vpop.f32.mrb[0].mxu0
    %v9341 = vadd.f32 %v9300, %v9340
    %v9342 = vpop.f32.mrb[0].mxu0
    %v9343 = vadd.f32 %v9302, %v9342
    %v9344 = vpop.f32.mrb[0].mxu0
    %v9345 = vpop.f32.mrb[0].mxu0
    %9346 = vdwg.mxu0
    %v9347 = vpack.c.bf16 %v8521, %v8521
    %v9348 = vpack.c.bf16 %v8523, %v8523
    %v9349 = vpack.c.bf16 %v9341, %v9341
    %v9350 = vpack.c.bf16 %v9343, %v9343
    %v9351 = vld [vmem:[%s3] sm:$0xf]
    %v9352 = vld [vmem:[%s3 + $0x4] sm:$0xf]
    %v9353 = vld [vmem:[%s3 + $0x8] sm:$0xf]
    %v9354 = vld [vmem:[%s3 + $0xc] sm:$0xf]
    %v9355 = vld [vmem:[%s3 + $0x10] sm:$0xf]
    %v9356 = vld [vmem:[%s3 + $0x14] sm:$0xf]
    %v9357 = vld [vmem:[%s3 + $0x18] sm:$0xf]
    %v9358 = vld [vmem:[%s3 + $0x1c] sm:$0xf]
    %v9359 = vld [vmem:[%s3 + $0x20] sm:$0xf]
    %v9360 = vld [vmem:[%s3 + $0x24] sm:$0xf]
    %v9361 = vld [vmem:[%s3 + $0x28] sm:$0xf]
    %v9362 = vld [vmem:[%s3 + $0x2c] sm:$0xf]
    %v9363 = vld [vmem:[%s3 + $0x30] sm:$0xf]
    %v9364 = vld [vmem:[%s3 + $0x34] sm:$0xf]
    %v9365 = vld [vmem:[%s3 + $0x38] sm:$0xf]
    %v9366 = vld [vmem:[%s3 + $0x3c] sm:$0xf]
    %v9367 = vld [vmem:[%s3 + $0x40] sm:$0xf]
    %v9368 = vld [vmem:[%s3 + $0x44] sm:$0xf]
    %v9369 = vld [vmem:[%s3 + $0x48] sm:$0xf]
    %v9370 = vld [vmem:[%s3 + $0x4c] sm:$0xf]
    %v9371 = vld [vmem:[%s3 + $0x50] sm:$0xf]
    %v9372 = vld [vmem:[%s3 + $0x54] sm:$0xf]
    %v9373 = vld [vmem:[%s3 + $0x58] sm:$0xf]
    %v9374 = vld [vmem:[%s3 + $0x5c] sm:$0xf]
    %v9375 = vld [vmem:[%s3 + $0x60] sm:$0xf]
    %v9376 = vld [vmem:[%s3 + $0x64] sm:$0xf]
    %v9377 = vld [vmem:[%s3 + $0x68] sm:$0xf]
    %v9378 = vld [vmem:[%s3 + $0x6c] sm:$0xf]
    %v9379 = vld [vmem:[%s3 + $0x70] sm:$0xf]
    %v9380 = vld [vmem:[%s3 + $0x74] sm:$0xf]
    %v9381 = vld [vmem:[%s3 + $0x78] sm:$0xf]
    %v9382 = vld [vmem:[%s3 + $0x7c] sm:$0xf]
    %v9383 = vld [vmem:[%s3 + $0x80] sm:$0xf]
    %v9384 = vld [vmem:[%s3 + $0x84] sm:$0xf]
    %v9385 = vld [vmem:[%s3 + $0x88] sm:$0xf]
    %v9386 = vld [vmem:[%s3 + $0x8c] sm:$0xf]
    %v9387 = vld [vmem:[%s3 + $0x90] sm:$0xf]
    %v9388 = vld [vmem:[%s3 + $0x94] sm:$0xf]
    %v9389 = vld [vmem:[%s3 + $0x98] sm:$0xf]
    %v9390 = vld [vmem:[%s3 + $0x9c] sm:$0xf]
    %v9391 = vld [vmem:[%s3 + $0xa0] sm:$0xf]
    %v9392 = vld [vmem:[%s3 + $0xa4] sm:$0xf]
    %v9393 = vld [vmem:[%s3 + $0xa8] sm:$0xf]
    %v9394 = vld [vmem:[%s3 + $0xac] sm:$0xf]
    %v9395 = vld [vmem:[%s3 + $0xb0] sm:$0xf]
    %v9396 = vld [vmem:[%s3 + $0xb4] sm:$0xf]
    %v9397 = vld [vmem:[%s3 + $0xb8] sm:$0xf]
    %v9398 = vld [vmem:[%s3 + $0xbc] sm:$0xf]
    %v9399 = vld [vmem:[%s3 + $0xc0] sm:$0xf]
    %v9400 = vld [vmem:[%s3 + $0xc4] sm:$0xf]
    %v9401 = vld [vmem:[%s3 + $0xc8] sm:$0xf]
    %v9402 = vld [vmem:[%s3 + $0xcc] sm:$0xf]
    %v9403 = vld [vmem:[%s3 + $0xd0] sm:$0xf]
    %v9404 = vld [vmem:[%s3 + $0xd4] sm:$0xf]
    %v9405 = vld [vmem:[%s3 + $0xd8] sm:$0xf]
    %v9406 = vld [vmem:[%s3 + $0xdc] sm:$0xf]
    %v9407 = vld [vmem:[%s3 + $0xe0] sm:$0xf]
    %v9408 = vld [vmem:[%s3 + $0xe4] sm:$0xf]
    %v9409 = vld [vmem:[%s3 + $0xe8] sm:$0xf]
    %v9410 = vld [vmem:[%s3 + $0xec] sm:$0xf]
    %v9411 = vld [vmem:[%s3 + $0xf0] sm:$0xf]
    %v9412 = vld [vmem:[%s3 + $0xf4] sm:$0xf]
    %v9413 = vld [vmem:[%s3 + $0xf8] sm:$0xf]
    %v9414 = vld [vmem:[%s3 + $0xfc] sm:$0xf]
    %v9415 = vld [vmem:[%s4] sm:$0x1]
    %v9417 = vlaneseq
    %v9418 = vshrl.u32 %v9417, 7
    %v9419 = vsub.s32 0, %v9418
    %v9420 = vrot.slane %v9415, %v9419
    %v9486 = vunpack.c.l.b16 %v9351
    %v9487 = vunpack.c.l.b16 %v9352
    %v9488 = vunpack.c.l.b16 %v9353
    %v9489 = vunpack.c.l.b16 %v9354
    %v9490 = vunpack.c.l.b16 %v9355
    %v9491 = vunpack.c.l.b16 %v9356
    %v9492 = vunpack.c.l.b16 %v9357
    %v9493 = vunpack.c.l.b16 %v9358
    %v9494 = vunpack.c.l.b16 %v9359
    %v9495 = vunpack.c.l.b16 %v9360
    %v9496 = vunpack.c.l.b16 %v9361
    %v9497 = vunpack.c.l.b16 %v9362
    %v9498 = vunpack.c.l.b16 %v9363
    %v9499 = vunpack.c.l.b16 %v9364
    %v9500 = vunpack.c.l.b16 %v9365
    %v9501 = vunpack.c.l.b16 %v9366
    %v9502 = vunpack.c.l.b16 %v9367
    %v9503 = vunpack.c.l.b16 %v9368
    %v9504 = vunpack.c.l.b16 %v9369
    %v9505 = vunpack.c.l.b16 %v9370
    %v9506 = vunpack.c.l.b16 %v9371
    %v9507 = vunpack.c.l.b16 %v9372
    %v9508 = vunpack.c.l.b16 %v9373
    %v9509 = vunpack.c.l.b16 %v9374
    %v9510 = vunpack.c.l.b16 %v9375
    %v9511 = vunpack.c.l.b16 %v9376
    %v9512 = vunpack.c.l.b16 %v9377
    %v9513 = vunpack.c.l.b16 %v9378
    %v9514 = vunpack.c.l.b16 %v9379
    %v9515 = vunpack.c.l.b16 %v9380
    %v9516 = vunpack.c.l.b16 %v9381
    %v9517 = vunpack.c.l.b16 %v9382
    %v9518 = vunpack.c.l.b16 %v9383
    %v9519 = vunpack.c.l.b16 %v9384
    %v9520 = vunpack.c.l.b16 %v9385
    %v9521 = vunpack.c.l.b16 %v9386
    %v9522 = vunpack.c.l.b16 %v9387
    %v9523 = vunpack.c.l.b16 %v9388
    %v9524 = vunpack.c.l.b16 %v9389
    %v9525 = vunpack.c.l.b16 %v9390
    %v9526 = vunpack.c.l.b16 %v9391
    %v9527 = vunpack.c.l.b16 %v9392
    %v9528 = vunpack.c.l.b16 %v9393
    %v9529 = vunpack.c.l.b16 %v9394
    %v9530 = vunpack.c.l.b16 %v9395
    %v9531 = vunpack.c.l.b16 %v9396
    %v9532 = vunpack.c.l.b16 %v9397
    %v9533 = vunpack.c.l.b16 %v9398
    %v9534 = vunpack.c.l.b16 %v9399
    %v9535 = vunpack.c.l.b16 %v9400
    %v9536 = vunpack.c.l.b16 %v9401
    %v9537 = vunpack.c.l.b16 %v9402
    %v9538 = vunpack.c.l.b16 %v9403
    %v9539 = vunpack.c.l.b16 %v9404
    %v9540 = vunpack.c.l.b16 %v9405
    %v9541 = vunpack.c.l.b16 %v9406
    %v9542 = vunpack.c.l.b16 %v9407
    %v9543 = vunpack.c.l.b16 %v9408
    %v9544 = vunpack.c.l.b16 %v9409
    %v9545 = vunpack.c.l.b16 %v9410
    %v9546 = vunpack.c.l.b16 %v9411
    %v9547 = vunpack.c.l.b16 %v9412
    %v9548 = vunpack.c.l.b16 %v9413
    %v9549 = vunpack.c.l.b16 %v9414
    %v9550 = vpack.c.b16 %v9487, %v9486
    %v9551 = vpack.c.b16 %v9489, %v9488
    %v9552 = vpack.c.b16 %v9491, %v9490
    %v9553 = vpack.c.b16 %v9493, %v9492
    %v9554 = vpack.c.b16 %v9495, %v9494
    %v9555 = vpack.c.b16 %v9497, %v9496
    %v9556 = vpack.c.b16 %v9499, %v9498
    %v9557 = vpack.c.b16 %v9501, %v9500
    %v9558 = vpack.c.b16 %v9503, %v9502
    %v9559 = vpack.c.b16 %v9505, %v9504
    %v9560 = vpack.c.b16 %v9507, %v9506
    %v9561 = vpack.c.b16 %v9509, %v9508
    %v9562 = vpack.c.b16 %v9511, %v9510
    %v9563 = vpack.c.b16 %v9513, %v9512
    %v9564 = vpack.c.b16 %v9515, %v9514
    %v9565 = vpack.c.b16 %v9517, %v9516
    %v9566 = vpack.c.b16 %v9519, %v9518
    %v9567 = vpack.c.b16 %v9521, %v9520
    %v9568 = vpack.c.b16 %v9523, %v9522
    %v9569 = vpack.c.b16 %v9525, %v9524
    %v9570 = vpack.c.b16 %v9527, %v9526
    %v9571 = vpack.c.b16 %v9529, %v9528
    %v9572 = vpack.c.b16 %v9531, %v9530
    %v9573 = vpack.c.b16 %v9533, %v9532
    %v9574 = vpack.c.b16 %v9535, %v9534
    %v9575 = vpack.c.b16 %v9537, %v9536
    %v9576 = vpack.c.b16 %v9539, %v9538
    %v9577 = vpack.c.b16 %v9541, %v9540
    %v9578 = vpack.c.b16 %v9543, %v9542
    %v9579 = vpack.c.b16 %v9545, %v9544
    %v9580 = vpack.c.b16 %v9547, %v9546
    %v9581 = vpack.c.b16 %v9549, %v9548
    %9614 = vmatprep.subr.bf16.mxu0 0
    %9615 = vmatpush1.bf16.msra.mxu0 %v9550
    %9616 = vmatprep.subr.bf16.mxu0 0
    %9617 = vmatpush1.bf16.msra.mxu0 %v9551
    %9618 = vmatprep.subr.bf16.mxu0 0
    %9619 = vmatpush1.bf16.msra.mxu0 %v9552
    %9620 = vmatprep.subr.bf16.mxu0 0
    %9621 = vmatpush1.bf16.msra.mxu0 %v9553
    %9622 = vmatprep.subr.bf16.mxu0 0
    %9623 = vmatpush1.bf16.msra.mxu0 %v9554
    %9624 = vmatprep.subr.bf16.mxu0 0
    %9625 = vmatpush1.bf16.msra.mxu0 %v9555
    %9626 = vmatprep.subr.bf16.mxu0 0
    %9627 = vmatpush1.bf16.msra.mxu0 %v9556
    %9628 = vmatprep.subr.bf16.mxu0 0
    %9629 = vmatpush1.bf16.msra.mxu0 %v9557
    %9630 = vmatprep.subr.bf16.mxu0 0
    %9631 = vmatpush1.bf16.msra.mxu0 %v9558
    %9632 = vmatprep.subr.bf16.mxu0 0
    %9633 = vmatpush1.bf16.msra.mxu0 %v9559
    %9634 = vmatprep.subr.bf16.mxu0 0
    %9635 = vmatpush1.bf16.msra.mxu0 %v9560
    %9636 = vmatprep.subr.bf16.mxu0 0
    %9637 = vmatpush1.bf16.msra.mxu0 %v9561
    %9638 = vmatprep.subr.bf16.mxu0 0
    %9639 = vmatpush1.bf16.msra.mxu0 %v9562
    %9640 = vmatprep.subr.bf16.mxu0 0
    %9641 = vmatpush1.bf16.msra.mxu0 %v9563
    %9642 = vmatprep.subr.bf16.mxu0 0
    %9643 = vmatpush1.bf16.msra.mxu0 %v9564
    %9644 = vmatprep.subr.bf16.mxu0 0
    %9645 = vmatpush1.bf16.msra.mxu0 %v9565
    %9646 = vmatprep.mubr.bf16.mxu0 %v9348
    %9647 = vmatmul.mubr.bf16.gmra.mrb[0].mxu0 %v9347
    %v9648 = vpop.f32.mrb[0].mxu0
    %v9649 = vadd.f32 %v9420, %v9648
    %v9650 = vpop.f32.mrb[0].mxu0
    %v9651 = vpop.f32.mrb[0].mxu0
    %v9652 = vpop.f32.mrb[0].mxu0
    %9653 = vdwg.mxu0
    %9654 = vmatprep.subr.bf16.mxu0 0
    %9655 = vmatpush1.bf16.msra.mxu0 %v9566
    %9656 = vmatprep.subr.bf16.mxu0 0
    %9657 = vmatpush1.bf16.msra.mxu0 %v9567
    %9658 = vmatprep.subr.bf16.mxu0 0
    %9659 = vmatpush1.bf16.msra.mxu0 %v9568
    %9660 = vmatprep.subr.bf16.mxu0 0
    %9661 = vmatpush1.bf16.msra.mxu0 %v9569
    %9662 = vmatprep.subr.bf16.mxu0 0
    %9663 = vmatpush1.bf16.msra.mxu0 %v9570
    %9664 = vmatprep.subr.bf16.mxu0 0
    %9665 = vmatpush1.bf16.msra.mxu0 %v9571
    %9666 = vmatprep.subr.bf16.mxu0 0
    %9667 = vmatpush1.bf16.msra.mxu0 %v9572
    %9668 = vmatprep.subr.bf16.mxu0 0
    %9669 = vmatpush1.bf16.msra.mxu0 %v9573
    %9670 = vmatprep.subr.bf16.mxu0 0
    %9671 = vmatpush1.bf16.msra.mxu0 %v9574
    %9672 = vmatprep.subr.bf16.mxu0 0
    %9673 = vmatpush1.bf16.msra.mxu0 %v9575
    %9674 = vmatprep.subr.bf16.mxu0 0
    %9675 = vmatpush1.bf16.msra.mxu0 %v9576
    %9676 = vmatprep.subr.bf16.mxu0 0
    %9677 = vmatpush1.bf16.msra.mxu0 %v9577
    %9678 = vmatprep.subr.bf16.mxu0 0
    %9679 = vmatpush1.bf16.msra.mxu0 %v9578
    %9680 = vmatprep.subr.bf16.mxu0 0
    %9681 = vmatpush1.bf16.msra.mxu0 %v9579
    %9682 = vmatprep.subr.bf16.mxu0 0
    %9683 = vmatpush1.bf16.msra.mxu0 %v9580
    %9684 = vmatprep.subr.bf16.mxu0 0
    %9685 = vmatpush1.bf16.msra.mxu0 %v9581
    %9686 = vmatprep.mubr.bf16.mxu0 %v9350
    %9687 = vmatmul.mubr.bf16.gmra.mrb[0].mxu0 %v9349
    %v9688 = vpop.f32.mrb[0].mxu0
    %v9689 = vadd.f32 %v9649, %v9688
    %v9690 = vpop.f32.mrb[0].mxu0
    %v9691 = vpop.f32.mrb[0].mxu0
    %v9692 = vpop.f32.mrb[0].mxu0
    %9693 = vdwg.mxu0
    %vm9694 = vcmask 41984
    %9695 = vst.msk [vmem:[#allocation2] sm:$0x3] %vm9694, %v9689
    // Predicated region
    $region22: #{cnn_forward.5} parent=1 // pred_check
      _
    $region23: #{cnn_forward.5} parent=1 // pred_check_branch
      %9697 = sbr.rel (0) target = $region25
    $region24: #{cnn_forward.5} parent=1 // pred_region
      %s9699 = ssub.s32 32, 32
      %9700 = vsyncadd [#allocation3], %s9699
      %s9702 = sshll.u32 [#allocation2], 4
      %s9703 = int_to_ptr.vmem [resolvable:$true] %s9702
      %9705 = dma.vmem_to_hbm [thread:$0]  %s9703, 32, %s5, [#allocation3]
    $region25: #{cnn_forward.5} parent=1 // pred_fallthru
      _
    // Predicated region
    $region26: #{cnn_forward.5} parent=1 // pred_check
      _
    $region27: #{cnn_forward.5} parent=1 // pred_check_branch
      %9707 = sbr.rel (0) target = $region29
    $region28: #{cnn_forward.5} parent=1 // pred_region
      %9708 = dma.done [#allocation3], 32
    $region29: #{cnn_forward.5} parent=1 // pred_fallthru
      _
    %9709 = vsyncpa [#allocation3], 1

</llo_original>
